<compile_context>
chip_gen: v7x
topology: tpu7x:2x2x1
jax: 0.10.0
libtpu: 0.0.40
codegen_flags: <defaults>
</compile_context>

<pallas_src>
import functools
import math

import jax
import jax.numpy as jnp
import numpy as np
from jax.experimental import pallas as pl
from jax.experimental.pallas import tpu as pltpu


# ----------------------------------------------------------------------------
# In-kernel helpers (values already resident in vregs)
# ----------------------------------------------------------------------------

def _ln(x, g, b, eps=1e-6):
    mu = jnp.mean(x, axis=-1, keepdims=True)
    var = jnp.mean((x - mu) ** 2, axis=-1, keepdims=True)
    return (x - mu) * jax.lax.rsqrt(var + eps) * g + b


def _dot(a_f32, w_bf16):
    # bf16 MXU operands, f32 accumulation (weights are stored in bf16).
    return jnp.dot(a_f32.astype(jnp.bfloat16), w_bf16,
                   preferred_element_type=jnp.float32)


def _mha(q3, k3, v3, bias, wo, bo, n_heads):
    """Multi-head scaled-dot-product attention + single fused output projection.

    q3: (B, Sq, D) f32    k3, v3: (B, Sk, D) f32
    bias: (B, Sq, Sk) additive mask (0 = attend, -1e9 = masked), built once.
    wo: (D, D) bf16       bo: (1, D) f32        returns (B, Sq, D) f32
    """
    B, Sq, D = q3.shape
    Dh = D // n_heads
    q3 = (q3 * (1.0 / math.sqrt(Dh))).astype(jnp.bfloat16)
    k3 = k3.astype(jnp.bfloat16)
    v3 = v3.astype(jnp.bfloat16)
    ctx = []
    for h in range(n_heads):                       # small static unroll
        lo, hi = h * Dh, (h + 1) * Dh
        s = jnp.einsum("bqd,bkd->bqk", q3[:, :, lo:hi], k3[:, :, lo:hi],
                       preferred_element_type=jnp.float32) + bias
        m = jnp.max(s, axis=-1, keepdims=True)
        e = jnp.exp(s - m)
        p = e * pl.reciprocal(jnp.sum(e, axis=-1, keepdims=True), approx=True)
        ctx.append(jnp.einsum("bqk,bkd->bqd", p.astype(jnp.bfloat16),
                              v3[:, :, lo:hi],
                              preferred_element_type=jnp.float32))
    # One K=D output projection instead of n_heads K=Dh projections.
    ctx = jnp.concatenate(ctx, axis=-1).reshape(B * Sq, D)
    out = _dot(ctx, wo) + bo
    return out.reshape(B, Sq, D)


# ----------------------------------------------------------------------------
# Fused Pallas kernels (one launch per stack)
# ----------------------------------------------------------------------------

def _encoder_stack_kernel(x_ref, pad_ref,
                          ln1_g, ln1_b, wqkv, bqkv, wo, bo,
                          ln2_g, ln2_b, w1, b1, w2, b2,
                          lnf_g, lnf_b,
                          o_ref, *, n_heads):
    l = pl.program_id(0)
    nl = pl.num_programs(0)

    @pl.when(l == 0)
    def _():
        o_ref[...] = x_ref[...]            # seed the resident accumulator

    x = o_ref[...]                         # (B, S, D) f32, persists across layers
    B, S, D = x.shape

    # Additive attention bias from the (B, S) key-pad mask, built in-kernel.
    bias = jnp.broadcast_to(((pad_ref[...] - 1.0) * 1e9)[:, None, :], (B, S, S))

    # --- self-attention sublayer (pre-LN, residual) ---
    y = _ln(x, ln1_g[...], ln1_b[...])
    qkv = (_dot(y.reshape(B * S, D), wqkv[...]) + bqkv[...]).reshape(B, S, 3 * D)
    x = x + _mha(qkv[:, :, :D], qkv[:, :, D:2 * D], qkv[:, :, 2 * D:],
                 bias, wo[...], bo[...], n_heads)

    # --- feed-forward sublayer (pre-LN, residual) ---
    y = _ln(x, ln2_g[...], ln2_b[...]).reshape(B * S, D)
    h = jnp.maximum(_dot(y, w1[...]) + b1[...], 0.0)
    x = x + (_dot(h, w2[...]) + b2[...]).reshape(B, S, D)

    @pl.when(l < nl - 1)
    def _():
        o_ref[...] = x

    @pl.when(l == nl - 1)                  # final encoder LayerNorm fused here
    def _():
        o_ref[...] = _ln(x, lnf_g[...], lnf_b[...])


def _decoder_stack_kernel(x_ref, mem_ref, tmask_ref, spad_ref,
                          ln1_g, ln1_b, wqkv, bqkv, wo_s, bo_s,
                          ln2_g, ln2_b, wq, bq, wkv, bkv, wo_c, bo_c,
                          ln3_g, ln3_b, w1, b1, w2, b2,
                          lnf_g, lnf_b, gen_w, gen_b,
                          o_ref, x_acc, *, n_heads):
    l = pl.program_id(0)
    nl = pl.num_programs(0)

    @pl.when(l == 0)
    def _():
        x_acc[...] = x_ref[...]

    x = x_acc[...]                         # (B, St, D) f32
    mem = mem_ref[...]                     # (B, Ss, D) f32
    B, St, D = x.shape
    Ss = mem.shape[1]

    # Additive biases, built once per layer (no per-head compare/select).
    self_bias = (tmask_ref[...] - 1.0) * 1e9                                  # (B, St, St)
    cross_bias = jnp.broadcast_to(((spad_ref[...] - 1.0) * 1e9)[:, None, :],
                                  (B, St, Ss))

    # --- masked self-attention ---
    y = _ln(x, ln1_g[...], ln1_b[...])
    qkv = (_dot(y.reshape(B * St, D), wqkv[...]) + bqkv[...]).reshape(B, St, 3 * D)
    x = x + _mha(qkv[:, :, :D], qkv[:, :, D:2 * D], qkv[:, :, 2 * D:],
                 self_bias, wo_s[...], bo_s[...], n_heads)

    # --- cross-attention over encoder memory ---
    y = _ln(x, ln2_g[...], ln2_b[...])
    q = (_dot(y.reshape(B * St, D), wq[...]) + bq[...]).reshape(B, St, D)
    kv = (_dot(mem.reshape(B * Ss, D), wkv[...]) + bkv[...]).reshape(B, Ss, 2 * D)
    x = x + _mha(q, kv[:, :, :D], kv[:, :, D:],
                 cross_bias, wo_c[...], bo_c[...], n_heads)

    # --- feed-forward ---
    y = _ln(x, ln3_g[...], ln3_b[...]).reshape(B * St, D)
    h = jnp.maximum(_dot(y, w1[...]) + b1[...], 0.0)
    x = x + (_dot(h, w2[...]) + b2[...]).reshape(B, St, D)

    x_acc[...] = x

    # --- final LN + Generator (Linear -> log_softmax), fused on last layer ---
    @pl.when(l == nl - 1)
    def _():
        y = _ln(x, lnf_g[...], lnf_b[...]).reshape(B * St, D)
        logits = _dot(y, gen_w[...]) + gen_b[...]
        m = jnp.max(logits, axis=-1, keepdims=True)
        s = logits - m
        lse = jnp.log(jnp.sum(jnp.exp(s), axis=-1, keepdims=True))
        V = logits.shape[-1]
        o_ref[...] = (s - lse).reshape(B, St, V)


# ----------------------------------------------------------------------------
# BlockSpec helpers & pallas_call wrappers
# ----------------------------------------------------------------------------

ENC_STACKED = ["ln1_g", "ln1_b", "wqkv", "bqkv", "wo", "bo",
               "ln2_g", "ln2_b", "w1", "b1", "w2", "b2"]
DEC_STACKED = ["ln1_g", "ln1_b", "wqkv", "bqkv", "wo_s", "bo_s",
               "ln2_g", "ln2_b", "wq", "bq", "wkv", "bkv", "wo_c", "bo_c",
               "ln3_g", "ln3_b", "w1", "b1", "w2", "b2"]


def _const_spec(a):
    nd = a.ndim
    return pl.BlockSpec(a.shape, lambda l, _nd=nd: (0,) * _nd)


def _stack_spec(a):
    # Leading (layer) axis is squeezed out; the kernel sees one layer's weight.
    nd = a.ndim
    return pl.BlockSpec((None,) + a.shape[1:],
                        lambda l, _nd=nd: (l,) + (0,) * (_nd - 1))


def encode(params, source, source_mask, cfg):
    enc = params["encoder"]
    x = embed(source, params["src_emb"], params["pe"], cfg["d_model"])
    B, S, D = x.shape
    stacked = [enc[k] for k in ENC_STACKED]
    consts = [enc["lnf_g"], enc["lnf_b"]]
    pad = source_mask.astype(jnp.float32)
    return pl.pallas_call(
        functools.partial(_encoder_stack_kernel, n_heads=cfg["h"]),
        grid=(cfg["N_enc"],),
        in_specs=([_const_spec(x), _const_spec(pad)]
                  + [_stack_spec(a) for a in stacked]
                  + [_const_spec(a) for a in consts]),
        out_specs=pl.BlockSpec((B, S, D), lambda l: (0, 0, 0)),
        out_shape=jax.ShapeDtypeStruct((B, S, D), jnp.float32),
        compiler_params=pltpu.CompilerParams(
            dimension_semantics=("arbitrary",)),
    )(x, pad, *stacked, *consts)


def decode_and_generate(params, mem, source_mask, target, target_mask, cfg):
    dec = params["decoder"]
    x = embed(target, params["tgt_emb"], params["pe"], cfg["d_model"])
    B, St, D = x.shape
    V = params["gen_w"].shape[1]
    stacked = [dec[k] for k in DEC_STACKED]
    consts = [dec["lnf_g"], dec["lnf_b"], params["gen_w"], params["gen_b"]]
    spad = source_mask.astype(jnp.float32)
    tmask = target_mask.astype(jnp.float32)
    return pl.pallas_call(
        functools.partial(_decoder_stack_kernel, n_heads=cfg["h"]),
        grid=(cfg["N_dec"],),
        in_specs=([_const_spec(x), _const_spec(mem),
                   _const_spec(tmask), _const_spec(spad)]
                  + [_stack_spec(a) for a in stacked]
                  + [_const_spec(a) for a in consts]),
        out_specs=pl.BlockSpec((B, St, V), lambda l: (0, 0, 0)),
        out_shape=jax.ShapeDtypeStruct((B, St, V), jnp.float32),
        scratch_shapes=[pltpu.VMEM((B, St, D), jnp.float32)],
        compiler_params=pltpu.CompilerParams(
            dimension_semantics=("arbitrary",)),
    )(x, mem, tmask, spad, *stacked, *consts)


def encoder_decoder_forward(params, source, source_mask, target, target_mask, cfg):
    mem = encode(params, source, source_mask, cfg)
    return decode_and_generate(params, mem, source_mask, target, target_mask, cfg)


# ----------------------------------------------------------------------------
# Model glue (plain JAX around the fused kernels)
# ----------------------------------------------------------------------------

def positional_encoding(max_len, d_model):
    pos = jnp.arange(max_len, dtype=jnp.float32)[:, None]
    div = jnp.exp(jnp.arange(0, d_model, 2, dtype=jnp.float32)
                  * (-math.log(10000.0) / d_model))
    pe = jnp.zeros((max_len, d_model), jnp.float32)
    pe = pe.at[:, 0::2].set(jnp.sin(pos * div))
    pe = pe.at[:, 1::2].set(jnp.cos(pos * div))
    return pe


def embed(tokens, emb_table, pe, d_model):
    x = jnp.take(emb_table, tokens, axis=0) * math.sqrt(d_model)
    return x + pe[: tokens.shape[1]][None, :, :]


# ----------------------------------------------------------------------------
# Deterministic parameter construction (matmul weights stored in bf16)
# ----------------------------------------------------------------------------

def xavier(key, shape):
    lim = math.sqrt(6.0 / (shape[0] + shape[1]))
    return jax.random.uniform(key, shape, jnp.float32, -lim, lim)


def _ones(d):
    return jnp.ones((1, d), jnp.float32)


def _zeros(d):
    return jnp.zeros((1, d), jnp.float32)


def make_encoder_params(key, N, d, d_ff):
    def one(k):
        ks = jax.random.split(k, 6)
        wqkv = jnp.concatenate([xavier(ks[0], (d, d)), xavier(ks[1], (d, d)),
                                xavier(ks[2], (d, d))], axis=1)   # fused QKV (D, 3D)
        return {"ln1_g": _ones(d), "ln1_b": _zeros(d),
                "wqkv": wqkv.astype(jnp.bfloat16), "bqkv": _zeros(3 * d),
                "wo": xavier(ks[3], (d, d)).astype(jnp.bfloat16), "bo": _zeros(d),
                "ln2_g": _ones(d), "ln2_b": _zeros(d),
                "w1": xavier(ks[4], (d, d_ff)).astype(jnp.bfloat16), "b1": _zeros(d_ff),
                "w2": xavier(ks[5], (d_ff, d)).astype(jnp.bfloat16), "b2": _zeros(d)}
    layers = [one(k) for k in jax.random.split(key, N)]
    stacked = {name: jnp.stack([lay[name] for lay in layers]) for name in ENC_STACKED}
    stacked["lnf_g"] = _ones(d)
    stacked["lnf_b"] = _zeros(d)
    return stacked


def make_decoder_params(key, N, d, d_ff):
    def one(k):
        ks = jax.random.split(k, 10)
        wqkv = jnp.concatenate([xavier(ks[0], (d, d)), xavier(ks[1], (d, d)),
                                xavier(ks[2], (d, d))], axis=1)   # fused QKV (D, 3D)
        wkv = jnp.concatenate([xavier(ks[5], (d, d)),
                               xavier(ks[6], (d, d))], axis=1)    # fused KV (D, 2D)
        return {"ln1_g": _ones(d), "ln1_b": _zeros(d),
                "wqkv": wqkv.astype(jnp.bfloat16), "bqkv": _zeros(3 * d),
                "wo_s": xavier(ks[3], (d, d)).astype(jnp.bfloat16), "bo_s": _zeros(d),
                "ln2_g": _ones(d), "ln2_b": _zeros(d),
                "wq": xavier(ks[4], (d, d)).astype(jnp.bfloat16), "bq": _zeros(d),
                "wkv": wkv.astype(jnp.bfloat16), "bkv": _zeros(2 * d),
                "wo_c": xavier(ks[7], (d, d)).astype(jnp.bfloat16), "bo_c": _zeros(d),
                "ln3_g": _ones(d), "ln3_b": _zeros(d),
                "w1": xavier(ks[8], (d, d_ff)).astype(jnp.bfloat16), "b1": _zeros(d_ff),
                "w2": xavier(ks[9], (d_ff, d)).astype(jnp.bfloat16), "b2": _zeros(d)}
    layers = [one(k) for k in jax.random.split(key, N)]
    stacked = {name: jnp.stack([lay[name] for lay in layers]) for name in DEC_STACKED}
    stacked["lnf_g"] = _ones(d)
    stacked["lnf_b"] = _zeros(d)
    return stacked


def make_params(cfg, key):
    d, d_ff = cfg["d_model"], cfg["d_ff"]
    keys = jax.random.split(key, 5)
    return {
        "pe": positional_encoding(cfg["max_len"], d),
        "src_emb": 0.02 * jax.random.normal(keys[0], (cfg["src_vocab"], d), jnp.float32),
        "tgt_emb": 0.02 * jax.random.normal(keys[1], (cfg["vocab"], d), jnp.float32),
        "encoder": make_encoder_params(keys[2], cfg["N_enc"], d, d_ff),
        "decoder": make_decoder_params(keys[3], cfg["N_dec"], d, d_ff),
        "gen_w": xavier(keys[4], (d, cfg["vocab"])).astype(jnp.bfloat16),
        "gen_b": jnp.zeros((1, cfg["vocab"]), jnp.float32),
    }


# ----------------------------------------------------------------------------
# Main
# ----------------------------------------------------------------------------

if __name__ == "__main__":
    cfg = {"vocab": 128, "src_vocab": 96, "h": 4, "d_model": 32,
           "N_enc": 2, "N_dec": 2, "d_ff": 64, "max_len": 22}
    B, S_src, S_tgt = 2, 8, 8

    params = make_params(cfg, jax.random.PRNGKey(42))

    key = jax.random.PRNGKey(0)
    k1, k2 = jax.random.split(key)
    source = jax.random.randint(k1, (B, S_src), 0, cfg["src_vocab"], dtype=jnp.int32)
    target = jax.random.randint(k2, (B, S_tgt), 0, cfg["vocab"], dtype=jnp.int32)
    source_mask = jnp.ones((B, S_src), jnp.float32)                        # key pad mask
    causal = jnp.tril(jnp.ones((S_tgt, S_tgt), jnp.float32))
    target_mask = jnp.broadcast_to(causal[None, :, :], (B, S_tgt, S_tgt))  # causal mask

    fwd = jax.jit(functools.partial(encoder_decoder_forward, cfg=cfg))
    logprobs = fwd(params, source, source_mask, target, target_mask)
    logprobs = jax.block_until_ready(logprobs)

    assert logprobs.shape == (B, S_tgt, cfg["vocab"])
    # log_softmax rows must exponentiate-sum to 1
    row_sums = np.asarray(jnp.sum(jnp.exp(logprobs), axis=-1))
    assert np.allclose(row_sums, 1.0, atol=1e-3), row_sums
    assert np.all(np.isfinite(np.asarray(logprobs)))
    print("KERNEL_OK")
</pallas_src>

<mosaic_0001>
module attributes {stable_mosaic.version = 11 : i64} {
  func.func @_encoder_stack_kernel(%arg0: i32, %arg1: memref<2x8x32xf32, #tpu.memory_space<vmem>>, %arg2: memref<2x8xf32, #tpu.memory_space<vmem>>, %arg3: memref<1x1x32xf32, #tpu.memory_space<vmem>>, %arg4: memref<1x1x32xf32, #tpu.memory_space<vmem>>, %arg5: memref<1x32x96xbf16, #tpu.memory_space<vmem>>, %arg6: memref<1x1x96xf32, #tpu.memory_space<vmem>>, %arg7: memref<1x32x32xbf16, #tpu.memory_space<vmem>>, %arg8: memref<1x1x32xf32, #tpu.memory_space<vmem>>, %arg9: memref<1x1x32xf32, #tpu.memory_space<vmem>>, %arg10: memref<1x1x32xf32, #tpu.memory_space<vmem>>, %arg11: memref<1x32x64xbf16, #tpu.memory_space<vmem>>, %arg12: memref<1x1x64xf32, #tpu.memory_space<vmem>>, %arg13: memref<1x64x32xbf16, #tpu.memory_space<vmem>>, %arg14: memref<1x1x32xf32, #tpu.memory_space<vmem>>, %arg15: memref<1x32xf32, #tpu.memory_space<vmem>>, %arg16: memref<1x32xf32, #tpu.memory_space<vmem>>, %arg17: memref<2x8x32xf32, #tpu.memory_space<vmem>>) attributes {dimension_semantics = [#tpu.dimension_semantics<arbitrary>], iteration_bounds = array<i64: 2>, scalar_prefetch = 0 : i64, scratch_operands = 0 : i64, tpu.core_type = #tpu.core_type<tc>, window_params = [{pipeline_mode = #tpu.pipeline_mode<synchronous>, transform_indices = @transform_0, window_bounds = array<i64: 2, 8, 32>}, {pipeline_mode = #tpu.pipeline_mode<synchronous>, transform_indices = @transform_1, window_bounds = array<i64: 2, 8>}, {transform_indices = @transform_2, window_bounds = array<i64: 1, 1, 32>}, {transform_indices = @transform_3, window_bounds = array<i64: 1, 1, 32>}, {transform_indices = @transform_4, window_bounds = array<i64: 1, 32, 96>}, {transform_indices = @transform_5, window_bounds = array<i64: 1, 1, 96>}, {transform_indices = @transform_6, window_bounds = array<i64: 1, 32, 32>}, {transform_indices = @transform_7, window_bounds = array<i64: 1, 1, 32>}, {transform_indices = @transform_8, window_bounds = array<i64: 1, 1, 32>}, {transform_indices = @transform_9, window_bounds = array<i64: 1, 1, 32>}, {transform_indices = @transform_10, window_bounds = array<i64: 1, 32, 64>}, {transform_indices = @transform_11, window_bounds = array<i64: 1, 1, 64>}, {transform_indices = @transform_12, window_bounds = array<i64: 1, 64, 32>}, {transform_indices = @transform_13, window_bounds = array<i64: 1, 1, 32>}, {pipeline_mode = #tpu.pipeline_mode<synchronous>, transform_indices = @transform_14, window_bounds = array<i64: 1, 32>}, {pipeline_mode = #tpu.pipeline_mode<synchronous>, transform_indices = @transform_15, window_bounds = array<i64: 1, 32>}, {pipeline_mode = #tpu.pipeline_mode<synchronous>, transform_indices = @transform_16, window_bounds = array<i64: 2, 8, 32>}]} {
    %c0_i32 = arith.constant 0 : i32
    %0 = arith.cmpi eq, %arg0, %c0_i32 : i32
    %1 = arith.extui %0 : i1 to i32
    %c0_i32_0 = arith.constant 0 : i32
    %2 = arith.cmpi ne, %1, %c0_i32_0 : i32
    scf.if %2 {
      %c0_77 = arith.constant 0 : index
      %c0_78 = arith.constant 0 : index
      %c0_79 = arith.constant 0 : index
      %193 = vector.load %arg1[%c0_77, %c0_78, %c0_79] : memref<2x8x32xf32, #tpu.memory_space<vmem>>, vector<2x8x32xf32>
      %c0_80 = arith.constant 0 : index
      %c0_81 = arith.constant 0 : index
      %c0_82 = arith.constant 0 : index
      %194 = vector.load %arg17[%c0_80, %c0_81, %c0_82] : memref<2x8x32xf32, #tpu.memory_space<vmem>>, vector<2x8x32xf32>
      tpu.vector_store %arg17[%c0_80, %c0_81, %c0_82], %193 {strides = array<i32>} : memref<2x8x32xf32, #tpu.memory_space<vmem>>, vector<2x8x32xf32>,
    } else {
    }
    %c0 = arith.constant 0 : index
    %c0_1 = arith.constant 0 : index
    %c0_2 = arith.constant 0 : index
    %3 = vector.load %arg17[%c0, %c0_1, %c0_2] : memref<2x8x32xf32, #tpu.memory_space<vmem>>, vector<2x8x32xf32>
    %c0_3 = arith.constant 0 : index
    %c0_4 = arith.constant 0 : index
    %4 = vector.load %arg2[%c0_3, %c0_4] : memref<2x8xf32, #tpu.memory_space<vmem>>, vector<2x8xf32>
    %cst = arith.constant 1.000000e+00 : f32
    %5 = vector.broadcast %cst : f32 to vector<2x8xf32>
    %6 = arith.subf %4, %5 : vector<2x8xf32>
    %cst_5 = arith.constant 1.000000e+09 : f32
    %7 = vector.broadcast %cst_5 : f32 to vector<2x8xf32>
    %8 = arith.mulf %6, %7 : vector<2x8xf32>
    %9 = vector.shape_cast %8 : vector<2x8xf32> to vector<2x1x8xf32>
    %10 = vector.shape_cast %9 : vector<2x1x8xf32> to vector<2x1x8xf32>
    %11 = vector.broadcast %10 : vector<2x1x8xf32> to vector<2x8x8xf32>
    %c0_6 = arith.constant 0 : index
    %c0_7 = arith.constant 0 : index
    %c0_8 = arith.constant 0 : index
    %12 = vector.load %arg3[%c0_6, %c0_7, %c0_8] : memref<1x1x32xf32, #tpu.memory_space<vmem>>, vector<1x1x32xf32>
    %13 = vector.shape_cast %12 : vector<1x1x32xf32> to vector<1x32xf32>
    %c0_9 = arith.constant 0 : index
    %c0_10 = arith.constant 0 : index
    %c0_11 = arith.constant 0 : index
    %14 = vector.load %arg4[%c0_9, %c0_10, %c0_11] : memref<1x1x32xf32, #tpu.memory_space<vmem>>, vector<1x1x32xf32>
    %15 = vector.shape_cast %14 : vector<1x1x32xf32> to vector<1x32xf32>
    %cst_12 = arith.constant dense<0.000000e+00> : vector<2x8xf32>
    %16 = vector.multi_reduction <add>, %3, %cst_12 [2] : vector<2x8x32xf32> to vector<2x8xf32>
    %17 = vector.shape_cast %16 : vector<2x8xf32> to vector<2x8x1xf32>
    %cst_13 = arith.constant 3.200000e+01 : f32
    %18 = vector.broadcast %cst_13 : f32 to vector<2x8x1xf32>
    %19 = arith.divf %17, %18 : vector<2x8x1xf32>
    %20 = vector.broadcast %19 : vector<2x8x1xf32> to vector<2x8x32xf32>
    %21 = arith.subf %3, %20 : vector<2x8x32xf32>
    %22 = arith.mulf %21, %21 : vector<2x8x32xf32>
    %cst_14 = arith.constant dense<0.000000e+00> : vector<2x8xf32>
    %23 = vector.multi_reduction <add>, %22, %cst_14 [2] : vector<2x8x32xf32> to vector<2x8xf32>
    %24 = vector.shape_cast %23 : vector<2x8xf32> to vector<2x8x1xf32>
    %cst_15 = arith.constant 3.200000e+01 : f32
    %25 = vector.broadcast %cst_15 : f32 to vector<2x8x1xf32>
    %26 = arith.divf %24, %25 : vector<2x8x1xf32>
    %27 = vector.broadcast %19 : vector<2x8x1xf32> to vector<2x8x32xf32>
    %28 = arith.subf %3, %27 : vector<2x8x32xf32>
    %cst_16 = arith.constant 9.99999997E-7 : f32
    %29 = vector.broadcast %cst_16 : f32 to vector<2x8x1xf32>
    %30 = arith.addf %26, %29 : vector<2x8x1xf32>
    %31 = math.rsqrt %30 : vector<2x8x1xf32>
    %32 = vector.broadcast %31 : vector<2x8x1xf32> to vector<2x8x32xf32>
    %33 = arith.mulf %28, %32 : vector<2x8x32xf32>
    %34 = vector.shape_cast %13 : vector<1x32xf32> to vector<1x1x32xf32>
    %35 = vector.broadcast %34 : vector<1x1x32xf32> to vector<2x8x32xf32>
    %36 = arith.mulf %33, %35 : vector<2x8x32xf32>
    %37 = vector.shape_cast %15 : vector<1x32xf32> to vector<1x1x32xf32>
    %38 = vector.broadcast %37 : vector<1x1x32xf32> to vector<2x8x32xf32>
    %39 = arith.addf %36, %38 : vector<2x8x32xf32>
    %40 = vector.shape_cast %39 : vector<2x8x32xf32> to vector<16x32xf32>
    %c0_17 = arith.constant 0 : index
    %c0_18 = arith.constant 0 : index
    %c0_19 = arith.constant 0 : index
    %41 = vector.load %arg5[%c0_17, %c0_18, %c0_19] : memref<1x32x96xbf16, #tpu.memory_space<vmem>>, vector<1x32x96xbf16>
    %42 = vector.shape_cast %41 : vector<1x32x96xbf16> to vector<32x96xbf16>
    %43 = arith.truncf %40 : vector<16x32xf32> to vector<16x32xbf16>
    %cst_20 = arith.constant dense<0.000000e+00> : vector<16x96xf32>
    %44 = tpu.matmul %43, %42, %cst_20 {dimension_numbers = #tpu.dot_dimension_numbers<[1], [0], [0], [1], [0, 0, 1, 1], [], []>} : vector<16x32xbf16>, vector<32x96xbf16>, vector<16x96xf32> -> vector<16x96xf32>
    %c0_21 = arith.constant 0 : index
    %c0_22 = arith.constant 0 : index
    %c0_23 = arith.constant 0 : index
    %45 = vector.load %arg6[%c0_21, %c0_22, %c0_23] : memref<1x1x96xf32, #tpu.memory_space<vmem>>, vector<1x1x96xf32>
    %46 = vector.shape_cast %45 : vector<1x1x96xf32> to vector<1x96xf32>
    %47 = vector.broadcast %46 : vector<1x96xf32> to vector<16x96xf32>
    %48 = arith.addf %44, %47 : vector<16x96xf32>
    %49 = vector.shape_cast %48 : vector<16x96xf32> to vector<2x8x96xf32>
    %50 = vector.extract_strided_slice %49 {offsets = [0, 0, 0], sizes = [2, 8, 32], strides = [1, 1, 1]} : vector<2x8x96xf32> to vector<2x8x32xf32>
    %51 = vector.extract_strided_slice %49 {offsets = [0, 0, 32], sizes = [2, 8, 32], strides = [1, 1, 1]} : vector<2x8x96xf32> to vector<2x8x32xf32>
    %52 = vector.extract_strided_slice %49 {offsets = [0, 0, 64], sizes = [2, 8, 32], strides = [1, 1, 1]} : vector<2x8x96xf32> to vector<2x8x32xf32>
    %c0_24 = arith.constant 0 : index
    %c0_25 = arith.constant 0 : index
    %c0_26 = arith.constant 0 : index
    %53 = vector.load %arg7[%c0_24, %c0_25, %c0_26] : memref<1x32x32xbf16, #tpu.memory_space<vmem>>, vector<1x32x32xbf16>
    %54 = vector.shape_cast %53 : vector<1x32x32xbf16> to vector<32x32xbf16>
    %c0_27 = arith.constant 0 : index
    %c0_28 = arith.constant 0 : index
    %c0_29 = arith.constant 0 : index
    %55 = vector.load %arg8[%c0_27, %c0_28, %c0_29] : memref<1x1x32xf32, #tpu.memory_space<vmem>>, vector<1x1x32xf32>
    %56 = vector.shape_cast %55 : vector<1x1x32xf32> to vector<1x32xf32>
    %cst_30 = arith.constant 0.353553385 : f32
    %57 = vector.broadcast %cst_30 : f32 to vector<2x8x32xf32>
    %58 = arith.mulf %50, %57 : vector<2x8x32xf32>
    %59 = arith.truncf %58 : vector<2x8x32xf32> to vector<2x8x32xbf16>
    %60 = arith.truncf %51 : vector<2x8x32xf32> to vector<2x8x32xbf16>
    %61 = arith.truncf %52 : vector<2x8x32xf32> to vector<2x8x32xbf16>
    %62 = vector.extract_strided_slice %59 {offsets = [0, 0, 0], sizes = [2, 8, 8], strides = [1, 1, 1]} : vector<2x8x32xbf16> to vector<2x8x8xbf16>
    %63 = vector.extract_strided_slice %60 {offsets = [0, 0, 0], sizes = [2, 8, 8], strides = [1, 1, 1]} : vector<2x8x32xbf16> to vector<2x8x8xbf16>
    "tpu.trace_start"() <{level = 10 : i32, message = "bqd,bkd->bqk"}> : () -> ()
    %cst_31 = arith.constant dense<0.000000e+00> : vector<2x8x8xf32>
    %64 = tpu.matmul %62, %63, %cst_31 {dimension_numbers = #tpu.dot_dimension_numbers<[2], [2], [1], [1], [0, 0, 0, 1, 1, 1], [0], [0]>} : vector<2x8x8xbf16>, vector<2x8x8xbf16>, vector<2x8x8xf32> -> vector<2x8x8xf32>
    "tpu.trace_stop"() : () -> ()
    %65 = arith.addf %64, %11 : vector<2x8x8xf32>
    %cst_32 = arith.constant dense<0xFF800000> : vector<2x8xf32>
    %66 = vector.multi_reduction <maximumf>, %65, %cst_32 [2] : vector<2x8x8xf32> to vector<2x8xf32>
    %67 = vector.shape_cast %66 : vector<2x8xf32> to vector<2x8x1xf32>
    %68 = vector.broadcast %67 : vector<2x8x1xf32> to vector<2x8x8xf32>
    %69 = arith.subf %65, %68 : vector<2x8x8xf32>
    %70 = math.exp %69 : vector<2x8x8xf32>
    %cst_33 = arith.constant dense<0.000000e+00> : vector<2x8xf32>
    %71 = vector.multi_reduction <add>, %70, %cst_33 [2] : vector<2x8x8xf32> to vector<2x8xf32>
    %72 = vector.shape_cast %71 : vector<2x8xf32> to vector<2x8x1xf32>
    %73 = tpu.reciprocal %72 {approx = true} : vector<2x8x1xf32> -> vector<2x8x1xf32>
    %74 = vector.broadcast %73 : vector<2x8x1xf32> to vector<2x8x8xf32>
    %75 = arith.mulf %70, %74 : vector<2x8x8xf32>
    %76 = arith.truncf %75 : vector<2x8x8xf32> to vector<2x8x8xbf16>
    %77 = vector.extract_strided_slice %61 {offsets = [0, 0, 0], sizes = [2, 8, 8], strides = [1, 1, 1]} : vector<2x8x32xbf16> to vector<2x8x8xbf16>
    "tpu.trace_start"() <{level = 10 : i32, message = "bqk,bkd->bqd"}> : () -> ()
    %cst_34 = arith.constant dense<0.000000e+00> : vector<2x8x8xf32>
    %78 = tpu.matmul %76, %77, %cst_34 {dimension_numbers = #tpu.dot_dimension_numbers<[2], [1], [1], [2], [0, 0, 0, 1, 1, 2], [0], [0]>} : vector<2x8x8xbf16>, vector<2x8x8xbf16>, vector<2x8x8xf32> -> vector<2x8x8xf32>
    "tpu.trace_stop"() : () -> ()
    %79 = vector.extract_strided_slice %59 {offsets = [0, 0, 8], sizes = [2, 8, 8], strides = [1, 1, 1]} : vector<2x8x32xbf16> to vector<2x8x8xbf16>
    %80 = vector.extract_strided_slice %60 {offsets = [0, 0, 8], sizes = [2, 8, 8], strides = [1, 1, 1]} : vector<2x8x32xbf16> to vector<2x8x8xbf16>
    "tpu.trace_start"() <{level = 10 : i32, message = "bqd,bkd->bqk"}> : () -> ()
    %cst_35 = arith.constant dense<0.000000e+00> : vector<2x8x8xf32>
    %81 = tpu.matmul %79, %80, %cst_35 {dimension_numbers = #tpu.dot_dimension_numbers<[2], [2], [1], [1], [0, 0, 0, 1, 1, 1], [0], [0]>} : vector<2x8x8xbf16>, vector<2x8x8xbf16>, vector<2x8x8xf32> -> vector<2x8x8xf32>
    "tpu.trace_stop"() : () -> ()
    %82 = arith.addf %81, %11 : vector<2x8x8xf32>
    %cst_36 = arith.constant dense<0xFF800000> : vector<2x8xf32>
    %83 = vector.multi_reduction <maximumf>, %82, %cst_36 [2] : vector<2x8x8xf32> to vector<2x8xf32>
    %84 = vector.shape_cast %83 : vector<2x8xf32> to vector<2x8x1xf32>
    %85 = vector.broadcast %84 : vector<2x8x1xf32> to vector<2x8x8xf32>
    %86 = arith.subf %82, %85 : vector<2x8x8xf32>
    %87 = math.exp %86 : vector<2x8x8xf32>
    %cst_37 = arith.constant dense<0.000000e+00> : vector<2x8xf32>
    %88 = vector.multi_reduction <add>, %87, %cst_37 [2] : vector<2x8x8xf32> to vector<2x8xf32>
    %89 = vector.shape_cast %88 : vector<2x8xf32> to vector<2x8x1xf32>
    %90 = tpu.reciprocal %89 {approx = true} : vector<2x8x1xf32> -> vector<2x8x1xf32>
    %91 = vector.broadcast %90 : vector<2x8x1xf32> to vector<2x8x8xf32>
    %92 = arith.mulf %87, %91 : vector<2x8x8xf32>
    %93 = arith.truncf %92 : vector<2x8x8xf32> to vector<2x8x8xbf16>
    %94 = vector.extract_strided_slice %61 {offsets = [0, 0, 8], sizes = [2, 8, 8], strides = [1, 1, 1]} : vector<2x8x32xbf16> to vector<2x8x8xbf16>
    "tpu.trace_start"() <{level = 10 : i32, message = "bqk,bkd->bqd"}> : () -> ()
    %cst_38 = arith.constant dense<0.000000e+00> : vector<2x8x8xf32>
    %95 = tpu.matmul %93, %94, %cst_38 {dimension_numbers = #tpu.dot_dimension_numbers<[2], [1], [1], [2], [0, 0, 0, 1, 1, 2], [0], [0]>} : vector<2x8x8xbf16>, vector<2x8x8xbf16>, vector<2x8x8xf32> -> vector<2x8x8xf32>
    "tpu.trace_stop"() : () -> ()
    %96 = vector.extract_strided_slice %59 {offsets = [0, 0, 16], sizes = [2, 8, 8], strides = [1, 1, 1]} : vector<2x8x32xbf16> to vector<2x8x8xbf16>
    %97 = vector.extract_strided_slice %60 {offsets = [0, 0, 16], sizes = [2, 8, 8], strides = [1, 1, 1]} : vector<2x8x32xbf16> to vector<2x8x8xbf16>
    "tpu.trace_start"() <{level = 10 : i32, message = "bqd,bkd->bqk"}> : () -> ()
    %cst_39 = arith.constant dense<0.000000e+00> : vector<2x8x8xf32>
    %98 = tpu.matmul %96, %97, %cst_39 {dimension_numbers = #tpu.dot_dimension_numbers<[2], [2], [1], [1], [0, 0, 0, 1, 1, 1], [0], [0]>} : vector<2x8x8xbf16>, vector<2x8x8xbf16>, vector<2x8x8xf32> -> vector<2x8x8xf32>
    "tpu.trace_stop"() : () -> ()
    %99 = arith.addf %98, %11 : vector<2x8x8xf32>
    %cst_40 = arith.constant dense<0xFF800000> : vector<2x8xf32>
    %100 = vector.multi_reduction <maximumf>, %99, %cst_40 [2] : vector<2x8x8xf32> to vector<2x8xf32>
    %101 = vector.shape_cast %100 : vector<2x8xf32> to vector<2x8x1xf32>
    %102 = vector.broadcast %101 : vector<2x8x1xf32> to vector<2x8x8xf32>
    %103 = arith.subf %99, %102 : vector<2x8x8xf32>
    %104 = math.exp %103 : vector<2x8x8xf32>
    %cst_41 = arith.constant dense<0.000000e+00> : vector<2x8xf32>
    %105 = vector.multi_reduction <add>, %104, %cst_41 [2] : vector<2x8x8xf32> to vector<2x8xf32>
    %106 = vector.shape_cast %105 : vector<2x8xf32> to vector<2x8x1xf32>
    %107 = tpu.reciprocal %106 {approx = true} : vector<2x8x1xf32> -> vector<2x8x1xf32>
    %108 = vector.broadcast %107 : vector<2x8x1xf32> to vector<2x8x8xf32>
    %109 = arith.mulf %104, %108 : vector<2x8x8xf32>
    %110 = arith.truncf %109 : vector<2x8x8xf32> to vector<2x8x8xbf16>
    %111 = vector.extract_strided_slice %61 {offsets = [0, 0, 16], sizes = [2, 8, 8], strides = [1, 1, 1]} : vector<2x8x32xbf16> to vector<2x8x8xbf16>
    "tpu.trace_start"() <{level = 10 : i32, message = "bqk,bkd->bqd"}> : () -> ()
    %cst_42 = arith.constant dense<0.000000e+00> : vector<2x8x8xf32>
    %112 = tpu.matmul %110, %111, %cst_42 {dimension_numbers = #tpu.dot_dimension_numbers<[2], [1], [1], [2], [0, 0, 0, 1, 1, 2], [0], [0]>} : vector<2x8x8xbf16>, vector<2x8x8xbf16>, vector<2x8x8xf32> -> vector<2x8x8xf32>
    "tpu.trace_stop"() : () -> ()
    %113 = vector.extract_strided_slice %59 {offsets = [0, 0, 24], sizes = [2, 8, 8], strides = [1, 1, 1]} : vector<2x8x32xbf16> to vector<2x8x8xbf16>
    %114 = vector.extract_strided_slice %60 {offsets = [0, 0, 24], sizes = [2, 8, 8], strides = [1, 1, 1]} : vector<2x8x32xbf16> to vector<2x8x8xbf16>
    "tpu.trace_start"() <{level = 10 : i32, message = "bqd,bkd->bqk"}> : () -> ()
    %cst_43 = arith.constant dense<0.000000e+00> : vector<2x8x8xf32>
    %115 = tpu.matmul %113, %114, %cst_43 {dimension_numbers = #tpu.dot_dimension_numbers<[2], [2], [1], [1], [0, 0, 0, 1, 1, 1], [0], [0]>} : vector<2x8x8xbf16>, vector<2x8x8xbf16>, vector<2x8x8xf32> -> vector<2x8x8xf32>
    "tpu.trace_stop"() : () -> ()
    %116 = arith.addf %115, %11 : vector<2x8x8xf32>
    %cst_44 = arith.constant dense<0xFF800000> : vector<2x8xf32>
    %117 = vector.multi_reduction <maximumf>, %116, %cst_44 [2] : vector<2x8x8xf32> to vector<2x8xf32>
    %118 = vector.shape_cast %117 : vector<2x8xf32> to vector<2x8x1xf32>
    %119 = vector.broadcast %118 : vector<2x8x1xf32> to vector<2x8x8xf32>
    %120 = arith.subf %116, %119 : vector<2x8x8xf32>
    %121 = math.exp %120 : vector<2x8x8xf32>
    %cst_45 = arith.constant dense<0.000000e+00> : vector<2x8xf32>
    %122 = vector.multi_reduction <add>, %121, %cst_45 [2] : vector<2x8x8xf32> to vector<2x8xf32>
    %123 = vector.shape_cast %122 : vector<2x8xf32> to vector<2x8x1xf32>
    %124 = tpu.reciprocal %123 {approx = true} : vector<2x8x1xf32> -> vector<2x8x1xf32>
    %125 = vector.broadcast %124 : vector<2x8x1xf32> to vector<2x8x8xf32>
    %126 = arith.mulf %121, %125 : vector<2x8x8xf32>
    %127 = arith.truncf %126 : vector<2x8x8xf32> to vector<2x8x8xbf16>
    %128 = vector.extract_strided_slice %61 {offsets = [0, 0, 24], sizes = [2, 8, 8], strides = [1, 1, 1]} : vector<2x8x32xbf16> to vector<2x8x8xbf16>
    "tpu.trace_start"() <{level = 10 : i32, message = "bqk,bkd->bqd"}> : () -> ()
    %cst_46 = arith.constant dense<0.000000e+00> : vector<2x8x8xf32>
    %129 = tpu.matmul %127, %128, %cst_46 {dimension_numbers = #tpu.dot_dimension_numbers<[2], [1], [1], [2], [0, 0, 0, 1, 1, 2], [0], [0]>} : vector<2x8x8xbf16>, vector<2x8x8xbf16>, vector<2x8x8xf32> -> vector<2x8x8xf32>
    "tpu.trace_stop"() : () -> ()
    %130 = tpu.concatenate %78, %95, %112, %129 in 2 : vector<2x8x8xf32>, vector<2x8x8xf32>, vector<2x8x8xf32>, vector<2x8x8xf32> -> vector<2x8x32xf32>
    %131 = vector.shape_cast %130 : vector<2x8x32xf32> to vector<16x32xf32>
    %132 = arith.truncf %131 : vector<16x32xf32> to vector<16x32xbf16>
    %cst_47 = arith.constant dense<0.000000e+00> : vector<16x32xf32>
    %133 = tpu.matmul %132, %54, %cst_47 {dimension_numbers = #tpu.dot_dimension_numbers<[1], [0], [0], [1], [0, 0, 1, 1], [], []>} : vector<16x32xbf16>, vector<32x32xbf16>, vector<16x32xf32> -> vector<16x32xf32>
    %134 = vector.broadcast %56 : vector<1x32xf32> to vector<16x32xf32>
    %135 = arith.addf %133, %134 : vector<16x32xf32>
    %136 = vector.shape_cast %135 : vector<16x32xf32> to vector<2x8x32xf32>
    %137 = arith.addf %3, %136 : vector<2x8x32xf32>
    %c0_48 = arith.constant 0 : index
    %c0_49 = arith.constant 0 : index
    %c0_50 = arith.constant 0 : index
    %138 = vector.load %arg9[%c0_48, %c0_49, %c0_50] : memref<1x1x32xf32, #tpu.memory_space<vmem>>, vector<1x1x32xf32>
    %139 = vector.shape_cast %138 : vector<1x1x32xf32> to vector<1x32xf32>
    %c0_51 = arith.constant 0 : index
    %c0_52 = arith.constant 0 : index
    %c0_53 = arith.constant 0 : index
    %140 = vector.load %arg10[%c0_51, %c0_52, %c0_53] : memref<1x1x32xf32, #tpu.memory_space<vmem>>, vector<1x1x32xf32>
    %141 = vector.shape_cast %140 : vector<1x1x32xf32> to vector<1x32xf32>
    %cst_54 = arith.constant dense<0.000000e+00> : vector<2x8xf32>
    %142 = vector.multi_reduction <add>, %137, %cst_54 [2] : vector<2x8x32xf32> to vector<2x8xf32>
    %143 = vector.shape_cast %142 : vector<2x8xf32> to vector<2x8x1xf32>
    %cst_55 = arith.constant 3.200000e+01 : f32
    %144 = vector.broadcast %cst_55 : f32 to vector<2x8x1xf32>
    %145 = arith.divf %143, %144 : vector<2x8x1xf32>
    %146 = vector.broadcast %145 : vector<2x8x1xf32> to vector<2x8x32xf32>
    %147 = arith.subf %137, %146 : vector<2x8x32xf32>
    %148 = arith.mulf %147, %147 : vector<2x8x32xf32>
    %cst_56 = arith.constant dense<0.000000e+00> : vector<2x8xf32>
    %149 = vector.multi_reduction <add>, %148, %cst_56 [2] : vector<2x8x32xf32> to vector<2x8xf32>
    %150 = vector.shape_cast %149 : vector<2x8xf32> to vector<2x8x1xf32>
    %cst_57 = arith.constant 3.200000e+01 : f32
    %151 = vector.broadcast %cst_57 : f32 to vector<2x8x1xf32>
    %152 = arith.divf %150, %151 : vector<2x8x1xf32>
    %153 = vector.broadcast %145 : vector<2x8x1xf32> to vector<2x8x32xf32>
    %154 = arith.subf %137, %153 : vector<2x8x32xf32>
    %cst_58 = arith.constant 9.99999997E-7 : f32
    %155 = vector.broadcast %cst_58 : f32 to vector<2x8x1xf32>
    %156 = arith.addf %152, %155 : vector<2x8x1xf32>
    %157 = math.rsqrt %156 : vector<2x8x1xf32>
    %158 = vector.broadcast %157 : vector<2x8x1xf32> to vector<2x8x32xf32>
    %159 = arith.mulf %154, %158 : vector<2x8x32xf32>
    %160 = vector.shape_cast %139 : vector<1x32xf32> to vector<1x1x32xf32>
    %161 = vector.broadcast %160 : vector<1x1x32xf32> to vector<2x8x32xf32>
    %162 = arith.mulf %159, %161 : vector<2x8x32xf32>
    %163 = vector.shape_cast %141 : vector<1x32xf32> to vector<1x1x32xf32>
    %164 = vector.broadcast %163 : vector<1x1x32xf32> to vector<2x8x32xf32>
    %165 = arith.addf %162, %164 : vector<2x8x32xf32>
    %166 = vector.shape_cast %165 : vector<2x8x32xf32> to vector<16x32xf32>
    %c0_59 = arith.constant 0 : index
    %c0_60 = arith.constant 0 : index
    %c0_61 = arith.constant 0 : index
    %167 = vector.load %arg11[%c0_59, %c0_60, %c0_61] : memref<1x32x64xbf16, #tpu.memory_space<vmem>>, vector<1x32x64xbf16>
    %168 = vector.shape_cast %167 : vector<1x32x64xbf16> to vector<32x64xbf16>
    %169 = arith.truncf %166 : vector<16x32xf32> to vector<16x32xbf16>
    %cst_62 = arith.constant dense<0.000000e+00> : vector<16x64xf32>
    %170 = tpu.matmul %169, %168, %cst_62 {dimension_numbers = #tpu.dot_dimension_numbers<[1], [0], [0], [1], [0, 0, 1, 1], [], []>} : vector<16x32xbf16>, vector<32x64xbf16>, vector<16x64xf32> -> vector<16x64xf32>
    %c0_63 = arith.constant 0 : index
    %c0_64 = arith.constant 0 : index
    %c0_65 = arith.constant 0 : index
    %171 = vector.load %arg12[%c0_63, %c0_64, %c0_65] : memref<1x1x64xf32, #tpu.memory_space<vmem>>, vector<1x1x64xf32>
    %172 = vector.shape_cast %171 : vector<1x1x64xf32> to vector<1x64xf32>
    %173 = vector.broadcast %172 : vector<1x64xf32> to vector<16x64xf32>
    %174 = arith.addf %170, %173 : vector<16x64xf32>
    %cst_66 = arith.constant 0.000000e+00 : f32
    %175 = vector.broadcast %cst_66 : f32 to vector<16x64xf32>
    %176 = arith.maximumf %174, %175 : vector<16x64xf32>
    %c0_67 = arith.constant 0 : index
    %c0_68 = arith.constant 0 : index
    %c0_69 = arith.constant 0 : index
    %177 = vector.load %arg13[%c0_67, %c0_68, %c0_69] : memref<1x64x32xbf16, #tpu.memory_space<vmem>>, vector<1x64x32xbf16>
    %178 = vector.shape_cast %177 : vector<1x64x32xbf16> to vector<64x32xbf16>
    %179 = arith.truncf %176 : vector<16x64xf32> to vector<16x64xbf16>
    %cst_70 = arith.constant dense<0.000000e+00> : vector<16x32xf32>
    %180 = tpu.matmul %179, %178, %cst_70 {dimension_numbers = #tpu.dot_dimension_numbers<[1], [0], [0], [1], [0, 0, 1, 1], [], []>} : vector<16x64xbf16>, vector<64x32xbf16>, vector<16x32xf32> -> vector<16x32xf32>
    %c0_71 = arith.constant 0 : index
    %c0_72 = arith.constant 0 : index
    %c0_73 = arith.constant 0 : index
    %181 = vector.load %arg14[%c0_71, %c0_72, %c0_73] : memref<1x1x32xf32, #tpu.memory_space<vmem>>, vector<1x1x32xf32>
    %182 = vector.shape_cast %181 : vector<1x1x32xf32> to vector<1x32xf32>
    %183 = vector.broadcast %182 : vector<1x32xf32> to vector<16x32xf32>
    %184 = arith.addf %180, %183 : vector<16x32xf32>
    %185 = vector.shape_cast %184 : vector<16x32xf32> to vector<2x8x32xf32>
    %186 = arith.addf %137, %185 : vector<2x8x32xf32>
    %c1_i32 = arith.constant 1 : i32
    %187 = arith.cmpi slt, %arg0, %c1_i32 : i32
    %188 = arith.extui %187 : i1 to i32
    %c0_i32_74 = arith.constant 0 : i32
    %189 = arith.cmpi ne, %188, %c0_i32_74 : i32
    scf.if %189 {
      %c0_77 = arith.constant 0 : index
      %c0_78 = arith.constant 0 : index
      %c0_79 = arith.constant 0 : index
      %193 = vector.load %arg17[%c0_77, %c0_78, %c0_79] : memref<2x8x32xf32, #tpu.memory_space<vmem>>, vector<2x8x32xf32>
      tpu.vector_store %arg17[%c0_77, %c0_78, %c0_79], %186 {strides = array<i32>} : memref<2x8x32xf32, #tpu.memory_space<vmem>>, vector<2x8x32xf32>,
    } else {
    }
    %c1_i32_75 = arith.constant 1 : i32
    %190 = arith.cmpi eq, %arg0, %c1_i32_75 : i32
    %191 = arith.extui %190 : i1 to i32
    %c0_i32_76 = arith.constant 0 : i32
    %192 = arith.cmpi ne, %191, %c0_i32_76 : i32
    scf.if %192 {
      %c0_77 = arith.constant 0 : index
      %c0_78 = arith.constant 0 : index
      %193 = vector.load %arg15[%c0_77, %c0_78] : memref<1x32xf32, #tpu.memory_space<vmem>>, vector<1x32xf32>
      %c0_79 = arith.constant 0 : index
      %c0_80 = arith.constant 0 : index
      %194 = vector.load %arg16[%c0_79, %c0_80] : memref<1x32xf32, #tpu.memory_space<vmem>>, vector<1x32xf32>
      %cst_81 = arith.constant dense<0.000000e+00> : vector<2x8xf32>
      %195 = vector.multi_reduction <add>, %186, %cst_81 [2] : vector<2x8x32xf32> to vector<2x8xf32>
      %196 = vector.shape_cast %195 : vector<2x8xf32> to vector<2x8x1xf32>
      %cst_82 = arith.constant 3.200000e+01 : f32
      %197 = vector.broadcast %cst_82 : f32 to vector<2x8x1xf32>
      %198 = arith.divf %196, %197 : vector<2x8x1xf32>
      %199 = vector.broadcast %198 : vector<2x8x1xf32> to vector<2x8x32xf32>
      %200 = arith.subf %186, %199 : vector<2x8x32xf32>
      %201 = arith.mulf %200, %200 : vector<2x8x32xf32>
      %cst_83 = arith.constant dense<0.000000e+00> : vector<2x8xf32>
      %202 = vector.multi_reduction <add>, %201, %cst_83 [2] : vector<2x8x32xf32> to vector<2x8xf32>
      %203 = vector.shape_cast %202 : vector<2x8xf32> to vector<2x8x1xf32>
      %cst_84 = arith.constant 3.200000e+01 : f32
      %204 = vector.broadcast %cst_84 : f32 to vector<2x8x1xf32>
      %205 = arith.divf %203, %204 : vector<2x8x1xf32>
      %206 = vector.broadcast %198 : vector<2x8x1xf32> to vector<2x8x32xf32>
      %207 = arith.subf %186, %206 : vector<2x8x32xf32>
      %cst_85 = arith.constant 9.99999997E-7 : f32
      %208 = vector.broadcast %cst_85 : f32 to vector<2x8x1xf32>
      %209 = arith.addf %205, %208 : vector<2x8x1xf32>
      %210 = math.rsqrt %209 : vector<2x8x1xf32>
      %211 = vector.broadcast %210 : vector<2x8x1xf32> to vector<2x8x32xf32>
      %212 = arith.mulf %207, %211 : vector<2x8x32xf32>
      %213 = vector.shape_cast %193 : vector<1x32xf32> to vector<1x1x32xf32>
      %214 = vector.broadcast %213 : vector<1x1x32xf32> to vector<2x8x32xf32>
      %215 = arith.mulf %212, %214 : vector<2x8x32xf32>
      %216 = vector.shape_cast %194 : vector<1x32xf32> to vector<1x1x32xf32>
      %217 = vector.broadcast %216 : vector<1x1x32xf32> to vector<2x8x32xf32>
      %218 = arith.addf %215, %217 : vector<2x8x32xf32>
      %c0_86 = arith.constant 0 : index
      %c0_87 = arith.constant 0 : index
      %c0_88 = arith.constant 0 : index
      %219 = vector.load %arg17[%c0_86, %c0_87, %c0_88] : memref<2x8x32xf32, #tpu.memory_space<vmem>>, vector<2x8x32xf32>
      tpu.vector_store %arg17[%c0_86, %c0_87, %c0_88], %218 {strides = array<i32>} : memref<2x8x32xf32, #tpu.memory_space<vmem>>, vector<2x8x32xf32>,
    } else {
    }
    return
  }
  func.func @transform_0(%arg0: i32) -> (i32, i32, i32) {
    %c0_i32 = arith.constant 0 : i32
    %c0_i32_0 = arith.constant 0 : i32
    %c0_i32_1 = arith.constant 0 : i32
    %c0_i32_2 = arith.constant 0 : i32
    return %c0_i32, %c0_i32_0, %c0_i32_1 : i32, i32, i32
  }
  func.func @transform_1(%arg0: i32) -> (i32, i32) {
    %c0_i32 = arith.constant 0 : i32
    %c0_i32_0 = arith.constant 0 : i32
    %c0_i32_1 = arith.constant 0 : i32
    return %c0_i32, %c0_i32_0 : i32, i32
  }
  func.func @transform_2(%arg0: i32) -> (i32, i32, i32) {
    %c0_i32 = arith.constant 0 : i32
    %c0_i32_0 = arith.constant 0 : i32
    %c0_i32_1 = arith.constant 0 : i32
    return %arg0, %c0_i32, %c0_i32_0 : i32, i32, i32
  }
  func.func @transform_3(%arg0: i32) -> (i32, i32, i32) {
    %c0_i32 = arith.constant 0 : i32
    %c0_i32_0 = arith.constant 0 : i32
    %c0_i32_1 = arith.constant 0 : i32
    return %arg0, %c0_i32, %c0_i32_0 : i32, i32, i32
  }
  func.func @transform_4(%arg0: i32) -> (i32, i32, i32) {
    %c0_i32 = arith.constant 0 : i32
    %c0_i32_0 = arith.constant 0 : i32
    %c0_i32_1 = arith.constant 0 : i32
    return %arg0, %c0_i32, %c0_i32_0 : i32, i32, i32
  }
  func.func @transform_5(%arg0: i32) -> (i32, i32, i32) {
    %c0_i32 = arith.constant 0 : i32
    %c0_i32_0 = arith.constant 0 : i32
    %c0_i32_1 = arith.constant 0 : i32
    return %arg0, %c0_i32, %c0_i32_0 : i32, i32, i32
  }
  func.func @transform_6(%arg0: i32) -> (i32, i32, i32) {
    %c0_i32 = arith.constant 0 : i32
    %c0_i32_0 = arith.constant 0 : i32
    %c0_i32_1 = arith.constant 0 : i32
    return %arg0, %c0_i32, %c0_i32_0 : i32, i32, i32
  }
  func.func @transform_7(%arg0: i32) -> (i32, i32, i32) {
    %c0_i32 = arith.constant 0 : i32
    %c0_i32_0 = arith.constant 0 : i32
    %c0_i32_1 = arith.constant 0 : i32
    return %arg0, %c0_i32, %c0_i32_0 : i32, i32, i32
  }
  func.func @transform_8(%arg0: i32) -> (i32, i32, i32) {
    %c0_i32 = arith.constant 0 : i32
    %c0_i32_0 = arith.constant 0 : i32
    %c0_i32_1 = arith.constant 0 : i32
    return %arg0, %c0_i32, %c0_i32_0 : i32, i32, i32
  }
  func.func @transform_9(%arg0: i32) -> (i32, i32, i32) {
    %c0_i32 = arith.constant 0 : i32
    %c0_i32_0 = arith.constant 0 : i32
    %c0_i32_1 = arith.constant 0 : i32
    return %arg0, %c0_i32, %c0_i32_0 : i32, i32, i32
  }
  func.func @transform_10(%arg0: i32) -> (i32, i32, i32) {
    %c0_i32 = arith.constant 0 : i32
    %c0_i32_0 = arith.constant 0 : i32
    %c0_i32_1 = arith.constant 0 : i32
    return %arg0, %c0_i32, %c0_i32_0 : i32, i32, i32
  }
  func.func @transform_11(%arg0: i32) -> (i32, i32, i32) {
    %c0_i32 = arith.constant 0 : i32
    %c0_i32_0 = arith.constant 0 : i32
    %c0_i32_1 = arith.constant 0 : i32
    return %arg0, %c0_i32, %c0_i32_0 : i32, i32, i32
  }
  func.func @transform_12(%arg0: i32) -> (i32, i32, i32) {
    %c0_i32 = arith.constant 0 : i32
    %c0_i32_0 = arith.constant 0 : i32
    %c0_i32_1 = arith.constant 0 : i32
    return %arg0, %c0_i32, %c0_i32_0 : i32, i32, i32
  }
  func.func @transform_13(%arg0: i32) -> (i32, i32, i32) {
    %c0_i32 = arith.constant 0 : i32
    %c0_i32_0 = arith.constant 0 : i32
    %c0_i32_1 = arith.constant 0 : i32
    return %arg0, %c0_i32, %c0_i32_0 : i32, i32, i32
  }
  func.func @transform_14(%arg0: i32) -> (i32, i32) {
    %c0_i32 = arith.constant 0 : i32
    %c0_i32_0 = arith.constant 0 : i32
    %c0_i32_1 = arith.constant 0 : i32
    return %c0_i32, %c0_i32_0 : i32, i32
  }
  func.func @transform_15(%arg0: i32) -> (i32, i32) {
    %c0_i32 = arith.constant 0 : i32
    %c0_i32_0 = arith.constant 0 : i32
    %c0_i32_1 = arith.constant 0 : i32
    return %c0_i32, %c0_i32_0 : i32, i32
  }
  func.func @transform_16(%arg0: i32) -> (i32, i32, i32) {
    %c0_i32 = arith.constant 0 : i32
    %c0_i32_0 = arith.constant 0 : i32
    %c0_i32_1 = arith.constant 0 : i32
    %c0_i32_2 = arith.constant 0 : i32
    return %c0_i32, %c0_i32_0, %c0_i32_1 : i32, i32, i32
  }
}

module attributes {stable_mosaic.version = 11 : i64} {
  func.func @_decoder_stack_kernel(%arg0: i32, %arg1: memref<2x8x32xf32, #tpu.memory_space<vmem>>, %arg2: memref<2x8x32xf32, #tpu.memory_space<vmem>>, %arg3: memref<2x8x8xf32, #tpu.memory_space<vmem>>, %arg4: memref<2x8xf32, #tpu.memory_space<vmem>>, %arg5: memref<1x1x32xf32, #tpu.memory_space<vmem>>, %arg6: memref<1x1x32xf32, #tpu.memory_space<vmem>>, %arg7: memref<1x32x96xbf16, #tpu.memory_space<vmem>>, %arg8: memref<1x1x96xf32, #tpu.memory_space<vmem>>, %arg9: memref<1x32x32xbf16, #tpu.memory_space<vmem>>, %arg10: memref<1x1x32xf32, #tpu.memory_space<vmem>>, %arg11: memref<1x1x32xf32, #tpu.memory_space<vmem>>, %arg12: memref<1x1x32xf32, #tpu.memory_space<vmem>>, %arg13: memref<1x32x32xbf16, #tpu.memory_space<vmem>>, %arg14: memref<1x1x32xf32, #tpu.memory_space<vmem>>, %arg15: memref<1x32x64xbf16, #tpu.memory_space<vmem>>, %arg16: memref<1x1x64xf32, #tpu.memory_space<vmem>>, %arg17: memref<1x32x32xbf16, #tpu.memory_space<vmem>>, %arg18: memref<1x1x32xf32, #tpu.memory_space<vmem>>, %arg19: memref<1x1x32xf32, #tpu.memory_space<vmem>>, %arg20: memref<1x1x32xf32, #tpu.memory_space<vmem>>, %arg21: memref<1x32x64xbf16, #tpu.memory_space<vmem>>, %arg22: memref<1x1x64xf32, #tpu.memory_space<vmem>>, %arg23: memref<1x64x32xbf16, #tpu.memory_space<vmem>>, %arg24: memref<1x1x32xf32, #tpu.memory_space<vmem>>, %arg25: memref<1x32xf32, #tpu.memory_space<vmem>>, %arg26: memref<1x32xf32, #tpu.memory_space<vmem>>, %arg27: memref<32x128xbf16, #tpu.memory_space<vmem>>, %arg28: memref<1x128xf32, #tpu.memory_space<vmem>>, %arg29: memref<2x8x128xf32, #tpu.memory_space<vmem>>, %arg30: memref<2x8x32xf32, #tpu.memory_space<vmem>>) attributes {dimension_semantics = [#tpu.dimension_semantics<arbitrary>], iteration_bounds = array<i64: 2>, scalar_prefetch = 0 : i64, scratch_operands = 1 : i64, tpu.core_type = #tpu.core_type<tc>, window_params = [{pipeline_mode = #tpu.pipeline_mode<synchronous>, transform_indices = @transform_0, window_bounds = array<i64: 2, 8, 32>}, {pipeline_mode = #tpu.pipeline_mode<synchronous>, transform_indices = @transform_1, window_bounds = array<i64: 2, 8, 32>}, {pipeline_mode = #tpu.pipeline_mode<synchronous>, transform_indices = @transform_2, window_bounds = array<i64: 2, 8, 8>}, {pipeline_mode = #tpu.pipeline_mode<synchronous>, transform_indices = @transform_3, window_bounds = array<i64: 2, 8>}, {transform_indices = @transform_4, window_bounds = array<i64: 1, 1, 32>}, {transform_indices = @transform_5, window_bounds = array<i64: 1, 1, 32>}, {transform_indices = @transform_6, window_bounds = array<i64: 1, 32, 96>}, {transform_indices = @transform_7, window_bounds = array<i64: 1, 1, 96>}, {transform_indices = @transform_8, window_bounds = array<i64: 1, 32, 32>}, {transform_indices = @transform_9, window_bounds = array<i64: 1, 1, 32>}, {transform_indices = @transform_10, window_bounds = array<i64: 1, 1, 32>}, {transform_indices = @transform_11, window_bounds = array<i64: 1, 1, 32>}, {transform_indices = @transform_12, window_bounds = array<i64: 1, 32, 32>}, {transform_indices = @transform_13, window_bounds = array<i64: 1, 1, 32>}, {transform_indices = @transform_14, window_bounds = array<i64: 1, 32, 64>}, {transform_indices = @transform_15, window_bounds = array<i64: 1, 1, 64>}, {transform_indices = @transform_16, window_bounds = array<i64: 1, 32, 32>}, {transform_indices = @transform_17, window_bounds = array<i64: 1, 1, 32>}, {transform_indices = @transform_18, window_bounds = array<i64: 1, 1, 32>}, {transform_indices = @transform_19, window_bounds = array<i64: 1, 1, 32>}, {transform_indices = @transform_20, window_bounds = array<i64: 1, 32, 64>}, {transform_indices = @transform_21, window_bounds = array<i64: 1, 1, 64>}, {transform_indices = @transform_22, window_bounds = array<i64: 1, 64, 32>}, {transform_indices = @transform_23, window_bounds = array<i64: 1, 1, 32>}, {pipeline_mode = #tpu.pipeline_mode<synchronous>, transform_indices = @transform_24, window_bounds = array<i64: 1, 32>}, {pipeline_mode = #tpu.pipeline_mode<synchronous>, transform_indices = @transform_25, window_bounds = array<i64: 1, 32>}, {pipeline_mode = #tpu.pipeline_mode<synchronous>, transform_indices = @transform_26, window_bounds = array<i64: 32, 128>}, {pipeline_mode = #tpu.pipeline_mode<synchronous>, transform_indices = @transform_27, window_bounds = array<i64: 1, 128>}, {pipeline_mode = #tpu.pipeline_mode<synchronous>, transform_indices = @transform_28, window_bounds = array<i64: 2, 8, 128>}]} {
    %c0_i32 = arith.constant 0 : i32
    %0 = arith.cmpi eq, %arg0, %c0_i32 : i32
    %1 = arith.extui %0 : i1 to i32
    %c0_i32_0 = arith.constant 0 : i32
    %2 = arith.cmpi ne, %1, %c0_i32_0 : i32
    scf.if %2 {
      %c0_135 = arith.constant 0 : index
      %c0_136 = arith.constant 0 : index
      %c0_137 = arith.constant 0 : index
      %332 = vector.load %arg1[%c0_135, %c0_136, %c0_137] : memref<2x8x32xf32, #tpu.memory_space<vmem>>, vector<2x8x32xf32>
      %c0_138 = arith.constant 0 : index
      %c0_139 = arith.constant 0 : index
      %c0_140 = arith.constant 0 : index
      %333 = vector.load %arg30[%c0_138, %c0_139, %c0_140] : memref<2x8x32xf32, #tpu.memory_space<vmem>>, vector<2x8x32xf32>
      tpu.vector_store %arg30[%c0_138, %c0_139, %c0_140], %332 {strides = array<i32>} : memref<2x8x32xf32, #tpu.memory_space<vmem>>, vector<2x8x32xf32>,
    } else {
    }
    %c0 = arith.constant 0 : index
    %c0_1 = arith.constant 0 : index
    %c0_2 = arith.constant 0 : index
    %3 = vector.load %arg30[%c0, %c0_1, %c0_2] : memref<2x8x32xf32, #tpu.memory_space<vmem>>, vector<2x8x32xf32>
    %c0_3 = arith.constant 0 : index
    %c0_4 = arith.constant 0 : index
    %c0_5 = arith.constant 0 : index
    %4 = vector.load %arg2[%c0_3, %c0_4, %c0_5] : memref<2x8x32xf32, #tpu.memory_space<vmem>>, vector<2x8x32xf32>
    %c0_6 = arith.constant 0 : index
    %c0_7 = arith.constant 0 : index
    %c0_8 = arith.constant 0 : index
    %5 = vector.load %arg3[%c0_6, %c0_7, %c0_8] : memref<2x8x8xf32, #tpu.memory_space<vmem>>, vector<2x8x8xf32>
    %cst = arith.constant 1.000000e+00 : f32
    %6 = vector.broadcast %cst : f32 to vector<2x8x8xf32>
    %7 = arith.subf %5, %6 : vector<2x8x8xf32>
    %cst_9 = arith.constant 1.000000e+09 : f32
    %8 = vector.broadcast %cst_9 : f32 to vector<2x8x8xf32>
    %9 = arith.mulf %7, %8 : vector<2x8x8xf32>
    %c0_10 = arith.constant 0 : index
    %c0_11 = arith.constant 0 : index
    %10 = vector.load %arg4[%c0_10, %c0_11] : memref<2x8xf32, #tpu.memory_space<vmem>>, vector<2x8xf32>
    %cst_12 = arith.constant 1.000000e+00 : f32
    %11 = vector.broadcast %cst_12 : f32 to vector<2x8xf32>
    %12 = arith.subf %10, %11 : vector<2x8xf32>
    %cst_13 = arith.constant 1.000000e+09 : f32
    %13 = vector.broadcast %cst_13 : f32 to vector<2x8xf32>
    %14 = arith.mulf %12, %13 : vector<2x8xf32>
    %15 = vector.shape_cast %14 : vector<2x8xf32> to vector<2x1x8xf32>
    %16 = vector.shape_cast %15 : vector<2x1x8xf32> to vector<2x1x8xf32>
    %17 = vector.broadcast %16 : vector<2x1x8xf32> to vector<2x8x8xf32>
    %c0_14 = arith.constant 0 : index
    %c0_15 = arith.constant 0 : index
    %c0_16 = arith.constant 0 : index
    %18 = vector.load %arg5[%c0_14, %c0_15, %c0_16] : memref<1x1x32xf32, #tpu.memory_space<vmem>>, vector<1x1x32xf32>
    %19 = vector.shape_cast %18 : vector<1x1x32xf32> to vector<1x32xf32>
    %c0_17 = arith.constant 0 : index
    %c0_18 = arith.constant 0 : index
    %c0_19 = arith.constant 0 : index
    %20 = vector.load %arg6[%c0_17, %c0_18, %c0_19] : memref<1x1x32xf32, #tpu.memory_space<vmem>>, vector<1x1x32xf32>
    %21 = vector.shape_cast %20 : vector<1x1x32xf32> to vector<1x32xf32>
    %cst_20 = arith.constant dense<0.000000e+00> : vector<2x8xf32>
    %22 = vector.multi_reduction <add>, %3, %cst_20 [2] : vector<2x8x32xf32> to vector<2x8xf32>
    %23 = vector.shape_cast %22 : vector<2x8xf32> to vector<2x8x1xf32>
    %cst_21 = arith.constant 3.200000e+01 : f32
    %24 = vector.broadcast %cst_21 : f32 to vector<2x8x1xf32>
    %25 = arith.divf %23, %24 : vector<2x8x1xf32>
    %26 = vector.broadcast %25 : vector<2x8x1xf32> to vector<2x8x32xf32>
    %27 = arith.subf %3, %26 : vector<2x8x32xf32>
    %28 = arith.mulf %27, %27 : vector<2x8x32xf32>
    %cst_22 = arith.constant dense<0.000000e+00> : vector<2x8xf32>
    %29 = vector.multi_reduction <add>, %28, %cst_22 [2] : vector<2x8x32xf32> to vector<2x8xf32>
    %30 = vector.shape_cast %29 : vector<2x8xf32> to vector<2x8x1xf32>
    %cst_23 = arith.constant 3.200000e+01 : f32
    %31 = vector.broadcast %cst_23 : f32 to vector<2x8x1xf32>
    %32 = arith.divf %30, %31 : vector<2x8x1xf32>
    %33 = vector.broadcast %25 : vector<2x8x1xf32> to vector<2x8x32xf32>
    %34 = arith.subf %3, %33 : vector<2x8x32xf32>
    %cst_24 = arith.constant 9.99999997E-7 : f32
    %35 = vector.broadcast %cst_24 : f32 to vector<2x8x1xf32>
    %36 = arith.addf %32, %35 : vector<2x8x1xf32>
    %37 = math.rsqrt %36 : vector<2x8x1xf32>
    %38 = vector.broadcast %37 : vector<2x8x1xf32> to vector<2x8x32xf32>
    %39 = arith.mulf %34, %38 : vector<2x8x32xf32>
    %40 = vector.shape_cast %19 : vector<1x32xf32> to vector<1x1x32xf32>
    %41 = vector.broadcast %40 : vector<1x1x32xf32> to vector<2x8x32xf32>
    %42 = arith.mulf %39, %41 : vector<2x8x32xf32>
    %43 = vector.shape_cast %21 : vector<1x32xf32> to vector<1x1x32xf32>
    %44 = vector.broadcast %43 : vector<1x1x32xf32> to vector<2x8x32xf32>
    %45 = arith.addf %42, %44 : vector<2x8x32xf32>
    %46 = vector.shape_cast %45 : vector<2x8x32xf32> to vector<16x32xf32>
    %c0_25 = arith.constant 0 : index
    %c0_26 = arith.constant 0 : index
    %c0_27 = arith.constant 0 : index
    %47 = vector.load %arg7[%c0_25, %c0_26, %c0_27] : memref<1x32x96xbf16, #tpu.memory_space<vmem>>, vector<1x32x96xbf16>
    %48 = vector.shape_cast %47 : vector<1x32x96xbf16> to vector<32x96xbf16>
    %49 = arith.truncf %46 : vector<16x32xf32> to vector<16x32xbf16>
    %cst_28 = arith.constant dense<0.000000e+00> : vector<16x96xf32>
    %50 = tpu.matmul %49, %48, %cst_28 {dimension_numbers = #tpu.dot_dimension_numbers<[1], [0], [0], [1], [0, 0, 1, 1], [], []>} : vector<16x32xbf16>, vector<32x96xbf16>, vector<16x96xf32> -> vector<16x96xf32>
    %c0_29 = arith.constant 0 : index
    %c0_30 = arith.constant 0 : index
    %c0_31 = arith.constant 0 : index
    %51 = vector.load %arg8[%c0_29, %c0_30, %c0_31] : memref<1x1x96xf32, #tpu.memory_space<vmem>>, vector<1x1x96xf32>
    %52 = vector.shape_cast %51 : vector<1x1x96xf32> to vector<1x96xf32>
    %53 = vector.broadcast %52 : vector<1x96xf32> to vector<16x96xf32>
    %54 = arith.addf %50, %53 : vector<16x96xf32>
    %55 = vector.shape_cast %54 : vector<16x96xf32> to vector<2x8x96xf32>
    %56 = vector.extract_strided_slice %55 {offsets = [0, 0, 0], sizes = [2, 8, 32], strides = [1, 1, 1]} : vector<2x8x96xf32> to vector<2x8x32xf32>
    %57 = vector.extract_strided_slice %55 {offsets = [0, 0, 32], sizes = [2, 8, 32], strides = [1, 1, 1]} : vector<2x8x96xf32> to vector<2x8x32xf32>
    %58 = vector.extract_strided_slice %55 {offsets = [0, 0, 64], sizes = [2, 8, 32], strides = [1, 1, 1]} : vector<2x8x96xf32> to vector<2x8x32xf32>
    %c0_32 = arith.constant 0 : index
    %c0_33 = arith.constant 0 : index
    %c0_34 = arith.constant 0 : index
    %59 = vector.load %arg9[%c0_32, %c0_33, %c0_34] : memref<1x32x32xbf16, #tpu.memory_space<vmem>>, vector<1x32x32xbf16>
    %60 = vector.shape_cast %59 : vector<1x32x32xbf16> to vector<32x32xbf16>
    %c0_35 = arith.constant 0 : index
    %c0_36 = arith.constant 0 : index
    %c0_37 = arith.constant 0 : index
    %61 = vector.load %arg10[%c0_35, %c0_36, %c0_37] : memref<1x1x32xf32, #tpu.memory_space<vmem>>, vector<1x1x32xf32>
    %62 = vector.shape_cast %61 : vector<1x1x32xf32> to vector<1x32xf32>
    %cst_38 = arith.constant 0.353553385 : f32
    %63 = vector.broadcast %cst_38 : f32 to vector<2x8x32xf32>
    %64 = arith.mulf %56, %63 : vector<2x8x32xf32>
    %65 = arith.truncf %64 : vector<2x8x32xf32> to vector<2x8x32xbf16>
    %66 = arith.truncf %57 : vector<2x8x32xf32> to vector<2x8x32xbf16>
    %67 = arith.truncf %58 : vector<2x8x32xf32> to vector<2x8x32xbf16>
    %68 = vector.extract_strided_slice %65 {offsets = [0, 0, 0], sizes = [2, 8, 8], strides = [1, 1, 1]} : vector<2x8x32xbf16> to vector<2x8x8xbf16>
    %69 = vector.extract_strided_slice %66 {offsets = [0, 0, 0], sizes = [2, 8, 8], strides = [1, 1, 1]} : vector<2x8x32xbf16> to vector<2x8x8xbf16>
    "tpu.trace_start"() <{level = 10 : i32, message = "bqd,bkd->bqk"}> : () -> ()
    %cst_39 = arith.constant dense<0.000000e+00> : vector<2x8x8xf32>
    %70 = tpu.matmul %68, %69, %cst_39 {dimension_numbers = #tpu.dot_dimension_numbers<[2], [2], [1], [1], [0, 0, 0, 1, 1, 1], [0], [0]>} : vector<2x8x8xbf16>, vector<2x8x8xbf16>, vector<2x8x8xf32> -> vector<2x8x8xf32>
    "tpu.trace_stop"() : () -> ()
    %71 = arith.addf %70, %9 : vector<2x8x8xf32>
    %cst_40 = arith.constant dense<0xFF800000> : vector<2x8xf32>
    %72 = vector.multi_reduction <maximumf>, %71, %cst_40 [2] : vector<2x8x8xf32> to vector<2x8xf32>
    %73 = vector.shape_cast %72 : vector<2x8xf32> to vector<2x8x1xf32>
    %74 = vector.broadcast %73 : vector<2x8x1xf32> to vector<2x8x8xf32>
    %75 = arith.subf %71, %74 : vector<2x8x8xf32>
    %76 = math.exp %75 : vector<2x8x8xf32>
    %cst_41 = arith.constant dense<0.000000e+00> : vector<2x8xf32>
    %77 = vector.multi_reduction <add>, %76, %cst_41 [2] : vector<2x8x8xf32> to vector<2x8xf32>
    %78 = vector.shape_cast %77 : vector<2x8xf32> to vector<2x8x1xf32>
    %79 = tpu.reciprocal %78 {approx = true} : vector<2x8x1xf32> -> vector<2x8x1xf32>
    %80 = vector.broadcast %79 : vector<2x8x1xf32> to vector<2x8x8xf32>
    %81 = arith.mulf %76, %80 : vector<2x8x8xf32>
    %82 = arith.truncf %81 : vector<2x8x8xf32> to vector<2x8x8xbf16>
    %83 = vector.extract_strided_slice %67 {offsets = [0, 0, 0], sizes = [2, 8, 8], strides = [1, 1, 1]} : vector<2x8x32xbf16> to vector<2x8x8xbf16>
    "tpu.trace_start"() <{level = 10 : i32, message = "bqk,bkd->bqd"}> : () -> ()
    %cst_42 = arith.constant dense<0.000000e+00> : vector<2x8x8xf32>
    %84 = tpu.matmul %82, %83, %cst_42 {dimension_numbers = #tpu.dot_dimension_numbers<[2], [1], [1], [2], [0, 0, 0, 1, 1, 2], [0], [0]>} : vector<2x8x8xbf16>, vector<2x8x8xbf16>, vector<2x8x8xf32> -> vector<2x8x8xf32>
    "tpu.trace_stop"() : () -> ()
    %85 = vector.extract_strided_slice %65 {offsets = [0, 0, 8], sizes = [2, 8, 8], strides = [1, 1, 1]} : vector<2x8x32xbf16> to vector<2x8x8xbf16>
    %86 = vector.extract_strided_slice %66 {offsets = [0, 0, 8], sizes = [2, 8, 8], strides = [1, 1, 1]} : vector<2x8x32xbf16> to vector<2x8x8xbf16>
    "tpu.trace_start"() <{level = 10 : i32, message = "bqd,bkd->bqk"}> : () -> ()
    %cst_43 = arith.constant dense<0.000000e+00> : vector<2x8x8xf32>
    %87 = tpu.matmul %85, %86, %cst_43 {dimension_numbers = #tpu.dot_dimension_numbers<[2], [2], [1], [1], [0, 0, 0, 1, 1, 1], [0], [0]>} : vector<2x8x8xbf16>, vector<2x8x8xbf16>, vector<2x8x8xf32> -> vector<2x8x8xf32>
    "tpu.trace_stop"() : () -> ()
    %88 = arith.addf %87, %9 : vector<2x8x8xf32>
    %cst_44 = arith.constant dense<0xFF800000> : vector<2x8xf32>
    %89 = vector.multi_reduction <maximumf>, %88, %cst_44 [2] : vector<2x8x8xf32> to vector<2x8xf32>
    %90 = vector.shape_cast %89 : vector<2x8xf32> to vector<2x8x1xf32>
    %91 = vector.broadcast %90 : vector<2x8x1xf32> to vector<2x8x8xf32>
    %92 = arith.subf %88, %91 : vector<2x8x8xf32>
    %93 = math.exp %92 : vector<2x8x8xf32>
    %cst_45 = arith.constant dense<0.000000e+00> : vector<2x8xf32>
    %94 = vector.multi_reduction <add>, %93, %cst_45 [2] : vector<2x8x8xf32> to vector<2x8xf32>
    %95 = vector.shape_cast %94 : vector<2x8xf32> to vector<2x8x1xf32>
    %96 = tpu.reciprocal %95 {approx = true} : vector<2x8x1xf32> -> vector<2x8x1xf32>
    %97 = vector.broadcast %96 : vector<2x8x1xf32> to vector<2x8x8xf32>
    %98 = arith.mulf %93, %97 : vector<2x8x8xf32>
    %99 = arith.truncf %98 : vector<2x8x8xf32> to vector<2x8x8xbf16>
    %100 = vector.extract_strided_slice %67 {offsets = [0, 0, 8], sizes = [2, 8, 8], strides = [1, 1, 1]} : vector<2x8x32xbf16> to vector<2x8x8xbf16>
    "tpu.trace_start"() <{level = 10 : i32, message = "bqk,bkd->bqd"}> : () -> ()
    %cst_46 = arith.constant dense<0.000000e+00> : vector<2x8x8xf32>
    %101 = tpu.matmul %99, %100, %cst_46 {dimension_numbers = #tpu.dot_dimension_numbers<[2], [1], [1], [2], [0, 0, 0, 1, 1, 2], [0], [0]>} : vector<2x8x8xbf16>, vector<2x8x8xbf16>, vector<2x8x8xf32> -> vector<2x8x8xf32>
    "tpu.trace_stop"() : () -> ()
    %102 = vector.extract_strided_slice %65 {offsets = [0, 0, 16], sizes = [2, 8, 8], strides = [1, 1, 1]} : vector<2x8x32xbf16> to vector<2x8x8xbf16>
    %103 = vector.extract_strided_slice %66 {offsets = [0, 0, 16], sizes = [2, 8, 8], strides = [1, 1, 1]} : vector<2x8x32xbf16> to vector<2x8x8xbf16>
    "tpu.trace_start"() <{level = 10 : i32, message = "bqd,bkd->bqk"}> : () -> ()
    %cst_47 = arith.constant dense<0.000000e+00> : vector<2x8x8xf32>
    %104 = tpu.matmul %102, %103, %cst_47 {dimension_numbers = #tpu.dot_dimension_numbers<[2], [2], [1], [1], [0, 0, 0, 1, 1, 1], [0], [0]>} : vector<2x8x8xbf16>, vector<2x8x8xbf16>, vector<2x8x8xf32> -> vector<2x8x8xf32>
    "tpu.trace_stop"() : () -> ()
    %105 = arith.addf %104, %9 : vector<2x8x8xf32>
    %cst_48 = arith.constant dense<0xFF800000> : vector<2x8xf32>
    %106 = vector.multi_reduction <maximumf>, %105, %cst_48 [2] : vector<2x8x8xf32> to vector<2x8xf32>
    %107 = vector.shape_cast %106 : vector<2x8xf32> to vector<2x8x1xf32>
    %108 = vector.broadcast %107 : vector<2x8x1xf32> to vector<2x8x8xf32>
    %109 = arith.subf %105, %108 : vector<2x8x8xf32>
    %110 = math.exp %109 : vector<2x8x8xf32>
    %cst_49 = arith.constant dense<0.000000e+00> : vector<2x8xf32>
    %111 = vector.multi_reduction <add>, %110, %cst_49 [2] : vector<2x8x8xf32> to vector<2x8xf32>
    %112 = vector.shape_cast %111 : vector<2x8xf32> to vector<2x8x1xf32>
    %113 = tpu.reciprocal %112 {approx = true} : vector<2x8x1xf32> -> vector<2x8x1xf32>
    %114 = vector.broadcast %113 : vector<2x8x1xf32> to vector<2x8x8xf32>
    %115 = arith.mulf %110, %114 : vector<2x8x8xf32>
    %116 = arith.truncf %115 : vector<2x8x8xf32> to vector<2x8x8xbf16>
    %117 = vector.extract_strided_slice %67 {offsets = [0, 0, 16], sizes = [2, 8, 8], strides = [1, 1, 1]} : vector<2x8x32xbf16> to vector<2x8x8xbf16>
    "tpu.trace_start"() <{level = 10 : i32, message = "bqk,bkd->bqd"}> : () -> ()
    %cst_50 = arith.constant dense<0.000000e+00> : vector<2x8x8xf32>
    %118 = tpu.matmul %116, %117, %cst_50 {dimension_numbers = #tpu.dot_dimension_numbers<[2], [1], [1], [2], [0, 0, 0, 1, 1, 2], [0], [0]>} : vector<2x8x8xbf16>, vector<2x8x8xbf16>, vector<2x8x8xf32> -> vector<2x8x8xf32>
    "tpu.trace_stop"() : () -> ()
    %119 = vector.extract_strided_slice %65 {offsets = [0, 0, 24], sizes = [2, 8, 8], strides = [1, 1, 1]} : vector<2x8x32xbf16> to vector<2x8x8xbf16>
    %120 = vector.extract_strided_slice %66 {offsets = [0, 0, 24], sizes = [2, 8, 8], strides = [1, 1, 1]} : vector<2x8x32xbf16> to vector<2x8x8xbf16>
    "tpu.trace_start"() <{level = 10 : i32, message = "bqd,bkd->bqk"}> : () -> ()
    %cst_51 = arith.constant dense<0.000000e+00> : vector<2x8x8xf32>
    %121 = tpu.matmul %119, %120, %cst_51 {dimension_numbers = #tpu.dot_dimension_numbers<[2], [2], [1], [1], [0, 0, 0, 1, 1, 1], [0], [0]>} : vector<2x8x8xbf16>, vector<2x8x8xbf16>, vector<2x8x8xf32> -> vector<2x8x8xf32>
    "tpu.trace_stop"() : () -> ()
    %122 = arith.addf %121, %9 : vector<2x8x8xf32>
    %cst_52 = arith.constant dense<0xFF800000> : vector<2x8xf32>
    %123 = vector.multi_reduction <maximumf>, %122, %cst_52 [2] : vector<2x8x8xf32> to vector<2x8xf32>
    %124 = vector.shape_cast %123 : vector<2x8xf32> to vector<2x8x1xf32>
    %125 = vector.broadcast %124 : vector<2x8x1xf32> to vector<2x8x8xf32>
    %126 = arith.subf %122, %125 : vector<2x8x8xf32>
    %127 = math.exp %126 : vector<2x8x8xf32>
    %cst_53 = arith.constant dense<0.000000e+00> : vector<2x8xf32>
    %128 = vector.multi_reduction <add>, %127, %cst_53 [2] : vector<2x8x8xf32> to vector<2x8xf32>
    %129 = vector.shape_cast %128 : vector<2x8xf32> to vector<2x8x1xf32>
    %130 = tpu.reciprocal %129 {approx = true} : vector<2x8x1xf32> -> vector<2x8x1xf32>
    %131 = vector.broadcast %130 : vector<2x8x1xf32> to vector<2x8x8xf32>
    %132 = arith.mulf %127, %131 : vector<2x8x8xf32>
    %133 = arith.truncf %132 : vector<2x8x8xf32> to vector<2x8x8xbf16>
    %134 = vector.extract_strided_slice %67 {offsets = [0, 0, 24], sizes = [2, 8, 8], strides = [1, 1, 1]} : vector<2x8x32xbf16> to vector<2x8x8xbf16>
    "tpu.trace_start"() <{level = 10 : i32, message = "bqk,bkd->bqd"}> : () -> ()
    %cst_54 = arith.constant dense<0.000000e+00> : vector<2x8x8xf32>
    %135 = tpu.matmul %133, %134, %cst_54 {dimension_numbers = #tpu.dot_dimension_numbers<[2], [1], [1], [2], [0, 0, 0, 1, 1, 2], [0], [0]>} : vector<2x8x8xbf16>, vector<2x8x8xbf16>, vector<2x8x8xf32> -> vector<2x8x8xf32>
    "tpu.trace_stop"() : () -> ()
    %136 = tpu.concatenate %84, %101, %118, %135 in 2 : vector<2x8x8xf32>, vector<2x8x8xf32>, vector<2x8x8xf32>, vector<2x8x8xf32> -> vector<2x8x32xf32>
    %137 = vector.shape_cast %136 : vector<2x8x32xf32> to vector<16x32xf32>
    %138 = arith.truncf %137 : vector<16x32xf32> to vector<16x32xbf16>
    %cst_55 = arith.constant dense<0.000000e+00> : vector<16x32xf32>
    %139 = tpu.matmul %138, %60, %cst_55 {dimension_numbers = #tpu.dot_dimension_numbers<[1], [0], [0], [1], [0, 0, 1, 1], [], []>} : vector<16x32xbf16>, vector<32x32xbf16>, vector<16x32xf32> -> vector<16x32xf32>
    %140 = vector.broadcast %62 : vector<1x32xf32> to vector<16x32xf32>
    %141 = arith.addf %139, %140 : vector<16x32xf32>
    %142 = vector.shape_cast %141 : vector<16x32xf32> to vector<2x8x32xf32>
    %143 = arith.addf %3, %142 : vector<2x8x32xf32>
    %c0_56 = arith.constant 0 : index
    %c0_57 = arith.constant 0 : index
    %c0_58 = arith.constant 0 : index
    %144 = vector.load %arg11[%c0_56, %c0_57, %c0_58] : memref<1x1x32xf32, #tpu.memory_space<vmem>>, vector<1x1x32xf32>
    %145 = vector.shape_cast %144 : vector<1x1x32xf32> to vector<1x32xf32>
    %c0_59 = arith.constant 0 : index
    %c0_60 = arith.constant 0 : index
    %c0_61 = arith.constant 0 : index
    %146 = vector.load %arg12[%c0_59, %c0_60, %c0_61] : memref<1x1x32xf32, #tpu.memory_space<vmem>>, vector<1x1x32xf32>
    %147 = vector.shape_cast %146 : vector<1x1x32xf32> to vector<1x32xf32>
    %cst_62 = arith.constant dense<0.000000e+00> : vector<2x8xf32>
    %148 = vector.multi_reduction <add>, %143, %cst_62 [2] : vector<2x8x32xf32> to vector<2x8xf32>
    %149 = vector.shape_cast %148 : vector<2x8xf32> to vector<2x8x1xf32>
    %cst_63 = arith.constant 3.200000e+01 : f32
    %150 = vector.broadcast %cst_63 : f32 to vector<2x8x1xf32>
    %151 = arith.divf %149, %150 : vector<2x8x1xf32>
    %152 = vector.broadcast %151 : vector<2x8x1xf32> to vector<2x8x32xf32>
    %153 = arith.subf %143, %152 : vector<2x8x32xf32>
    %154 = arith.mulf %153, %153 : vector<2x8x32xf32>
    %cst_64 = arith.constant dense<0.000000e+00> : vector<2x8xf32>
    %155 = vector.multi_reduction <add>, %154, %cst_64 [2] : vector<2x8x32xf32> to vector<2x8xf32>
    %156 = vector.shape_cast %155 : vector<2x8xf32> to vector<2x8x1xf32>
    %cst_65 = arith.constant 3.200000e+01 : f32
    %157 = vector.broadcast %cst_65 : f32 to vector<2x8x1xf32>
    %158 = arith.divf %156, %157 : vector<2x8x1xf32>
    %159 = vector.broadcast %151 : vector<2x8x1xf32> to vector<2x8x32xf32>
    %160 = arith.subf %143, %159 : vector<2x8x32xf32>
    %cst_66 = arith.constant 9.99999997E-7 : f32
    %161 = vector.broadcast %cst_66 : f32 to vector<2x8x1xf32>
    %162 = arith.addf %158, %161 : vector<2x8x1xf32>
    %163 = math.rsqrt %162 : vector<2x8x1xf32>
    %164 = vector.broadcast %163 : vector<2x8x1xf32> to vector<2x8x32xf32>
    %165 = arith.mulf %160, %164 : vector<2x8x32xf32>
    %166 = vector.shape_cast %145 : vector<1x32xf32> to vector<1x1x32xf32>
    %167 = vector.broadcast %166 : vector<1x1x32xf32> to vector<2x8x32xf32>
    %168 = arith.mulf %165, %167 : vector<2x8x32xf32>
    %169 = vector.shape_cast %147 : vector<1x32xf32> to vector<1x1x32xf32>
    %170 = vector.broadcast %169 : vector<1x1x32xf32> to vector<2x8x32xf32>
    %171 = arith.addf %168, %170 : vector<2x8x32xf32>
    %172 = vector.shape_cast %171 : vector<2x8x32xf32> to vector<16x32xf32>
    %c0_67 = arith.constant 0 : index
    %c0_68 = arith.constant 0 : index
    %c0_69 = arith.constant 0 : index
    %173 = vector.load %arg13[%c0_67, %c0_68, %c0_69] : memref<1x32x32xbf16, #tpu.memory_space<vmem>>, vector<1x32x32xbf16>
    %174 = vector.shape_cast %173 : vector<1x32x32xbf16> to vector<32x32xbf16>
    %175 = arith.truncf %172 : vector<16x32xf32> to vector<16x32xbf16>
    %cst_70 = arith.constant dense<0.000000e+00> : vector<16x32xf32>
    %176 = tpu.matmul %175, %174, %cst_70 {dimension_numbers = #tpu.dot_dimension_numbers<[1], [0], [0], [1], [0, 0, 1, 1], [], []>} : vector<16x32xbf16>, vector<32x32xbf16>, vector<16x32xf32> -> vector<16x32xf32>
    %c0_71 = arith.constant 0 : index
    %c0_72 = arith.constant 0 : index
    %c0_73 = arith.constant 0 : index
    %177 = vector.load %arg14[%c0_71, %c0_72, %c0_73] : memref<1x1x32xf32, #tpu.memory_space<vmem>>, vector<1x1x32xf32>
    %178 = vector.shape_cast %177 : vector<1x1x32xf32> to vector<1x32xf32>
    %179 = vector.broadcast %178 : vector<1x32xf32> to vector<16x32xf32>
    %180 = arith.addf %176, %179 : vector<16x32xf32>
    %181 = vector.shape_cast %180 : vector<16x32xf32> to vector<2x8x32xf32>
    %182 = vector.shape_cast %4 : vector<2x8x32xf32> to vector<16x32xf32>
    %c0_74 = arith.constant 0 : index
    %c0_75 = arith.constant 0 : index
    %c0_76 = arith.constant 0 : index
    %183 = vector.load %arg15[%c0_74, %c0_75, %c0_76] : memref<1x32x64xbf16, #tpu.memory_space<vmem>>, vector<1x32x64xbf16>
    %184 = vector.shape_cast %183 : vector<1x32x64xbf16> to vector<32x64xbf16>
    %185 = arith.truncf %182 : vector<16x32xf32> to vector<16x32xbf16>
    %cst_77 = arith.constant dense<0.000000e+00> : vector<16x64xf32>
    %186 = tpu.matmul %185, %184, %cst_77 {dimension_numbers = #tpu.dot_dimension_numbers<[1], [0], [0], [1], [0, 0, 1, 1], [], []>} : vector<16x32xbf16>, vector<32x64xbf16>, vector<16x64xf32> -> vector<16x64xf32>
    %c0_78 = arith.constant 0 : index
    %c0_79 = arith.constant 0 : index
    %c0_80 = arith.constant 0 : index
    %187 = vector.load %arg16[%c0_78, %c0_79, %c0_80] : memref<1x1x64xf32, #tpu.memory_space<vmem>>, vector<1x1x64xf32>
    %188 = vector.shape_cast %187 : vector<1x1x64xf32> to vector<1x64xf32>
    %189 = vector.broadcast %188 : vector<1x64xf32> to vector<16x64xf32>
    %190 = arith.addf %186, %189 : vector<16x64xf32>
    %191 = vector.shape_cast %190 : vector<16x64xf32> to vector<2x8x64xf32>
    %192 = vector.extract_strided_slice %191 {offsets = [0, 0, 0], sizes = [2, 8, 32], strides = [1, 1, 1]} : vector<2x8x64xf32> to vector<2x8x32xf32>
    %193 = vector.extract_strided_slice %191 {offsets = [0, 0, 32], sizes = [2, 8, 32], strides = [1, 1, 1]} : vector<2x8x64xf32> to vector<2x8x32xf32>
    %c0_81 = arith.constant 0 : index
    %c0_82 = arith.constant 0 : index
    %c0_83 = arith.constant 0 : index
    %194 = vector.load %arg17[%c0_81, %c0_82, %c0_83] : memref<1x32x32xbf16, #tpu.memory_space<vmem>>, vector<1x32x32xbf16>
    %195 = vector.shape_cast %194 : vector<1x32x32xbf16> to vector<32x32xbf16>
    %c0_84 = arith.constant 0 : index
    %c0_85 = arith.constant 0 : index
    %c0_86 = arith.constant 0 : index
    %196 = vector.load %arg18[%c0_84, %c0_85, %c0_86] : memref<1x1x32xf32, #tpu.memory_space<vmem>>, vector<1x1x32xf32>
    %197 = vector.shape_cast %196 : vector<1x1x32xf32> to vector<1x32xf32>
    %cst_87 = arith.constant 0.353553385 : f32
    %198 = vector.broadcast %cst_87 : f32 to vector<2x8x32xf32>
    %199 = arith.mulf %181, %198 : vector<2x8x32xf32>
    %200 = arith.truncf %199 : vector<2x8x32xf32> to vector<2x8x32xbf16>
    %201 = arith.truncf %192 : vector<2x8x32xf32> to vector<2x8x32xbf16>
    %202 = arith.truncf %193 : vector<2x8x32xf32> to vector<2x8x32xbf16>
    %203 = vector.extract_strided_slice %200 {offsets = [0, 0, 0], sizes = [2, 8, 8], strides = [1, 1, 1]} : vector<2x8x32xbf16> to vector<2x8x8xbf16>
    %204 = vector.extract_strided_slice %201 {offsets = [0, 0, 0], sizes = [2, 8, 8], strides = [1, 1, 1]} : vector<2x8x32xbf16> to vector<2x8x8xbf16>
    "tpu.trace_start"() <{level = 10 : i32, message = "bqd,bkd->bqk"}> : () -> ()
    %cst_88 = arith.constant dense<0.000000e+00> : vector<2x8x8xf32>
    %205 = tpu.matmul %203, %204, %cst_88 {dimension_numbers = #tpu.dot_dimension_numbers<[2], [2], [1], [1], [0, 0, 0, 1, 1, 1], [0], [0]>} : vector<2x8x8xbf16>, vector<2x8x8xbf16>, vector<2x8x8xf32> -> vector<2x8x8xf32>
    "tpu.trace_stop"() : () -> ()
    %206 = arith.addf %205, %17 : vector<2x8x8xf32>
    %cst_89 = arith.constant dense<0xFF800000> : vector<2x8xf32>
    %207 = vector.multi_reduction <maximumf>, %206, %cst_89 [2] : vector<2x8x8xf32> to vector<2x8xf32>
    %208 = vector.shape_cast %207 : vector<2x8xf32> to vector<2x8x1xf32>
    %209 = vector.broadcast %208 : vector<2x8x1xf32> to vector<2x8x8xf32>
    %210 = arith.subf %206, %209 : vector<2x8x8xf32>
    %211 = math.exp %210 : vector<2x8x8xf32>
    %cst_90 = arith.constant dense<0.000000e+00> : vector<2x8xf32>
    %212 = vector.multi_reduction <add>, %211, %cst_90 [2] : vector<2x8x8xf32> to vector<2x8xf32>
    %213 = vector.shape_cast %212 : vector<2x8xf32> to vector<2x8x1xf32>
    %214 = tpu.reciprocal %213 {approx = true} : vector<2x8x1xf32> -> vector<2x8x1xf32>
    %215 = vector.broadcast %214 : vector<2x8x1xf32> to vector<2x8x8xf32>
    %216 = arith.mulf %211, %215 : vector<2x8x8xf32>
    %217 = arith.truncf %216 : vector<2x8x8xf32> to vector<2x8x8xbf16>
    %218 = vector.extract_strided_slice %202 {offsets = [0, 0, 0], sizes = [2, 8, 8], strides = [1, 1, 1]} : vector<2x8x32xbf16> to vector<2x8x8xbf16>
    "tpu.trace_start"() <{level = 10 : i32, message = "bqk,bkd->bqd"}> : () -> ()
    %cst_91 = arith.constant dense<0.000000e+00> : vector<2x8x8xf32>
    %219 = tpu.matmul %217, %218, %cst_91 {dimension_numbers = #tpu.dot_dimension_numbers<[2], [1], [1], [2], [0, 0, 0, 1, 1, 2], [0], [0]>} : vector<2x8x8xbf16>, vector<2x8x8xbf16>, vector<2x8x8xf32> -> vector<2x8x8xf32>
    "tpu.trace_stop"() : () -> ()
    %220 = vector.extract_strided_slice %200 {offsets = [0, 0, 8], sizes = [2, 8, 8], strides = [1, 1, 1]} : vector<2x8x32xbf16> to vector<2x8x8xbf16>
    %221 = vector.extract_strided_slice %201 {offsets = [0, 0, 8], sizes = [2, 8, 8], strides = [1, 1, 1]} : vector<2x8x32xbf16> to vector<2x8x8xbf16>
    "tpu.trace_start"() <{level = 10 : i32, message = "bqd,bkd->bqk"}> : () -> ()
    %cst_92 = arith.constant dense<0.000000e+00> : vector<2x8x8xf32>
    %222 = tpu.matmul %220, %221, %cst_92 {dimension_numbers = #tpu.dot_dimension_numbers<[2], [2], [1], [1], [0, 0, 0, 1, 1, 1], [0], [0]>} : vector<2x8x8xbf16>, vector<2x8x8xbf16>, vector<2x8x8xf32> -> vector<2x8x8xf32>
    "tpu.trace_stop"() : () -> ()
    %223 = arith.addf %222, %17 : vector<2x8x8xf32>
    %cst_93 = arith.constant dense<0xFF800000> : vector<2x8xf32>
    %224 = vector.multi_reduction <maximumf>, %223, %cst_93 [2] : vector<2x8x8xf32> to vector<2x8xf32>
    %225 = vector.shape_cast %224 : vector<2x8xf32> to vector<2x8x1xf32>
    %226 = vector.broadcast %225 : vector<2x8x1xf32> to vector<2x8x8xf32>
    %227 = arith.subf %223, %226 : vector<2x8x8xf32>
    %228 = math.exp %227 : vector<2x8x8xf32>
    %cst_94 = arith.constant dense<0.000000e+00> : vector<2x8xf32>
    %229 = vector.multi_reduction <add>, %228, %cst_94 [2] : vector<2x8x8xf32> to vector<2x8xf32>
    %230 = vector.shape_cast %229 : vector<2x8xf32> to vector<2x8x1xf32>
    %231 = tpu.reciprocal %230 {approx = true} : vector<2x8x1xf32> -> vector<2x8x1xf32>
    %232 = vector.broadcast %231 : vector<2x8x1xf32> to vector<2x8x8xf32>
    %233 = arith.mulf %228, %232 : vector<2x8x8xf32>
    %234 = arith.truncf %233 : vector<2x8x8xf32> to vector<2x8x8xbf16>
    %235 = vector.extract_strided_slice %202 {offsets = [0, 0, 8], sizes = [2, 8, 8], strides = [1, 1, 1]} : vector<2x8x32xbf16> to vector<2x8x8xbf16>
    "tpu.trace_start"() <{level = 10 : i32, message = "bqk,bkd->bqd"}> : () -> ()
    %cst_95 = arith.constant dense<0.000000e+00> : vector<2x8x8xf32>
    %236 = tpu.matmul %234, %235, %cst_95 {dimension_numbers = #tpu.dot_dimension_numbers<[2], [1], [1], [2], [0, 0, 0, 1, 1, 2], [0], [0]>} : vector<2x8x8xbf16>, vector<2x8x8xbf16>, vector<2x8x8xf32> -> vector<2x8x8xf32>
    "tpu.trace_stop"() : () -> ()
    %237 = vector.extract_strided_slice %200 {offsets = [0, 0, 16], sizes = [2, 8, 8], strides = [1, 1, 1]} : vector<2x8x32xbf16> to vector<2x8x8xbf16>
    %238 = vector.extract_strided_slice %201 {offsets = [0, 0, 16], sizes = [2, 8, 8], strides = [1, 1, 1]} : vector<2x8x32xbf16> to vector<2x8x8xbf16>
    "tpu.trace_start"() <{level = 10 : i32, message = "bqd,bkd->bqk"}> : () -> ()
    %cst_96 = arith.constant dense<0.000000e+00> : vector<2x8x8xf32>
    %239 = tpu.matmul %237, %238, %cst_96 {dimension_numbers = #tpu.dot_dimension_numbers<[2], [2], [1], [1], [0, 0, 0, 1, 1, 1], [0], [0]>} : vector<2x8x8xbf16>, vector<2x8x8xbf16>, vector<2x8x8xf32> -> vector<2x8x8xf32>
    "tpu.trace_stop"() : () -> ()
    %240 = arith.addf %239, %17 : vector<2x8x8xf32>
    %cst_97 = arith.constant dense<0xFF800000> : vector<2x8xf32>
    %241 = vector.multi_reduction <maximumf>, %240, %cst_97 [2] : vector<2x8x8xf32> to vector<2x8xf32>
    %242 = vector.shape_cast %241 : vector<2x8xf32> to vector<2x8x1xf32>
    %243 = vector.broadcast %242 : vector<2x8x1xf32> to vector<2x8x8xf32>
    %244 = arith.subf %240, %243 : vector<2x8x8xf32>
    %245 = math.exp %244 : vector<2x8x8xf32>
    %cst_98 = arith.constant dense<0.000000e+00> : vector<2x8xf32>
    %246 = vector.multi_reduction <add>, %245, %cst_98 [2] : vector<2x8x8xf32> to vector<2x8xf32>
    %247 = vector.shape_cast %246 : vector<2x8xf32> to vector<2x8x1xf32>
    %248 = tpu.reciprocal %247 {approx = true} : vector<2x8x1xf32> -> vector<2x8x1xf32>
    %249 = vector.broadcast %248 : vector<2x8x1xf32> to vector<2x8x8xf32>
    %250 = arith.mulf %245, %249 : vector<2x8x8xf32>
    %251 = arith.truncf %250 : vector<2x8x8xf32> to vector<2x8x8xbf16>
    %252 = vector.extract_strided_slice %202 {offsets = [0, 0, 16], sizes = [2, 8, 8], strides = [1, 1, 1]} : vector<2x8x32xbf16> to vector<2x8x8xbf16>
    "tpu.trace_start"() <{level = 10 : i32, message = "bqk,bkd->bqd"}> : () -> ()
    %cst_99 = arith.constant dense<0.000000e+00> : vector<2x8x8xf32>
    %253 = tpu.matmul %251, %252, %cst_99 {dimension_numbers = #tpu.dot_dimension_numbers<[2], [1], [1], [2], [0, 0, 0, 1, 1, 2], [0], [0]>} : vector<2x8x8xbf16>, vector<2x8x8xbf16>, vector<2x8x8xf32> -> vector<2x8x8xf32>
    "tpu.trace_stop"() : () -> ()
    %254 = vector.extract_strided_slice %200 {offsets = [0, 0, 24], sizes = [2, 8, 8], strides = [1, 1, 1]} : vector<2x8x32xbf16> to vector<2x8x8xbf16>
    %255 = vector.extract_strided_slice %201 {offsets = [0, 0, 24], sizes = [2, 8, 8], strides = [1, 1, 1]} : vector<2x8x32xbf16> to vector<2x8x8xbf16>
    "tpu.trace_start"() <{level = 10 : i32, message = "bqd,bkd->bqk"}> : () -> ()
    %cst_100 = arith.constant dense<0.000000e+00> : vector<2x8x8xf32>
    %256 = tpu.matmul %254, %255, %cst_100 {dimension_numbers = #tpu.dot_dimension_numbers<[2], [2], [1], [1], [0, 0, 0, 1, 1, 1], [0], [0]>} : vector<2x8x8xbf16>, vector<2x8x8xbf16>, vector<2x8x8xf32> -> vector<2x8x8xf32>
    "tpu.trace_stop"() : () -> ()
    %257 = arith.addf %256, %17 : vector<2x8x8xf32>
    %cst_101 = arith.constant dense<0xFF800000> : vector<2x8xf32>
    %258 = vector.multi_reduction <maximumf>, %257, %cst_101 [2] : vector<2x8x8xf32> to vector<2x8xf32>
    %259 = vector.shape_cast %258 : vector<2x8xf32> to vector<2x8x1xf32>
    %260 = vector.broadcast %259 : vector<2x8x1xf32> to vector<2x8x8xf32>
    %261 = arith.subf %257, %260 : vector<2x8x8xf32>
    %262 = math.exp %261 : vector<2x8x8xf32>
    %cst_102 = arith.constant dense<0.000000e+00> : vector<2x8xf32>
    %263 = vector.multi_reduction <add>, %262, %cst_102 [2] : vector<2x8x8xf32> to vector<2x8xf32>
    %264 = vector.shape_cast %263 : vector<2x8xf32> to vector<2x8x1xf32>
    %265 = tpu.reciprocal %264 {approx = true} : vector<2x8x1xf32> -> vector<2x8x1xf32>
    %266 = vector.broadcast %265 : vector<2x8x1xf32> to vector<2x8x8xf32>
    %267 = arith.mulf %262, %266 : vector<2x8x8xf32>
    %268 = arith.truncf %267 : vector<2x8x8xf32> to vector<2x8x8xbf16>
    %269 = vector.extract_strided_slice %202 {offsets = [0, 0, 24], sizes = [2, 8, 8], strides = [1, 1, 1]} : vector<2x8x32xbf16> to vector<2x8x8xbf16>
    "tpu.trace_start"() <{level = 10 : i32, message = "bqk,bkd->bqd"}> : () -> ()
    %cst_103 = arith.constant dense<0.000000e+00> : vector<2x8x8xf32>
    %270 = tpu.matmul %268, %269, %cst_103 {dimension_numbers = #tpu.dot_dimension_numbers<[2], [1], [1], [2], [0, 0, 0, 1, 1, 2], [0], [0]>} : vector<2x8x8xbf16>, vector<2x8x8xbf16>, vector<2x8x8xf32> -> vector<2x8x8xf32>
    "tpu.trace_stop"() : () -> ()
    %271 = tpu.concatenate %219, %236, %253, %270 in 2 : vector<2x8x8xf32>, vector<2x8x8xf32>, vector<2x8x8xf32>, vector<2x8x8xf32> -> vector<2x8x32xf32>
    %272 = vector.shape_cast %271 : vector<2x8x32xf32> to vector<16x32xf32>
    %273 = arith.truncf %272 : vector<16x32xf32> to vector<16x32xbf16>
    %cst_104 = arith.constant dense<0.000000e+00> : vector<16x32xf32>
    %274 = tpu.matmul %273, %195, %cst_104 {dimension_numbers = #tpu.dot_dimension_numbers<[1], [0], [0], [1], [0, 0, 1, 1], [], []>} : vector<16x32xbf16>, vector<32x32xbf16>, vector<16x32xf32> -> vector<16x32xf32>
    %275 = vector.broadcast %197 : vector<1x32xf32> to vector<16x32xf32>
    %276 = arith.addf %274, %275 : vector<16x32xf32>
    %277 = vector.shape_cast %276 : vector<16x32xf32> to vector<2x8x32xf32>
    %278 = arith.addf %143, %277 : vector<2x8x32xf32>
    %c0_105 = arith.constant 0 : index
    %c0_106 = arith.constant 0 : index
    %c0_107 = arith.constant 0 : index
    %279 = vector.load %arg19[%c0_105, %c0_106, %c0_107] : memref<1x1x32xf32, #tpu.memory_space<vmem>>, vector<1x1x32xf32>
    %280 = vector.shape_cast %279 : vector<1x1x32xf32> to vector<1x32xf32>
    %c0_108 = arith.constant 0 : index
    %c0_109 = arith.constant 0 : index
    %c0_110 = arith.constant 0 : index
    %281 = vector.load %arg20[%c0_108, %c0_109, %c0_110] : memref<1x1x32xf32, #tpu.memory_space<vmem>>, vector<1x1x32xf32>
    %282 = vector.shape_cast %281 : vector<1x1x32xf32> to vector<1x32xf32>
    %cst_111 = arith.constant dense<0.000000e+00> : vector<2x8xf32>
    %283 = vector.multi_reduction <add>, %278, %cst_111 [2] : vector<2x8x32xf32> to vector<2x8xf32>
    %284 = vector.shape_cast %283 : vector<2x8xf32> to vector<2x8x1xf32>
    %cst_112 = arith.constant 3.200000e+01 : f32
    %285 = vector.broadcast %cst_112 : f32 to vector<2x8x1xf32>
    %286 = arith.divf %284, %285 : vector<2x8x1xf32>
    %287 = vector.broadcast %286 : vector<2x8x1xf32> to vector<2x8x32xf32>
    %288 = arith.subf %278, %287 : vector<2x8x32xf32>
    %289 = arith.mulf %288, %288 : vector<2x8x32xf32>
    %cst_113 = arith.constant dense<0.000000e+00> : vector<2x8xf32>
    %290 = vector.multi_reduction <add>, %289, %cst_113 [2] : vector<2x8x32xf32> to vector<2x8xf32>
    %291 = vector.shape_cast %290 : vector<2x8xf32> to vector<2x8x1xf32>
    %cst_114 = arith.constant 3.200000e+01 : f32
    %292 = vector.broadcast %cst_114 : f32 to vector<2x8x1xf32>
    %293 = arith.divf %291, %292 : vector<2x8x1xf32>
    %294 = vector.broadcast %286 : vector<2x8x1xf32> to vector<2x8x32xf32>
    %295 = arith.subf %278, %294 : vector<2x8x32xf32>
    %cst_115 = arith.constant 9.99999997E-7 : f32
    %296 = vector.broadcast %cst_115 : f32 to vector<2x8x1xf32>
    %297 = arith.addf %293, %296 : vector<2x8x1xf32>
    %298 = math.rsqrt %297 : vector<2x8x1xf32>
    %299 = vector.broadcast %298 : vector<2x8x1xf32> to vector<2x8x32xf32>
    %300 = arith.mulf %295, %299 : vector<2x8x32xf32>
    %301 = vector.shape_cast %280 : vector<1x32xf32> to vector<1x1x32xf32>
    %302 = vector.broadcast %301 : vector<1x1x32xf32> to vector<2x8x32xf32>
    %303 = arith.mulf %300, %302 : vector<2x8x32xf32>
    %304 = vector.shape_cast %282 : vector<1x32xf32> to vector<1x1x32xf32>
    %305 = vector.broadcast %304 : vector<1x1x32xf32> to vector<2x8x32xf32>
    %306 = arith.addf %303, %305 : vector<2x8x32xf32>
    %307 = vector.shape_cast %306 : vector<2x8x32xf32> to vector<16x32xf32>
    %c0_116 = arith.constant 0 : index
    %c0_117 = arith.constant 0 : index
    %c0_118 = arith.constant 0 : index
    %308 = vector.load %arg21[%c0_116, %c0_117, %c0_118] : memref<1x32x64xbf16, #tpu.memory_space<vmem>>, vector<1x32x64xbf16>
    %309 = vector.shape_cast %308 : vector<1x32x64xbf16> to vector<32x64xbf16>
    %310 = arith.truncf %307 : vector<16x32xf32> to vector<16x32xbf16>
    %cst_119 = arith.constant dense<0.000000e+00> : vector<16x64xf32>
    %311 = tpu.matmul %310, %309, %cst_119 {dimension_numbers = #tpu.dot_dimension_numbers<[1], [0], [0], [1], [0, 0, 1, 1], [], []>} : vector<16x32xbf16>, vector<32x64xbf16>, vector<16x64xf32> -> vector<16x64xf32>
    %c0_120 = arith.constant 0 : index
    %c0_121 = arith.constant 0 : index
    %c0_122 = arith.constant 0 : index
    %312 = vector.load %arg22[%c0_120, %c0_121, %c0_122] : memref<1x1x64xf32, #tpu.memory_space<vmem>>, vector<1x1x64xf32>
    %313 = vector.shape_cast %312 : vector<1x1x64xf32> to vector<1x64xf32>
    %314 = vector.broadcast %313 : vector<1x64xf32> to vector<16x64xf32>
    %315 = arith.addf %311, %314 : vector<16x64xf32>
    %cst_123 = arith.constant 0.000000e+00 : f32
    %316 = vector.broadcast %cst_123 : f32 to vector<16x64xf32>
    %317 = arith.maximumf %315, %316 : vector<16x64xf32>
    %c0_124 = arith.constant 0 : index
    %c0_125 = arith.constant 0 : index
    %c0_126 = arith.constant 0 : index
    %318 = vector.load %arg23[%c0_124, %c0_125, %c0_126] : memref<1x64x32xbf16, #tpu.memory_space<vmem>>, vector<1x64x32xbf16>
    %319 = vector.shape_cast %318 : vector<1x64x32xbf16> to vector<64x32xbf16>
    %320 = arith.truncf %317 : vector<16x64xf32> to vector<16x64xbf16>
    %cst_127 = arith.constant dense<0.000000e+00> : vector<16x32xf32>
    %321 = tpu.matmul %320, %319, %cst_127 {dimension_numbers = #tpu.dot_dimension_numbers<[1], [0], [0], [1], [0, 0, 1, 1], [], []>} : vector<16x64xbf16>, vector<64x32xbf16>, vector<16x32xf32> -> vector<16x32xf32>
    %c0_128 = arith.constant 0 : index
    %c0_129 = arith.constant 0 : index
    %c0_130 = arith.constant 0 : index
    %322 = vector.load %arg24[%c0_128, %c0_129, %c0_130] : memref<1x1x32xf32, #tpu.memory_space<vmem>>, vector<1x1x32xf32>
    %323 = vector.shape_cast %322 : vector<1x1x32xf32> to vector<1x32xf32>
    %324 = vector.broadcast %323 : vector<1x32xf32> to vector<16x32xf32>
    %325 = arith.addf %321, %324 : vector<16x32xf32>
    %326 = vector.shape_cast %325 : vector<16x32xf32> to vector<2x8x32xf32>
    %327 = arith.addf %278, %326 : vector<2x8x32xf32>
    %c0_131 = arith.constant 0 : index
    %c0_132 = arith.constant 0 : index
    %c0_133 = arith.constant 0 : index
    %328 = vector.load %arg30[%c0_131, %c0_132, %c0_133] : memref<2x8x32xf32, #tpu.memory_space<vmem>>, vector<2x8x32xf32>
    tpu.vector_store %arg30[%c0_131, %c0_132, %c0_133], %327 {strides = array<i32>} : memref<2x8x32xf32, #tpu.memory_space<vmem>>, vector<2x8x32xf32>,
    %c1_i32 = arith.constant 1 : i32
    %329 = arith.cmpi eq, %arg0, %c1_i32 : i32
    %330 = arith.extui %329 : i1 to i32
    %c0_i32_134 = arith.constant 0 : i32
    %331 = arith.cmpi ne, %330, %c0_i32_134 : i32
    scf.if %331 {
      %c0_135 = arith.constant 0 : index
      %c0_136 = arith.constant 0 : index
      %332 = vector.load %arg25[%c0_135, %c0_136] : memref<1x32xf32, #tpu.memory_space<vmem>>, vector<1x32xf32>
      %c0_137 = arith.constant 0 : index
      %c0_138 = arith.constant 0 : index
      %333 = vector.load %arg26[%c0_137, %c0_138] : memref<1x32xf32, #tpu.memory_space<vmem>>, vector<1x32xf32>
      %cst_139 = arith.constant dense<0.000000e+00> : vector<2x8xf32>
      %334 = vector.multi_reduction <add>, %327, %cst_139 [2] : vector<2x8x32xf32> to vector<2x8xf32>
      %335 = vector.shape_cast %334 : vector<2x8xf32> to vector<2x8x1xf32>
      %cst_140 = arith.constant 3.200000e+01 : f32
      %336 = vector.broadcast %cst_140 : f32 to vector<2x8x1xf32>
      %337 = arith.divf %335, %336 : vector<2x8x1xf32>
      %338 = vector.broadcast %337 : vector<2x8x1xf32> to vector<2x8x32xf32>
      %339 = arith.subf %327, %338 : vector<2x8x32xf32>
      %340 = arith.mulf %339, %339 : vector<2x8x32xf32>
      %cst_141 = arith.constant dense<0.000000e+00> : vector<2x8xf32>
      %341 = vector.multi_reduction <add>, %340, %cst_141 [2] : vector<2x8x32xf32> to vector<2x8xf32>
      %342 = vector.shape_cast %341 : vector<2x8xf32> to vector<2x8x1xf32>
      %cst_142 = arith.constant 3.200000e+01 : f32
      %343 = vector.broadcast %cst_142 : f32 to vector<2x8x1xf32>
      %344 = arith.divf %342, %343 : vector<2x8x1xf32>
      %345 = vector.broadcast %337 : vector<2x8x1xf32> to vector<2x8x32xf32>
      %346 = arith.subf %327, %345 : vector<2x8x32xf32>
      %cst_143 = arith.constant 9.99999997E-7 : f32
      %347 = vector.broadcast %cst_143 : f32 to vector<2x8x1xf32>
      %348 = arith.addf %344, %347 : vector<2x8x1xf32>
      %349 = math.rsqrt %348 : vector<2x8x1xf32>
      %350 = vector.broadcast %349 : vector<2x8x1xf32> to vector<2x8x32xf32>
      %351 = arith.mulf %346, %350 : vector<2x8x32xf32>
      %352 = vector.shape_cast %332 : vector<1x32xf32> to vector<1x1x32xf32>
      %353 = vector.broadcast %352 : vector<1x1x32xf32> to vector<2x8x32xf32>
      %354 = arith.mulf %351, %353 : vector<2x8x32xf32>
      %355 = vector.shape_cast %333 : vector<1x32xf32> to vector<1x1x32xf32>
      %356 = vector.broadcast %355 : vector<1x1x32xf32> to vector<2x8x32xf32>
      %357 = arith.addf %354, %356 : vector<2x8x32xf32>
      %358 = vector.shape_cast %357 : vector<2x8x32xf32> to vector<16x32xf32>
      %c0_144 = arith.constant 0 : index
      %c0_145 = arith.constant 0 : index
      %359 = vector.load %arg27[%c0_144, %c0_145] : memref<32x128xbf16, #tpu.memory_space<vmem>>, vector<32x128xbf16>
      %360 = arith.truncf %358 : vector<16x32xf32> to vector<16x32xbf16>
      %cst_146 = arith.constant dense<0.000000e+00> : vector<16x128xf32>
      %361 = tpu.matmul %360, %359, %cst_146 {dimension_numbers = #tpu.dot_dimension_numbers<[1], [0], [0], [1], [0, 0, 1, 1], [], []>} : vector<16x32xbf16>, vector<32x128xbf16>, vector<16x128xf32> -> vector<16x128xf32>
      %c0_147 = arith.constant 0 : index
      %c0_148 = arith.constant 0 : index
      %362 = vector.load %arg28[%c0_147, %c0_148] : memref<1x128xf32, #tpu.memory_space<vmem>>, vector<1x128xf32>
      %363 = vector.broadcast %362 : vector<1x128xf32> to vector<16x128xf32>
      %364 = arith.addf %361, %363 : vector<16x128xf32>
      %cst_149 = arith.constant dense<0xFF800000> : vector<16xf32>
      %365 = vector.multi_reduction <maximumf>, %364, %cst_149 [1] : vector<16x128xf32> to vector<16xf32>
      %366 = vector.shape_cast %365 : vector<16xf32> to vector<16x1xf32>
      %367 = vector.broadcast %366 : vector<16x1xf32> to vector<16x128xf32>
      %368 = arith.subf %364, %367 : vector<16x128xf32>
      %369 = math.exp %368 : vector<16x128xf32>
      %cst_150 = arith.constant dense<0.000000e+00> : vector<16xf32>
      %370 = vector.multi_reduction <add>, %369, %cst_150 [1] : vector<16x128xf32> to vector<16xf32>
      %371 = vector.shape_cast %370 : vector<16xf32> to vector<16x1xf32>
      %372 = math.log %371 : vector<16x1xf32>
      %373 = vector.broadcast %372 : vector<16x1xf32> to vector<16x128xf32>
      %374 = arith.subf %368, %373 : vector<16x128xf32>
      %375 = vector.shape_cast %374 : vector<16x128xf32> to vector<2x8x128xf32>
      %c0_151 = arith.constant 0 : index
      %c0_152 = arith.constant 0 : index
      %c0_153 = arith.constant 0 : index
      %376 = vector.load %arg29[%c0_151, %c0_152, %c0_153] : memref<2x8x128xf32, #tpu.memory_space<vmem>>, vector<2x8x128xf32>
      tpu.vector_store %arg29[%c0_151, %c0_152, %c0_153], %375 {strides = array<i32>} : memref<2x8x128xf32, #tpu.memory_space<vmem>>, vector<2x8x128xf32>,
    } else {
    }
    return
  }
  func.func @transform_0(%arg0: i32) -> (i32, i32, i32) {
    %c0_i32 = arith.constant 0 : i32
    %c0_i32_0 = arith.constant 0 : i32
    %c0_i32_1 = arith.constant 0 : i32
    %c0_i32_2 = arith.constant 0 : i32
    return %c0_i32, %c0_i32_0, %c0_i32_1 : i32, i32, i32
  }
  func.func @transform_1(%arg0: i32) -> (i32, i32, i32) {
    %c0_i32 = arith.constant 0 : i32
    %c0_i32_0 = arith.constant 0 : i32
    %c0_i32_1 = arith.constant 0 : i32
    %c0_i32_2 = arith.constant 0 : i32
    return %c0_i32, %c0_i32_0, %c0_i32_1 : i32, i32, i32
  }
  func.func @transform_2(%arg0: i32) -> (i32, i32, i32) {
    %c0_i32 = arith.constant 0 : i32
    %c0_i32_0 = arith.constant 0 : i32
    %c0_i32_1 = arith.constant 0 : i32
    %c0_i32_2 = arith.constant 0 : i32
    return %c0_i32, %c0_i32_0, %c0_i32_1 : i32, i32, i32
  }
  func.func @transform_3(%arg0: i32) -> (i32, i32) {
    %c0_i32 = arith.constant 0 : i32
    %c0_i32_0 = arith.constant 0 : i32
    %c0_i32_1 = arith.constant 0 : i32
    return %c0_i32, %c0_i32_0 : i32, i32
  }
  func.func @transform_4(%arg0: i32) -> (i32, i32, i32) {
    %c0_i32 = arith.constant 0 : i32
    %c0_i32_0 = arith.constant 0 : i32
    %c0_i32_1 = arith.constant 0 : i32
    return %arg0, %c0_i32, %c0_i32_0 : i32, i32, i32
  }
  func.func @transform_5(%arg0: i32) -> (i32, i32, i32) {
    %c0_i32 = arith.constant 0 : i32
    %c0_i32_0 = arith.constant 0 : i32
    %c0_i32_1 = arith.constant 0 : i32
    return %arg0, %c0_i32, %c0_i32_0 : i32, i32, i32
  }
  func.func @transform_6(%arg0: i32) -> (i32, i32, i32) {
    %c0_i32 = arith.constant 0 : i32
    %c0_i32_0 = arith.constant 0 : i32
    %c0_i32_1 = arith.constant 0 : i32
    return %arg0, %c0_i32, %c0_i32_0 : i32, i32, i32
  }
  func.func @transform_7(%arg0: i32) -> (i32, i32, i32) {
    %c0_i32 = arith.constant 0 : i32
    %c0_i32_0 = arith.constant 0 : i32
    %c0_i32_1 = arith.constant 0 : i32
    return %arg0, %c0_i32, %c0_i32_0 : i32, i32, i32
  }
  func.func @transform_8(%arg0: i32) -> (i32, i32, i32) {
    %c0_i32 = arith.constant 0 : i32
    %c0_i32_0 = arith.constant 0 : i32
    %c0_i32_1 = arith.constant 0 : i32
    return %arg0, %c0_i32, %c0_i32_0 : i32, i32, i32
  }
  func.func @transform_9(%arg0: i32) -> (i32, i32, i32) {
    %c0_i32 = arith.constant 0 : i32
    %c0_i32_0 = arith.constant 0 : i32
    %c0_i32_1 = arith.constant 0 : i32
    return %arg0, %c0_i32, %c0_i32_0 : i32, i32, i32
  }
  func.func @transform_10(%arg0: i32) -> (i32, i32, i32) {
    %c0_i32 = arith.constant 0 : i32
    %c0_i32_0 = arith.constant 0 : i32
    %c0_i32_1 = arith.constant 0 : i32
    return %arg0, %c0_i32, %c0_i32_0 : i32, i32, i32
  }
  func.func @transform_11(%arg0: i32) -> (i32, i32, i32) {
    %c0_i32 = arith.constant 0 : i32
    %c0_i32_0 = arith.constant 0 : i32
    %c0_i32_1 = arith.constant 0 : i32
    return %arg0, %c0_i32, %c0_i32_0 : i32, i32, i32
  }
  func.func @transform_12(%arg0: i32) -> (i32, i32, i32) {
    %c0_i32 = arith.constant 0 : i32
    %c0_i32_0 = arith.constant 0 : i32
    %c0_i32_1 = arith.constant 0 : i32
    return %arg0, %c0_i32, %c0_i32_0 : i32, i32, i32
  }
  func.func @transform_13(%arg0: i32) -> (i32, i32, i32) {
    %c0_i32 = arith.constant 0 : i32
    %c0_i32_0 = arith.constant 0 : i32
    %c0_i32_1 = arith.constant 0 : i32
    return %arg0, %c0_i32, %c0_i32_0 : i32, i32, i32
  }
  func.func @transform_14(%arg0: i32) -> (i32, i32, i32) {
    %c0_i32 = arith.constant 0 : i32
    %c0_i32_0 = arith.constant 0 : i32
    %c0_i32_1 = arith.constant 0 : i32
    return %arg0, %c0_i32, %c0_i32_0 : i32, i32, i32
  }
  func.func @transform_15(%arg0: i32) -> (i32, i32, i32) {
    %c0_i32 = arith.constant 0 : i32
    %c0_i32_0 = arith.constant 0 : i32
    %c0_i32_1 = arith.constant 0 : i32
    return %arg0, %c0_i32, %c0_i32_0 : i32, i32, i32
  }
  func.func @transform_16(%arg0: i32) -> (i32, i32, i32) {
    %c0_i32 = arith.constant 0 : i32
    %c0_i32_0 = arith.constant 0 : i32
    %c0_i32_1 = arith.constant 0 : i32
    return %arg0, %c0_i32, %c0_i32_0 : i32, i32, i32
  }
  func.func @transform_17(%arg0: i32) -> (i32, i32, i32) {
    %c0_i32 = arith.constant 0 : i32
    %c0_i32_0 = arith.constant 0 : i32
    %c0_i32_1 = arith.constant 0 : i32
    return %arg0, %c0_i32, %c0_i32_0 : i32, i32, i32
  }
  func.func @transform_18(%arg0: i32) -> (i32, i32, i32) {
    %c0_i32 = arith.constant 0 : i32
    %c0_i32_0 = arith.constant 0 : i32
    %c0_i32_1 = arith.constant 0 : i32
    return %arg0, %c0_i32, %c0_i32_0 : i32, i32, i32
  }
  func.func @transform_19(%arg0: i32) -> (i32, i32, i32) {
    %c0_i32 = arith.constant 0 : i32
    %c0_i32_0 = arith.constant 0 : i32
    %c0_i32_1 = arith.constant 0 : i32
    return %arg0, %c0_i32, %c0_i32_0 : i32, i32, i32
  }
  func.func @transform_20(%arg0: i32) -> (i32, i32, i32) {
    %c0_i32 = arith.constant 0 : i32
    %c0_i32_0 = arith.constant 0 : i32
    %c0_i32_1 = arith.constant 0 : i32
    return %arg0, %c0_i32, %c0_i32_0 : i32, i32, i32
  }
  func.func @transform_21(%arg0: i32) -> (i32, i32, i32) {
    %c0_i32 = arith.constant 0 : i32
    %c0_i32_0 = arith.constant 0 : i32
    %c0_i32_1 = arith.constant 0 : i32
    return %arg0, %c0_i32, %c0_i32_0 : i32, i32, i32
  }
  func.func @transform_22(%arg0: i32) -> (i32, i32, i32) {
    %c0_i32 = arith.constant 0 : i32
    %c0_i32_0 = arith.constant 0 : i32
    %c0_i32_1 = arith.constant 0 : i32
    return %arg0, %c0_i32, %c0_i32_0 : i32, i32, i32
  }
  func.func @transform_23(%arg0: i32) -> (i32, i32, i32) {
    %c0_i32 = arith.constant 0 : i32
    %c0_i32_0 = arith.constant 0 : i32
    %c0_i32_1 = arith.constant 0 : i32
    return %arg0, %c0_i32, %c0_i32_0 : i32, i32, i32
  }
  func.func @transform_24(%arg0: i32) -> (i32, i32) {
    %c0_i32 = arith.constant 0 : i32
    %c0_i32_0 = arith.constant 0 : i32
    %c0_i32_1 = arith.constant 0 : i32
    return %c0_i32, %c0_i32_0 : i32, i32
  }
  func.func @transform_25(%arg0: i32) -> (i32, i32) {
    %c0_i32 = arith.constant 0 : i32
    %c0_i32_0 = arith.constant 0 : i32
    %c0_i32_1 = arith.constant 0 : i32
    return %c0_i32, %c0_i32_0 : i32, i32
  }
  func.func @transform_26(%arg0: i32) -> (i32, i32) {
    %c0_i32 = arith.constant 0 : i32
    %c0_i32_0 = arith.constant 0 : i32
    %c0_i32_1 = arith.constant 0 : i32
    return %c0_i32, %c0_i32_0 : i32, i32
  }
  func.func @transform_27(%arg0: i32) -> (i32, i32) {
    %c0_i32 = arith.constant 0 : i32
    %c0_i32_0 = arith.constant 0 : i32
    %c0_i32_1 = arith.constant 0 : i32
    return %c0_i32, %c0_i32_0 : i32, i32
  }
  func.func @transform_28(%arg0: i32) -> (i32, i32, i32) {
    %c0_i32 = arith.constant 0 : i32
    %c0_i32_0 = arith.constant 0 : i32
    %c0_i32_1 = arith.constant 0 : i32
    %c0_i32_2 = arith.constant 0 : i32
    return %c0_i32, %c0_i32_0, %c0_i32_1 : i32, i32, i32
  }
}

</mosaic_0001>

<llo_original>
// kernel: encoder_decoder_forward.2
$region0: #{encoder_decoder_forward.2}
  #allocation0 [shape = 'u32[]', space=smem, size = 0x4, offset = 0x4, fixed_abs, tag = 'smem constant byte address 0x4 - core index']
  #allocation1 [shape = 'u32[144,128]{1,0:T(1,128)}', space=vmem, size = 0x12000, scoped, tag = 'internal scratch']
  %s0 = inlined_call_operand.vmem [shape: f32[2,8,32], index: 0, kind: input, shape index: {}]
  %s1 = inlined_call_operand.vmem [shape: f32[2,8], index: 1, kind: input, shape index: {}]
  %s2 = inlined_call_operand.vmem [shape: f32[2,1,32], index: 2, kind: input, shape index: {}]
  %s3 = inlined_call_operand.vmem [shape: f32[2,1,32], index: 3, kind: input, shape index: {}]
  %s4 = inlined_call_operand.vmem [shape: bf16[2,32,96], index: 4, kind: input, shape index: {}]
  %s5 = inlined_call_operand.vmem [shape: f32[2,1,96], index: 5, kind: input, shape index: {}]
  %s6 = inlined_call_operand.vmem [shape: bf16[2,32,32], index: 6, kind: input, shape index: {}]
  %s7 = inlined_call_operand.vmem [shape: f32[2,1,32], index: 7, kind: input, shape index: {}]
  %s8 = inlined_call_operand.vmem [shape: f32[2,1,32], index: 8, kind: input, shape index: {}]
  %s9 = inlined_call_operand.vmem [shape: f32[2,1,32], index: 9, kind: input, shape index: {}]
  %s10 = inlined_call_operand.vmem [shape: bf16[2,32,64], index: 10, kind: input, shape index: {}]
  %s11 = inlined_call_operand.vmem [shape: f32[2,1,64], index: 11, kind: input, shape index: {}]
  %s12 = inlined_call_operand.vmem [shape: bf16[2,64,32], index: 12, kind: input, shape index: {}]
  %s13 = inlined_call_operand.vmem [shape: f32[2,1,32], index: 13, kind: input, shape index: {}]
  %s14 = inlined_call_operand.vmem [shape: f32[1,32], index: 14, kind: input, shape index: {}]
  %s15 = inlined_call_operand.vmem [shape: f32[1,32], index: 15, kind: input, shape index: {}]
  %s16 = inlined_call_operand.vmem [shape: f32[2,8,32], index: 16, kind: output, shape index: {}]
  %s17 = sld [smem:[#allocation0]]
  $region109: #{encoder_decoder_forward.2} parent=0
    _
  %s19 = ssub.s32 1, %s17
  %s20 = scalar_select 0, %s19, %s17
  loop: start=0, step=1, limit=4
  $region2: #{encoder_decoder_forward.2} parent=0 // loop_pre_header
    _
  $region3: #{encoder_decoder_forward.2} parent=0 // loop_header
    %s22 = sphi 0, %s26
    %p23 = scmp.ge.s32.totalorder %s22, 4
    %s30 = sphi 0, %s30
    %s32 = sphi 0, %s30
    %s33 = sphi 0, %s32
    %s47 = sphi 0, %s33
    %s51 = sphi 0, %s51
    %s53 = sphi 0, %s51
    %s54 = sphi 0, %s53
    %s68 = sphi 0, %s54
    %s74 = sphi 0, %s76
    %s77 = sphi 0, %s74
    %s78 = sphi 0, %s77
    %s94 = sphi 0, %s78
    %s100 = sphi 0, %s102
    %s103 = sphi 0, %s100
    %s104 = sphi 0, %s103
    %s120 = sphi 0, %s104
    %s126 = sphi 0, %s128
    %s129 = sphi 0, %s126
    %s130 = sphi 0, %s129
    %s146 = sphi 0, %s130
    %s152 = sphi 0, %s154
    %s155 = sphi 0, %s152
    %s156 = sphi 0, %s155
    %s172 = sphi 0, %s156
    %s178 = sphi 0, %s180
    %s181 = sphi 0, %s178
    %s182 = sphi 0, %s181
    %s198 = sphi 0, %s182
    %s204 = sphi 0, %s206
    %s207 = sphi 0, %s204
    %s208 = sphi 0, %s207
    %s224 = sphi 0, %s208
    %s230 = sphi 0, %s232
    %s233 = sphi 0, %s230
    %s234 = sphi 0, %s233
    %s250 = sphi 0, %s234
    %s256 = sphi 0, %s258
    %s259 = sphi 0, %s256
    %s260 = sphi 0, %s259
    %s276 = sphi 0, %s260
    %s282 = sphi 0, %s284
    %s285 = sphi 0, %s282
    %s286 = sphi 0, %s285
    %s302 = sphi 0, %s286
    %s308 = sphi 0, %s310
    %s311 = sphi 0, %s308
    %s312 = sphi 0, %s311
    %s328 = sphi 0, %s312
    %s334 = sphi 0, %s336
    %s337 = sphi 0, %s334
    %s338 = sphi 0, %s337
    %s354 = sphi 0, %s338
    %s360 = sphi 0, %s362
    %s363 = sphi 0, %s360
    %s364 = sphi 0, %s363
    %s380 = sphi 0, %s364
    %s384 = sphi 0, %s384
    %s386 = sphi 0, %s384
    %s387 = sphi 0, %s386
    %s401 = sphi 0, %s387
    %s405 = sphi 0, %s405
    %s407 = sphi 0, %s405
    %s408 = sphi 0, %s407
    %s422 = sphi 0, %s408
    %s426 = sphi 0, %s426
    %s428 = sphi 0, %s426
    %s429 = sphi 0, %s428
    %s443 = sphi 0, %s429
  $region4: #{encoder_decoder_forward.2} parent=0 // loop_header_branch
    %25 = sbr.rel (%p23) target = $region8
  $region5: #{encoder_decoder_forward.2} parent=0 // loop_body
    %s27 = ssub.s32 %s22, 1
    %s28 = ssub.s32 %s22, 2
    %s29 = sadd.s32 %s22, 1
    %s31 = sadd.s32 %s30, 1
    %p34 = scmp.eq.s32.totalorder %s22, 1
    %p35 = scmp.ne.s32.totalorder %s30, %s32
    %p36 = scmp.eq.s32.totalorder %s22, 0
    %p37 = por %p35, %p36
    %p38 = scmp.ne.s32.totalorder %s30, %s32
    %p39 = scmp.eq.s32.totalorder %s27, 1
    %p40 = por %p38, %p39
    %p41 = scmp.ne.s32.totalorder %s32, %s33
    %p42 = scmp.eq.s32.totalorder %s27, 0
    %p43 = por %p41, %p42
    %p44 = scmp.ne.s32.totalorder %s32, %s33
    %p45 = scmp.eq.s32.totalorder %s28, 1
    %p46 = por %p44, %p45
    %p48 = scmp.ne.s32.totalorder %s33, %s47
    %p49 = scmp.eq.s32.totalorder %s28, 0
    %p50 = por %p48, %p49
    %s52 = sadd.s32 %s51, 1
    %p55 = scmp.eq.s32.totalorder %s22, 1
    %p56 = scmp.ne.s32.totalorder %s51, %s53
    %p57 = scmp.eq.s32.totalorder %s22, 0
    %p58 = por %p56, %p57
    %p59 = scmp.ne.s32.totalorder %s51, %s53
    %p60 = scmp.eq.s32.totalorder %s27, 1
    %p61 = por %p59, %p60
    %p62 = scmp.ne.s32.totalorder %s53, %s54
    %p63 = scmp.eq.s32.totalorder %s27, 0
    %p64 = por %p62, %p63
    %p65 = scmp.ne.s32.totalorder %s53, %s54
    %p66 = scmp.eq.s32.totalorder %s28, 1
    %p67 = por %p65, %p66
    %p69 = scmp.ne.s32.totalorder %s54, %s68
    %p70 = scmp.eq.s32.totalorder %s28, 0
    %p71 = por %p69, %p70
    %s72 = ssub.s32 %s22, %s29
    %p73 = scmp.eq.s32.totalorder %s72, 0
    %s75 = sadd.s32 %s74, 1
    %s76 = scalar_select %p73, %s74, %s75
    %p79 = pneg %p73
    %p80 = scmp.eq.s32.totalorder %s22, 1
    %p81 = por %p79, %p80
    %p82 = scmp.ne.s32.totalorder %s74, %s77
    %p83 = scmp.eq.s32.totalorder %s22, 0
    %p84 = por %p82, %p83
    %p85 = scmp.ne.s32.totalorder %s74, %s77
    %p86 = scmp.eq.s32.totalorder %s27, 1
    %p87 = por %p85, %p86
    %p88 = scmp.ne.s32.totalorder %s77, %s78
    %p89 = scmp.eq.s32.totalorder %s27, 0
    %p90 = por %p88, %p89
    %p91 = scmp.ne.s32.totalorder %s77, %s78
    %p92 = scmp.eq.s32.totalorder %s28, 1
    %p93 = por %p91, %p92
    %p95 = scmp.ne.s32.totalorder %s78, %s94
    %p96 = scmp.eq.s32.totalorder %s28, 0
    %p97 = por %p95, %p96
    %s98 = ssub.s32 %s22, %s29
    %p99 = scmp.eq.s32.totalorder %s98, 0
    %s101 = sadd.s32 %s100, 1
    %s102 = scalar_select %p99, %s100, %s101
    %p105 = pneg %p99
    %p106 = scmp.eq.s32.totalorder %s22, 1
    %p107 = por %p105, %p106
    %p108 = scmp.ne.s32.totalorder %s100, %s103
    %p109 = scmp.eq.s32.totalorder %s22, 0
    %p110 = por %p108, %p109
    %p111 = scmp.ne.s32.totalorder %s100, %s103
    %p112 = scmp.eq.s32.totalorder %s27, 1
    %p113 = por %p111, %p112
    %p114 = scmp.ne.s32.totalorder %s103, %s104
    %p115 = scmp.eq.s32.totalorder %s27, 0
    %p116 = por %p114, %p115
    %p117 = scmp.ne.s32.totalorder %s103, %s104
    %p118 = scmp.eq.s32.totalorder %s28, 1
    %p119 = por %p117, %p118
    %p121 = scmp.ne.s32.totalorder %s104, %s120
    %p122 = scmp.eq.s32.totalorder %s28, 0
    %p123 = por %p121, %p122
    %s124 = ssub.s32 %s22, %s29
    %p125 = scmp.eq.s32.totalorder %s124, 0
    %s127 = sadd.s32 %s126, 1
    %s128 = scalar_select %p125, %s126, %s127
    %p131 = pneg %p125
    %p132 = scmp.eq.s32.totalorder %s22, 1
    %p133 = por %p131, %p132
    %p134 = scmp.ne.s32.totalorder %s126, %s129
    %p135 = scmp.eq.s32.totalorder %s22, 0
    %p136 = por %p134, %p135
    %p137 = scmp.ne.s32.totalorder %s126, %s129
    %p138 = scmp.eq.s32.totalorder %s27, 1
    %p139 = por %p137, %p138
    %p140 = scmp.ne.s32.totalorder %s129, %s130
    %p141 = scmp.eq.s32.totalorder %s27, 0
    %p142 = por %p140, %p141
    %p143 = scmp.ne.s32.totalorder %s129, %s130
    %p144 = scmp.eq.s32.totalorder %s28, 1
    %p145 = por %p143, %p144
    %p147 = scmp.ne.s32.totalorder %s130, %s146
    %p148 = scmp.eq.s32.totalorder %s28, 0
    %p149 = por %p147, %p148
    %s150 = ssub.s32 %s22, %s29
    %p151 = scmp.eq.s32.totalorder %s150, 0
    %s153 = sadd.s32 %s152, 1
    %s154 = scalar_select %p151, %s152, %s153
    %p157 = pneg %p151
    %p158 = scmp.eq.s32.totalorder %s22, 1
    %p159 = por %p157, %p158
    %p160 = scmp.ne.s32.totalorder %s152, %s155
    %p161 = scmp.eq.s32.totalorder %s22, 0
    %p162 = por %p160, %p161
    %p163 = scmp.ne.s32.totalorder %s152, %s155
    %p164 = scmp.eq.s32.totalorder %s27, 1
    %p165 = por %p163, %p164
    %p166 = scmp.ne.s32.totalorder %s155, %s156
    %p167 = scmp.eq.s32.totalorder %s27, 0
    %p168 = por %p166, %p167
    %p169 = scmp.ne.s32.totalorder %s155, %s156
    %p170 = scmp.eq.s32.totalorder %s28, 1
    %p171 = por %p169, %p170
    %p173 = scmp.ne.s32.totalorder %s156, %s172
    %p174 = scmp.eq.s32.totalorder %s28, 0
    %p175 = por %p173, %p174
    %s176 = ssub.s32 %s22, %s29
    %p177 = scmp.eq.s32.totalorder %s176, 0
    %s179 = sadd.s32 %s178, 1
    %s180 = scalar_select %p177, %s178, %s179
    %p183 = pneg %p177
    %p184 = scmp.eq.s32.totalorder %s22, 1
    %p185 = por %p183, %p184
    %p186 = scmp.ne.s32.totalorder %s178, %s181
    %p187 = scmp.eq.s32.totalorder %s22, 0
    %p188 = por %p186, %p187
    %p189 = scmp.ne.s32.totalorder %s178, %s181
    %p190 = scmp.eq.s32.totalorder %s27, 1
    %p191 = por %p189, %p190
    %p192 = scmp.ne.s32.totalorder %s181, %s182
    %p193 = scmp.eq.s32.totalorder %s27, 0
    %p194 = por %p192, %p193
    %p195 = scmp.ne.s32.totalorder %s181, %s182
    %p196 = scmp.eq.s32.totalorder %s28, 1
    %p197 = por %p195, %p196
    %p199 = scmp.ne.s32.totalorder %s182, %s198
    %p200 = scmp.eq.s32.totalorder %s28, 0
    %p201 = por %p199, %p200
    %s202 = ssub.s32 %s22, %s29
    %p203 = scmp.eq.s32.totalorder %s202, 0
    %s205 = sadd.s32 %s204, 1
    %s206 = scalar_select %p203, %s204, %s205
    %p209 = pneg %p203
    %p210 = scmp.eq.s32.totalorder %s22, 1
    %p211 = por %p209, %p210
    %p212 = scmp.ne.s32.totalorder %s204, %s207
    %p213 = scmp.eq.s32.totalorder %s22, 0
    %p214 = por %p212, %p213
    %p215 = scmp.ne.s32.totalorder %s204, %s207
    %p216 = scmp.eq.s32.totalorder %s27, 1
    %p217 = por %p215, %p216
    %p218 = scmp.ne.s32.totalorder %s207, %s208
    %p219 = scmp.eq.s32.totalorder %s27, 0
    %p220 = por %p218, %p219
    %p221 = scmp.ne.s32.totalorder %s207, %s208
    %p222 = scmp.eq.s32.totalorder %s28, 1
    %p223 = por %p221, %p222
    %p225 = scmp.ne.s32.totalorder %s208, %s224
    %p226 = scmp.eq.s32.totalorder %s28, 0
    %p227 = por %p225, %p226
    %s228 = ssub.s32 %s22, %s29
    %p229 = scmp.eq.s32.totalorder %s228, 0
    %s231 = sadd.s32 %s230, 1
    %s232 = scalar_select %p229, %s230, %s231
    %p235 = pneg %p229
    %p236 = scmp.eq.s32.totalorder %s22, 1
    %p237 = por %p235, %p236
    %p238 = scmp.ne.s32.totalorder %s230, %s233
    %p239 = scmp.eq.s32.totalorder %s22, 0
    %p240 = por %p238, %p239
    %p241 = scmp.ne.s32.totalorder %s230, %s233
    %p242 = scmp.eq.s32.totalorder %s27, 1
    %p243 = por %p241, %p242
    %p244 = scmp.ne.s32.totalorder %s233, %s234
    %p245 = scmp.eq.s32.totalorder %s27, 0
    %p246 = por %p244, %p245
    %p247 = scmp.ne.s32.totalorder %s233, %s234
    %p248 = scmp.eq.s32.totalorder %s28, 1
    %p249 = por %p247, %p248
    %p251 = scmp.ne.s32.totalorder %s234, %s250
    %p252 = scmp.eq.s32.totalorder %s28, 0
    %p253 = por %p251, %p252
    %s254 = ssub.s32 %s22, %s29
    %p255 = scmp.eq.s32.totalorder %s254, 0
    %s257 = sadd.s32 %s256, 1
    %s258 = scalar_select %p255, %s256, %s257
    %p261 = pneg %p255
    %p262 = scmp.eq.s32.totalorder %s22, 1
    %p263 = por %p261, %p262
    %p264 = scmp.ne.s32.totalorder %s256, %s259
    %p265 = scmp.eq.s32.totalorder %s22, 0
    %p266 = por %p264, %p265
    %p267 = scmp.ne.s32.totalorder %s256, %s259
    %p268 = scmp.eq.s32.totalorder %s27, 1
    %p269 = por %p267, %p268
    %p270 = scmp.ne.s32.totalorder %s259, %s260
    %p271 = scmp.eq.s32.totalorder %s27, 0
    %p272 = por %p270, %p271
    %p273 = scmp.ne.s32.totalorder %s259, %s260
    %p274 = scmp.eq.s32.totalorder %s28, 1
    %p275 = por %p273, %p274
    %p277 = scmp.ne.s32.totalorder %s260, %s276
    %p278 = scmp.eq.s32.totalorder %s28, 0
    %p279 = por %p277, %p278
    %s280 = ssub.s32 %s22, %s29
    %p281 = scmp.eq.s32.totalorder %s280, 0
    %s283 = sadd.s32 %s282, 1
    %s284 = scalar_select %p281, %s282, %s283
    %p287 = pneg %p281
    %p288 = scmp.eq.s32.totalorder %s22, 1
    %p289 = por %p287, %p288
    %p290 = scmp.ne.s32.totalorder %s282, %s285
    %p291 = scmp.eq.s32.totalorder %s22, 0
    %p292 = por %p290, %p291
    %p293 = scmp.ne.s32.totalorder %s282, %s285
    %p294 = scmp.eq.s32.totalorder %s27, 1
    %p295 = por %p293, %p294
    %p296 = scmp.ne.s32.totalorder %s285, %s286
    %p297 = scmp.eq.s32.totalorder %s27, 0
    %p298 = por %p296, %p297
    %p299 = scmp.ne.s32.totalorder %s285, %s286
    %p300 = scmp.eq.s32.totalorder %s28, 1
    %p301 = por %p299, %p300
    %p303 = scmp.ne.s32.totalorder %s286, %s302
    %p304 = scmp.eq.s32.totalorder %s28, 0
    %p305 = por %p303, %p304
    %s306 = ssub.s32 %s22, %s29
    %p307 = scmp.eq.s32.totalorder %s306, 0
    %s309 = sadd.s32 %s308, 1
    %s310 = scalar_select %p307, %s308, %s309
    %p313 = pneg %p307
    %p314 = scmp.eq.s32.totalorder %s22, 1
    %p315 = por %p313, %p314
    %p316 = scmp.ne.s32.totalorder %s308, %s311
    %p317 = scmp.eq.s32.totalorder %s22, 0
    %p318 = por %p316, %p317
    %p319 = scmp.ne.s32.totalorder %s308, %s311
    %p320 = scmp.eq.s32.totalorder %s27, 1
    %p321 = por %p319, %p320
    %p322 = scmp.ne.s32.totalorder %s311, %s312
    %p323 = scmp.eq.s32.totalorder %s27, 0
    %p324 = por %p322, %p323
    %p325 = scmp.ne.s32.totalorder %s311, %s312
    %p326 = scmp.eq.s32.totalorder %s28, 1
    %p327 = por %p325, %p326
    %p329 = scmp.ne.s32.totalorder %s312, %s328
    %p330 = scmp.eq.s32.totalorder %s28, 0
    %p331 = por %p329, %p330
    %s332 = ssub.s32 %s22, %s29
    %p333 = scmp.eq.s32.totalorder %s332, 0
    %s335 = sadd.s32 %s334, 1
    %s336 = scalar_select %p333, %s334, %s335
    %p339 = pneg %p333
    %p340 = scmp.eq.s32.totalorder %s22, 1
    %p341 = por %p339, %p340
    %p342 = scmp.ne.s32.totalorder %s334, %s337
    %p343 = scmp.eq.s32.totalorder %s22, 0
    %p344 = por %p342, %p343
    %p345 = scmp.ne.s32.totalorder %s334, %s337
    %p346 = scmp.eq.s32.totalorder %s27, 1
    %p347 = por %p345, %p346
    %p348 = scmp.ne.s32.totalorder %s337, %s338
    %p349 = scmp.eq.s32.totalorder %s27, 0
    %p350 = por %p348, %p349
    %p351 = scmp.ne.s32.totalorder %s337, %s338
    %p352 = scmp.eq.s32.totalorder %s28, 1
    %p353 = por %p351, %p352
    %p355 = scmp.ne.s32.totalorder %s338, %s354
    %p356 = scmp.eq.s32.totalorder %s28, 0
    %p357 = por %p355, %p356
    %s358 = ssub.s32 %s22, %s29
    %p359 = scmp.eq.s32.totalorder %s358, 0
    %s361 = sadd.s32 %s360, 1
    %s362 = scalar_select %p359, %s360, %s361
    %p365 = pneg %p359
    %p366 = scmp.eq.s32.totalorder %s22, 1
    %p367 = por %p365, %p366
    %p368 = scmp.ne.s32.totalorder %s360, %s363
    %p369 = scmp.eq.s32.totalorder %s22, 0
    %p370 = por %p368, %p369
    %p371 = scmp.ne.s32.totalorder %s360, %s363
    %p372 = scmp.eq.s32.totalorder %s27, 1
    %p373 = por %p371, %p372
    %p374 = scmp.ne.s32.totalorder %s363, %s364
    %p375 = scmp.eq.s32.totalorder %s27, 0
    %p376 = por %p374, %p375
    %p377 = scmp.ne.s32.totalorder %s363, %s364
    %p378 = scmp.eq.s32.totalorder %s28, 1
    %p379 = por %p377, %p378
    %p381 = scmp.ne.s32.totalorder %s364, %s380
    %p382 = scmp.eq.s32.totalorder %s28, 0
    %p383 = por %p381, %p382
    %s385 = sadd.s32 %s384, 1
    %p388 = scmp.eq.s32.totalorder %s22, 1
    %p389 = scmp.ne.s32.totalorder %s384, %s386
    %p390 = scmp.eq.s32.totalorder %s22, 0
    %p391 = por %p389, %p390
    %p392 = scmp.ne.s32.totalorder %s384, %s386
    %p393 = scmp.eq.s32.totalorder %s27, 1
    %p394 = por %p392, %p393
    %p395 = scmp.ne.s32.totalorder %s386, %s387
    %p396 = scmp.eq.s32.totalorder %s27, 0
    %p397 = por %p395, %p396
    %p398 = scmp.ne.s32.totalorder %s386, %s387
    %p399 = scmp.eq.s32.totalorder %s28, 1
    %p400 = por %p398, %p399
    %p402 = scmp.ne.s32.totalorder %s387, %s401
    %p403 = scmp.eq.s32.totalorder %s28, 0
    %p404 = por %p402, %p403
    %s406 = sadd.s32 %s405, 1
    %p409 = scmp.eq.s32.totalorder %s22, 1
    %p410 = scmp.ne.s32.totalorder %s405, %s407
    %p411 = scmp.eq.s32.totalorder %s22, 0
    %p412 = por %p410, %p411
    %p413 = scmp.ne.s32.totalorder %s405, %s407
    %p414 = scmp.eq.s32.totalorder %s27, 1
    %p415 = por %p413, %p414
    %p416 = scmp.ne.s32.totalorder %s407, %s408
    %p417 = scmp.eq.s32.totalorder %s27, 0
    %p418 = por %p416, %p417
    %p419 = scmp.ne.s32.totalorder %s407, %s408
    %p420 = scmp.eq.s32.totalorder %s28, 1
    %p421 = por %p419, %p420
    %p423 = scmp.ne.s32.totalorder %s408, %s422
    %p424 = scmp.eq.s32.totalorder %s28, 0
    %p425 = por %p423, %p424
    %s427 = sadd.s32 %s426, 1
    %p430 = scmp.eq.s32.totalorder %s22, 1
    %p431 = scmp.ne.s32.totalorder %s426, %s428
    %p432 = scmp.eq.s32.totalorder %s22, 0
    %p433 = por %p431, %p432
    %p434 = scmp.ne.s32.totalorder %s426, %s428
    %p435 = scmp.eq.s32.totalorder %s27, 1
    %p436 = por %p434, %p435
    %p437 = scmp.ne.s32.totalorder %s428, %s429
    %p438 = scmp.eq.s32.totalorder %s27, 0
    %p439 = por %p437, %p438
    %p440 = scmp.ne.s32.totalorder %s428, %s429
    %p441 = scmp.eq.s32.totalorder %s28, 1
    %p442 = por %p440, %p441
    %p444 = scmp.ne.s32.totalorder %s429, %s443
    %p445 = scmp.eq.s32.totalorder %s28, 0
    %p446 = por %p444, %p445
    %p447 = scmp.le.s32.totalorder 1, %s22
    %p448 = scmp.lt.s32.totalorder %s22, 3
    %p449 = pnand %p447, %p448
    %p450 = pneg %p449
    // Predicated region
    $region9: #{encoder_decoder_forward.2} parent=5 // pred_check
      _
    $region10: #{encoder_decoder_forward.2} parent=5 // pred_check_branch
      %452 = sbr.rel (%p449) target = $region12
    $region11: #{encoder_decoder_forward.2} parent=5 // pred_region
      %s453 = ssub.s32 %s22, 1
      // Predicated region
      $region13: #{encoder_decoder_forward.2} parent=11 // pred_check
        %p454 = pneg %p43
      $region14: #{encoder_decoder_forward.2} parent=11 // pred_check_branch
        %456 = sbr.rel (%p454) target = $region16
      $region15: #{encoder_decoder_forward.2} parent=11 // pred_region
        _
      $region16: #{encoder_decoder_forward.2} parent=11 // pred_fallthru
        _
      // Predicated region
      $region17: #{encoder_decoder_forward.2} parent=11 // pred_check
        %p457 = pneg %p64
      $region18: #{encoder_decoder_forward.2} parent=11 // pred_check_branch
        %459 = sbr.rel (%p457) target = $region20
      $region19: #{encoder_decoder_forward.2} parent=11 // pred_region
        _
      $region20: #{encoder_decoder_forward.2} parent=11 // pred_fallthru
        _
      // Predicated region
      $region21: #{encoder_decoder_forward.2} parent=11 // pred_check
        %p460 = pneg %p397
      $region22: #{encoder_decoder_forward.2} parent=11 // pred_check_branch
        %462 = sbr.rel (%p460) target = $region24
      $region23: #{encoder_decoder_forward.2} parent=11 // pred_region
        _
      $region24: #{encoder_decoder_forward.2} parent=11 // pred_fallthru
        _
      // Predicated region
      $region25: #{encoder_decoder_forward.2} parent=11 // pred_check
        %p463 = pneg %p418
      $region26: #{encoder_decoder_forward.2} parent=11 // pred_check_branch
        %465 = sbr.rel (%p463) target = $region28
      $region27: #{encoder_decoder_forward.2} parent=11 // pred_region
        _
      $region28: #{encoder_decoder_forward.2} parent=11 // pred_fallthru
        _
    $region12: #{encoder_decoder_forward.2} parent=5 // pred_fallthru
      _
    %p466 = scmp.lt.s32.totalorder %s22, 2
    // Predicated region
    $region29: #{encoder_decoder_forward.2} parent=5 // pred_check
      %p467 = pneg %p466
    $region30: #{encoder_decoder_forward.2} parent=5 // pred_check_branch
      %469 = sbr.rel (%p467) target = $region32
    $region31: #{encoder_decoder_forward.2} parent=5 // pred_region
      // Predicated region
      $region33: #{encoder_decoder_forward.2} parent=31 // pred_check
        %p470 = pneg %p84
      $region34: #{encoder_decoder_forward.2} parent=31 // pred_check_branch
        %472 = sbr.rel (%p470) target = $region36
      $region35: #{encoder_decoder_forward.2} parent=31 // pred_region
        %p473 = scmp.lt.s32.totalorder %s22, 1
        %s474 = scalar_select %p473, %s22, 1
        %s475 = scalar_lea.vmem %s2, %s474
      $region36: #{encoder_decoder_forward.2} parent=31 // pred_fallthru
        _
      // Predicated region
      $region37: #{encoder_decoder_forward.2} parent=31 // pred_check
        %p476 = pneg %p110
      $region38: #{encoder_decoder_forward.2} parent=31 // pred_check_branch
        %478 = sbr.rel (%p476) target = $region40
      $region39: #{encoder_decoder_forward.2} parent=31 // pred_region
        %p479 = scmp.lt.s32.totalorder %s22, 1
        %s480 = scalar_select %p479, %s22, 1
        %s481 = scalar_lea.vmem %s3, %s480
      $region40: #{encoder_decoder_forward.2} parent=31 // pred_fallthru
        _
      // Predicated region
      $region41: #{encoder_decoder_forward.2} parent=31 // pred_check
        %p482 = pneg %p136
      $region42: #{encoder_decoder_forward.2} parent=31 // pred_check_branch
        %484 = sbr.rel (%p482) target = $region44
      $region43: #{encoder_decoder_forward.2} parent=31 // pred_region
        %p485 = scmp.lt.s32.totalorder %s22, 1
        %s486 = scalar_select %p485, %s22, 1
        %s487 = smul.addr %s486, 4
        %s488 = smul.addr %s487, 4
        %s489 = scalar_lea.vmem %s4, %s488
      $region44: #{encoder_decoder_forward.2} parent=31 // pred_fallthru
        _
      // Predicated region
      $region45: #{encoder_decoder_forward.2} parent=31 // pred_check
        %p490 = pneg %p162
      $region46: #{encoder_decoder_forward.2} parent=31 // pred_check_branch
        %492 = sbr.rel (%p490) target = $region48
      $region47: #{encoder_decoder_forward.2} parent=31 // pred_region
        %p493 = scmp.lt.s32.totalorder %s22, 1
        %s494 = scalar_select %p493, %s22, 1
        %s495 = scalar_lea.vmem %s5, %s494
      $region48: #{encoder_decoder_forward.2} parent=31 // pred_fallthru
        _
      // Predicated region
      $region49: #{encoder_decoder_forward.2} parent=31 // pred_check
        %p496 = pneg %p188
      $region50: #{encoder_decoder_forward.2} parent=31 // pred_check_branch
        %498 = sbr.rel (%p496) target = $region52
      $region51: #{encoder_decoder_forward.2} parent=31 // pred_region
        %p499 = scmp.lt.s32.totalorder %s22, 1
        %s500 = scalar_select %p499, %s22, 1
        %s501 = smul.addr %s500, 4
        %s502 = smul.addr %s501, 4
        %s503 = scalar_lea.vmem %s6, %s502
      $region52: #{encoder_decoder_forward.2} parent=31 // pred_fallthru
        _
      // Predicated region
      $region53: #{encoder_decoder_forward.2} parent=31 // pred_check
        %p504 = pneg %p214
      $region54: #{encoder_decoder_forward.2} parent=31 // pred_check_branch
        %506 = sbr.rel (%p504) target = $region56
      $region55: #{encoder_decoder_forward.2} parent=31 // pred_region
        %p507 = scmp.lt.s32.totalorder %s22, 1
        %s508 = scalar_select %p507, %s22, 1
        %s509 = scalar_lea.vmem %s7, %s508
      $region56: #{encoder_decoder_forward.2} parent=31 // pred_fallthru
        _
      // Predicated region
      $region57: #{encoder_decoder_forward.2} parent=31 // pred_check
        %p510 = pneg %p240
      $region58: #{encoder_decoder_forward.2} parent=31 // pred_check_branch
        %512 = sbr.rel (%p510) target = $region60
      $region59: #{encoder_decoder_forward.2} parent=31 // pred_region
        %p513 = scmp.lt.s32.totalorder %s22, 1
        %s514 = scalar_select %p513, %s22, 1
        %s515 = scalar_lea.vmem %s8, %s514
      $region60: #{encoder_decoder_forward.2} parent=31 // pred_fallthru
        _
      // Predicated region
      $region61: #{encoder_decoder_forward.2} parent=31 // pred_check
        %p516 = pneg %p266
      $region62: #{encoder_decoder_forward.2} parent=31 // pred_check_branch
        %518 = sbr.rel (%p516) target = $region64
      $region63: #{encoder_decoder_forward.2} parent=31 // pred_region
        %p519 = scmp.lt.s32.totalorder %s22, 1
        %s520 = scalar_select %p519, %s22, 1
        %s521 = scalar_lea.vmem %s9, %s520
      $region64: #{encoder_decoder_forward.2} parent=31 // pred_fallthru
        _
      // Predicated region
      $region65: #{encoder_decoder_forward.2} parent=31 // pred_check
        %p522 = pneg %p292
      $region66: #{encoder_decoder_forward.2} parent=31 // pred_check_branch
        %524 = sbr.rel (%p522) target = $region68
      $region67: #{encoder_decoder_forward.2} parent=31 // pred_region
        %p525 = scmp.lt.s32.totalorder %s22, 1
        %s526 = scalar_select %p525, %s22, 1
        %s527 = smul.addr %s526, 4
        %s528 = smul.addr %s527, 4
        %s529 = scalar_lea.vmem %s10, %s528
      $region68: #{encoder_decoder_forward.2} parent=31 // pred_fallthru
        _
      // Predicated region
      $region69: #{encoder_decoder_forward.2} parent=31 // pred_check
        %p530 = pneg %p318
      $region70: #{encoder_decoder_forward.2} parent=31 // pred_check_branch
        %532 = sbr.rel (%p530) target = $region72
      $region71: #{encoder_decoder_forward.2} parent=31 // pred_region
        %p533 = scmp.lt.s32.totalorder %s22, 1
        %s534 = scalar_select %p533, %s22, 1
        %s535 = scalar_lea.vmem %s11, %s534
      $region72: #{encoder_decoder_forward.2} parent=31 // pred_fallthru
        _
      // Predicated region
      $region73: #{encoder_decoder_forward.2} parent=31 // pred_check
        %p536 = pneg %p344
      $region74: #{encoder_decoder_forward.2} parent=31 // pred_check_branch
        %538 = sbr.rel (%p536) target = $region76
      $region75: #{encoder_decoder_forward.2} parent=31 // pred_region
        %p539 = scmp.lt.s32.totalorder %s22, 1
        %s540 = scalar_select %p539, %s22, 1
        %s541 = smul.addr %s540, 8
        %s542 = smul.addr %s541, 4
        %s543 = scalar_lea.vmem %s12, %s542
      $region76: #{encoder_decoder_forward.2} parent=31 // pred_fallthru
        _
      // Predicated region
      $region77: #{encoder_decoder_forward.2} parent=31 // pred_check
        %p544 = pneg %p370
      $region78: #{encoder_decoder_forward.2} parent=31 // pred_check_branch
        %546 = sbr.rel (%p544) target = $region80
      $region79: #{encoder_decoder_forward.2} parent=31 // pred_region
        %p547 = scmp.lt.s32.totalorder %s22, 1
        %s548 = scalar_select %p547, %s22, 1
        %s549 = scalar_lea.vmem %s13, %s548
      $region80: #{encoder_decoder_forward.2} parent=31 // pred_fallthru
        _
    $region32: #{encoder_decoder_forward.2} parent=5 // pred_fallthru
      _
    %p550 = scmp.le.s32.totalorder 1, %s22
    %p551 = scmp.lt.s32.totalorder %s22, 3
    %p552 = pnand %p550, %p551
    %p553 = pneg %p552
    // Predicated region
    $region81: #{encoder_decoder_forward.2} parent=5 // pred_check
      _
    $region82: #{encoder_decoder_forward.2} parent=5 // pred_check_branch
      %555 = sbr.rel (%p552) target = $region84
    $region83: #{encoder_decoder_forward.2} parent=5 // pred_region
      %s556 = ssub.s32 %s22, 1
      %p557 = pneg %p43
      %p558 = pneg %p40
      %p559 = pneg %p64
      %p560 = pneg %p61
      %p561 = scmp.lt.s32.totalorder %s27, 1
      %s562 = scalar_select %p561, %s27, 1
      %s563 = scalar_lea.vmem %s2, %s562
      %p564 = pneg %p90
      %p565 = pneg %p87
      %p566 = scmp.lt.s32.totalorder %s27, 1
      %s567 = scalar_select %p566, %s27, 1
      %s568 = scalar_lea.vmem %s3, %s567
      %p569 = pneg %p116
      %p570 = pneg %p113
      %p571 = scmp.lt.s32.totalorder %s27, 1
      %s572 = scalar_select %p571, %s27, 1
      %s573 = smul.addr %s572, 4
      %s574 = smul.addr %s573, 4
      %s575 = scalar_lea.vmem %s4, %s574
      %p576 = pneg %p142
      %p577 = pneg %p139
      %p578 = scmp.lt.s32.totalorder %s27, 1
      %s579 = scalar_select %p578, %s27, 1
      %s580 = scalar_lea.vmem %s5, %s579
      %p581 = pneg %p168
      %p582 = pneg %p165
      %p583 = scmp.lt.s32.totalorder %s27, 1
      %s584 = scalar_select %p583, %s27, 1
      %s585 = smul.addr %s584, 4
      %s586 = smul.addr %s585, 4
      %s587 = scalar_lea.vmem %s6, %s586
      %p588 = pneg %p194
      %p589 = pneg %p191
      %p590 = scmp.lt.s32.totalorder %s27, 1
      %s591 = scalar_select %p590, %s27, 1
      %s592 = scalar_lea.vmem %s7, %s591
      %p593 = pneg %p220
      %p594 = pneg %p217
      %p595 = scmp.lt.s32.totalorder %s27, 1
      %s596 = scalar_select %p595, %s27, 1
      %s597 = scalar_lea.vmem %s8, %s596
      %p598 = pneg %p246
      %p599 = pneg %p243
      %p600 = scmp.lt.s32.totalorder %s27, 1
      %s601 = scalar_select %p600, %s27, 1
      %s602 = scalar_lea.vmem %s9, %s601
      %p603 = pneg %p272
      %p604 = pneg %p269
      %p605 = scmp.lt.s32.totalorder %s27, 1
      %s606 = scalar_select %p605, %s27, 1
      %s607 = smul.addr %s606, 4
      %s608 = smul.addr %s607, 4
      %s609 = scalar_lea.vmem %s10, %s608
      %p610 = pneg %p298
      %p611 = pneg %p295
      %p612 = scmp.lt.s32.totalorder %s27, 1
      %s613 = scalar_select %p612, %s27, 1
      %s614 = scalar_lea.vmem %s11, %s613
      %p615 = pneg %p324
      %p616 = pneg %p321
      %p617 = scmp.lt.s32.totalorder %s27, 1
      %s618 = scalar_select %p617, %s27, 1
      %s619 = smul.addr %s618, 8
      %s620 = smul.addr %s619, 4
      %s621 = scalar_lea.vmem %s12, %s620
      %p622 = pneg %p350
      %p623 = pneg %p347
      %p624 = scmp.lt.s32.totalorder %s27, 1
      %s625 = scalar_select %p624, %s27, 1
      %s626 = scalar_lea.vmem %s13, %s625
      %p627 = pneg %p376
      %p628 = pneg %p373
      %p629 = pneg %p397
      %p630 = pneg %p394
      %p631 = pneg %p418
      %p632 = pneg %p415
      %p633 = pneg %p439
      %p634 = pneg %p436
      %p635 = scmp.lt.s32.totalorder %s27, 1
      %s636 = scalar_select %p635, %s27, 1
      %s637 = scalar_lea.vmem %s2, %s636
      %p638 = scmp.lt.s32.totalorder %s27, 1
      %s639 = scalar_select %p638, %s27, 1
      %s640 = scalar_lea.vmem %s3, %s639
      %p641 = scmp.lt.s32.totalorder %s27, 1
      %s642 = scalar_select %p641, %s27, 1
      %s643 = smul.addr %s642, 4
      %s644 = smul.addr %s643, 4
      %s645 = scalar_lea.vmem %s4, %s644
      %p646 = scmp.lt.s32.totalorder %s27, 1
      %s647 = scalar_select %p646, %s27, 1
      %s648 = scalar_lea.vmem %s5, %s647
      %p649 = scmp.lt.s32.totalorder %s27, 1
      %s650 = scalar_select %p649, %s27, 1
      %s651 = smul.addr %s650, 4
      %s652 = smul.addr %s651, 4
      %s653 = scalar_lea.vmem %s6, %s652
      %p654 = scmp.lt.s32.totalorder %s27, 1
      %s655 = scalar_select %p654, %s27, 1
      %s656 = scalar_lea.vmem %s7, %s655
      %p657 = scmp.lt.s32.totalorder %s27, 1
      %s658 = scalar_select %p657, %s27, 1
      %s659 = scalar_lea.vmem %s8, %s658
      %p660 = scmp.lt.s32.totalorder %s27, 1
      %s661 = scalar_select %p660, %s27, 1
      %s662 = scalar_lea.vmem %s9, %s661
      %p663 = scmp.lt.s32.totalorder %s27, 1
      %s664 = scalar_select %p663, %s27, 1
      %s665 = smul.addr %s664, 4
      %s666 = smul.addr %s665, 4
      %s667 = scalar_lea.vmem %s10, %s666
      %p668 = scmp.lt.s32.totalorder %s27, 1
      %s669 = scalar_select %p668, %s27, 1
      %s670 = scalar_lea.vmem %s11, %s669
      %p671 = scmp.lt.s32.totalorder %s27, 1
      %s672 = scalar_select %p671, %s27, 1
      %s673 = smul.addr %s672, 8
      %s674 = smul.addr %s673, 4
      %s675 = scalar_lea.vmem %s12, %s674
      %p676 = scmp.lt.s32.totalorder %s27, 1
      %s677 = scalar_select %p676, %s27, 1
      %s678 = scalar_lea.vmem %s13, %s677
      %p680 = scmp.eq.s32.totalorder %s27, 0
      // Predicated region
      $region85: #{encoder_decoder_forward.2} parent=83 // pred_check
        %p681 = pneg %p680
      $region86: #{encoder_decoder_forward.2} parent=83 // pred_check_branch
        %683 = sbr.rel (%p681) target = $region88
      $region87: #{encoder_decoder_forward.2} parent=83 // pred_region
        %v684 = vld [vmem:[%s0] sm:$0xff]
        %v685 = vld [vmem:[%s0 + $0x8] sm:$0xff]
        %vm686 = vcmask 261120
        %687 = vst.msk [vmem:[%s16] sm:$0xff] %vm686, %v684
        %688 = vst.msk [vmem:[%s16 + $0x8] sm:$0xff] %vm686, %v685
      $region88: #{encoder_decoder_forward.2} parent=83 // pred_fallthru
        _
      %v689 = vld [vmem:[%s16] sm:$0xff]
      %v690 = vld [vmem:[%s16 + $0x8] sm:$0xff]
      %v691 = vld [vmem:[%s1] sm:$0x3]
      %v692 = vsub.f32 %v691, 1.0
      %v693 = vmul.f32 %v692, 1e+09
      %v696 = vunpack.c.l.s4 1966171168
      %v697 = vunpack.c.0.s8 %v696
      %v698 = vlaneseq
      %v699 = vshrl.u32 %v698, 7
      %v700 = vsub.s32 %v697, %v699
      %v701 = vrot.slane %v693, %v700
      %v702 = vcombine.high %v701, %v701
      %v704 = vunpack.c.l.s4 1966171168
      %v705 = vunpack.c.0.s8 %v704
      %v706 = vlaneseq
      %v707 = vshrl.u32 %v706, 7
      %v708 = vsub.s32 %v705, %v707
      %v709 = vrot.slane %v701, %v708
      %v711 = vunpack.c.l.s4 1966171168
      %v712 = vunpack.c.0.s8 %v711
      %v713 = vlaneseq
      %v714 = vshrl.u32 %v713, 7
      %v715 = vsub.s32 %v712, %v714
      %v716 = vrot.slane %v702, %v715
      %v717 = vlaneseq
      %v718 = vshrl.u32 %v717, 7
      %v719 = vsub.s32 0, %v718
      %v720 = vrot.slane %v709, %v719
      %v721 = vlaneseq
      %v722 = vshrl.u32 %v721, 7
      %v723 = vsub.s32 0, %v722
      %v724 = vrot.slane %v716, %v723
      %v727 = vld [vmem:[%s637] sm:$0x1]
      %v728 = vld [vmem:[%s640] sm:$0x1]
      %vm729 = vcmask 261120
      %v730 = vsel %vm729, %v689, 0.0
      %731 = vadd.xlane.f32.xlu0 %v730
      %v732 = vpop.xlane.xlu0 %731
      %v733 = vsel %vm729, %v690, 0.0
      %734 = vadd.xlane.f32.xlu0 %v733
      %v735 = vpop.xlane.xlu0 %734
      %v736 = vrcp.pop 32.0
      %v737 = vmul.f32 %v732, %v736
      %v738 = vmul.f32 %v735, %v736
      %v739 = vsub.f32 %v689, %v737
      %v740 = vsub.f32 %v690, %v738
      %v741 = vmul.f32 %v739, %v739
      %v742 = vmul.f32 %v740, %v740
      %v743 = vsel %vm729, %v741, 0.0
      %744 = vadd.xlane.f32.xlu0 %v743
      %v745 = vpop.xlane.xlu0 %744
      %v746 = vsel %vm729, %v742, 0.0
      %747 = vadd.xlane.f32.xlu0 %v746
      %v748 = vpop.xlane.xlu0 %747
      %v749 = vmul.f32 %v745, %v736
      %v750 = vmul.f32 %v748, %v736
      %v751 = vadd.f32 %v749, 1e-06
      %v752 = vadd.f32 %v750, 1e-06
      %v753 = vrsqrt.pop %v751
      %v754 = vrsqrt.pop %v752
      %v755 = vmul.f32 %v739, %v753
      %v756 = vmul.f32 %v740, %v754
      %v758 = vlaneseq
      %v759 = vshrl.u32 %v758, 7
      %v760 = vsub.s32 0, %v759
      %v761 = vrot.slane %v727, %v760
      %v763 = vmul.f32 %v755, %v761
      %v764 = vmul.f32 %v756, %v761
      %v766 = vlaneseq
      %v767 = vshrl.u32 %v766, 7
      %v768 = vsub.s32 0, %v767
      %v769 = vrot.slane %v728, %v768
      %v771 = vadd.f32 %v763, %v769
      %v772 = vadd.f32 %v764, %v769
      %v773 = vld [vmem:[%s645] sm:$0xf]
      %v774 = vld [vmem:[%s645 + $0x4] sm:$0xf]
      %v775 = vld [vmem:[%s645 + $0x8] sm:$0xf]
      %v776 = vld [vmem:[%s645 + $0xc] sm:$0xf]
      %v777 = vpack.c.bf16 %v772, %v771
      %v778 = vld [vmem:[%s648] sm:$0x1]
      %v780 = vlaneseq
      %v781 = vshrl.u32 %v780, 7
      %v782 = vsub.s32 0, %v781
      %v783 = vrot.slane %v778, %v782
      %v789 = vunpack.c.l.b16 %v773
      %v790 = vunpack.c.l.b16 %v774
      %v791 = vunpack.c.l.b16 %v775
      %v792 = vunpack.c.l.b16 %v776
      %v793 = vpack.c.b16 %v790, %v789
      %v794 = vpack.c.b16 %v792, %v791
      %v798 = vsel %vm729, %v777, 0
      %800 = vmatprep.subr.bf16.mxu0 0
      %801 = vmatpush1.bf16.msra.mxu0 %v793
      %802 = vmatprep.subr.bf16.mxu0 0
      %803 = vmatpush1.bf16.msra.mxu0 %v794
      %804 = vmatprep.subr.bf16.mxu0 0
      %805 = vmatpush1.bf16.msra.mxu0 0
      %806 = vmatprep.subr.bf16.mxu0 0
      %807 = vmatpush1.bf16.msra.mxu0 0
      %808 = vmatprep.subr.bf16.mxu0 0
      %809 = vmatpush1.bf16.msra.mxu0 0
      %810 = vmatprep.subr.bf16.mxu0 0
      %811 = vmatpush1.bf16.msra.mxu0 0
      %812 = vmatprep.subr.bf16.mxu0 0
      %813 = vmatpush1.bf16.msra.mxu0 0
      %814 = vmatprep.subr.bf16.mxu0 0
      %815 = vmatpush1.bf16.msra.mxu0 0
      %816 = vmatprep.subr.bf16.mxu0 0
      %817 = vmatpush1.bf16.msra.mxu0 0
      %818 = vmatprep.subr.bf16.mxu0 0
      %819 = vmatpush1.bf16.msra.mxu0 0
      %820 = vmatprep.subr.bf16.mxu0 0
      %821 = vmatpush1.bf16.msra.mxu0 0
      %822 = vmatprep.subr.bf16.mxu0 0
      %823 = vmatpush1.bf16.msra.mxu0 0
      %824 = vmatprep.subr.bf16.mxu0 0
      %825 = vmatpush1.bf16.msra.mxu0 0
      %826 = vmatprep.subr.bf16.mxu0 0
      %827 = vmatpush1.bf16.msra.mxu0 0
      %828 = vmatprep.subr.bf16.mxu0 0
      %829 = vmatpush1.bf16.msra.mxu0 0
      %830 = vmatprep.subr.bf16.mxu0 0
      %831 = vmatpush1.bf16.msra.mxu0 0
      %832 = vmatprep.mubr.bf16.mxu0 0
      %833 = vmatmul.mubr.bf16.gmra.mrb[0].mxu0 %v798
      %v834 = vpop.f32.mrb[0].mxu0
      %v835 = vadd.f32 %v783, %v834
      %v836 = vpop.f32.mrb[0].mxu0
      %v837 = vpop.f32.mrb[0].mxu0
      %v838 = vadd.f32 %v783, %v837
      %v839 = vpop.f32.mrb[0].mxu0
      %840 = vdwg.mxu0
      %v841 = vld [vmem:[%s653] sm:$0xf]
      %v842 = vld [vmem:[%s653 + $0x4] sm:$0xf]
      %v843 = vld [vmem:[%s653 + $0x8] sm:$0xf]
      %v844 = vld [vmem:[%s653 + $0xc] sm:$0xf]
      %v845 = vld [vmem:[%s656] sm:$0x1]
      %v846 = vmul.f32 %v835, 0.35355338
      %v847 = vmul.f32 %v838, 0.35355338
      %v848 = vpack.c.bf16 %v846, %v846
      %v849 = vpack.c.bf16 %v847, %v847
      %v850 = vpack.c.bf16 %v835, %v835
      %v851 = vpack.c.bf16 %v838, %v838
      %853 = vrot.lane.b32.xlu0 %v850, 96
      %v854 = vpop.permute.xlu0 %853
      %vm855 = vcmask 64512
      %v857 = vsel %vm855, %v848, 0
      %v860 = vsel %vm855, %v854, 0
      %862 = vmatprep.subr.bf16.mxu0 0
      %863 = vmatpush1.bf16.xpose.msra.mxu0 %v860
      %864 = vmatprep.subr.bf16.mxu0 0
      %865 = vmatpush1.bf16.xpose.msra.mxu0 0
      %866 = vmatprep.subr.bf16.mxu0 0
      %867 = vmatpush1.bf16.xpose.msra.mxu0 0
      %868 = vmatprep.subr.bf16.mxu0 0
      %869 = vmatpush1.bf16.xpose.msra.mxu0 0
      %870 = vmatprep.subr.bf16.mxu0 0
      %871 = vmatpush1.bf16.xpose.msra.mxu0 0
      %872 = vmatprep.subr.bf16.mxu0 0
      %873 = vmatpush1.bf16.xpose.msra.mxu0 0
      %874 = vmatprep.subr.bf16.mxu0 0
      %875 = vmatpush1.bf16.xpose.msra.mxu0 0
      %876 = vmatprep.subr.bf16.mxu0 0
      %877 = vmatpush1.bf16.xpose.msra.mxu0 0
      %878 = vmatprep.subr.bf16.mxu0 0
      %879 = vmatpush1.bf16.xpose.msra.mxu0 0
      %880 = vmatprep.subr.bf16.mxu0 0
      %881 = vmatpush1.bf16.xpose.msra.mxu0 0
      %882 = vmatprep.subr.bf16.mxu0 0
      %883 = vmatpush1.bf16.xpose.msra.mxu0 0
      %884 = vmatprep.subr.bf16.mxu0 0
      %885 = vmatpush1.bf16.xpose.msra.mxu0 0
      %886 = vmatprep.subr.bf16.mxu0 0
      %887 = vmatpush1.bf16.xpose.msra.mxu0 0
      %888 = vmatprep.subr.bf16.mxu0 0
      %889 = vmatpush1.bf16.xpose.msra.mxu0 0
      %890 = vmatprep.subr.bf16.mxu0 0
      %891 = vmatpush1.bf16.xpose.msra.mxu0 0
      %892 = vmatprep.subr.bf16.mxu0 0
      %893 = vmatpush1.bf16.xpose.msra.mxu0 0
      %894 = vmatprep.mubr.bf16.mxu0 0
      %895 = vmatmul.mubr.bf16.gmra.mrb[0].mxu0 %v857
      %v896 = vpop.f32.mrb[0].mxu0
      %v897 = vadd.f32 %v720, %v896
      %v898 = vpop.f32.mrb[0].mxu0
      %v899 = vpop.f32.mrb[0].mxu0
      %v900 = vpop.f32.mrb[0].mxu0
      %901 = vdwg.mxu0
      %903 = vrot.lane.b32.xlu0 %v851, 96
      %v904 = vpop.permute.xlu0 %903
      %v906 = vsel %vm855, %v849, 0
      %v909 = vsel %vm855, %v904, 0
      %911 = vmatprep.subr.bf16.mxu0 0
      %912 = vmatpush1.bf16.xpose.msra.mxu0 %v909
      %913 = vmatprep.subr.bf16.mxu0 0
      %914 = vmatpush1.bf16.xpose.msra.mxu0 0
      %915 = vmatprep.subr.bf16.mxu0 0
      %916 = vmatpush1.bf16.xpose.msra.mxu0 0
      %917 = vmatprep.subr.bf16.mxu0 0
      %918 = vmatpush1.bf16.xpose.msra.mxu0 0
      %919 = vmatprep.subr.bf16.mxu0 0
      %920 = vmatpush1.bf16.xpose.msra.mxu0 0
      %921 = vmatprep.subr.bf16.mxu0 0
      %922 = vmatpush1.bf16.xpose.msra.mxu0 0
      %923 = vmatprep.subr.bf16.mxu0 0
      %924 = vmatpush1.bf16.xpose.msra.mxu0 0
      %925 = vmatprep.subr.bf16.mxu0 0
      %926 = vmatpush1.bf16.xpose.msra.mxu0 0
      %927 = vmatprep.subr.bf16.mxu0 0
      %928 = vmatpush1.bf16.xpose.msra.mxu0 0
      %929 = vmatprep.subr.bf16.mxu0 0
      %930 = vmatpush1.bf16.xpose.msra.mxu0 0
      %931 = vmatprep.subr.bf16.mxu0 0
      %932 = vmatpush1.bf16.xpose.msra.mxu0 0
      %933 = vmatprep.subr.bf16.mxu0 0
      %934 = vmatpush1.bf16.xpose.msra.mxu0 0
      %935 = vmatprep.subr.bf16.mxu0 0
      %936 = vmatpush1.bf16.xpose.msra.mxu0 0
      %937 = vmatprep.subr.bf16.mxu0 0
      %938 = vmatpush1.bf16.xpose.msra.mxu0 0
      %939 = vmatprep.subr.bf16.mxu0 0
      %940 = vmatpush1.bf16.xpose.msra.mxu0 0
      %941 = vmatprep.subr.bf16.mxu0 0
      %942 = vmatpush1.bf16.xpose.msra.mxu0 0
      %943 = vmatprep.mubr.bf16.mxu0 0
      %944 = vmatmul.mubr.bf16.gmra.mrb[0].mxu0 %v906
      %v945 = vpop.f32.mrb[0].mxu0
      %v946 = vadd.f32 %v724, %v945
      %v947 = vpop.f32.mrb[0].mxu0
      %v948 = vpop.f32.mrb[0].mxu0
      %v949 = vpop.f32.mrb[0].mxu0
      %950 = vdwg.mxu0
      %v951 = vsel %vm855, %v897, -inf
      %952 = vmax.xlane.f32.xlu0 %v951
      %v953 = vpop.xlane.xlu0 %952
      %v954 = vsel %vm855, %v946, -inf
      %955 = vmax.xlane.f32.xlu0 %v954
      %v956 = vpop.xlane.xlu0 %955
      %v957 = vsub.f32 %v897, %v953
      %v958 = vsub.f32 %v946, %v956
      %v959 = vmul.f32 %v957, 1.442695
      %v960 = vpow.pop %v959
      %v961 = vmul.f32 %v958, 1.442695
      %v962 = vpow.pop %v961
      %v963 = vsel %vm855, %v960, 0.0
      %964 = vadd.xlane.f32.xlu0 %v963
      %v965 = vpop.xlane.xlu0 %964
      %v966 = vsel %vm855, %v962, 0.0
      %967 = vadd.xlane.f32.xlu0 %v966
      %v968 = vpop.xlane.xlu0 %967
      %v969 = vrcp.pop %v965
      %v970 = vrcp.pop %v968
      %v971 = vmul.f32 %v960, %v969
      %v972 = vmul.f32 %v962, %v970
      %v973 = vpack.c.bf16 %v971, %v971
      %v974 = vpack.c.bf16 %v972, %v972
      %975 = vrot.lane.b32.xlu0 %v850, 64
      %v976 = vpop.permute.xlu0 %975
      %v978 = vsel %vm855, %v973, 0
      %vm980 = vcmask 1043456
      %v982 = vsel %vm980, %v976, 0
      %984 = vmatprep.subr.bf16.mxu0 0
      %985 = vmatpush1.bf16.msra.mxu0 %v982
      %986 = vmatprep.subr.bf16.mxu0 0
      %987 = vmatpush1.bf16.msra.mxu0 0
      %988 = vmatprep.subr.bf16.mxu0 0
      %989 = vmatpush1.bf16.msra.mxu0 0
      %990 = vmatprep.subr.bf16.mxu0 0
      %991 = vmatpush1.bf16.msra.mxu0 0
      %992 = vmatprep.subr.bf16.mxu0 0
      %993 = vmatpush1.bf16.msra.mxu0 0
      %994 = vmatprep.subr.bf16.mxu0 0
      %995 = vmatpush1.bf16.msra.mxu0 0
      %996 = vmatprep.subr.bf16.mxu0 0
      %997 = vmatpush1.bf16.msra.mxu0 0
      %998 = vmatprep.subr.bf16.mxu0 0
      %999 = vmatpush1.bf16.msra.mxu0 0
      %1000 = vmatprep.subr.bf16.mxu0 0
      %1001 = vmatpush1.bf16.msra.mxu0 0
      %1002 = vmatprep.subr.bf16.mxu0 0
      %1003 = vmatpush1.bf16.msra.mxu0 0
      %1004 = vmatprep.subr.bf16.mxu0 0
      %1005 = vmatpush1.bf16.msra.mxu0 0
      %1006 = vmatprep.subr.bf16.mxu0 0
      %1007 = vmatpush1.bf16.msra.mxu0 0
      %1008 = vmatprep.subr.bf16.mxu0 0
      %1009 = vmatpush1.bf16.msra.mxu0 0
      %1010 = vmatprep.subr.bf16.mxu0 0
      %1011 = vmatpush1.bf16.msra.mxu0 0
      %1012 = vmatprep.subr.bf16.mxu0 0
      %1013 = vmatpush1.bf16.msra.mxu0 0
      %1014 = vmatprep.subr.bf16.mxu0 0
      %1015 = vmatpush1.bf16.msra.mxu0 0
      %1016 = vmatprep.mubr.bf16.mxu0 0
      %1017 = vmatmul.mubr.bf16.gmra.mrb[0].mxu0 %v978
      %v1018 = vpop.f32.mrb[0].mxu0
      %v1019 = vadd.f32 0.0, %v1018
      %v1020 = vpop.f32.mrb[0].mxu0
      %v1021 = vpop.f32.mrb[0].mxu0
      %v1022 = vpop.f32.mrb[0].mxu0
      %1023 = vdwg.mxu0
      %1024 = vrot.lane.b32.xlu0 %v851, 64
      %v1025 = vpop.permute.xlu0 %1024
      %v1027 = vsel %vm855, %v974, 0
      %v1030 = vsel %vm980, %v1025, 0
      %1032 = vmatprep.subr.bf16.mxu0 0
      %1033 = vmatpush1.bf16.msra.mxu0 %v1030
      %1034 = vmatprep.subr.bf16.mxu0 0
      %1035 = vmatpush1.bf16.msra.mxu0 0
      %1036 = vmatprep.subr.bf16.mxu0 0
      %1037 = vmatpush1.bf16.msra.mxu0 0
      %1038 = vmatprep.subr.bf16.mxu0 0
      %1039 = vmatpush1.bf16.msra.mxu0 0
      %1040 = vmatprep.subr.bf16.mxu0 0
      %1041 = vmatpush1.bf16.msra.mxu0 0
      %1042 = vmatprep.subr.bf16.mxu0 0
      %1043 = vmatpush1.bf16.msra.mxu0 0
      %1044 = vmatprep.subr.bf16.mxu0 0
      %1045 = vmatpush1.bf16.msra.mxu0 0
      %1046 = vmatprep.subr.bf16.mxu0 0
      %1047 = vmatpush1.bf16.msra.mxu0 0
      %1048 = vmatprep.subr.bf16.mxu0 0
      %1049 = vmatpush1.bf16.msra.mxu0 0
      %1050 = vmatprep.subr.bf16.mxu0 0
      %1051 = vmatpush1.bf16.msra.mxu0 0
      %1052 = vmatprep.subr.bf16.mxu0 0
      %1053 = vmatpush1.bf16.msra.mxu0 0
      %1054 = vmatprep.subr.bf16.mxu0 0
      %1055 = vmatpush1.bf16.msra.mxu0 0
      %1056 = vmatprep.subr.bf16.mxu0 0
      %1057 = vmatpush1.bf16.msra.mxu0 0
      %1058 = vmatprep.subr.bf16.mxu0 0
      %1059 = vmatpush1.bf16.msra.mxu0 0
      %1060 = vmatprep.subr.bf16.mxu0 0
      %1061 = vmatpush1.bf16.msra.mxu0 0
      %1062 = vmatprep.subr.bf16.mxu0 0
      %1063 = vmatpush1.bf16.msra.mxu0 0
      %1064 = vmatprep.mubr.bf16.mxu0 0
      %1065 = vmatmul.mubr.bf16.gmra.mrb[0].mxu0 %v1027
      %v1066 = vpop.f32.mrb[0].mxu0
      %v1067 = vadd.f32 0.0, %v1066
      %v1068 = vpop.f32.mrb[0].mxu0
      %v1069 = vpop.f32.mrb[0].mxu0
      %v1070 = vpop.f32.mrb[0].mxu0
      %1071 = vdwg.mxu0
      %1073 = vrot.lane.b32.xlu0 %v848, 120
      %v1074 = vpop.permute.xlu0 %1073
      %1075 = vrot.lane.b32.xlu0 %v850, 88
      %v1076 = vpop.permute.xlu0 %1075
      %v1078 = vsel %vm855, %v1074, 0
      %v1081 = vsel %vm855, %v1076, 0
      %1083 = vmatprep.subr.bf16.mxu0 0
      %1084 = vmatpush1.bf16.xpose.msra.mxu0 %v1081
      %1085 = vmatprep.subr.bf16.mxu0 0
      %1086 = vmatpush1.bf16.xpose.msra.mxu0 0
      %1087 = vmatprep.subr.bf16.mxu0 0
      %1088 = vmatpush1.bf16.xpose.msra.mxu0 0
      %1089 = vmatprep.subr.bf16.mxu0 0
      %1090 = vmatpush1.bf16.xpose.msra.mxu0 0
      %1091 = vmatprep.subr.bf16.mxu0 0
      %1092 = vmatpush1.bf16.xpose.msra.mxu0 0
      %1093 = vmatprep.subr.bf16.mxu0 0
      %1094 = vmatpush1.bf16.xpose.msra.mxu0 0
      %1095 = vmatprep.subr.bf16.mxu0 0
      %1096 = vmatpush1.bf16.xpose.msra.mxu0 0
      %1097 = vmatprep.subr.bf16.mxu0 0
      %1098 = vmatpush1.bf16.xpose.msra.mxu0 0
      %1099 = vmatprep.subr.bf16.mxu0 0
      %1100 = vmatpush1.bf16.xpose.msra.mxu0 0
      %1101 = vmatprep.subr.bf16.mxu0 0
      %1102 = vmatpush1.bf16.xpose.msra.mxu0 0
      %1103 = vmatprep.subr.bf16.mxu0 0
      %1104 = vmatpush1.bf16.xpose.msra.mxu0 0
      %1105 = vmatprep.subr.bf16.mxu0 0
      %1106 = vmatpush1.bf16.xpose.msra.mxu0 0
      %1107 = vmatprep.subr.bf16.mxu0 0
      %1108 = vmatpush1.bf16.xpose.msra.mxu0 0
      %1109 = vmatprep.subr.bf16.mxu0 0
      %1110 = vmatpush1.bf16.xpose.msra.mxu0 0
      %1111 = vmatprep.subr.bf16.mxu0 0
      %1112 = vmatpush1.bf16.xpose.msra.mxu0 0
      %1113 = vmatprep.subr.bf16.mxu0 0
      %1114 = vmatpush1.bf16.xpose.msra.mxu0 0
      %1115 = vmatprep.mubr.bf16.mxu0 0
      %1116 = vmatmul.mubr.bf16.gmra.mrb[0].mxu0 %v1078
      %v1117 = vpop.f32.mrb[0].mxu0
      %v1118 = vadd.f32 %v720, %v1117
      %v1119 = vpop.f32.mrb[0].mxu0
      %v1120 = vpop.f32.mrb[0].mxu0
      %v1121 = vpop.f32.mrb[0].mxu0
      %1122 = vdwg.mxu0
      %1124 = vrot.lane.b32.xlu0 %v849, 120
      %v1125 = vpop.permute.xlu0 %1124
      %1126 = vrot.lane.b32.xlu0 %v851, 88
      %v1127 = vpop.permute.xlu0 %1126
      %v1129 = vsel %vm855, %v1125, 0
      %v1132 = vsel %vm855, %v1127, 0
      %1134 = vmatprep.subr.bf16.mxu0 0
      %1135 = vmatpush1.bf16.xpose.msra.mxu0 %v1132
      %1136 = vmatprep.subr.bf16.mxu0 0
      %1137 = vmatpush1.bf16.xpose.msra.mxu0 0
      %1138 = vmatprep.subr.bf16.mxu0 0
      %1139 = vmatpush1.bf16.xpose.msra.mxu0 0
      %1140 = vmatprep.subr.bf16.mxu0 0
      %1141 = vmatpush1.bf16.xpose.msra.mxu0 0
      %1142 = vmatprep.subr.bf16.mxu0 0
      %1143 = vmatpush1.bf16.xpose.msra.mxu0 0
      %1144 = vmatprep.subr.bf16.mxu0 0
      %1145 = vmatpush1.bf16.xpose.msra.mxu0 0
      %1146 = vmatprep.subr.bf16.mxu0 0
      %1147 = vmatpush1.bf16.xpose.msra.mxu0 0
      %1148 = vmatprep.subr.bf16.mxu0 0
      %1149 = vmatpush1.bf16.xpose.msra.mxu0 0
      %1150 = vmatprep.subr.bf16.mxu0 0
      %1151 = vmatpush1.bf16.xpose.msra.mxu0 0
      %1152 = vmatprep.subr.bf16.mxu0 0
      %1153 = vmatpush1.bf16.xpose.msra.mxu0 0
      %1154 = vmatprep.subr.bf16.mxu0 0
      %1155 = vmatpush1.bf16.xpose.msra.mxu0 0
      %1156 = vmatprep.subr.bf16.mxu0 0
      %1157 = vmatpush1.bf16.xpose.msra.mxu0 0
      %1158 = vmatprep.subr.bf16.mxu0 0
      %1159 = vmatpush1.bf16.xpose.msra.mxu0 0
      %1160 = vmatprep.subr.bf16.mxu0 0
      %1161 = vmatpush1.bf16.xpose.msra.mxu0 0
      %1162 = vmatprep.subr.bf16.mxu0 0
      %1163 = vmatpush1.bf16.xpose.msra.mxu0 0
      %1164 = vmatprep.subr.bf16.mxu0 0
      %1165 = vmatpush1.bf16.xpose.msra.mxu0 0
      %1166 = vmatprep.mubr.bf16.mxu0 0
      %1167 = vmatmul.mubr.bf16.gmra.mrb[0].mxu0 %v1129
      %v1168 = vpop.f32.mrb[0].mxu0
      %v1169 = vadd.f32 %v724, %v1168
      %v1170 = vpop.f32.mrb[0].mxu0
      %v1171 = vpop.f32.mrb[0].mxu0
      %v1172 = vpop.f32.mrb[0].mxu0
      %1173 = vdwg.mxu0
      %v1174 = vsel %vm855, %v1118, -inf
      %1175 = vmax.xlane.f32.xlu0 %v1174
      %v1176 = vpop.xlane.xlu0 %1175
      %v1177 = vsel %vm855, %v1169, -inf
      %1178 = vmax.xlane.f32.xlu0 %v1177
      %v1179 = vpop.xlane.xlu0 %1178
      %v1180 = vsub.f32 %v1118, %v1176
      %v1181 = vsub.f32 %v1169, %v1179
      %v1182 = vmul.f32 %v1180, 1.442695
      %v1183 = vpow.pop %v1182
      %v1184 = vmul.f32 %v1181, 1.442695
      %v1185 = vpow.pop %v1184
      %v1186 = vsel %vm855, %v1183, 0.0
      %1187 = vadd.xlane.f32.xlu0 %v1186
      %v1188 = vpop.xlane.xlu0 %1187
      %v1189 = vsel %vm855, %v1185, 0.0
      %1190 = vadd.xlane.f32.xlu0 %v1189
      %v1191 = vpop.xlane.xlu0 %1190
      %v1192 = vrcp.pop %v1188
      %v1193 = vrcp.pop %v1191
      %v1194 = vmul.f32 %v1183, %v1192
      %v1195 = vmul.f32 %v1185, %v1193
      %v1196 = vpack.c.bf16 %v1194, %v1194
      %v1197 = vpack.c.bf16 %v1195, %v1195
      %1198 = vrot.lane.b32.xlu0 %v850, 56
      %v1199 = vpop.permute.xlu0 %1198
      %v1201 = vsel %vm855, %v1196, 0
      %v1204 = vsel %vm980, %v1199, 0
      %1206 = vmatprep.subr.bf16.mxu0 0
      %1207 = vmatpush1.bf16.msra.mxu0 %v1204
      %1208 = vmatprep.subr.bf16.mxu0 0
      %1209 = vmatpush1.bf16.msra.mxu0 0
      %1210 = vmatprep.subr.bf16.mxu0 0
      %1211 = vmatpush1.bf16.msra.mxu0 0
      %1212 = vmatprep.subr.bf16.mxu0 0
      %1213 = vmatpush1.bf16.msra.mxu0 0
      %1214 = vmatprep.subr.bf16.mxu0 0
      %1215 = vmatpush1.bf16.msra.mxu0 0
      %1216 = vmatprep.subr.bf16.mxu0 0
      %1217 = vmatpush1.bf16.msra.mxu0 0
      %1218 = vmatprep.subr.bf16.mxu0 0
      %1219 = vmatpush1.bf16.msra.mxu0 0
      %1220 = vmatprep.subr.bf16.mxu0 0
      %1221 = vmatpush1.bf16.msra.mxu0 0
      %1222 = vmatprep.subr.bf16.mxu0 0
      %1223 = vmatpush1.bf16.msra.mxu0 0
      %1224 = vmatprep.subr.bf16.mxu0 0
      %1225 = vmatpush1.bf16.msra.mxu0 0
      %1226 = vmatprep.subr.bf16.mxu0 0
      %1227 = vmatpush1.bf16.msra.mxu0 0
      %1228 = vmatprep.subr.bf16.mxu0 0
      %1229 = vmatpush1.bf16.msra.mxu0 0
      %1230 = vmatprep.subr.bf16.mxu0 0
      %1231 = vmatpush1.bf16.msra.mxu0 0
      %1232 = vmatprep.subr.bf16.mxu0 0
      %1233 = vmatpush1.bf16.msra.mxu0 0
      %1234 = vmatprep.subr.bf16.mxu0 0
      %1235 = vmatpush1.bf16.msra.mxu0 0
      %1236 = vmatprep.subr.bf16.mxu0 0
      %1237 = vmatpush1.bf16.msra.mxu0 0
      %1238 = vmatprep.mubr.bf16.mxu0 0
      %1239 = vmatmul.mubr.bf16.gmra.mrb[0].mxu0 %v1201
      %v1240 = vpop.f32.mrb[0].mxu0
      %v1241 = vadd.f32 0.0, %v1240
      %v1242 = vpop.f32.mrb[0].mxu0
      %v1243 = vpop.f32.mrb[0].mxu0
      %v1244 = vpop.f32.mrb[0].mxu0
      %1245 = vdwg.mxu0
      %1246 = vrot.lane.b32.xlu0 %v851, 56
      %v1247 = vpop.permute.xlu0 %1246
      %v1249 = vsel %vm855, %v1197, 0
      %v1252 = vsel %vm980, %v1247, 0
      %1254 = vmatprep.subr.bf16.mxu0 0
      %1255 = vmatpush1.bf16.msra.mxu0 %v1252
      %1256 = vmatprep.subr.bf16.mxu0 0
      %1257 = vmatpush1.bf16.msra.mxu0 0
      %1258 = vmatprep.subr.bf16.mxu0 0
      %1259 = vmatpush1.bf16.msra.mxu0 0
      %1260 = vmatprep.subr.bf16.mxu0 0
      %1261 = vmatpush1.bf16.msra.mxu0 0
      %1262 = vmatprep.subr.bf16.mxu0 0
      %1263 = vmatpush1.bf16.msra.mxu0 0
      %1264 = vmatprep.subr.bf16.mxu0 0
      %1265 = vmatpush1.bf16.msra.mxu0 0
      %1266 = vmatprep.subr.bf16.mxu0 0
      %1267 = vmatpush1.bf16.msra.mxu0 0
      %1268 = vmatprep.subr.bf16.mxu0 0
      %1269 = vmatpush1.bf16.msra.mxu0 0
      %1270 = vmatprep.subr.bf16.mxu0 0
      %1271 = vmatpush1.bf16.msra.mxu0 0
      %1272 = vmatprep.subr.bf16.mxu0 0
      %1273 = vmatpush1.bf16.msra.mxu0 0
      %1274 = vmatprep.subr.bf16.mxu0 0
      %1275 = vmatpush1.bf16.msra.mxu0 0
      %1276 = vmatprep.subr.bf16.mxu0 0
      %1277 = vmatpush1.bf16.msra.mxu0 0
      %1278 = vmatprep.subr.bf16.mxu0 0
      %1279 = vmatpush1.bf16.msra.mxu0 0
      %1280 = vmatprep.subr.bf16.mxu0 0
      %1281 = vmatpush1.bf16.msra.mxu0 0
      %1282 = vmatprep.subr.bf16.mxu0 0
      %1283 = vmatpush1.bf16.msra.mxu0 0
      %1284 = vmatprep.subr.bf16.mxu0 0
      %1285 = vmatpush1.bf16.msra.mxu0 0
      %1286 = vmatprep.mubr.bf16.mxu0 0
      %1287 = vmatmul.mubr.bf16.gmra.mrb[0].mxu0 %v1249
      %v1288 = vpop.f32.mrb[0].mxu0
      %v1289 = vadd.f32 0.0, %v1288
      %v1290 = vpop.f32.mrb[0].mxu0
      %v1291 = vpop.f32.mrb[0].mxu0
      %v1292 = vpop.f32.mrb[0].mxu0
      %1293 = vdwg.mxu0
      %1294 = vrot.lane.b32.xlu0 %v848, 112
      %v1295 = vpop.permute.xlu0 %1294
      %1296 = vrot.lane.b32.xlu0 %v850, 80
      %v1297 = vpop.permute.xlu0 %1296
      %v1299 = vsel %vm855, %v1295, 0
      %v1302 = vsel %vm855, %v1297, 0
      %1304 = vmatprep.subr.bf16.mxu0 0
      %1305 = vmatpush1.bf16.xpose.msra.mxu0 %v1302
      %1306 = vmatprep.subr.bf16.mxu0 0
      %1307 = vmatpush1.bf16.xpose.msra.mxu0 0
      %1308 = vmatprep.subr.bf16.mxu0 0
      %1309 = vmatpush1.bf16.xpose.msra.mxu0 0
      %1310 = vmatprep.subr.bf16.mxu0 0
      %1311 = vmatpush1.bf16.xpose.msra.mxu0 0
      %1312 = vmatprep.subr.bf16.mxu0 0
      %1313 = vmatpush1.bf16.xpose.msra.mxu0 0
      %1314 = vmatprep.subr.bf16.mxu0 0
      %1315 = vmatpush1.bf16.xpose.msra.mxu0 0
      %1316 = vmatprep.subr.bf16.mxu0 0
      %1317 = vmatpush1.bf16.xpose.msra.mxu0 0
      %1318 = vmatprep.subr.bf16.mxu0 0
      %1319 = vmatpush1.bf16.xpose.msra.mxu0 0
      %1320 = vmatprep.subr.bf16.mxu0 0
      %1321 = vmatpush1.bf16.xpose.msra.mxu0 0
      %1322 = vmatprep.subr.bf16.mxu0 0
      %1323 = vmatpush1.bf16.xpose.msra.mxu0 0
      %1324 = vmatprep.subr.bf16.mxu0 0
      %1325 = vmatpush1.bf16.xpose.msra.mxu0 0
      %1326 = vmatprep.subr.bf16.mxu0 0
      %1327 = vmatpush1.bf16.xpose.msra.mxu0 0
      %1328 = vmatprep.subr.bf16.mxu0 0
      %1329 = vmatpush1.bf16.xpose.msra.mxu0 0
      %1330 = vmatprep.subr.bf16.mxu0 0
      %1331 = vmatpush1.bf16.xpose.msra.mxu0 0
      %1332 = vmatprep.subr.bf16.mxu0 0
      %1333 = vmatpush1.bf16.xpose.msra.mxu0 0
      %1334 = vmatprep.subr.bf16.mxu0 0
      %1335 = vmatpush1.bf16.xpose.msra.mxu0 0
      %1336 = vmatprep.mubr.bf16.mxu0 0
      %1337 = vmatmul.mubr.bf16.gmra.mrb[0].mxu0 %v1299
      %v1338 = vpop.f32.mrb[0].mxu0
      %v1339 = vadd.f32 %v720, %v1338
      %v1340 = vpop.f32.mrb[0].mxu0
      %v1341 = vpop.f32.mrb[0].mxu0
      %v1342 = vpop.f32.mrb[0].mxu0
      %1343 = vdwg.mxu0
      %1344 = vrot.lane.b32.xlu0 %v849, 112
      %v1345 = vpop.permute.xlu0 %1344
      %1346 = vrot.lane.b32.xlu0 %v851, 80
      %v1347 = vpop.permute.xlu0 %1346
      %v1349 = vsel %vm855, %v1345, 0
      %v1352 = vsel %vm855, %v1347, 0
      %1354 = vmatprep.subr.bf16.mxu0 0
      %1355 = vmatpush1.bf16.xpose.msra.mxu0 %v1352
      %1356 = vmatprep.subr.bf16.mxu0 0
      %1357 = vmatpush1.bf16.xpose.msra.mxu0 0
      %1358 = vmatprep.subr.bf16.mxu0 0
      %1359 = vmatpush1.bf16.xpose.msra.mxu0 0
      %1360 = vmatprep.subr.bf16.mxu0 0
      %1361 = vmatpush1.bf16.xpose.msra.mxu0 0
      %1362 = vmatprep.subr.bf16.mxu0 0
      %1363 = vmatpush1.bf16.xpose.msra.mxu0 0
      %1364 = vmatprep.subr.bf16.mxu0 0
      %1365 = vmatpush1.bf16.xpose.msra.mxu0 0
      %1366 = vmatprep.subr.bf16.mxu0 0
      %1367 = vmatpush1.bf16.xpose.msra.mxu0 0
      %1368 = vmatprep.subr.bf16.mxu0 0
      %1369 = vmatpush1.bf16.xpose.msra.mxu0 0
      %1370 = vmatprep.subr.bf16.mxu0 0
      %1371 = vmatpush1.bf16.xpose.msra.mxu0 0
      %1372 = vmatprep.subr.bf16.mxu0 0
      %1373 = vmatpush1.bf16.xpose.msra.mxu0 0
      %1374 = vmatprep.subr.bf16.mxu0 0
      %1375 = vmatpush1.bf16.xpose.msra.mxu0 0
      %1376 = vmatprep.subr.bf16.mxu0 0
      %1377 = vmatpush1.bf16.xpose.msra.mxu0 0
      %1378 = vmatprep.subr.bf16.mxu0 0
      %1379 = vmatpush1.bf16.xpose.msra.mxu0 0
      %1380 = vmatprep.subr.bf16.mxu0 0
      %1381 = vmatpush1.bf16.xpose.msra.mxu0 0
      %1382 = vmatprep.subr.bf16.mxu0 0
      %1383 = vmatpush1.bf16.xpose.msra.mxu0 0
      %1384 = vmatprep.subr.bf16.mxu0 0
      %1385 = vmatpush1.bf16.xpose.msra.mxu0 0
      %1386 = vmatprep.mubr.bf16.mxu0 0
      %1387 = vmatmul.mubr.bf16.gmra.mrb[0].mxu0 %v1349
      %v1388 = vpop.f32.mrb[0].mxu0
      %v1389 = vadd.f32 %v724, %v1388
      %v1390 = vpop.f32.mrb[0].mxu0
      %v1391 = vpop.f32.mrb[0].mxu0
      %v1392 = vpop.f32.mrb[0].mxu0
      %1393 = vdwg.mxu0
      %v1394 = vsel %vm855, %v1339, -inf
      %1395 = vmax.xlane.f32.xlu0 %v1394
      %v1396 = vpop.xlane.xlu0 %1395
      %v1397 = vsel %vm855, %v1389, -inf
      %1398 = vmax.xlane.f32.xlu0 %v1397
      %v1399 = vpop.xlane.xlu0 %1398
      %v1400 = vsub.f32 %v1339, %v1396
      %v1401 = vsub.f32 %v1389, %v1399
      %v1402 = vmul.f32 %v1400, 1.442695
      %v1403 = vpow.pop %v1402
      %v1404 = vmul.f32 %v1401, 1.442695
      %v1405 = vpow.pop %v1404
      %v1406 = vsel %vm855, %v1403, 0.0
      %1407 = vadd.xlane.f32.xlu0 %v1406
      %v1408 = vpop.xlane.xlu0 %1407
      %v1409 = vsel %vm855, %v1405, 0.0
      %1410 = vadd.xlane.f32.xlu0 %v1409
      %v1411 = vpop.xlane.xlu0 %1410
      %v1412 = vrcp.pop %v1408
      %v1413 = vrcp.pop %v1411
      %v1414 = vmul.f32 %v1403, %v1412
      %v1415 = vmul.f32 %v1405, %v1413
      %v1416 = vpack.c.bf16 %v1414, %v1414
      %v1417 = vpack.c.bf16 %v1415, %v1415
      %1418 = vrot.lane.b32.xlu0 %v850, 48
      %v1419 = vpop.permute.xlu0 %1418
      %v1421 = vsel %vm855, %v1416, 0
      %v1424 = vsel %vm980, %v1419, 0
      %1426 = vmatprep.subr.bf16.mxu0 0
      %1427 = vmatpush1.bf16.msra.mxu0 %v1424
      %1428 = vmatprep.subr.bf16.mxu0 0
      %1429 = vmatpush1.bf16.msra.mxu0 0
      %1430 = vmatprep.subr.bf16.mxu0 0
      %1431 = vmatpush1.bf16.msra.mxu0 0
      %1432 = vmatprep.subr.bf16.mxu0 0
      %1433 = vmatpush1.bf16.msra.mxu0 0
      %1434 = vmatprep.subr.bf16.mxu0 0
      %1435 = vmatpush1.bf16.msra.mxu0 0
      %1436 = vmatprep.subr.bf16.mxu0 0
      %1437 = vmatpush1.bf16.msra.mxu0 0
      %1438 = vmatprep.subr.bf16.mxu0 0
      %1439 = vmatpush1.bf16.msra.mxu0 0
      %1440 = vmatprep.subr.bf16.mxu0 0
      %1441 = vmatpush1.bf16.msra.mxu0 0
      %1442 = vmatprep.subr.bf16.mxu0 0
      %1443 = vmatpush1.bf16.msra.mxu0 0
      %1444 = vmatprep.subr.bf16.mxu0 0
      %1445 = vmatpush1.bf16.msra.mxu0 0
      %1446 = vmatprep.subr.bf16.mxu0 0
      %1447 = vmatpush1.bf16.msra.mxu0 0
      %1448 = vmatprep.subr.bf16.mxu0 0
      %1449 = vmatpush1.bf16.msra.mxu0 0
      %1450 = vmatprep.subr.bf16.mxu0 0
      %1451 = vmatpush1.bf16.msra.mxu0 0
      %1452 = vmatprep.subr.bf16.mxu0 0
      %1453 = vmatpush1.bf16.msra.mxu0 0
      %1454 = vmatprep.subr.bf16.mxu0 0
      %1455 = vmatpush1.bf16.msra.mxu0 0
      %1456 = vmatprep.subr.bf16.mxu0 0
      %1457 = vmatpush1.bf16.msra.mxu0 0
      %1458 = vmatprep.mubr.bf16.mxu0 0
      %1459 = vmatmul.mubr.bf16.gmra.mrb[0].mxu0 %v1421
      %v1460 = vpop.f32.mrb[0].mxu0
      %v1461 = vadd.f32 0.0, %v1460
      %v1462 = vpop.f32.mrb[0].mxu0
      %v1463 = vpop.f32.mrb[0].mxu0
      %v1464 = vpop.f32.mrb[0].mxu0
      %1465 = vdwg.mxu0
      %1466 = vrot.lane.b32.xlu0 %v851, 48
      %v1467 = vpop.permute.xlu0 %1466
      %v1469 = vsel %vm855, %v1417, 0
      %v1472 = vsel %vm980, %v1467, 0
      %1474 = vmatprep.subr.bf16.mxu0 0
      %1475 = vmatpush1.bf16.msra.mxu0 %v1472
      %1476 = vmatprep.subr.bf16.mxu0 0
      %1477 = vmatpush1.bf16.msra.mxu0 0
      %1478 = vmatprep.subr.bf16.mxu0 0
      %1479 = vmatpush1.bf16.msra.mxu0 0
      %1480 = vmatprep.subr.bf16.mxu0 0
      %1481 = vmatpush1.bf16.msra.mxu0 0
      %1482 = vmatprep.subr.bf16.mxu0 0
      %1483 = vmatpush1.bf16.msra.mxu0 0
      %1484 = vmatprep.subr.bf16.mxu0 0
      %1485 = vmatpush1.bf16.msra.mxu0 0
      %1486 = vmatprep.subr.bf16.mxu0 0
      %1487 = vmatpush1.bf16.msra.mxu0 0
      %1488 = vmatprep.subr.bf16.mxu0 0
      %1489 = vmatpush1.bf16.msra.mxu0 0
      %1490 = vmatprep.subr.bf16.mxu0 0
      %1491 = vmatpush1.bf16.msra.mxu0 0
      %1492 = vmatprep.subr.bf16.mxu0 0
      %1493 = vmatpush1.bf16.msra.mxu0 0
      %1494 = vmatprep.subr.bf16.mxu0 0
      %1495 = vmatpush1.bf16.msra.mxu0 0
      %1496 = vmatprep.subr.bf16.mxu0 0
      %1497 = vmatpush1.bf16.msra.mxu0 0
      %1498 = vmatprep.subr.bf16.mxu0 0
      %1499 = vmatpush1.bf16.msra.mxu0 0
      %1500 = vmatprep.subr.bf16.mxu0 0
      %1501 = vmatpush1.bf16.msra.mxu0 0
      %1502 = vmatprep.subr.bf16.mxu0 0
      %1503 = vmatpush1.bf16.msra.mxu0 0
      %1504 = vmatprep.subr.bf16.mxu0 0
      %1505 = vmatpush1.bf16.msra.mxu0 0
      %1506 = vmatprep.mubr.bf16.mxu0 0
      %1507 = vmatmul.mubr.bf16.gmra.mrb[0].mxu0 %v1469
      %v1508 = vpop.f32.mrb[0].mxu0
      %v1509 = vadd.f32 0.0, %v1508
      %v1510 = vpop.f32.mrb[0].mxu0
      %v1511 = vpop.f32.mrb[0].mxu0
      %v1512 = vpop.f32.mrb[0].mxu0
      %1513 = vdwg.mxu0
      %1514 = vrot.lane.b32.xlu0 %v848, 104
      %v1515 = vpop.permute.xlu0 %1514
      %1516 = vrot.lane.b32.xlu0 %v850, 72
      %v1517 = vpop.permute.xlu0 %1516
      %v1519 = vsel %vm855, %v1515, 0
      %v1522 = vsel %vm855, %v1517, 0
      %1524 = vmatprep.subr.bf16.mxu0 0
      %1525 = vmatpush1.bf16.xpose.msra.mxu0 %v1522
      %1526 = vmatprep.subr.bf16.mxu0 0
      %1527 = vmatpush1.bf16.xpose.msra.mxu0 0
      %1528 = vmatprep.subr.bf16.mxu0 0
      %1529 = vmatpush1.bf16.xpose.msra.mxu0 0
      %1530 = vmatprep.subr.bf16.mxu0 0
      %1531 = vmatpush1.bf16.xpose.msra.mxu0 0
      %1532 = vmatprep.subr.bf16.mxu0 0
      %1533 = vmatpush1.bf16.xpose.msra.mxu0 0
      %1534 = vmatprep.subr.bf16.mxu0 0
      %1535 = vmatpush1.bf16.xpose.msra.mxu0 0
      %1536 = vmatprep.subr.bf16.mxu0 0
      %1537 = vmatpush1.bf16.xpose.msra.mxu0 0
      %1538 = vmatprep.subr.bf16.mxu0 0
      %1539 = vmatpush1.bf16.xpose.msra.mxu0 0
      %1540 = vmatprep.subr.bf16.mxu0 0
      %1541 = vmatpush1.bf16.xpose.msra.mxu0 0
      %1542 = vmatprep.subr.bf16.mxu0 0
      %1543 = vmatpush1.bf16.xpose.msra.mxu0 0
      %1544 = vmatprep.subr.bf16.mxu0 0
      %1545 = vmatpush1.bf16.xpose.msra.mxu0 0
      %1546 = vmatprep.subr.bf16.mxu0 0
      %1547 = vmatpush1.bf16.xpose.msra.mxu0 0
      %1548 = vmatprep.subr.bf16.mxu0 0
      %1549 = vmatpush1.bf16.xpose.msra.mxu0 0
      %1550 = vmatprep.subr.bf16.mxu0 0
      %1551 = vmatpush1.bf16.xpose.msra.mxu0 0
      %1552 = vmatprep.subr.bf16.mxu0 0
      %1553 = vmatpush1.bf16.xpose.msra.mxu0 0
      %1554 = vmatprep.subr.bf16.mxu0 0
      %1555 = vmatpush1.bf16.xpose.msra.mxu0 0
      %1556 = vmatprep.mubr.bf16.mxu0 0
      %1557 = vmatmul.mubr.bf16.gmra.mrb[0].mxu0 %v1519
      %v1558 = vpop.f32.mrb[0].mxu0
      %v1559 = vadd.f32 %v720, %v1558
      %v1560 = vpop.f32.mrb[0].mxu0
      %v1561 = vpop.f32.mrb[0].mxu0
      %v1562 = vpop.f32.mrb[0].mxu0
      %1563 = vdwg.mxu0
      %1564 = vrot.lane.b32.xlu0 %v849, 104
      %v1565 = vpop.permute.xlu0 %1564
      %1566 = vrot.lane.b32.xlu0 %v851, 72
      %v1567 = vpop.permute.xlu0 %1566
      %v1569 = vsel %vm855, %v1565, 0
      %v1572 = vsel %vm855, %v1567, 0
      %1574 = vmatprep.subr.bf16.mxu0 0
      %1575 = vmatpush1.bf16.xpose.msra.mxu0 %v1572
      %1576 = vmatprep.subr.bf16.mxu0 0
      %1577 = vmatpush1.bf16.xpose.msra.mxu0 0
      %1578 = vmatprep.subr.bf16.mxu0 0
      %1579 = vmatpush1.bf16.xpose.msra.mxu0 0
      %1580 = vmatprep.subr.bf16.mxu0 0
      %1581 = vmatpush1.bf16.xpose.msra.mxu0 0
      %1582 = vmatprep.subr.bf16.mxu0 0
      %1583 = vmatpush1.bf16.xpose.msra.mxu0 0
      %1584 = vmatprep.subr.bf16.mxu0 0
      %1585 = vmatpush1.bf16.xpose.msra.mxu0 0
      %1586 = vmatprep.subr.bf16.mxu0 0
      %1587 = vmatpush1.bf16.xpose.msra.mxu0 0
      %1588 = vmatprep.subr.bf16.mxu0 0
      %1589 = vmatpush1.bf16.xpose.msra.mxu0 0
      %1590 = vmatprep.subr.bf16.mxu0 0
      %1591 = vmatpush1.bf16.xpose.msra.mxu0 0
      %1592 = vmatprep.subr.bf16.mxu0 0
      %1593 = vmatpush1.bf16.xpose.msra.mxu0 0
      %1594 = vmatprep.subr.bf16.mxu0 0
      %1595 = vmatpush1.bf16.xpose.msra.mxu0 0
      %1596 = vmatprep.subr.bf16.mxu0 0
      %1597 = vmatpush1.bf16.xpose.msra.mxu0 0
      %1598 = vmatprep.subr.bf16.mxu0 0
      %1599 = vmatpush1.bf16.xpose.msra.mxu0 0
      %1600 = vmatprep.subr.bf16.mxu0 0
      %1601 = vmatpush1.bf16.xpose.msra.mxu0 0
      %1602 = vmatprep.subr.bf16.mxu0 0
      %1603 = vmatpush1.bf16.xpose.msra.mxu0 0
      %1604 = vmatprep.subr.bf16.mxu0 0
      %1605 = vmatpush1.bf16.xpose.msra.mxu0 0
      %1606 = vmatprep.mubr.bf16.mxu0 0
      %1607 = vmatmul.mubr.bf16.gmra.mrb[0].mxu0 %v1569
      %v1608 = vpop.f32.mrb[0].mxu0
      %v1609 = vadd.f32 %v724, %v1608
      %v1610 = vpop.f32.mrb[0].mxu0
      %v1611 = vpop.f32.mrb[0].mxu0
      %v1612 = vpop.f32.mrb[0].mxu0
      %1613 = vdwg.mxu0
      %v1614 = vsel %vm855, %v1559, -inf
      %1615 = vmax.xlane.f32.xlu0 %v1614
      %v1616 = vpop.xlane.xlu0 %1615
      %v1617 = vsel %vm855, %v1609, -inf
      %1618 = vmax.xlane.f32.xlu0 %v1617
      %v1619 = vpop.xlane.xlu0 %1618
      %v1620 = vsub.f32 %v1559, %v1616
      %v1621 = vsub.f32 %v1609, %v1619
      %v1622 = vmul.f32 %v1620, 1.442695
      %v1623 = vpow.pop %v1622
      %v1624 = vmul.f32 %v1621, 1.442695
      %v1625 = vpow.pop %v1624
      %v1626 = vsel %vm855, %v1623, 0.0
      %1627 = vadd.xlane.f32.xlu0 %v1626
      %v1628 = vpop.xlane.xlu0 %1627
      %v1629 = vsel %vm855, %v1625, 0.0
      %1630 = vadd.xlane.f32.xlu0 %v1629
      %v1631 = vpop.xlane.xlu0 %1630
      %v1632 = vrcp.pop %v1628
      %v1633 = vrcp.pop %v1631
      %v1634 = vmul.f32 %v1623, %v1632
      %v1635 = vmul.f32 %v1625, %v1633
      %v1636 = vpack.c.bf16 %v1634, %v1634
      %v1637 = vpack.c.bf16 %v1635, %v1635
      %1638 = vrot.lane.b32.xlu0 %v850, 40
      %v1639 = vpop.permute.xlu0 %1638
      %v1641 = vsel %vm855, %v1636, 0
      %v1644 = vsel %vm980, %v1639, 0
      %1646 = vmatprep.subr.bf16.mxu0 0
      %1647 = vmatpush1.bf16.msra.mxu0 %v1644
      %1648 = vmatprep.subr.bf16.mxu0 0
      %1649 = vmatpush1.bf16.msra.mxu0 0
      %1650 = vmatprep.subr.bf16.mxu0 0
      %1651 = vmatpush1.bf16.msra.mxu0 0
      %1652 = vmatprep.subr.bf16.mxu0 0
      %1653 = vmatpush1.bf16.msra.mxu0 0
      %1654 = vmatprep.subr.bf16.mxu0 0
      %1655 = vmatpush1.bf16.msra.mxu0 0
      %1656 = vmatprep.subr.bf16.mxu0 0
      %1657 = vmatpush1.bf16.msra.mxu0 0
      %1658 = vmatprep.subr.bf16.mxu0 0
      %1659 = vmatpush1.bf16.msra.mxu0 0
      %1660 = vmatprep.subr.bf16.mxu0 0
      %1661 = vmatpush1.bf16.msra.mxu0 0
      %1662 = vmatprep.subr.bf16.mxu0 0
      %1663 = vmatpush1.bf16.msra.mxu0 0
      %1664 = vmatprep.subr.bf16.mxu0 0
      %1665 = vmatpush1.bf16.msra.mxu0 0
      %1666 = vmatprep.subr.bf16.mxu0 0
      %1667 = vmatpush1.bf16.msra.mxu0 0
      %1668 = vmatprep.subr.bf16.mxu0 0
      %1669 = vmatpush1.bf16.msra.mxu0 0
      %1670 = vmatprep.subr.bf16.mxu0 0
      %1671 = vmatpush1.bf16.msra.mxu0 0
      %1672 = vmatprep.subr.bf16.mxu0 0
      %1673 = vmatpush1.bf16.msra.mxu0 0
      %1674 = vmatprep.subr.bf16.mxu0 0
      %1675 = vmatpush1.bf16.msra.mxu0 0
      %1676 = vmatprep.subr.bf16.mxu0 0
      %1677 = vmatpush1.bf16.msra.mxu0 0
      %1678 = vmatprep.mubr.bf16.mxu0 0
      %1679 = vmatmul.mubr.bf16.gmra.mrb[0].mxu0 %v1641
      %v1680 = vpop.f32.mrb[0].mxu0
      %v1681 = vadd.f32 0.0, %v1680
      %v1682 = vpop.f32.mrb[0].mxu0
      %v1683 = vpop.f32.mrb[0].mxu0
      %v1684 = vpop.f32.mrb[0].mxu0
      %1685 = vdwg.mxu0
      %1686 = vrot.lane.b32.xlu0 %v851, 40
      %v1687 = vpop.permute.xlu0 %1686
      %v1689 = vsel %vm855, %v1637, 0
      %v1692 = vsel %vm980, %v1687, 0
      %1694 = vmatprep.subr.bf16.mxu0 0
      %1695 = vmatpush1.bf16.msra.mxu0 %v1692
      %1696 = vmatprep.subr.bf16.mxu0 0
      %1697 = vmatpush1.bf16.msra.mxu0 0
      %1698 = vmatprep.subr.bf16.mxu0 0
      %1699 = vmatpush1.bf16.msra.mxu0 0
      %1700 = vmatprep.subr.bf16.mxu0 0
      %1701 = vmatpush1.bf16.msra.mxu0 0
      %1702 = vmatprep.subr.bf16.mxu0 0
      %1703 = vmatpush1.bf16.msra.mxu0 0
      %1704 = vmatprep.subr.bf16.mxu0 0
      %1705 = vmatpush1.bf16.msra.mxu0 0
      %1706 = vmatprep.subr.bf16.mxu0 0
      %1707 = vmatpush1.bf16.msra.mxu0 0
      %1708 = vmatprep.subr.bf16.mxu0 0
      %1709 = vmatpush1.bf16.msra.mxu0 0
      %1710 = vmatprep.subr.bf16.mxu0 0
      %1711 = vmatpush1.bf16.msra.mxu0 0
      %1712 = vmatprep.subr.bf16.mxu0 0
      %1713 = vmatpush1.bf16.msra.mxu0 0
      %1714 = vmatprep.subr.bf16.mxu0 0
      %1715 = vmatpush1.bf16.msra.mxu0 0
      %1716 = vmatprep.subr.bf16.mxu0 0
      %1717 = vmatpush1.bf16.msra.mxu0 0
      %1718 = vmatprep.subr.bf16.mxu0 0
      %1719 = vmatpush1.bf16.msra.mxu0 0
      %1720 = vmatprep.subr.bf16.mxu0 0
      %1721 = vmatpush1.bf16.msra.mxu0 0
      %1722 = vmatprep.subr.bf16.mxu0 0
      %1723 = vmatpush1.bf16.msra.mxu0 0
      %1724 = vmatprep.subr.bf16.mxu0 0
      %1725 = vmatpush1.bf16.msra.mxu0 0
      %1726 = vmatprep.mubr.bf16.mxu0 0
      %1727 = vmatmul.mubr.bf16.gmra.mrb[0].mxu0 %v1689
      %v1728 = vpop.f32.mrb[0].mxu0
      %v1729 = vadd.f32 0.0, %v1728
      %v1730 = vpop.f32.mrb[0].mxu0
      %v1731 = vpop.f32.mrb[0].mxu0
      %v1732 = vpop.f32.mrb[0].mxu0
      %1733 = vdwg.mxu0
      %1736 = vrot.lane.b32.xlu0 %v1241, 8
      %v1737 = vpop.permute.xlu0 %1736
      %1738 = vrot.lane.b32.xlu0 %v1289, 8
      %v1739 = vpop.permute.xlu0 %1738
      %1744 = vrot.lane.b32.xlu0 %v1461, 16
      %v1745 = vpop.permute.xlu0 %1744
      %1746 = vrot.lane.b32.xlu0 %v1509, 16
      %v1747 = vpop.permute.xlu0 %1746
      %1752 = vrot.lane.b32.xlu0 %v1681, 24
      %v1753 = vpop.permute.xlu0 %1752
      %1754 = vrot.lane.b32.xlu0 %v1729, 24
      %v1755 = vpop.permute.xlu0 %1754
      %v1758 = vsel %vm855, %v1019, %v1737
      %v1759 = vsel %vm855, %v1067, %v1739
      %vm1760 = vcmask 130048
      %v1761 = vsel %vm1760, %v1758, %v1745
      %v1762 = vsel %vm1760, %v1759, %v1747
      %vm1763 = vcmask 195584
      %v1764 = vsel %vm1763, %v1761, %v1753
      %v1765 = vsel %vm1763, %v1762, %v1755
      %v1766 = vpack.c.bf16 %v1765, %v1764
      %v1768 = vlaneseq
      %v1769 = vshrl.u32 %v1768, 7
      %v1770 = vsub.s32 0, %v1769
      %v1771 = vrot.slane %v845, %v1770
      %v1777 = vunpack.c.l.b16 %v841
      %v1778 = vunpack.c.l.b16 %v842
      %v1779 = vunpack.c.l.b16 %v843
      %v1780 = vunpack.c.l.b16 %v844
      %v1781 = vpack.c.b16 %v1778, %v1777
      %v1782 = vpack.c.b16 %v1780, %v1779
      %v1786 = vsel %vm729, %v1766, 0
      %1788 = vmatprep.subr.bf16.mxu0 0
      %1789 = vmatpush1.bf16.msra.mxu0 %v1781
      %1790 = vmatprep.subr.bf16.mxu0 0
      %1791 = vmatpush1.bf16.msra.mxu0 %v1782
      %1792 = vmatprep.subr.bf16.mxu0 0
      %1793 = vmatpush1.bf16.msra.mxu0 0
      %1794 = vmatprep.subr.bf16.mxu0 0
      %1795 = vmatpush1.bf16.msra.mxu0 0
      %1796 = vmatprep.subr.bf16.mxu0 0
      %1797 = vmatpush1.bf16.msra.mxu0 0
      %1798 = vmatprep.subr.bf16.mxu0 0
      %1799 = vmatpush1.bf16.msra.mxu0 0
      %1800 = vmatprep.subr.bf16.mxu0 0
      %1801 = vmatpush1.bf16.msra.mxu0 0
      %1802 = vmatprep.subr.bf16.mxu0 0
      %1803 = vmatpush1.bf16.msra.mxu0 0
      %1804 = vmatprep.subr.bf16.mxu0 0
      %1805 = vmatpush1.bf16.msra.mxu0 0
      %1806 = vmatprep.subr.bf16.mxu0 0
      %1807 = vmatpush1.bf16.msra.mxu0 0
      %1808 = vmatprep.subr.bf16.mxu0 0
      %1809 = vmatpush1.bf16.msra.mxu0 0
      %1810 = vmatprep.subr.bf16.mxu0 0
      %1811 = vmatpush1.bf16.msra.mxu0 0
      %1812 = vmatprep.subr.bf16.mxu0 0
      %1813 = vmatpush1.bf16.msra.mxu0 0
      %1814 = vmatprep.subr.bf16.mxu0 0
      %1815 = vmatpush1.bf16.msra.mxu0 0
      %1816 = vmatprep.subr.bf16.mxu0 0
      %1817 = vmatpush1.bf16.msra.mxu0 0
      %1818 = vmatprep.subr.bf16.mxu0 0
      %1819 = vmatpush1.bf16.msra.mxu0 0
      %1820 = vmatprep.mubr.bf16.mxu0 0
      %1821 = vmatmul.mubr.bf16.gmra.mrb[0].mxu0 %v1786
      %v1822 = vpop.f32.mrb[0].mxu0
      %v1823 = vadd.f32 %v1771, %v1822
      %v1824 = vpop.f32.mrb[0].mxu0
      %v1825 = vpop.f32.mrb[0].mxu0
      %v1826 = vadd.f32 %v1771, %v1825
      %v1827 = vpop.f32.mrb[0].mxu0
      %1828 = vdwg.mxu0
      %v1829 = vadd.f32 %v689, %v1823
      %v1830 = vadd.f32 %v690, %v1826
      %v1831 = vld [vmem:[%s659] sm:$0x1]
      %v1832 = vld [vmem:[%s662] sm:$0x1]
      %v1833 = vsel %vm729, %v1829, 0.0
      %1834 = vadd.xlane.f32.xlu0 %v1833
      %v1835 = vpop.xlane.xlu0 %1834
      %v1836 = vsel %vm729, %v1830, 0.0
      %1837 = vadd.xlane.f32.xlu0 %v1836
      %v1838 = vpop.xlane.xlu0 %1837
      %v1839 = vmul.f32 %v1835, %v736
      %v1840 = vmul.f32 %v1838, %v736
      %v1841 = vsub.f32 %v1829, %v1839
      %v1842 = vsub.f32 %v1830, %v1840
      %v1843 = vmul.f32 %v1841, %v1841
      %v1844 = vmul.f32 %v1842, %v1842
      %v1845 = vsel %vm729, %v1843, 0.0
      %1846 = vadd.xlane.f32.xlu0 %v1845
      %v1847 = vpop.xlane.xlu0 %1846
      %v1848 = vsel %vm729, %v1844, 0.0
      %1849 = vadd.xlane.f32.xlu0 %v1848
      %v1850 = vpop.xlane.xlu0 %1849
      %v1851 = vmul.f32 %v1847, %v736
      %v1852 = vmul.f32 %v1850, %v736
      %v1853 = vadd.f32 %v1851, 1e-06
      %v1854 = vadd.f32 %v1852, 1e-06
      %v1855 = vrsqrt.pop %v1853
      %v1856 = vrsqrt.pop %v1854
      %v1857 = vmul.f32 %v1841, %v1855
      %v1858 = vmul.f32 %v1842, %v1856
      %v1860 = vlaneseq
      %v1861 = vshrl.u32 %v1860, 7
      %v1862 = vsub.s32 0, %v1861
      %v1863 = vrot.slane %v1831, %v1862
      %v1865 = vmul.f32 %v1857, %v1863
      %v1866 = vmul.f32 %v1858, %v1863
      %v1868 = vlaneseq
      %v1869 = vshrl.u32 %v1868, 7
      %v1870 = vsub.s32 0, %v1869
      %v1871 = vrot.slane %v1832, %v1870
      %v1873 = vadd.f32 %v1865, %v1871
      %v1874 = vadd.f32 %v1866, %v1871
      %v1875 = vld [vmem:[%s667] sm:$0xf]
      %v1876 = vld [vmem:[%s667 + $0x4] sm:$0xf]
      %v1877 = vld [vmem:[%s667 + $0x8] sm:$0xf]
      %v1878 = vld [vmem:[%s667 + $0xc] sm:$0xf]
      %v1879 = vpack.c.bf16 %v1874, %v1873
      %v1880 = vld [vmem:[%s670] sm:$0x1]
      %v1882 = vlaneseq
      %v1883 = vshrl.u32 %v1882, 7
      %v1884 = vsub.s32 0, %v1883
      %v1885 = vrot.slane %v1880, %v1884
      %v1891 = vunpack.c.l.b16 %v1875
      %v1892 = vunpack.c.l.b16 %v1876
      %v1893 = vunpack.c.l.b16 %v1877
      %v1894 = vunpack.c.l.b16 %v1878
      %v1895 = vpack.c.b16 %v1892, %v1891
      %v1896 = vpack.c.b16 %v1894, %v1893
      %v1900 = vsel %vm729, %v1879, 0
      %1902 = vmatprep.subr.bf16.mxu0 0
      %1903 = vmatpush1.bf16.msra.mxu0 %v1895
      %1904 = vmatprep.subr.bf16.mxu0 0
      %1905 = vmatpush1.bf16.msra.mxu0 %v1896
      %1906 = vmatprep.subr.bf16.mxu0 0
      %1907 = vmatpush1.bf16.msra.mxu0 0
      %1908 = vmatprep.subr.bf16.mxu0 0
      %1909 = vmatpush1.bf16.msra.mxu0 0
      %1910 = vmatprep.subr.bf16.mxu0 0
      %1911 = vmatpush1.bf16.msra.mxu0 0
      %1912 = vmatprep.subr.bf16.mxu0 0
      %1913 = vmatpush1.bf16.msra.mxu0 0
      %1914 = vmatprep.subr.bf16.mxu0 0
      %1915 = vmatpush1.bf16.msra.mxu0 0
      %1916 = vmatprep.subr.bf16.mxu0 0
      %1917 = vmatpush1.bf16.msra.mxu0 0
      %1918 = vmatprep.subr.bf16.mxu0 0
      %1919 = vmatpush1.bf16.msra.mxu0 0
      %1920 = vmatprep.subr.bf16.mxu0 0
      %1921 = vmatpush1.bf16.msra.mxu0 0
      %1922 = vmatprep.subr.bf16.mxu0 0
      %1923 = vmatpush1.bf16.msra.mxu0 0
      %1924 = vmatprep.subr.bf16.mxu0 0
      %1925 = vmatpush1.bf16.msra.mxu0 0
      %1926 = vmatprep.subr.bf16.mxu0 0
      %1927 = vmatpush1.bf16.msra.mxu0 0
      %1928 = vmatprep.subr.bf16.mxu0 0
      %1929 = vmatpush1.bf16.msra.mxu0 0
      %1930 = vmatprep.subr.bf16.mxu0 0
      %1931 = vmatpush1.bf16.msra.mxu0 0
      %1932 = vmatprep.subr.bf16.mxu0 0
      %1933 = vmatpush1.bf16.msra.mxu0 0
      %1934 = vmatprep.mubr.bf16.mxu0 0
      %1935 = vmatmul.mubr.bf16.gmra.mrb[0].mxu0 %v1900
      %v1936 = vpop.f32.mrb[0].mxu0
      %v1937 = vadd.f32 %v1885, %v1936
      %v1938 = vpop.f32.mrb[0].mxu0
      %v1939 = vpop.f32.mrb[0].mxu0
      %v1940 = vadd.f32 %v1885, %v1939
      %v1941 = vpop.f32.mrb[0].mxu0
      %1942 = vdwg.mxu0
      %v1943 = vmax.f32 %v1937, 0.0
      %v1944 = vmax.f32 %v1940, 0.0
      %v1945 = vld [vmem:[%s675] sm:$0xf]
      %v1946 = vld [vmem:[%s675 + $0x4] sm:$0xf]
      %v1947 = vld [vmem:[%s675 + $0x8] sm:$0xf]
      %v1948 = vld [vmem:[%s675 + $0xc] sm:$0xf]
      %v1949 = vld [vmem:[%s675 + $0x10] sm:$0xf]
      %v1950 = vld [vmem:[%s675 + $0x14] sm:$0xf]
      %v1951 = vld [vmem:[%s675 + $0x18] sm:$0xf]
      %v1952 = vld [vmem:[%s675 + $0x1c] sm:$0xf]
      %v1953 = vpack.c.bf16 %v1944, %v1943
      %v1954 = vld [vmem:[%s678] sm:$0x1]
      %v1956 = vlaneseq
      %v1957 = vshrl.u32 %v1956, 7
      %v1958 = vsub.s32 0, %v1957
      %v1959 = vrot.slane %v1954, %v1958
      %v1969 = vunpack.c.l.b16 %v1945
      %v1970 = vunpack.c.l.b16 %v1946
      %v1971 = vunpack.c.l.b16 %v1947
      %v1972 = vunpack.c.l.b16 %v1948
      %v1973 = vunpack.c.l.b16 %v1949
      %v1974 = vunpack.c.l.b16 %v1950
      %v1975 = vunpack.c.l.b16 %v1951
      %v1976 = vunpack.c.l.b16 %v1952
      %v1977 = vpack.c.b16 %v1970, %v1969
      %v1978 = vpack.c.b16 %v1972, %v1971
      %v1979 = vpack.c.b16 %v1974, %v1973
      %v1980 = vpack.c.b16 %v1976, %v1975
      %vm1985 = vcmask 523264
      %v1987 = vsel %vm1985, %v1953, 0
      %1989 = vmatprep.subr.bf16.mxu0 0
      %1990 = vmatpush1.bf16.msra.mxu0 %v1977
      %1991 = vmatprep.subr.bf16.mxu0 0
      %1992 = vmatpush1.bf16.msra.mxu0 %v1978
      %1993 = vmatprep.subr.bf16.mxu0 0
      %1994 = vmatpush1.bf16.msra.mxu0 %v1979
      %1995 = vmatprep.subr.bf16.mxu0 0
      %1996 = vmatpush1.bf16.msra.mxu0 %v1980
      %1997 = vmatprep.subr.bf16.mxu0 0
      %1998 = vmatpush1.bf16.msra.mxu0 0
      %1999 = vmatprep.subr.bf16.mxu0 0
      %2000 = vmatpush1.bf16.msra.mxu0 0
      %2001 = vmatprep.subr.bf16.mxu0 0
      %2002 = vmatpush1.bf16.msra.mxu0 0
      %2003 = vmatprep.subr.bf16.mxu0 0
      %2004 = vmatpush1.bf16.msra.mxu0 0
      %2005 = vmatprep.subr.bf16.mxu0 0
      %2006 = vmatpush1.bf16.msra.mxu0 0
      %2007 = vmatprep.subr.bf16.mxu0 0
      %2008 = vmatpush1.bf16.msra.mxu0 0
      %2009 = vmatprep.subr.bf16.mxu0 0
      %2010 = vmatpush1.bf16.msra.mxu0 0
      %2011 = vmatprep.subr.bf16.mxu0 0
      %2012 = vmatpush1.bf16.msra.mxu0 0
      %2013 = vmatprep.subr.bf16.mxu0 0
      %2014 = vmatpush1.bf16.msra.mxu0 0
      %2015 = vmatprep.subr.bf16.mxu0 0
      %2016 = vmatpush1.bf16.msra.mxu0 0
      %2017 = vmatprep.subr.bf16.mxu0 0
      %2018 = vmatpush1.bf16.msra.mxu0 0
      %2019 = vmatprep.subr.bf16.mxu0 0
      %2020 = vmatpush1.bf16.msra.mxu0 0
      %2021 = vmatprep.mubr.bf16.mxu0 0
      %2022 = vmatmul.mubr.bf16.gmra.mrb[0].mxu0 %v1987
      %v2023 = vpop.f32.mrb[0].mxu0
      %v2024 = vadd.f32 %v1959, %v2023
      %v2025 = vpop.f32.mrb[0].mxu0
      %v2026 = vpop.f32.mrb[0].mxu0
      %v2027 = vadd.f32 %v1959, %v2026
      %v2028 = vpop.f32.mrb[0].mxu0
      %2029 = vdwg.mxu0
      %v2030 = vadd.f32 %v1829, %v2024
      %v2031 = vadd.f32 %v1830, %v2027
      %p2032 = scmp.lt.s32.totalorder %s27, 1
      // Predicated region
      $region89: #{encoder_decoder_forward.2} parent=83 // pred_check
        %p2033 = pneg %p2032
      $region90: #{encoder_decoder_forward.2} parent=83 // pred_check_branch
        %2035 = sbr.rel (%p2033) target = $region92
      $region91: #{encoder_decoder_forward.2} parent=83 // pred_region
        %2036 = vst.msk [vmem:[%s16] sm:$0xff] %vm729, %v2030
        %2037 = vst.msk [vmem:[%s16 + $0x8] sm:$0xff] %vm729, %v2031
      $region92: #{encoder_decoder_forward.2} parent=83 // pred_fallthru
        _
      %p2038 = scmp.eq.s32.totalorder %s27, 1
      // Predicated region
      $region93: #{encoder_decoder_forward.2} parent=83 // pred_check
        %p2039 = pneg %p2038
      $region94: #{encoder_decoder_forward.2} parent=83 // pred_check_branch
        %2041 = sbr.rel (%p2039) target = $region96
      $region95: #{encoder_decoder_forward.2} parent=83 // pred_region
        %v2042 = vld [vmem:[%s14] sm:$0x1]
        %v2043 = vld [vmem:[%s15] sm:$0x1]
        %v2044 = vsel %vm729, %v2030, 0.0
        %2045 = vadd.xlane.f32.xlu0 %v2044
        %v2046 = vpop.xlane.xlu0 %2045
        %v2047 = vsel %vm729, %v2031, 0.0
        %2048 = vadd.xlane.f32.xlu0 %v2047
        %v2049 = vpop.xlane.xlu0 %2048
        %v2050 = vmul.f32 %v2046, %v736
        %v2051 = vmul.f32 %v2049, %v736
        %v2052 = vsub.f32 %v2030, %v2050
        %v2053 = vsub.f32 %v2031, %v2051
        %v2054 = vmul.f32 %v2052, %v2052
        %v2055 = vmul.f32 %v2053, %v2053
        %v2056 = vsel %vm729, %v2054, 0.0
        %2057 = vadd.xlane.f32.xlu0 %v2056
        %v2058 = vpop.xlane.xlu0 %2057
        %v2059 = vsel %vm729, %v2055, 0.0
        %2060 = vadd.xlane.f32.xlu0 %v2059
        %v2061 = vpop.xlane.xlu0 %2060
        %v2062 = vmul.f32 %v2058, %v736
        %v2063 = vmul.f32 %v2061, %v736
        %v2064 = vadd.f32 %v2062, 1e-06
        %v2065 = vadd.f32 %v2063, 1e-06
        %v2066 = vrsqrt.pop %v2064
        %v2067 = vrsqrt.pop %v2065
        %v2068 = vmul.f32 %v2052, %v2066
        %v2069 = vmul.f32 %v2053, %v2067
        %v2071 = vlaneseq
        %v2072 = vshrl.u32 %v2071, 7
        %v2073 = vsub.s32 0, %v2072
        %v2074 = vrot.slane %v2042, %v2073
        %v2076 = vmul.f32 %v2068, %v2074
        %v2077 = vmul.f32 %v2069, %v2074
        %v2079 = vlaneseq
        %v2080 = vshrl.u32 %v2079, 7
        %v2081 = vsub.s32 0, %v2080
        %v2082 = vrot.slane %v2043, %v2081
        %v2084 = vadd.f32 %v2076, %v2082
        %v2085 = vadd.f32 %v2077, %v2082
        %2086 = vst.msk [vmem:[%s16] sm:$0xff] %vm729, %v2084
        %2087 = vst.msk [vmem:[%s16 + $0x8] sm:$0xff] %vm729, %v2085
      $region96: #{encoder_decoder_forward.2} parent=83 // pred_fallthru
        _
      // Predicated region
      $region97: #{encoder_decoder_forward.2} parent=83 // pred_check
        %p2088 = pneg %p436
      $region98: #{encoder_decoder_forward.2} parent=83 // pred_check_branch
        %2090 = sbr.rel (%p2088) target = $region100
      $region99: #{encoder_decoder_forward.2} parent=83 // pred_region
        _
      $region100: #{encoder_decoder_forward.2} parent=83 // pred_fallthru
        _
      // Predicated region
      $region101: #{encoder_decoder_forward.2} parent=83 // pred_check
        %p2091 = pneg %p436
      $region102: #{encoder_decoder_forward.2} parent=83 // pred_check_branch
        %2093 = sbr.rel (%p2091) target = $region104
      $region103: #{encoder_decoder_forward.2} parent=83 // pred_region
        _
      $region104: #{encoder_decoder_forward.2} parent=83 // pred_fallthru
        _
    $region84: #{encoder_decoder_forward.2} parent=5 // pred_fallthru
      _
    %p2094 = scmp.le.s32.totalorder 2, %s22
    // Predicated region
    $region105: #{encoder_decoder_forward.2} parent=5 // pred_check
      %p2095 = pneg %p2094
    $region106: #{encoder_decoder_forward.2} parent=5 // pred_check_branch
      %2097 = sbr.rel (%p2095) target = $region108
    $region107: #{encoder_decoder_forward.2} parent=5 // pred_region
      %s2098 = ssub.s32 %s22, 2
    $region108: #{encoder_decoder_forward.2} parent=5 // pred_fallthru
      _
  $region6: #{encoder_decoder_forward.2} parent=0 // loop_footer
    %s26 = sadd.s32 1, %s22
  $region7: #{encoder_decoder_forward.2} parent=0 // loop_footer_branch
    %21 = sbr.rel target = $region3
  $region8: #{encoder_decoder_forward.2} parent=0 // loop_exit
    _

// kernel: encoder_decoder_forward.3
$region0: #{encoder_decoder_forward.3}
  #allocation0 [shape = 'u32[]', space=smem, size = 0x4, offset = 0x4, fixed_abs, tag = 'smem constant byte address 0x4 - core index']
  #allocation1 [shape = 'u32[144,128]{1,0:T(1,128)}', space=vmem, size = 0x12000, scoped, tag = 'internal scratch']
  #allocation2 [shape = 'f32[2,8,32]{2,1,0:T(8,128)}', space=vmem, size = 0x2000, scoped, tag = 'scratch operand']
  %s0 = inlined_call_operand.vmem [shape: f32[2,8,32], index: 0, kind: input, shape index: {}]
  %s1 = inlined_call_operand.vmem [shape: f32[2,8,32], index: 1, kind: input, shape index: {}]
  %s2 = inlined_call_operand.vmem [shape: f32[2,8,8], index: 2, kind: input, shape index: {}]
  %s3 = inlined_call_operand.vmem [shape: f32[2,8], index: 3, kind: input, shape index: {}]
  %s4 = inlined_call_operand.vmem [shape: f32[2,1,32], index: 4, kind: input, shape index: {}]
  %s5 = inlined_call_operand.vmem [shape: f32[2,1,32], index: 5, kind: input, shape index: {}]
  %s6 = inlined_call_operand.vmem [shape: bf16[2,32,96], index: 6, kind: input, shape index: {}]
  %s7 = inlined_call_operand.vmem [shape: f32[2,1,96], index: 7, kind: input, shape index: {}]
  %s8 = inlined_call_operand.vmem [shape: bf16[2,32,32], index: 8, kind: input, shape index: {}]
  %s9 = inlined_call_operand.vmem [shape: f32[2,1,32], index: 9, kind: input, shape index: {}]
  %s10 = inlined_call_operand.vmem [shape: f32[2,1,32], index: 10, kind: input, shape index: {}]
  %s11 = inlined_call_operand.vmem [shape: f32[2,1,32], index: 11, kind: input, shape index: {}]
  %s12 = inlined_call_operand.vmem [shape: bf16[2,32,32], index: 12, kind: input, shape index: {}]
  %s13 = inlined_call_operand.vmem [shape: f32[2,1,32], index: 13, kind: input, shape index: {}]
  %s14 = inlined_call_operand.vmem [shape: bf16[2,32,64], index: 14, kind: input, shape index: {}]
  %s15 = inlined_call_operand.vmem [shape: f32[2,1,64], index: 15, kind: input, shape index: {}]
  %s16 = inlined_call_operand.vmem [shape: bf16[2,32,32], index: 16, kind: input, shape index: {}]
  %s17 = inlined_call_operand.vmem [shape: f32[2,1,32], index: 17, kind: input, shape index: {}]
  %s18 = inlined_call_operand.vmem [shape: f32[2,1,32], index: 18, kind: input, shape index: {}]
  %s19 = inlined_call_operand.vmem [shape: f32[2,1,32], index: 19, kind: input, shape index: {}]
  %s20 = inlined_call_operand.vmem [shape: bf16[2,32,64], index: 20, kind: input, shape index: {}]
  %s21 = inlined_call_operand.vmem [shape: f32[2,1,64], index: 21, kind: input, shape index: {}]
  %s22 = inlined_call_operand.vmem [shape: bf16[2,64,32], index: 22, kind: input, shape index: {}]
  %s23 = inlined_call_operand.vmem [shape: f32[2,1,32], index: 23, kind: input, shape index: {}]
  %s24 = inlined_call_operand.vmem [shape: f32[1,32], index: 24, kind: input, shape index: {}]
  %s25 = inlined_call_operand.vmem [shape: f32[1,32], index: 25, kind: input, shape index: {}]
  %s26 = inlined_call_operand.vmem [shape: bf16[32,128], index: 26, kind: input, shape index: {}]
  %s27 = inlined_call_operand.vmem [shape: f32[1,128], index: 27, kind: input, shape index: {}]
  %s28 = inlined_call_operand.hbm [shape: f32[2,8,128], index: 28, kind: output, shape index: {}]
  %s29 = sld [smem:[#allocation0]]
  $region153: #{encoder_decoder_forward.3} parent=0
    _
  %s31 = ssub.s32 1, %s29
  %s32 = scalar_select 0, %s31, %s29
  $region1: #{encoder_decoder_forward.3} parent=0
    #allocation3 [shape = 'u8[8192]{0}', space=vmem, size = 0x2000, scoped, tag = 'output window, operand 0, single buffered']
    #allocation4 [shape = 's32[2]{0}', space=sflag, size = 0x8, scoped, tag = 'scoped memory for encoder_decoder_forward.3']
    %33 = vsyncpa [#allocation4], 0
    loop: start=0, step=1, limit=4
    $region2: #{encoder_decoder_forward.3} parent=1 // loop_pre_header
      _
    $region3: #{encoder_decoder_forward.3} parent=1 // loop_header
      %s35 = sphi 0, %s39
      %p36 = scmp.ge.s32.totalorder %s35, 4
      %s43 = sphi 0, %s43
      %s45 = sphi 0, %s43
      %s46 = sphi 0, %s45
      %s60 = sphi 0, %s46
      %s64 = sphi 0, %s64
      %s66 = sphi 0, %s64
      %s67 = sphi 0, %s66
      %s81 = sphi 0, %s67
      %s85 = sphi 0, %s85
      %s87 = sphi 0, %s85
      %s88 = sphi 0, %s87
      %s102 = sphi 0, %s88
      %s106 = sphi 0, %s106
      %s108 = sphi 0, %s106
      %s109 = sphi 0, %s108
      %s123 = sphi 0, %s109
      %s129 = sphi 0, %s131
      %s132 = sphi 0, %s129
      %s133 = sphi 0, %s132
      %s149 = sphi 0, %s133
      %s155 = sphi 0, %s157
      %s158 = sphi 0, %s155
      %s159 = sphi 0, %s158
      %s175 = sphi 0, %s159
      %s181 = sphi 0, %s183
      %s184 = sphi 0, %s181
      %s185 = sphi 0, %s184
      %s201 = sphi 0, %s185
      %s207 = sphi 0, %s209
      %s210 = sphi 0, %s207
      %s211 = sphi 0, %s210
      %s227 = sphi 0, %s211
      %s233 = sphi 0, %s235
      %s236 = sphi 0, %s233
      %s237 = sphi 0, %s236
      %s253 = sphi 0, %s237
      %s259 = sphi 0, %s261
      %s262 = sphi 0, %s259
      %s263 = sphi 0, %s262
      %s279 = sphi 0, %s263
      %s285 = sphi 0, %s287
      %s288 = sphi 0, %s285
      %s289 = sphi 0, %s288
      %s305 = sphi 0, %s289
      %s311 = sphi 0, %s313
      %s314 = sphi 0, %s311
      %s315 = sphi 0, %s314
      %s331 = sphi 0, %s315
      %s337 = sphi 0, %s339
      %s340 = sphi 0, %s337
      %s341 = sphi 0, %s340
      %s357 = sphi 0, %s341
      %s363 = sphi 0, %s365
      %s366 = sphi 0, %s363
      %s367 = sphi 0, %s366
      %s383 = sphi 0, %s367
      %s389 = sphi 0, %s391
      %s392 = sphi 0, %s389
      %s393 = sphi 0, %s392
      %s409 = sphi 0, %s393
      %s415 = sphi 0, %s417
      %s418 = sphi 0, %s415
      %s419 = sphi 0, %s418
      %s435 = sphi 0, %s419
      %s441 = sphi 0, %s443
      %s444 = sphi 0, %s441
      %s445 = sphi 0, %s444
      %s461 = sphi 0, %s445
      %s467 = sphi 0, %s469
      %s470 = sphi 0, %s467
      %s471 = sphi 0, %s470
      %s487 = sphi 0, %s471
      %s493 = sphi 0, %s495
      %s496 = sphi 0, %s493
      %s497 = sphi 0, %s496
      %s513 = sphi 0, %s497
      %s519 = sphi 0, %s521
      %s522 = sphi 0, %s519
      %s523 = sphi 0, %s522
      %s539 = sphi 0, %s523
      %s545 = sphi 0, %s547
      %s548 = sphi 0, %s545
      %s549 = sphi 0, %s548
      %s565 = sphi 0, %s549
      %s571 = sphi 0, %s573
      %s574 = sphi 0, %s571
      %s575 = sphi 0, %s574
      %s591 = sphi 0, %s575
      %s597 = sphi 0, %s599
      %s600 = sphi 0, %s597
      %s601 = sphi 0, %s600
      %s617 = sphi 0, %s601
      %s623 = sphi 0, %s625
      %s626 = sphi 0, %s623
      %s627 = sphi 0, %s626
      %s643 = sphi 0, %s627
      %s647 = sphi 0, %s647
      %s649 = sphi 0, %s647
      %s650 = sphi 0, %s649
      %s664 = sphi 0, %s650
      %s668 = sphi 0, %s668
      %s670 = sphi 0, %s668
      %s671 = sphi 0, %s670
      %s685 = sphi 0, %s671
      %s689 = sphi 0, %s689
      %s691 = sphi 0, %s689
      %s692 = sphi 0, %s691
      %s706 = sphi 0, %s692
      %s710 = sphi 0, %s710
      %s712 = sphi 0, %s710
      %s713 = sphi 0, %s712
      %s727 = sphi 0, %s713
      %s731 = sphi 0, %s731
      %s733 = sphi 0, %s731
      %s734 = sphi 0, %s733
      %s748 = sphi 0, %s734
    $region4: #{encoder_decoder_forward.3} parent=1 // loop_header_branch
      %38 = sbr.rel (%p36) target = $region8
    $region5: #{encoder_decoder_forward.3} parent=1 // loop_body
      %s40 = ssub.s32 %s35, 1
      %s41 = ssub.s32 %s35, 2
      %s42 = sadd.s32 %s35, 1
      %s44 = sadd.s32 %s43, 1
      %p47 = scmp.eq.s32.totalorder %s35, 1
      %p48 = scmp.ne.s32.totalorder %s43, %s45
      %p49 = scmp.eq.s32.totalorder %s35, 0
      %p50 = por %p48, %p49
      %p51 = scmp.ne.s32.totalorder %s43, %s45
      %p52 = scmp.eq.s32.totalorder %s40, 1
      %p53 = por %p51, %p52
      %p54 = scmp.ne.s32.totalorder %s45, %s46
      %p55 = scmp.eq.s32.totalorder %s40, 0
      %p56 = por %p54, %p55
      %p57 = scmp.ne.s32.totalorder %s45, %s46
      %p58 = scmp.eq.s32.totalorder %s41, 1
      %p59 = por %p57, %p58
      %p61 = scmp.ne.s32.totalorder %s46, %s60
      %p62 = scmp.eq.s32.totalorder %s41, 0
      %p63 = por %p61, %p62
      %s65 = sadd.s32 %s64, 1
      %p68 = scmp.eq.s32.totalorder %s35, 1
      %p69 = scmp.ne.s32.totalorder %s64, %s66
      %p70 = scmp.eq.s32.totalorder %s35, 0
      %p71 = por %p69, %p70
      %p72 = scmp.ne.s32.totalorder %s64, %s66
      %p73 = scmp.eq.s32.totalorder %s40, 1
      %p74 = por %p72, %p73
      %p75 = scmp.ne.s32.totalorder %s66, %s67
      %p76 = scmp.eq.s32.totalorder %s40, 0
      %p77 = por %p75, %p76
      %p78 = scmp.ne.s32.totalorder %s66, %s67
      %p79 = scmp.eq.s32.totalorder %s41, 1
      %p80 = por %p78, %p79
      %p82 = scmp.ne.s32.totalorder %s67, %s81
      %p83 = scmp.eq.s32.totalorder %s41, 0
      %p84 = por %p82, %p83
      %s86 = sadd.s32 %s85, 1
      %p89 = scmp.eq.s32.totalorder %s35, 1
      %p90 = scmp.ne.s32.totalorder %s85, %s87
      %p91 = scmp.eq.s32.totalorder %s35, 0
      %p92 = por %p90, %p91
      %p93 = scmp.ne.s32.totalorder %s85, %s87
      %p94 = scmp.eq.s32.totalorder %s40, 1
      %p95 = por %p93, %p94
      %p96 = scmp.ne.s32.totalorder %s87, %s88
      %p97 = scmp.eq.s32.totalorder %s40, 0
      %p98 = por %p96, %p97
      %p99 = scmp.ne.s32.totalorder %s87, %s88
      %p100 = scmp.eq.s32.totalorder %s41, 1
      %p101 = por %p99, %p100
      %p103 = scmp.ne.s32.totalorder %s88, %s102
      %p104 = scmp.eq.s32.totalorder %s41, 0
      %p105 = por %p103, %p104
      %s107 = sadd.s32 %s106, 1
      %p110 = scmp.eq.s32.totalorder %s35, 1
      %p111 = scmp.ne.s32.totalorder %s106, %s108
      %p112 = scmp.eq.s32.totalorder %s35, 0
      %p113 = por %p111, %p112
      %p114 = scmp.ne.s32.totalorder %s106, %s108
      %p115 = scmp.eq.s32.totalorder %s40, 1
      %p116 = por %p114, %p115
      %p117 = scmp.ne.s32.totalorder %s108, %s109
      %p118 = scmp.eq.s32.totalorder %s40, 0
      %p119 = por %p117, %p118
      %p120 = scmp.ne.s32.totalorder %s108, %s109
      %p121 = scmp.eq.s32.totalorder %s41, 1
      %p122 = por %p120, %p121
      %p124 = scmp.ne.s32.totalorder %s109, %s123
      %p125 = scmp.eq.s32.totalorder %s41, 0
      %p126 = por %p124, %p125
      %s127 = ssub.s32 %s35, %s42
      %p128 = scmp.eq.s32.totalorder %s127, 0
      %s130 = sadd.s32 %s129, 1
      %s131 = scalar_select %p128, %s129, %s130
      %p134 = pneg %p128
      %p135 = scmp.eq.s32.totalorder %s35, 1
      %p136 = por %p134, %p135
      %p137 = scmp.ne.s32.totalorder %s129, %s132
      %p138 = scmp.eq.s32.totalorder %s35, 0
      %p139 = por %p137, %p138
      %p140 = scmp.ne.s32.totalorder %s129, %s132
      %p141 = scmp.eq.s32.totalorder %s40, 1
      %p142 = por %p140, %p141
      %p143 = scmp.ne.s32.totalorder %s132, %s133
      %p144 = scmp.eq.s32.totalorder %s40, 0
      %p145 = por %p143, %p144
      %p146 = scmp.ne.s32.totalorder %s132, %s133
      %p147 = scmp.eq.s32.totalorder %s41, 1
      %p148 = por %p146, %p147
      %p150 = scmp.ne.s32.totalorder %s133, %s149
      %p151 = scmp.eq.s32.totalorder %s41, 0
      %p152 = por %p150, %p151
      %s153 = ssub.s32 %s35, %s42
      %p154 = scmp.eq.s32.totalorder %s153, 0
      %s156 = sadd.s32 %s155, 1
      %s157 = scalar_select %p154, %s155, %s156
      %p160 = pneg %p154
      %p161 = scmp.eq.s32.totalorder %s35, 1
      %p162 = por %p160, %p161
      %p163 = scmp.ne.s32.totalorder %s155, %s158
      %p164 = scmp.eq.s32.totalorder %s35, 0
      %p165 = por %p163, %p164
      %p166 = scmp.ne.s32.totalorder %s155, %s158
      %p167 = scmp.eq.s32.totalorder %s40, 1
      %p168 = por %p166, %p167
      %p169 = scmp.ne.s32.totalorder %s158, %s159
      %p170 = scmp.eq.s32.totalorder %s40, 0
      %p171 = por %p169, %p170
      %p172 = scmp.ne.s32.totalorder %s158, %s159
      %p173 = scmp.eq.s32.totalorder %s41, 1
      %p174 = por %p172, %p173
      %p176 = scmp.ne.s32.totalorder %s159, %s175
      %p177 = scmp.eq.s32.totalorder %s41, 0
      %p178 = por %p176, %p177
      %s179 = ssub.s32 %s35, %s42
      %p180 = scmp.eq.s32.totalorder %s179, 0
      %s182 = sadd.s32 %s181, 1
      %s183 = scalar_select %p180, %s181, %s182
      %p186 = pneg %p180
      %p187 = scmp.eq.s32.totalorder %s35, 1
      %p188 = por %p186, %p187
      %p189 = scmp.ne.s32.totalorder %s181, %s184
      %p190 = scmp.eq.s32.totalorder %s35, 0
      %p191 = por %p189, %p190
      %p192 = scmp.ne.s32.totalorder %s181, %s184
      %p193 = scmp.eq.s32.totalorder %s40, 1
      %p194 = por %p192, %p193
      %p195 = scmp.ne.s32.totalorder %s184, %s185
      %p196 = scmp.eq.s32.totalorder %s40, 0
      %p197 = por %p195, %p196
      %p198 = scmp.ne.s32.totalorder %s184, %s185
      %p199 = scmp.eq.s32.totalorder %s41, 1
      %p200 = por %p198, %p199
      %p202 = scmp.ne.s32.totalorder %s185, %s201
      %p203 = scmp.eq.s32.totalorder %s41, 0
      %p204 = por %p202, %p203
      %s205 = ssub.s32 %s35, %s42
      %p206 = scmp.eq.s32.totalorder %s205, 0
      %s208 = sadd.s32 %s207, 1
      %s209 = scalar_select %p206, %s207, %s208
      %p212 = pneg %p206
      %p213 = scmp.eq.s32.totalorder %s35, 1
      %p214 = por %p212, %p213
      %p215 = scmp.ne.s32.totalorder %s207, %s210
      %p216 = scmp.eq.s32.totalorder %s35, 0
      %p217 = por %p215, %p216
      %p218 = scmp.ne.s32.totalorder %s207, %s210
      %p219 = scmp.eq.s32.totalorder %s40, 1
      %p220 = por %p218, %p219
      %p221 = scmp.ne.s32.totalorder %s210, %s211
      %p222 = scmp.eq.s32.totalorder %s40, 0
      %p223 = por %p221, %p222
      %p224 = scmp.ne.s32.totalorder %s210, %s211
      %p225 = scmp.eq.s32.totalorder %s41, 1
      %p226 = por %p224, %p225
      %p228 = scmp.ne.s32.totalorder %s211, %s227
      %p229 = scmp.eq.s32.totalorder %s41, 0
      %p230 = por %p228, %p229
      %s231 = ssub.s32 %s35, %s42
      %p232 = scmp.eq.s32.totalorder %s231, 0
      %s234 = sadd.s32 %s233, 1
      %s235 = scalar_select %p232, %s233, %s234
      %p238 = pneg %p232
      %p239 = scmp.eq.s32.totalorder %s35, 1
      %p240 = por %p238, %p239
      %p241 = scmp.ne.s32.totalorder %s233, %s236
      %p242 = scmp.eq.s32.totalorder %s35, 0
      %p243 = por %p241, %p242
      %p244 = scmp.ne.s32.totalorder %s233, %s236
      %p245 = scmp.eq.s32.totalorder %s40, 1
      %p246 = por %p244, %p245
      %p247 = scmp.ne.s32.totalorder %s236, %s237
      %p248 = scmp.eq.s32.totalorder %s40, 0
      %p249 = por %p247, %p248
      %p250 = scmp.ne.s32.totalorder %s236, %s237
      %p251 = scmp.eq.s32.totalorder %s41, 1
      %p252 = por %p250, %p251
      %p254 = scmp.ne.s32.totalorder %s237, %s253
      %p255 = scmp.eq.s32.totalorder %s41, 0
      %p256 = por %p254, %p255
      %s257 = ssub.s32 %s35, %s42
      %p258 = scmp.eq.s32.totalorder %s257, 0
      %s260 = sadd.s32 %s259, 1
      %s261 = scalar_select %p258, %s259, %s260
      %p264 = pneg %p258
      %p265 = scmp.eq.s32.totalorder %s35, 1
      %p266 = por %p264, %p265
      %p267 = scmp.ne.s32.totalorder %s259, %s262
      %p268 = scmp.eq.s32.totalorder %s35, 0
      %p269 = por %p267, %p268
      %p270 = scmp.ne.s32.totalorder %s259, %s262
      %p271 = scmp.eq.s32.totalorder %s40, 1
      %p272 = por %p270, %p271
      %p273 = scmp.ne.s32.totalorder %s262, %s263
      %p274 = scmp.eq.s32.totalorder %s40, 0
      %p275 = por %p273, %p274
      %p276 = scmp.ne.s32.totalorder %s262, %s263
      %p277 = scmp.eq.s32.totalorder %s41, 1
      %p278 = por %p276, %p277
      %p280 = scmp.ne.s32.totalorder %s263, %s279
      %p281 = scmp.eq.s32.totalorder %s41, 0
      %p282 = por %p280, %p281
      %s283 = ssub.s32 %s35, %s42
      %p284 = scmp.eq.s32.totalorder %s283, 0
      %s286 = sadd.s32 %s285, 1
      %s287 = scalar_select %p284, %s285, %s286
      %p290 = pneg %p284
      %p291 = scmp.eq.s32.totalorder %s35, 1
      %p292 = por %p290, %p291
      %p293 = scmp.ne.s32.totalorder %s285, %s288
      %p294 = scmp.eq.s32.totalorder %s35, 0
      %p295 = por %p293, %p294
      %p296 = scmp.ne.s32.totalorder %s285, %s288
      %p297 = scmp.eq.s32.totalorder %s40, 1
      %p298 = por %p296, %p297
      %p299 = scmp.ne.s32.totalorder %s288, %s289
      %p300 = scmp.eq.s32.totalorder %s40, 0
      %p301 = por %p299, %p300
      %p302 = scmp.ne.s32.totalorder %s288, %s289
      %p303 = scmp.eq.s32.totalorder %s41, 1
      %p304 = por %p302, %p303
      %p306 = scmp.ne.s32.totalorder %s289, %s305
      %p307 = scmp.eq.s32.totalorder %s41, 0
      %p308 = por %p306, %p307
      %s309 = ssub.s32 %s35, %s42
      %p310 = scmp.eq.s32.totalorder %s309, 0
      %s312 = sadd.s32 %s311, 1
      %s313 = scalar_select %p310, %s311, %s312
      %p316 = pneg %p310
      %p317 = scmp.eq.s32.totalorder %s35, 1
      %p318 = por %p316, %p317
      %p319 = scmp.ne.s32.totalorder %s311, %s314
      %p320 = scmp.eq.s32.totalorder %s35, 0
      %p321 = por %p319, %p320
      %p322 = scmp.ne.s32.totalorder %s311, %s314
      %p323 = scmp.eq.s32.totalorder %s40, 1
      %p324 = por %p322, %p323
      %p325 = scmp.ne.s32.totalorder %s314, %s315
      %p326 = scmp.eq.s32.totalorder %s40, 0
      %p327 = por %p325, %p326
      %p328 = scmp.ne.s32.totalorder %s314, %s315
      %p329 = scmp.eq.s32.totalorder %s41, 1
      %p330 = por %p328, %p329
      %p332 = scmp.ne.s32.totalorder %s315, %s331
      %p333 = scmp.eq.s32.totalorder %s41, 0
      %p334 = por %p332, %p333
      %s335 = ssub.s32 %s35, %s42
      %p336 = scmp.eq.s32.totalorder %s335, 0
      %s338 = sadd.s32 %s337, 1
      %s339 = scalar_select %p336, %s337, %s338
      %p342 = pneg %p336
      %p343 = scmp.eq.s32.totalorder %s35, 1
      %p344 = por %p342, %p343
      %p345 = scmp.ne.s32.totalorder %s337, %s340
      %p346 = scmp.eq.s32.totalorder %s35, 0
      %p347 = por %p345, %p346
      %p348 = scmp.ne.s32.totalorder %s337, %s340
      %p349 = scmp.eq.s32.totalorder %s40, 1
      %p350 = por %p348, %p349
      %p351 = scmp.ne.s32.totalorder %s340, %s341
      %p352 = scmp.eq.s32.totalorder %s40, 0
      %p353 = por %p351, %p352
      %p354 = scmp.ne.s32.totalorder %s340, %s341
      %p355 = scmp.eq.s32.totalorder %s41, 1
      %p356 = por %p354, %p355
      %p358 = scmp.ne.s32.totalorder %s341, %s357
      %p359 = scmp.eq.s32.totalorder %s41, 0
      %p360 = por %p358, %p359
      %s361 = ssub.s32 %s35, %s42
      %p362 = scmp.eq.s32.totalorder %s361, 0
      %s364 = sadd.s32 %s363, 1
      %s365 = scalar_select %p362, %s363, %s364
      %p368 = pneg %p362
      %p369 = scmp.eq.s32.totalorder %s35, 1
      %p370 = por %p368, %p369
      %p371 = scmp.ne.s32.totalorder %s363, %s366
      %p372 = scmp.eq.s32.totalorder %s35, 0
      %p373 = por %p371, %p372
      %p374 = scmp.ne.s32.totalorder %s363, %s366
      %p375 = scmp.eq.s32.totalorder %s40, 1
      %p376 = por %p374, %p375
      %p377 = scmp.ne.s32.totalorder %s366, %s367
      %p378 = scmp.eq.s32.totalorder %s40, 0
      %p379 = por %p377, %p378
      %p380 = scmp.ne.s32.totalorder %s366, %s367
      %p381 = scmp.eq.s32.totalorder %s41, 1
      %p382 = por %p380, %p381
      %p384 = scmp.ne.s32.totalorder %s367, %s383
      %p385 = scmp.eq.s32.totalorder %s41, 0
      %p386 = por %p384, %p385
      %s387 = ssub.s32 %s35, %s42
      %p388 = scmp.eq.s32.totalorder %s387, 0
      %s390 = sadd.s32 %s389, 1
      %s391 = scalar_select %p388, %s389, %s390
      %p394 = pneg %p388
      %p395 = scmp.eq.s32.totalorder %s35, 1
      %p396 = por %p394, %p395
      %p397 = scmp.ne.s32.totalorder %s389, %s392
      %p398 = scmp.eq.s32.totalorder %s35, 0
      %p399 = por %p397, %p398
      %p400 = scmp.ne.s32.totalorder %s389, %s392
      %p401 = scmp.eq.s32.totalorder %s40, 1
      %p402 = por %p400, %p401
      %p403 = scmp.ne.s32.totalorder %s392, %s393
      %p404 = scmp.eq.s32.totalorder %s40, 0
      %p405 = por %p403, %p404
      %p406 = scmp.ne.s32.totalorder %s392, %s393
      %p407 = scmp.eq.s32.totalorder %s41, 1
      %p408 = por %p406, %p407
      %p410 = scmp.ne.s32.totalorder %s393, %s409
      %p411 = scmp.eq.s32.totalorder %s41, 0
      %p412 = por %p410, %p411
      %s413 = ssub.s32 %s35, %s42
      %p414 = scmp.eq.s32.totalorder %s413, 0
      %s416 = sadd.s32 %s415, 1
      %s417 = scalar_select %p414, %s415, %s416
      %p420 = pneg %p414
      %p421 = scmp.eq.s32.totalorder %s35, 1
      %p422 = por %p420, %p421
      %p423 = scmp.ne.s32.totalorder %s415, %s418
      %p424 = scmp.eq.s32.totalorder %s35, 0
      %p425 = por %p423, %p424
      %p426 = scmp.ne.s32.totalorder %s415, %s418
      %p427 = scmp.eq.s32.totalorder %s40, 1
      %p428 = por %p426, %p427
      %p429 = scmp.ne.s32.totalorder %s418, %s419
      %p430 = scmp.eq.s32.totalorder %s40, 0
      %p431 = por %p429, %p430
      %p432 = scmp.ne.s32.totalorder %s418, %s419
      %p433 = scmp.eq.s32.totalorder %s41, 1
      %p434 = por %p432, %p433
      %p436 = scmp.ne.s32.totalorder %s419, %s435
      %p437 = scmp.eq.s32.totalorder %s41, 0
      %p438 = por %p436, %p437
      %s439 = ssub.s32 %s35, %s42
      %p440 = scmp.eq.s32.totalorder %s439, 0
      %s442 = sadd.s32 %s441, 1
      %s443 = scalar_select %p440, %s441, %s442
      %p446 = pneg %p440
      %p447 = scmp.eq.s32.totalorder %s35, 1
      %p448 = por %p446, %p447
      %p449 = scmp.ne.s32.totalorder %s441, %s444
      %p450 = scmp.eq.s32.totalorder %s35, 0
      %p451 = por %p449, %p450
      %p452 = scmp.ne.s32.totalorder %s441, %s444
      %p453 = scmp.eq.s32.totalorder %s40, 1
      %p454 = por %p452, %p453
      %p455 = scmp.ne.s32.totalorder %s444, %s445
      %p456 = scmp.eq.s32.totalorder %s40, 0
      %p457 = por %p455, %p456
      %p458 = scmp.ne.s32.totalorder %s444, %s445
      %p459 = scmp.eq.s32.totalorder %s41, 1
      %p460 = por %p458, %p459
      %p462 = scmp.ne.s32.totalorder %s445, %s461
      %p463 = scmp.eq.s32.totalorder %s41, 0
      %p464 = por %p462, %p463
      %s465 = ssub.s32 %s35, %s42
      %p466 = scmp.eq.s32.totalorder %s465, 0
      %s468 = sadd.s32 %s467, 1
      %s469 = scalar_select %p466, %s467, %s468
      %p472 = pneg %p466
      %p473 = scmp.eq.s32.totalorder %s35, 1
      %p474 = por %p472, %p473
      %p475 = scmp.ne.s32.totalorder %s467, %s470
      %p476 = scmp.eq.s32.totalorder %s35, 0
      %p477 = por %p475, %p476
      %p478 = scmp.ne.s32.totalorder %s467, %s470
      %p479 = scmp.eq.s32.totalorder %s40, 1
      %p480 = por %p478, %p479
      %p481 = scmp.ne.s32.totalorder %s470, %s471
      %p482 = scmp.eq.s32.totalorder %s40, 0
      %p483 = por %p481, %p482
      %p484 = scmp.ne.s32.totalorder %s470, %s471
      %p485 = scmp.eq.s32.totalorder %s41, 1
      %p486 = por %p484, %p485
      %p488 = scmp.ne.s32.totalorder %s471, %s487
      %p489 = scmp.eq.s32.totalorder %s41, 0
      %p490 = por %p488, %p489
      %s491 = ssub.s32 %s35, %s42
      %p492 = scmp.eq.s32.totalorder %s491, 0
      %s494 = sadd.s32 %s493, 1
      %s495 = scalar_select %p492, %s493, %s494
      %p498 = pneg %p492
      %p499 = scmp.eq.s32.totalorder %s35, 1
      %p500 = por %p498, %p499
      %p501 = scmp.ne.s32.totalorder %s493, %s496
      %p502 = scmp.eq.s32.totalorder %s35, 0
      %p503 = por %p501, %p502
      %p504 = scmp.ne.s32.totalorder %s493, %s496
      %p505 = scmp.eq.s32.totalorder %s40, 1
      %p506 = por %p504, %p505
      %p507 = scmp.ne.s32.totalorder %s496, %s497
      %p508 = scmp.eq.s32.totalorder %s40, 0
      %p509 = por %p507, %p508
      %p510 = scmp.ne.s32.totalorder %s496, %s497
      %p511 = scmp.eq.s32.totalorder %s41, 1
      %p512 = por %p510, %p511
      %p514 = scmp.ne.s32.totalorder %s497, %s513
      %p515 = scmp.eq.s32.totalorder %s41, 0
      %p516 = por %p514, %p515
      %s517 = ssub.s32 %s35, %s42
      %p518 = scmp.eq.s32.totalorder %s517, 0
      %s520 = sadd.s32 %s519, 1
      %s521 = scalar_select %p518, %s519, %s520
      %p524 = pneg %p518
      %p525 = scmp.eq.s32.totalorder %s35, 1
      %p526 = por %p524, %p525
      %p527 = scmp.ne.s32.totalorder %s519, %s522
      %p528 = scmp.eq.s32.totalorder %s35, 0
      %p529 = por %p527, %p528
      %p530 = scmp.ne.s32.totalorder %s519, %s522
      %p531 = scmp.eq.s32.totalorder %s40, 1
      %p532 = por %p530, %p531
      %p533 = scmp.ne.s32.totalorder %s522, %s523
      %p534 = scmp.eq.s32.totalorder %s40, 0
      %p535 = por %p533, %p534
      %p536 = scmp.ne.s32.totalorder %s522, %s523
      %p537 = scmp.eq.s32.totalorder %s41, 1
      %p538 = por %p536, %p537
      %p540 = scmp.ne.s32.totalorder %s523, %s539
      %p541 = scmp.eq.s32.totalorder %s41, 0
      %p542 = por %p540, %p541
      %s543 = ssub.s32 %s35, %s42
      %p544 = scmp.eq.s32.totalorder %s543, 0
      %s546 = sadd.s32 %s545, 1
      %s547 = scalar_select %p544, %s545, %s546
      %p550 = pneg %p544
      %p551 = scmp.eq.s32.totalorder %s35, 1
      %p552 = por %p550, %p551
      %p553 = scmp.ne.s32.totalorder %s545, %s548
      %p554 = scmp.eq.s32.totalorder %s35, 0
      %p555 = por %p553, %p554
      %p556 = scmp.ne.s32.totalorder %s545, %s548
      %p557 = scmp.eq.s32.totalorder %s40, 1
      %p558 = por %p556, %p557
      %p559 = scmp.ne.s32.totalorder %s548, %s549
      %p560 = scmp.eq.s32.totalorder %s40, 0
      %p561 = por %p559, %p560
      %p562 = scmp.ne.s32.totalorder %s548, %s549
      %p563 = scmp.eq.s32.totalorder %s41, 1
      %p564 = por %p562, %p563
      %p566 = scmp.ne.s32.totalorder %s549, %s565
      %p567 = scmp.eq.s32.totalorder %s41, 0
      %p568 = por %p566, %p567
      %s569 = ssub.s32 %s35, %s42
      %p570 = scmp.eq.s32.totalorder %s569, 0
      %s572 = sadd.s32 %s571, 1
      %s573 = scalar_select %p570, %s571, %s572
      %p576 = pneg %p570
      %p577 = scmp.eq.s32.totalorder %s35, 1
      %p578 = por %p576, %p577
      %p579 = scmp.ne.s32.totalorder %s571, %s574
      %p580 = scmp.eq.s32.totalorder %s35, 0
      %p581 = por %p579, %p580
      %p582 = scmp.ne.s32.totalorder %s571, %s574
      %p583 = scmp.eq.s32.totalorder %s40, 1
      %p584 = por %p582, %p583
      %p585 = scmp.ne.s32.totalorder %s574, %s575
      %p586 = scmp.eq.s32.totalorder %s40, 0
      %p587 = por %p585, %p586
      %p588 = scmp.ne.s32.totalorder %s574, %s575
      %p589 = scmp.eq.s32.totalorder %s41, 1
      %p590 = por %p588, %p589
      %p592 = scmp.ne.s32.totalorder %s575, %s591
      %p593 = scmp.eq.s32.totalorder %s41, 0
      %p594 = por %p592, %p593
      %s595 = ssub.s32 %s35, %s42
      %p596 = scmp.eq.s32.totalorder %s595, 0
      %s598 = sadd.s32 %s597, 1
      %s599 = scalar_select %p596, %s597, %s598
      %p602 = pneg %p596
      %p603 = scmp.eq.s32.totalorder %s35, 1
      %p604 = por %p602, %p603
      %p605 = scmp.ne.s32.totalorder %s597, %s600
      %p606 = scmp.eq.s32.totalorder %s35, 0
      %p607 = por %p605, %p606
      %p608 = scmp.ne.s32.totalorder %s597, %s600
      %p609 = scmp.eq.s32.totalorder %s40, 1
      %p610 = por %p608, %p609
      %p611 = scmp.ne.s32.totalorder %s600, %s601
      %p612 = scmp.eq.s32.totalorder %s40, 0
      %p613 = por %p611, %p612
      %p614 = scmp.ne.s32.totalorder %s600, %s601
      %p615 = scmp.eq.s32.totalorder %s41, 1
      %p616 = por %p614, %p615
      %p618 = scmp.ne.s32.totalorder %s601, %s617
      %p619 = scmp.eq.s32.totalorder %s41, 0
      %p620 = por %p618, %p619
      %s621 = ssub.s32 %s35, %s42
      %p622 = scmp.eq.s32.totalorder %s621, 0
      %s624 = sadd.s32 %s623, 1
      %s625 = scalar_select %p622, %s623, %s624
      %p628 = pneg %p622
      %p629 = scmp.eq.s32.totalorder %s35, 1
      %p630 = por %p628, %p629
      %p631 = scmp.ne.s32.totalorder %s623, %s626
      %p632 = scmp.eq.s32.totalorder %s35, 0
      %p633 = por %p631, %p632
      %p634 = scmp.ne.s32.totalorder %s623, %s626
      %p635 = scmp.eq.s32.totalorder %s40, 1
      %p636 = por %p634, %p635
      %p637 = scmp.ne.s32.totalorder %s626, %s627
      %p638 = scmp.eq.s32.totalorder %s40, 0
      %p639 = por %p637, %p638
      %p640 = scmp.ne.s32.totalorder %s626, %s627
      %p641 = scmp.eq.s32.totalorder %s41, 1
      %p642 = por %p640, %p641
      %p644 = scmp.ne.s32.totalorder %s627, %s643
      %p645 = scmp.eq.s32.totalorder %s41, 0
      %p646 = por %p644, %p645
      %s648 = sadd.s32 %s647, 1
      %p651 = scmp.eq.s32.totalorder %s35, 1
      %p652 = scmp.ne.s32.totalorder %s647, %s649
      %p653 = scmp.eq.s32.totalorder %s35, 0
      %p654 = por %p652, %p653
      %p655 = scmp.ne.s32.totalorder %s647, %s649
      %p656 = scmp.eq.s32.totalorder %s40, 1
      %p657 = por %p655, %p656
      %p658 = scmp.ne.s32.totalorder %s649, %s650
      %p659 = scmp.eq.s32.totalorder %s40, 0
      %p660 = por %p658, %p659
      %p661 = scmp.ne.s32.totalorder %s649, %s650
      %p662 = scmp.eq.s32.totalorder %s41, 1
      %p663 = por %p661, %p662
      %p665 = scmp.ne.s32.totalorder %s650, %s664
      %p666 = scmp.eq.s32.totalorder %s41, 0
      %p667 = por %p665, %p666
      %s669 = sadd.s32 %s668, 1
      %p672 = scmp.eq.s32.totalorder %s35, 1
      %p673 = scmp.ne.s32.totalorder %s668, %s670
      %p674 = scmp.eq.s32.totalorder %s35, 0
      %p675 = por %p673, %p674
      %p676 = scmp.ne.s32.totalorder %s668, %s670
      %p677 = scmp.eq.s32.totalorder %s40, 1
      %p678 = por %p676, %p677
      %p679 = scmp.ne.s32.totalorder %s670, %s671
      %p680 = scmp.eq.s32.totalorder %s40, 0
      %p681 = por %p679, %p680
      %p682 = scmp.ne.s32.totalorder %s670, %s671
      %p683 = scmp.eq.s32.totalorder %s41, 1
      %p684 = por %p682, %p683
      %p686 = scmp.ne.s32.totalorder %s671, %s685
      %p687 = scmp.eq.s32.totalorder %s41, 0
      %p688 = por %p686, %p687
      %s690 = sadd.s32 %s689, 1
      %p693 = scmp.eq.s32.totalorder %s35, 1
      %p694 = scmp.ne.s32.totalorder %s689, %s691
      %p695 = scmp.eq.s32.totalorder %s35, 0
      %p696 = por %p694, %p695
      %p697 = scmp.ne.s32.totalorder %s689, %s691
      %p698 = scmp.eq.s32.totalorder %s40, 1
      %p699 = por %p697, %p698
      %p700 = scmp.ne.s32.totalorder %s691, %s692
      %p701 = scmp.eq.s32.totalorder %s40, 0
      %p702 = por %p700, %p701
      %p703 = scmp.ne.s32.totalorder %s691, %s692
      %p704 = scmp.eq.s32.totalorder %s41, 1
      %p705 = por %p703, %p704
      %p707 = scmp.ne.s32.totalorder %s692, %s706
      %p708 = scmp.eq.s32.totalorder %s41, 0
      %p709 = por %p707, %p708
      %s711 = sadd.s32 %s710, 1
      %p714 = scmp.eq.s32.totalorder %s35, 1
      %p715 = scmp.ne.s32.totalorder %s710, %s712
      %p716 = scmp.eq.s32.totalorder %s35, 0
      %p717 = por %p715, %p716
      %p718 = scmp.ne.s32.totalorder %s710, %s712
      %p719 = scmp.eq.s32.totalorder %s40, 1
      %p720 = por %p718, %p719
      %p721 = scmp.ne.s32.totalorder %s712, %s713
      %p722 = scmp.eq.s32.totalorder %s40, 0
      %p723 = por %p721, %p722
      %p724 = scmp.ne.s32.totalorder %s712, %s713
      %p725 = scmp.eq.s32.totalorder %s41, 1
      %p726 = por %p724, %p725
      %p728 = scmp.ne.s32.totalorder %s713, %s727
      %p729 = scmp.eq.s32.totalorder %s41, 0
      %p730 = por %p728, %p729
      %s732 = sadd.s32 %s731, 1
      %p735 = scmp.eq.s32.totalorder %s35, 1
      %p736 = scmp.ne.s32.totalorder %s731, %s733
      %p737 = scmp.eq.s32.totalorder %s35, 0
      %p738 = por %p736, %p737
      %p739 = scmp.ne.s32.totalorder %s731, %s733
      %p740 = scmp.eq.s32.totalorder %s40, 1
      %p741 = por %p739, %p740
      %p742 = scmp.ne.s32.totalorder %s733, %s734
      %p743 = scmp.eq.s32.totalorder %s40, 0
      %p744 = por %p742, %p743
      %p745 = scmp.ne.s32.totalorder %s733, %s734
      %p746 = scmp.eq.s32.totalorder %s41, 1
      %p747 = por %p745, %p746
      %p749 = scmp.ne.s32.totalorder %s734, %s748
      %p750 = scmp.eq.s32.totalorder %s41, 0
      %p751 = por %p749, %p750
      %p752 = scmp.le.s32.totalorder 1, %s35
      %p753 = scmp.lt.s32.totalorder %s35, 3
      %p754 = pnand %p752, %p753
      %p755 = pneg %p754
      // Predicated region
      $region9: #{encoder_decoder_forward.3} parent=5 // pred_check
        _
      $region10: #{encoder_decoder_forward.3} parent=5 // pred_check_branch
        %757 = sbr.rel (%p754) target = $region12
      $region11: #{encoder_decoder_forward.3} parent=5 // pred_region
        %s758 = ssub.s32 %s35, 1
        // Predicated region
        $region13: #{encoder_decoder_forward.3} parent=11 // pred_check
          %p759 = pneg %p56
        $region14: #{encoder_decoder_forward.3} parent=11 // pred_check_branch
          %761 = sbr.rel (%p759) target = $region16
        $region15: #{encoder_decoder_forward.3} parent=11 // pred_region
          _
        $region16: #{encoder_decoder_forward.3} parent=11 // pred_fallthru
          _
        // Predicated region
        $region17: #{encoder_decoder_forward.3} parent=11 // pred_check
          %p762 = pneg %p77
        $region18: #{encoder_decoder_forward.3} parent=11 // pred_check_branch
          %764 = sbr.rel (%p762) target = $region20
        $region19: #{encoder_decoder_forward.3} parent=11 // pred_region
          _
        $region20: #{encoder_decoder_forward.3} parent=11 // pred_fallthru
          _
        // Predicated region
        $region21: #{encoder_decoder_forward.3} parent=11 // pred_check
          %p765 = pneg %p98
        $region22: #{encoder_decoder_forward.3} parent=11 // pred_check_branch
          %767 = sbr.rel (%p765) target = $region24
        $region23: #{encoder_decoder_forward.3} parent=11 // pred_region
          _
        $region24: #{encoder_decoder_forward.3} parent=11 // pred_fallthru
          _
        // Predicated region
        $region25: #{encoder_decoder_forward.3} parent=11 // pred_check
          %p768 = pneg %p119
        $region26: #{encoder_decoder_forward.3} parent=11 // pred_check_branch
          %770 = sbr.rel (%p768) target = $region28
        $region27: #{encoder_decoder_forward.3} parent=11 // pred_region
          _
        $region28: #{encoder_decoder_forward.3} parent=11 // pred_fallthru
          _
        // Predicated region
        $region29: #{encoder_decoder_forward.3} parent=11 // pred_check
          %p771 = pneg %p660
        $region30: #{encoder_decoder_forward.3} parent=11 // pred_check_branch
          %773 = sbr.rel (%p771) target = $region32
        $region31: #{encoder_decoder_forward.3} parent=11 // pred_region
          _
        $region32: #{encoder_decoder_forward.3} parent=11 // pred_fallthru
          _
        // Predicated region
        $region33: #{encoder_decoder_forward.3} parent=11 // pred_check
          %p774 = pneg %p681
        $region34: #{encoder_decoder_forward.3} parent=11 // pred_check_branch
          %776 = sbr.rel (%p774) target = $region36
        $region35: #{encoder_decoder_forward.3} parent=11 // pred_region
          _
        $region36: #{encoder_decoder_forward.3} parent=11 // pred_fallthru
          _
        // Predicated region
        $region37: #{encoder_decoder_forward.3} parent=11 // pred_check
          %p777 = pneg %p702
        $region38: #{encoder_decoder_forward.3} parent=11 // pred_check_branch
          %779 = sbr.rel (%p777) target = $region40
        $region39: #{encoder_decoder_forward.3} parent=11 // pred_region
          _
        $region40: #{encoder_decoder_forward.3} parent=11 // pred_fallthru
          _
        // Predicated region
        $region41: #{encoder_decoder_forward.3} parent=11 // pred_check
          %p780 = pneg %p723
        $region42: #{encoder_decoder_forward.3} parent=11 // pred_check_branch
          %782 = sbr.rel (%p780) target = $region44
        $region43: #{encoder_decoder_forward.3} parent=11 // pred_region
          _
        $region44: #{encoder_decoder_forward.3} parent=11 // pred_fallthru
          _
      $region12: #{encoder_decoder_forward.3} parent=5 // pred_fallthru
        _
      %p783 = scmp.lt.s32.totalorder %s35, 2
      // Predicated region
      $region45: #{encoder_decoder_forward.3} parent=5 // pred_check
        %p784 = pneg %p783
      $region46: #{encoder_decoder_forward.3} parent=5 // pred_check_branch
        %786 = sbr.rel (%p784) target = $region48
      $region47: #{encoder_decoder_forward.3} parent=5 // pred_region
        // Predicated region
        $region49: #{encoder_decoder_forward.3} parent=47 // pred_check
          %p787 = pneg %p139
        $region50: #{encoder_decoder_forward.3} parent=47 // pred_check_branch
          %789 = sbr.rel (%p787) target = $region52
        $region51: #{encoder_decoder_forward.3} parent=47 // pred_region
          %p790 = scmp.lt.s32.totalorder %s35, 1
          %s791 = scalar_select %p790, %s35, 1
          %s792 = scalar_lea.vmem %s4, %s791
        $region52: #{encoder_decoder_forward.3} parent=47 // pred_fallthru
          _
        // Predicated region
        $region53: #{encoder_decoder_forward.3} parent=47 // pred_check
          %p793 = pneg %p165
        $region54: #{encoder_decoder_forward.3} parent=47 // pred_check_branch
          %795 = sbr.rel (%p793) target = $region56
        $region55: #{encoder_decoder_forward.3} parent=47 // pred_region
          %p796 = scmp.lt.s32.totalorder %s35, 1
          %s797 = scalar_select %p796, %s35, 1
          %s798 = scalar_lea.vmem %s5, %s797
        $region56: #{encoder_decoder_forward.3} parent=47 // pred_fallthru
          _
        // Predicated region
        $region57: #{encoder_decoder_forward.3} parent=47 // pred_check
          %p799 = pneg %p191
        $region58: #{encoder_decoder_forward.3} parent=47 // pred_check_branch
          %801 = sbr.rel (%p799) target = $region60
        $region59: #{encoder_decoder_forward.3} parent=47 // pred_region
          %p802 = scmp.lt.s32.totalorder %s35, 1
          %s803 = scalar_select %p802, %s35, 1
          %s804 = smul.addr %s803, 4
          %s805 = smul.addr %s804, 4
          %s806 = scalar_lea.vmem %s6, %s805
        $region60: #{encoder_decoder_forward.3} parent=47 // pred_fallthru
          _
        // Predicated region
        $region61: #{encoder_decoder_forward.3} parent=47 // pred_check
          %p807 = pneg %p217
        $region62: #{encoder_decoder_forward.3} parent=47 // pred_check_branch
          %809 = sbr.rel (%p807) target = $region64
        $region63: #{encoder_decoder_forward.3} parent=47 // pred_region
          %p810 = scmp.lt.s32.totalorder %s35, 1
          %s811 = scalar_select %p810, %s35, 1
          %s812 = scalar_lea.vmem %s7, %s811
        $region64: #{encoder_decoder_forward.3} parent=47 // pred_fallthru
          _
        // Predicated region
        $region65: #{encoder_decoder_forward.3} parent=47 // pred_check
          %p813 = pneg %p243
        $region66: #{encoder_decoder_forward.3} parent=47 // pred_check_branch
          %815 = sbr.rel (%p813) target = $region68
        $region67: #{encoder_decoder_forward.3} parent=47 // pred_region
          %p816 = scmp.lt.s32.totalorder %s35, 1
          %s817 = scalar_select %p816, %s35, 1
          %s818 = smul.addr %s817, 4
          %s819 = smul.addr %s818, 4
          %s820 = scalar_lea.vmem %s8, %s819
        $region68: #{encoder_decoder_forward.3} parent=47 // pred_fallthru
          _
        // Predicated region
        $region69: #{encoder_decoder_forward.3} parent=47 // pred_check
          %p821 = pneg %p269
        $region70: #{encoder_decoder_forward.3} parent=47 // pred_check_branch
          %823 = sbr.rel (%p821) target = $region72
        $region71: #{encoder_decoder_forward.3} parent=47 // pred_region
          %p824 = scmp.lt.s32.totalorder %s35, 1
          %s825 = scalar_select %p824, %s35, 1
          %s826 = scalar_lea.vmem %s9, %s825
        $region72: #{encoder_decoder_forward.3} parent=47 // pred_fallthru
          _
        // Predicated region
        $region73: #{encoder_decoder_forward.3} parent=47 // pred_check
          %p827 = pneg %p295
        $region74: #{encoder_decoder_forward.3} parent=47 // pred_check_branch
          %829 = sbr.rel (%p827) target = $region76
        $region75: #{encoder_decoder_forward.3} parent=47 // pred_region
          %p830 = scmp.lt.s32.totalorder %s35, 1
          %s831 = scalar_select %p830, %s35, 1
          %s832 = scalar_lea.vmem %s10, %s831
        $region76: #{encoder_decoder_forward.3} parent=47 // pred_fallthru
          _
        // Predicated region
        $region77: #{encoder_decoder_forward.3} parent=47 // pred_check
          %p833 = pneg %p321
        $region78: #{encoder_decoder_forward.3} parent=47 // pred_check_branch
          %835 = sbr.rel (%p833) target = $region80
        $region79: #{encoder_decoder_forward.3} parent=47 // pred_region
          %p836 = scmp.lt.s32.totalorder %s35, 1
          %s837 = scalar_select %p836, %s35, 1
          %s838 = scalar_lea.vmem %s11, %s837
        $region80: #{encoder_decoder_forward.3} parent=47 // pred_fallthru
          _
        // Predicated region
        $region81: #{encoder_decoder_forward.3} parent=47 // pred_check
          %p839 = pneg %p347
        $region82: #{encoder_decoder_forward.3} parent=47 // pred_check_branch
          %841 = sbr.rel (%p839) target = $region84
        $region83: #{encoder_decoder_forward.3} parent=47 // pred_region
          %p842 = scmp.lt.s32.totalorder %s35, 1
          %s843 = scalar_select %p842, %s35, 1
          %s844 = smul.addr %s843, 4
          %s845 = smul.addr %s844, 4
          %s846 = scalar_lea.vmem %s12, %s845
        $region84: #{encoder_decoder_forward.3} parent=47 // pred_fallthru
          _
        // Predicated region
        $region85: #{encoder_decoder_forward.3} parent=47 // pred_check
          %p847 = pneg %p373
        $region86: #{encoder_decoder_forward.3} parent=47 // pred_check_branch
          %849 = sbr.rel (%p847) target = $region88
        $region87: #{encoder_decoder_forward.3} parent=47 // pred_region
          %p850 = scmp.lt.s32.totalorder %s35, 1
          %s851 = scalar_select %p850, %s35, 1
          %s852 = scalar_lea.vmem %s13, %s851
        $region88: #{encoder_decoder_forward.3} parent=47 // pred_fallthru
          _
        // Predicated region
        $region89: #{encoder_decoder_forward.3} parent=47 // pred_check
          %p853 = pneg %p399
        $region90: #{encoder_decoder_forward.3} parent=47 // pred_check_branch
          %855 = sbr.rel (%p853) target = $region92
        $region91: #{encoder_decoder_forward.3} parent=47 // pred_region
          %p856 = scmp.lt.s32.totalorder %s35, 1
          %s857 = scalar_select %p856, %s35, 1
          %s858 = smul.addr %s857, 4
          %s859 = smul.addr %s858, 4
          %s860 = scalar_lea.vmem %s14, %s859
        $region92: #{encoder_decoder_forward.3} parent=47 // pred_fallthru
          _
        // Predicated region
        $region93: #{encoder_decoder_forward.3} parent=47 // pred_check
          %p861 = pneg %p425
        $region94: #{encoder_decoder_forward.3} parent=47 // pred_check_branch
          %863 = sbr.rel (%p861) target = $region96
        $region95: #{encoder_decoder_forward.3} parent=47 // pred_region
          %p864 = scmp.lt.s32.totalorder %s35, 1
          %s865 = scalar_select %p864, %s35, 1
          %s866 = scalar_lea.vmem %s15, %s865
        $region96: #{encoder_decoder_forward.3} parent=47 // pred_fallthru
          _
        // Predicated region
        $region97: #{encoder_decoder_forward.3} parent=47 // pred_check
          %p867 = pneg %p451
        $region98: #{encoder_decoder_forward.3} parent=47 // pred_check_branch
          %869 = sbr.rel (%p867) target = $region100
        $region99: #{encoder_decoder_forward.3} parent=47 // pred_region
          %p870 = scmp.lt.s32.totalorder %s35, 1
          %s871 = scalar_select %p870, %s35, 1
          %s872 = smul.addr %s871, 4
          %s873 = smul.addr %s872, 4
          %s874 = scalar_lea.vmem %s16, %s873
        $region100: #{encoder_decoder_forward.3} parent=47 // pred_fallthru
          _
        // Predicated region
        $region101: #{encoder_decoder_forward.3} parent=47 // pred_check
          %p875 = pneg %p477
        $region102: #{encoder_decoder_forward.3} parent=47 // pred_check_branch
          %877 = sbr.rel (%p875) target = $region104
        $region103: #{encoder_decoder_forward.3} parent=47 // pred_region
          %p878 = scmp.lt.s32.totalorder %s35, 1
          %s879 = scalar_select %p878, %s35, 1
          %s880 = scalar_lea.vmem %s17, %s879
        $region104: #{encoder_decoder_forward.3} parent=47 // pred_fallthru
          _
        // Predicated region
        $region105: #{encoder_decoder_forward.3} parent=47 // pred_check
          %p881 = pneg %p503
        $region106: #{encoder_decoder_forward.3} parent=47 // pred_check_branch
          %883 = sbr.rel (%p881) target = $region108
        $region107: #{encoder_decoder_forward.3} parent=47 // pred_region
          %p884 = scmp.lt.s32.totalorder %s35, 1
          %s885 = scalar_select %p884, %s35, 1
          %s886 = scalar_lea.vmem %s18, %s885
        $region108: #{encoder_decoder_forward.3} parent=47 // pred_fallthru
          _
        // Predicated region
        $region109: #{encoder_decoder_forward.3} parent=47 // pred_check
          %p887 = pneg %p529
        $region110: #{encoder_decoder_forward.3} parent=47 // pred_check_branch
          %889 = sbr.rel (%p887) target = $region112
        $region111: #{encoder_decoder_forward.3} parent=47 // pred_region
          %p890 = scmp.lt.s32.totalorder %s35, 1
          %s891 = scalar_select %p890, %s35, 1
          %s892 = scalar_lea.vmem %s19, %s891
        $region112: #{encoder_decoder_forward.3} parent=47 // pred_fallthru
          _
        // Predicated region
        $region113: #{encoder_decoder_forward.3} parent=47 // pred_check
          %p893 = pneg %p555
        $region114: #{encoder_decoder_forward.3} parent=47 // pred_check_branch
          %895 = sbr.rel (%p893) target = $region116
        $region115: #{encoder_decoder_forward.3} parent=47 // pred_region
          %p896 = scmp.lt.s32.totalorder %s35, 1
          %s897 = scalar_select %p896, %s35, 1
          %s898 = smul.addr %s897, 4
          %s899 = smul.addr %s898, 4
          %s900 = scalar_lea.vmem %s20, %s899
        $region116: #{encoder_decoder_forward.3} parent=47 // pred_fallthru
          _
        // Predicated region
        $region117: #{encoder_decoder_forward.3} parent=47 // pred_check
          %p901 = pneg %p581
        $region118: #{encoder_decoder_forward.3} parent=47 // pred_check_branch
          %903 = sbr.rel (%p901) target = $region120
        $region119: #{encoder_decoder_forward.3} parent=47 // pred_region
          %p904 = scmp.lt.s32.totalorder %s35, 1
          %s905 = scalar_select %p904, %s35, 1
          %s906 = scalar_lea.vmem %s21, %s905
        $region120: #{encoder_decoder_forward.3} parent=47 // pred_fallthru
          _
        // Predicated region
        $region121: #{encoder_decoder_forward.3} parent=47 // pred_check
          %p907 = pneg %p607
        $region122: #{encoder_decoder_forward.3} parent=47 // pred_check_branch
          %909 = sbr.rel (%p907) target = $region124
        $region123: #{encoder_decoder_forward.3} parent=47 // pred_region
          %p910 = scmp.lt.s32.totalorder %s35, 1
          %s911 = scalar_select %p910, %s35, 1
          %s912 = smul.addr %s911, 8
          %s913 = smul.addr %s912, 4
          %s914 = scalar_lea.vmem %s22, %s913
        $region124: #{encoder_decoder_forward.3} parent=47 // pred_fallthru
          _
        // Predicated region
        $region125: #{encoder_decoder_forward.3} parent=47 // pred_check
          %p915 = pneg %p633
        $region126: #{encoder_decoder_forward.3} parent=47 // pred_check_branch
          %917 = sbr.rel (%p915) target = $region128
        $region127: #{encoder_decoder_forward.3} parent=47 // pred_region
          %p918 = scmp.lt.s32.totalorder %s35, 1
          %s919 = scalar_select %p918, %s35, 1
          %s920 = scalar_lea.vmem %s23, %s919
        $region128: #{encoder_decoder_forward.3} parent=47 // pred_fallthru
          _
      $region48: #{encoder_decoder_forward.3} parent=5 // pred_fallthru
        _
      %p921 = scmp.le.s32.totalorder 1, %s35
      %p922 = scmp.lt.s32.totalorder %s35, 3
      %p923 = pnand %p921, %p922
      %p924 = pneg %p923
      // Predicated region
      $region129: #{encoder_decoder_forward.3} parent=5 // pred_check
        _
      $region130: #{encoder_decoder_forward.3} parent=5 // pred_check_branch
        %926 = sbr.rel (%p923) target = $region132
      $region131: #{encoder_decoder_forward.3} parent=5 // pred_region
        %s927 = ssub.s32 %s35, 1
        %p928 = pneg %p56
        %p929 = pneg %p53
        %p930 = pneg %p77
        %p931 = pneg %p74
        %p932 = pneg %p98
        %p933 = pneg %p95
        %p934 = pneg %p119
        %p935 = pneg %p116
        %p936 = scmp.lt.s32.totalorder %s40, 1
        %s937 = scalar_select %p936, %s40, 1
        %s938 = scalar_lea.vmem %s4, %s937
        %p939 = pneg %p145
        %p940 = pneg %p142
        %p941 = scmp.lt.s32.totalorder %s40, 1
        %s942 = scalar_select %p941, %s40, 1
        %s943 = scalar_lea.vmem %s5, %s942
        %p944 = pneg %p171
        %p945 = pneg %p168
        %p946 = scmp.lt.s32.totalorder %s40, 1
        %s947 = scalar_select %p946, %s40, 1
        %s948 = smul.addr %s947, 4
        %s949 = smul.addr %s948, 4
        %s950 = scalar_lea.vmem %s6, %s949
        %p951 = pneg %p197
        %p952 = pneg %p194
        %p953 = scmp.lt.s32.totalorder %s40, 1
        %s954 = scalar_select %p953, %s40, 1
        %s955 = scalar_lea.vmem %s7, %s954
        %p956 = pneg %p223
        %p957 = pneg %p220
        %p958 = scmp.lt.s32.totalorder %s40, 1
        %s959 = scalar_select %p958, %s40, 1
        %s960 = smul.addr %s959, 4
        %s961 = smul.addr %s960, 4
        %s962 = scalar_lea.vmem %s8, %s961
        %p963 = pneg %p249
        %p964 = pneg %p246
        %p965 = scmp.lt.s32.totalorder %s40, 1
        %s966 = scalar_select %p965, %s40, 1
        %s967 = scalar_lea.vmem %s9, %s966
        %p968 = pneg %p275
        %p969 = pneg %p272
        %p970 = scmp.lt.s32.totalorder %s40, 1
        %s971 = scalar_select %p970, %s40, 1
        %s972 = scalar_lea.vmem %s10, %s971
        %p973 = pneg %p301
        %p974 = pneg %p298
        %p975 = scmp.lt.s32.totalorder %s40, 1
        %s976 = scalar_select %p975, %s40, 1
        %s977 = scalar_lea.vmem %s11, %s976
        %p978 = pneg %p327
        %p979 = pneg %p324
        %p980 = scmp.lt.s32.totalorder %s40, 1
        %s981 = scalar_select %p980, %s40, 1
        %s982 = smul.addr %s981, 4
        %s983 = smul.addr %s982, 4
        %s984 = scalar_lea.vmem %s12, %s983
        %p985 = pneg %p353
        %p986 = pneg %p350
        %p987 = scmp.lt.s32.totalorder %s40, 1
        %s988 = scalar_select %p987, %s40, 1
        %s989 = scalar_lea.vmem %s13, %s988
        %p990 = pneg %p379
        %p991 = pneg %p376
        %p992 = scmp.lt.s32.totalorder %s40, 1
        %s993 = scalar_select %p992, %s40, 1
        %s994 = smul.addr %s993, 4
        %s995 = smul.addr %s994, 4
        %s996 = scalar_lea.vmem %s14, %s995
        %p997 = pneg %p405
        %p998 = pneg %p402
        %p999 = scmp.lt.s32.totalorder %s40, 1
        %s1000 = scalar_select %p999, %s40, 1
        %s1001 = scalar_lea.vmem %s15, %s1000
        %p1002 = pneg %p431
        %p1003 = pneg %p428
        %p1004 = scmp.lt.s32.totalorder %s40, 1
        %s1005 = scalar_select %p1004, %s40, 1
        %s1006 = smul.addr %s1005, 4
        %s1007 = smul.addr %s1006, 4
        %s1008 = scalar_lea.vmem %s16, %s1007
        %p1009 = pneg %p457
        %p1010 = pneg %p454
        %p1011 = scmp.lt.s32.totalorder %s40, 1
        %s1012 = scalar_select %p1011, %s40, 1
        %s1013 = scalar_lea.vmem %s17, %s1012
        %p1014 = pneg %p483
        %p1015 = pneg %p480
        %p1016 = scmp.lt.s32.totalorder %s40, 1
        %s1017 = scalar_select %p1016, %s40, 1
        %s1018 = scalar_lea.vmem %s18, %s1017
        %p1019 = pneg %p509
        %p1020 = pneg %p506
        %p1021 = scmp.lt.s32.totalorder %s40, 1
        %s1022 = scalar_select %p1021, %s40, 1
        %s1023 = scalar_lea.vmem %s19, %s1022
        %p1024 = pneg %p535
        %p1025 = pneg %p532
        %p1026 = scmp.lt.s32.totalorder %s40, 1
        %s1027 = scalar_select %p1026, %s40, 1
        %s1028 = smul.addr %s1027, 4
        %s1029 = smul.addr %s1028, 4
        %s1030 = scalar_lea.vmem %s20, %s1029
        %p1031 = pneg %p561
        %p1032 = pneg %p558
        %p1033 = scmp.lt.s32.totalorder %s40, 1
        %s1034 = scalar_select %p1033, %s40, 1
        %s1035 = scalar_lea.vmem %s21, %s1034
        %p1036 = pneg %p587
        %p1037 = pneg %p584
        %p1038 = scmp.lt.s32.totalorder %s40, 1
        %s1039 = scalar_select %p1038, %s40, 1
        %s1040 = smul.addr %s1039, 8
        %s1041 = smul.addr %s1040, 4
        %s1042 = scalar_lea.vmem %s22, %s1041
        %p1043 = pneg %p613
        %p1044 = pneg %p610
        %p1045 = scmp.lt.s32.totalorder %s40, 1
        %s1046 = scalar_select %p1045, %s40, 1
        %s1047 = scalar_lea.vmem %s23, %s1046
        %p1048 = pneg %p639
        %p1049 = pneg %p636
        %p1050 = pneg %p660
        %p1051 = pneg %p657
        %p1052 = pneg %p681
        %p1053 = pneg %p678
        %p1054 = pneg %p702
        %p1055 = pneg %p699
        %p1056 = pneg %p723
        %p1057 = pneg %p720
        %p1058 = pneg %p744
        %p1059 = pneg %p741
        %p1060 = scmp.lt.s32.totalorder %s40, 1
        %s1061 = scalar_select %p1060, %s40, 1
        %s1062 = scalar_lea.vmem %s4, %s1061
        %p1063 = scmp.lt.s32.totalorder %s40, 1
        %s1064 = scalar_select %p1063, %s40, 1
        %s1065 = scalar_lea.vmem %s5, %s1064
        %p1066 = scmp.lt.s32.totalorder %s40, 1
        %s1067 = scalar_select %p1066, %s40, 1
        %s1068 = smul.addr %s1067, 4
        %s1069 = smul.addr %s1068, 4
        %s1070 = scalar_lea.vmem %s6, %s1069
        %p1071 = scmp.lt.s32.totalorder %s40, 1
        %s1072 = scalar_select %p1071, %s40, 1
        %s1073 = scalar_lea.vmem %s7, %s1072
        %p1074 = scmp.lt.s32.totalorder %s40, 1
        %s1075 = scalar_select %p1074, %s40, 1
        %s1076 = smul.addr %s1075, 4
        %s1077 = smul.addr %s1076, 4
        %s1078 = scalar_lea.vmem %s8, %s1077
        %p1079 = scmp.lt.s32.totalorder %s40, 1
        %s1080 = scalar_select %p1079, %s40, 1
        %s1081 = scalar_lea.vmem %s9, %s1080
        %p1082 = scmp.lt.s32.totalorder %s40, 1
        %s1083 = scalar_select %p1082, %s40, 1
        %s1084 = scalar_lea.vmem %s10, %s1083
        %p1085 = scmp.lt.s32.totalorder %s40, 1
        %s1086 = scalar_select %p1085, %s40, 1
        %s1087 = scalar_lea.vmem %s11, %s1086
        %p1088 = scmp.lt.s32.totalorder %s40, 1
        %s1089 = scalar_select %p1088, %s40, 1
        %s1090 = smul.addr %s1089, 4
        %s1091 = smul.addr %s1090, 4
        %s1092 = scalar_lea.vmem %s12, %s1091
        %p1093 = scmp.lt.s32.totalorder %s40, 1
        %s1094 = scalar_select %p1093, %s40, 1
        %s1095 = scalar_lea.vmem %s13, %s1094
        %p1096 = scmp.lt.s32.totalorder %s40, 1
        %s1097 = scalar_select %p1096, %s40, 1
        %s1098 = smul.addr %s1097, 4
        %s1099 = smul.addr %s1098, 4
        %s1100 = scalar_lea.vmem %s14, %s1099
        %p1101 = scmp.lt.s32.totalorder %s40, 1
        %s1102 = scalar_select %p1101, %s40, 1
        %s1103 = scalar_lea.vmem %s15, %s1102
        %p1104 = scmp.lt.s32.totalorder %s40, 1
        %s1105 = scalar_select %p1104, %s40, 1
        %s1106 = smul.addr %s1105, 4
        %s1107 = smul.addr %s1106, 4
        %s1108 = scalar_lea.vmem %s16, %s1107
        %p1109 = scmp.lt.s32.totalorder %s40, 1
        %s1110 = scalar_select %p1109, %s40, 1
        %s1111 = scalar_lea.vmem %s17, %s1110
        %p1112 = scmp.lt.s32.totalorder %s40, 1
        %s1113 = scalar_select %p1112, %s40, 1
        %s1114 = scalar_lea.vmem %s18, %s1113
        %p1115 = scmp.lt.s32.totalorder %s40, 1
        %s1116 = scalar_select %p1115, %s40, 1
        %s1117 = scalar_lea.vmem %s19, %s1116
        %p1118 = scmp.lt.s32.totalorder %s40, 1
        %s1119 = scalar_select %p1118, %s40, 1
        %s1120 = smul.addr %s1119, 4
        %s1121 = smul.addr %s1120, 4
        %s1122 = scalar_lea.vmem %s20, %s1121
        %p1123 = scmp.lt.s32.totalorder %s40, 1
        %s1124 = scalar_select %p1123, %s40, 1
        %s1125 = scalar_lea.vmem %s21, %s1124
        %p1126 = scmp.lt.s32.totalorder %s40, 1
        %s1127 = scalar_select %p1126, %s40, 1
        %s1128 = smul.addr %s1127, 8
        %s1129 = smul.addr %s1128, 4
        %s1130 = scalar_lea.vmem %s22, %s1129
        %p1131 = scmp.lt.s32.totalorder %s40, 1
        %s1132 = scalar_select %p1131, %s40, 1
        %s1133 = scalar_lea.vmem %s23, %s1132
        %p1135 = scmp.eq.s32.totalorder %s40, 0
        // Predicated region
        $region133: #{encoder_decoder_forward.3} parent=131 // pred_check
          %p1136 = pneg %p1135
        $region134: #{encoder_decoder_forward.3} parent=131 // pred_check_branch
          %1138 = sbr.rel (%p1136) target = $region136
        $region135: #{encoder_decoder_forward.3} parent=131 // pred_region
          %v1139 = vld [vmem:[%s0] sm:$0xff]
          %v1140 = vld [vmem:[%s0 + $0x8] sm:$0xff]
          %vm1141 = vcmask 261120
          %1142 = vst.msk [vmem:[#allocation2] sm:$0xff] %vm1141, %v1139
          %1143 = vst.msk [vmem:[#allocation2 + $0x8] sm:$0xff] %vm1141, %v1140
        $region136: #{encoder_decoder_forward.3} parent=131 // pred_fallthru
          _
        %v1144 = vld [vmem:[#allocation2] sm:$0xff]
        %v1145 = vld [vmem:[#allocation2 + $0x8] sm:$0xff]
        %v1146 = vld [vmem:[%s1] sm:$0xff]
        %v1147 = vld [vmem:[%s1 + $0x8] sm:$0xff]
        %v1148 = vld [vmem:[%s2] sm:$0xff]
        %v1149 = vld [vmem:[%s2 + $0x8] sm:$0xff]
        %v1150 = vsub.f32 %v1148, 1.0
        %v1151 = vsub.f32 %v1149, 1.0
        %v1152 = vmul.f32 %v1150, 1e+09
        %v1153 = vmul.f32 %v1151, 1e+09
        %v1154 = vld [vmem:[%s3] sm:$0x3]
        %v1155 = vsub.f32 %v1154, 1.0
        %v1156 = vmul.f32 %v1155, 1e+09
        %v1159 = vunpack.c.l.s4 1966171168
        %v1160 = vunpack.c.0.s8 %v1159
        %v1161 = vlaneseq
        %v1162 = vshrl.u32 %v1161, 7
        %v1163 = vsub.s32 %v1160, %v1162
        %v1164 = vrot.slane %v1156, %v1163
        %v1165 = vcombine.high %v1164, %v1164
        %v1167 = vunpack.c.l.s4 1966171168
        %v1168 = vunpack.c.0.s8 %v1167
        %v1169 = vlaneseq
        %v1170 = vshrl.u32 %v1169, 7
        %v1171 = vsub.s32 %v1168, %v1170
        %v1172 = vrot.slane %v1164, %v1171
        %v1174 = vunpack.c.l.s4 1966171168
        %v1175 = vunpack.c.0.s8 %v1174
        %v1176 = vlaneseq
        %v1177 = vshrl.u32 %v1176, 7
        %v1178 = vsub.s32 %v1175, %v1177
        %v1179 = vrot.slane %v1165, %v1178
        %v1180 = vlaneseq
        %v1181 = vshrl.u32 %v1180, 7
        %v1182 = vsub.s32 0, %v1181
        %v1183 = vrot.slane %v1172, %v1182
        %v1184 = vlaneseq
        %v1185 = vshrl.u32 %v1184, 7
        %v1186 = vsub.s32 0, %v1185
        %v1187 = vrot.slane %v1179, %v1186
        %v1190 = vld [vmem:[%s1062] sm:$0x1]
        %v1191 = vld [vmem:[%s1065] sm:$0x1]
        %vm1192 = vcmask 261120
        %v1193 = vsel %vm1192, %v1144, 0.0
        %1194 = vadd.xlane.f32.xlu0 %v1193
        %v1195 = vpop.xlane.xlu0 %1194
        %v1196 = vsel %vm1192, %v1145, 0.0
        %1197 = vadd.xlane.f32.xlu0 %v1196
        %v1198 = vpop.xlane.xlu0 %1197
        %v1199 = vrcp.pop 32.0
        %v1200 = vmul.f32 %v1195, %v1199
        %v1201 = vmul.f32 %v1198, %v1199
        %v1202 = vsub.f32 %v1144, %v1200
        %v1203 = vsub.f32 %v1145, %v1201
        %v1204 = vmul.f32 %v1202, %v1202
        %v1205 = vmul.f32 %v1203, %v1203
        %v1206 = vsel %vm1192, %v1204, 0.0
        %1207 = vadd.xlane.f32.xlu0 %v1206
        %v1208 = vpop.xlane.xlu0 %1207
        %v1209 = vsel %vm1192, %v1205, 0.0
        %1210 = vadd.xlane.f32.xlu0 %v1209
        %v1211 = vpop.xlane.xlu0 %1210
        %v1212 = vmul.f32 %v1208, %v1199
        %v1213 = vmul.f32 %v1211, %v1199
        %v1214 = vadd.f32 %v1212, 1e-06
        %v1215 = vadd.f32 %v1213, 1e-06
        %v1216 = vrsqrt.pop %v1214
        %v1217 = vrsqrt.pop %v1215
        %v1218 = vmul.f32 %v1202, %v1216
        %v1219 = vmul.f32 %v1203, %v1217
        %v1221 = vlaneseq
        %v1222 = vshrl.u32 %v1221, 7
        %v1223 = vsub.s32 0, %v1222
        %v1224 = vrot.slane %v1190, %v1223
        %v1226 = vmul.f32 %v1218, %v1224
        %v1227 = vmul.f32 %v1219, %v1224
        %v1229 = vlaneseq
        %v1230 = vshrl.u32 %v1229, 7
        %v1231 = vsub.s32 0, %v1230
        %v1232 = vrot.slane %v1191, %v1231
        %v1234 = vadd.f32 %v1226, %v1232
        %v1235 = vadd.f32 %v1227, %v1232
        %v1236 = vld [vmem:[%s1070] sm:$0xf]
        %v1237 = vld [vmem:[%s1070 + $0x4] sm:$0xf]
        %v1238 = vld [vmem:[%s1070 + $0x8] sm:$0xf]
        %v1239 = vld [vmem:[%s1070 + $0xc] sm:$0xf]
        %v1240 = vpack.c.bf16 %v1235, %v1234
        %v1241 = vld [vmem:[%s1073] sm:$0x1]
        %v1243 = vlaneseq
        %v1244 = vshrl.u32 %v1243, 7
        %v1245 = vsub.s32 0, %v1244
        %v1246 = vrot.slane %v1241, %v1245
        %v1252 = vunpack.c.l.b16 %v1236
        %v1253 = vunpack.c.l.b16 %v1237
        %v1254 = vunpack.c.l.b16 %v1238
        %v1255 = vunpack.c.l.b16 %v1239
        %v1256 = vpack.c.b16 %v1253, %v1252
        %v1257 = vpack.c.b16 %v1255, %v1254
        %v1261 = vsel %vm1192, %v1240, 0
        %1263 = vmatprep.subr.bf16.mxu0 0
        %1264 = vmatpush1.bf16.msra.mxu0 %v1256
        %1265 = vmatprep.subr.bf16.mxu0 0
        %1266 = vmatpush1.bf16.msra.mxu0 %v1257
        %1267 = vmatprep.subr.bf16.mxu0 0
        %1268 = vmatpush1.bf16.msra.mxu0 0
        %1269 = vmatprep.subr.bf16.mxu0 0
        %1270 = vmatpush1.bf16.msra.mxu0 0
        %1271 = vmatprep.subr.bf16.mxu0 0
        %1272 = vmatpush1.bf16.msra.mxu0 0
        %1273 = vmatprep.subr.bf16.mxu0 0
        %1274 = vmatpush1.bf16.msra.mxu0 0
        %1275 = vmatprep.subr.bf16.mxu0 0
        %1276 = vmatpush1.bf16.msra.mxu0 0
        %1277 = vmatprep.subr.bf16.mxu0 0
        %1278 = vmatpush1.bf16.msra.mxu0 0
        %1279 = vmatprep.subr.bf16.mxu0 0
        %1280 = vmatpush1.bf16.msra.mxu0 0
        %1281 = vmatprep.subr.bf16.mxu0 0
        %1282 = vmatpush1.bf16.msra.mxu0 0
        %1283 = vmatprep.subr.bf16.mxu0 0
        %1284 = vmatpush1.bf16.msra.mxu0 0
        %1285 = vmatprep.subr.bf16.mxu0 0
        %1286 = vmatpush1.bf16.msra.mxu0 0
        %1287 = vmatprep.subr.bf16.mxu0 0
        %1288 = vmatpush1.bf16.msra.mxu0 0
        %1289 = vmatprep.subr.bf16.mxu0 0
        %1290 = vmatpush1.bf16.msra.mxu0 0
        %1291 = vmatprep.subr.bf16.mxu0 0
        %1292 = vmatpush1.bf16.msra.mxu0 0
        %1293 = vmatprep.subr.bf16.mxu0 0
        %1294 = vmatpush1.bf16.msra.mxu0 0
        %1295 = vmatprep.mubr.bf16.mxu0 0
        %1296 = vmatmul.mubr.bf16.gmra.mrb[0].mxu0 %v1261
        %v1297 = vpop.f32.mrb[0].mxu0
        %v1298 = vadd.f32 %v1246, %v1297
        %v1299 = vpop.f32.mrb[0].mxu0
        %v1300 = vpop.f32.mrb[0].mxu0
        %v1301 = vadd.f32 %v1246, %v1300
        %v1302 = vpop.f32.mrb[0].mxu0
        %1303 = vdwg.mxu0
        %v1304 = vld [vmem:[%s1078] sm:$0xf]
        %v1305 = vld [vmem:[%s1078 + $0x4] sm:$0xf]
        %v1306 = vld [vmem:[%s1078 + $0x8] sm:$0xf]
        %v1307 = vld [vmem:[%s1078 + $0xc] sm:$0xf]
        %v1308 = vld [vmem:[%s1081] sm:$0x1]
        %v1309 = vmul.f32 %v1298, 0.35355338
        %v1310 = vmul.f32 %v1301, 0.35355338
        %v1311 = vpack.c.bf16 %v1309, %v1309
        %v1312 = vpack.c.bf16 %v1310, %v1310
        %v1313 = vpack.c.bf16 %v1298, %v1298
        %v1314 = vpack.c.bf16 %v1301, %v1301
        %1316 = vrot.lane.b32.xlu0 %v1313, 96
        %v1317 = vpop.permute.xlu0 %1316
        %vm1318 = vcmask 64512
        %v1320 = vsel %vm1318, %v1311, 0
        %v1323 = vsel %vm1318, %v1317, 0
        %1325 = vmatprep.subr.bf16.mxu0 0
        %1326 = vmatpush1.bf16.xpose.msra.mxu0 %v1323
        %1327 = vmatprep.subr.bf16.mxu0 0
        %1328 = vmatpush1.bf16.xpose.msra.mxu0 0
        %1329 = vmatprep.subr.bf16.mxu0 0
        %1330 = vmatpush1.bf16.xpose.msra.mxu0 0
        %1331 = vmatprep.subr.bf16.mxu0 0
        %1332 = vmatpush1.bf16.xpose.msra.mxu0 0
        %1333 = vmatprep.subr.bf16.mxu0 0
        %1334 = vmatpush1.bf16.xpose.msra.mxu0 0
        %1335 = vmatprep.subr.bf16.mxu0 0
        %1336 = vmatpush1.bf16.xpose.msra.mxu0 0
        %1337 = vmatprep.subr.bf16.mxu0 0
        %1338 = vmatpush1.bf16.xpose.msra.mxu0 0
        %1339 = vmatprep.subr.bf16.mxu0 0
        %1340 = vmatpush1.bf16.xpose.msra.mxu0 0
        %1341 = vmatprep.subr.bf16.mxu0 0
        %1342 = vmatpush1.bf16.xpose.msra.mxu0 0
        %1343 = vmatprep.subr.bf16.mxu0 0
        %1344 = vmatpush1.bf16.xpose.msra.mxu0 0
        %1345 = vmatprep.subr.bf16.mxu0 0
        %1346 = vmatpush1.bf16.xpose.msra.mxu0 0
        %1347 = vmatprep.subr.bf16.mxu0 0
        %1348 = vmatpush1.bf16.xpose.msra.mxu0 0
        %1349 = vmatprep.subr.bf16.mxu0 0
        %1350 = vmatpush1.bf16.xpose.msra.mxu0 0
        %1351 = vmatprep.subr.bf16.mxu0 0
        %1352 = vmatpush1.bf16.xpose.msra.mxu0 0
        %1353 = vmatprep.subr.bf16.mxu0 0
        %1354 = vmatpush1.bf16.xpose.msra.mxu0 0
        %1355 = vmatprep.subr.bf16.mxu0 0
        %1356 = vmatpush1.bf16.xpose.msra.mxu0 0
        %1357 = vmatprep.mubr.bf16.mxu0 0
        %1358 = vmatmul.mubr.bf16.gmra.mrb[0].mxu0 %v1320
        %v1359 = vpop.f32.mrb[0].mxu0
        %v1360 = vadd.f32 %v1152, %v1359
        %v1361 = vpop.f32.mrb[0].mxu0
        %v1362 = vpop.f32.mrb[0].mxu0
        %v1363 = vpop.f32.mrb[0].mxu0
        %1364 = vdwg.mxu0
        %1366 = vrot.lane.b32.xlu0 %v1314, 96
        %v1367 = vpop.permute.xlu0 %1366
        %v1369 = vsel %vm1318, %v1312, 0
        %v1372 = vsel %vm1318, %v1367, 0
        %1374 = vmatprep.subr.bf16.mxu0 0
        %1375 = vmatpush1.bf16.xpose.msra.mxu0 %v1372
        %1376 = vmatprep.subr.bf16.mxu0 0
        %1377 = vmatpush1.bf16.xpose.msra.mxu0 0
        %1378 = vmatprep.subr.bf16.mxu0 0
        %1379 = vmatpush1.bf16.xpose.msra.mxu0 0
        %1380 = vmatprep.subr.bf16.mxu0 0
        %1381 = vmatpush1.bf16.xpose.msra.mxu0 0
        %1382 = vmatprep.subr.bf16.mxu0 0
        %1383 = vmatpush1.bf16.xpose.msra.mxu0 0
        %1384 = vmatprep.subr.bf16.mxu0 0
        %1385 = vmatpush1.bf16.xpose.msra.mxu0 0
        %1386 = vmatprep.subr.bf16.mxu0 0
        %1387 = vmatpush1.bf16.xpose.msra.mxu0 0
        %1388 = vmatprep.subr.bf16.mxu0 0
        %1389 = vmatpush1.bf16.xpose.msra.mxu0 0
        %1390 = vmatprep.subr.bf16.mxu0 0
        %1391 = vmatpush1.bf16.xpose.msra.mxu0 0
        %1392 = vmatprep.subr.bf16.mxu0 0
        %1393 = vmatpush1.bf16.xpose.msra.mxu0 0
        %1394 = vmatprep.subr.bf16.mxu0 0
        %1395 = vmatpush1.bf16.xpose.msra.mxu0 0
        %1396 = vmatprep.subr.bf16.mxu0 0
        %1397 = vmatpush1.bf16.xpose.msra.mxu0 0
        %1398 = vmatprep.subr.bf16.mxu0 0
        %1399 = vmatpush1.bf16.xpose.msra.mxu0 0
        %1400 = vmatprep.subr.bf16.mxu0 0
        %1401 = vmatpush1.bf16.xpose.msra.mxu0 0
        %1402 = vmatprep.subr.bf16.mxu0 0
        %1403 = vmatpush1.bf16.xpose.msra.mxu0 0
        %1404 = vmatprep.subr.bf16.mxu0 0
        %1405 = vmatpush1.bf16.xpose.msra.mxu0 0
        %1406 = vmatprep.mubr.bf16.mxu0 0
        %1407 = vmatmul.mubr.bf16.gmra.mrb[0].mxu0 %v1369
        %v1408 = vpop.f32.mrb[0].mxu0
        %v1409 = vadd.f32 %v1153, %v1408
        %v1410 = vpop.f32.mrb[0].mxu0
        %v1411 = vpop.f32.mrb[0].mxu0
        %v1412 = vpop.f32.mrb[0].mxu0
        %1413 = vdwg.mxu0
        %v1414 = vsel %vm1318, %v1360, -inf
        %1415 = vmax.xlane.f32.xlu0 %v1414
        %v1416 = vpop.xlane.xlu0 %1415
        %v1417 = vsel %vm1318, %v1409, -inf
        %1418 = vmax.xlane.f32.xlu0 %v1417
        %v1419 = vpop.xlane.xlu0 %1418
        %v1420 = vsub.f32 %v1360, %v1416
        %v1421 = vsub.f32 %v1409, %v1419
        %v1422 = vmul.f32 %v1420, 1.442695
        %v1423 = vpow.pop %v1422
        %v1424 = vmul.f32 %v1421, 1.442695
        %v1425 = vpow.pop %v1424
        %v1426 = vsel %vm1318, %v1423, 0.0
        %1427 = vadd.xlane.f32.xlu0 %v1426
        %v1428 = vpop.xlane.xlu0 %1427
        %v1429 = vsel %vm1318, %v1425, 0.0
        %1430 = vadd.xlane.f32.xlu0 %v1429
        %v1431 = vpop.xlane.xlu0 %1430
        %v1432 = vrcp.pop %v1428
        %v1433 = vrcp.pop %v1431
        %v1434 = vmul.f32 %v1423, %v1432
        %v1435 = vmul.f32 %v1425, %v1433
        %v1436 = vpack.c.bf16 %v1434, %v1434
        %v1437 = vpack.c.bf16 %v1435, %v1435
        %1438 = vrot.lane.b32.xlu0 %v1313, 64
        %v1439 = vpop.permute.xlu0 %1438
        %v1441 = vsel %vm1318, %v1436, 0
        %vm1443 = vcmask 1043456
        %v1445 = vsel %vm1443, %v1439, 0
        %1447 = vmatprep.subr.bf16.mxu0 0
        %1448 = vmatpush1.bf16.msra.mxu0 %v1445
        %1449 = vmatprep.subr.bf16.mxu0 0
        %1450 = vmatpush1.bf16.msra.mxu0 0
        %1451 = vmatprep.subr.bf16.mxu0 0
        %1452 = vmatpush1.bf16.msra.mxu0 0
        %1453 = vmatprep.subr.bf16.mxu0 0
        %1454 = vmatpush1.bf16.msra.mxu0 0
        %1455 = vmatprep.subr.bf16.mxu0 0
        %1456 = vmatpush1.bf16.msra.mxu0 0
        %1457 = vmatprep.subr.bf16.mxu0 0
        %1458 = vmatpush1.bf16.msra.mxu0 0
        %1459 = vmatprep.subr.bf16.mxu0 0
        %1460 = vmatpush1.bf16.msra.mxu0 0
        %1461 = vmatprep.subr.bf16.mxu0 0
        %1462 = vmatpush1.bf16.msra.mxu0 0
        %1463 = vmatprep.subr.bf16.mxu0 0
        %1464 = vmatpush1.bf16.msra.mxu0 0
        %1465 = vmatprep.subr.bf16.mxu0 0
        %1466 = vmatpush1.bf16.msra.mxu0 0
        %1467 = vmatprep.subr.bf16.mxu0 0
        %1468 = vmatpush1.bf16.msra.mxu0 0
        %1469 = vmatprep.subr.bf16.mxu0 0
        %1470 = vmatpush1.bf16.msra.mxu0 0
        %1471 = vmatprep.subr.bf16.mxu0 0
        %1472 = vmatpush1.bf16.msra.mxu0 0
        %1473 = vmatprep.subr.bf16.mxu0 0
        %1474 = vmatpush1.bf16.msra.mxu0 0
        %1475 = vmatprep.subr.bf16.mxu0 0
        %1476 = vmatpush1.bf16.msra.mxu0 0
        %1477 = vmatprep.subr.bf16.mxu0 0
        %1478 = vmatpush1.bf16.msra.mxu0 0
        %1479 = vmatprep.mubr.bf16.mxu0 0
        %1480 = vmatmul.mubr.bf16.gmra.mrb[0].mxu0 %v1441
        %v1481 = vpop.f32.mrb[0].mxu0
        %v1482 = vadd.f32 0.0, %v1481
        %v1483 = vpop.f32.mrb[0].mxu0
        %v1484 = vpop.f32.mrb[0].mxu0
        %v1485 = vpop.f32.mrb[0].mxu0
        %1486 = vdwg.mxu0
        %1487 = vrot.lane.b32.xlu0 %v1314, 64
        %v1488 = vpop.permute.xlu0 %1487
        %v1490 = vsel %vm1318, %v1437, 0
        %v1493 = vsel %vm1443, %v1488, 0
        %1495 = vmatprep.subr.bf16.mxu0 0
        %1496 = vmatpush1.bf16.msra.mxu0 %v1493
        %1497 = vmatprep.subr.bf16.mxu0 0
        %1498 = vmatpush1.bf16.msra.mxu0 0
        %1499 = vmatprep.subr.bf16.mxu0 0
        %1500 = vmatpush1.bf16.msra.mxu0 0
        %1501 = vmatprep.subr.bf16.mxu0 0
        %1502 = vmatpush1.bf16.msra.mxu0 0
        %1503 = vmatprep.subr.bf16.mxu0 0
        %1504 = vmatpush1.bf16.msra.mxu0 0
        %1505 = vmatprep.subr.bf16.mxu0 0
        %1506 = vmatpush1.bf16.msra.mxu0 0
        %1507 = vmatprep.subr.bf16.mxu0 0
        %1508 = vmatpush1.bf16.msra.mxu0 0
        %1509 = vmatprep.subr.bf16.mxu0 0
        %1510 = vmatpush1.bf16.msra.mxu0 0
        %1511 = vmatprep.subr.bf16.mxu0 0
        %1512 = vmatpush1.bf16.msra.mxu0 0
        %1513 = vmatprep.subr.bf16.mxu0 0
        %1514 = vmatpush1.bf16.msra.mxu0 0
        %1515 = vmatprep.subr.bf16.mxu0 0
        %1516 = vmatpush1.bf16.msra.mxu0 0
        %1517 = vmatprep.subr.bf16.mxu0 0
        %1518 = vmatpush1.bf16.msra.mxu0 0
        %1519 = vmatprep.subr.bf16.mxu0 0
        %1520 = vmatpush1.bf16.msra.mxu0 0
        %1521 = vmatprep.subr.bf16.mxu0 0
        %1522 = vmatpush1.bf16.msra.mxu0 0
        %1523 = vmatprep.subr.bf16.mxu0 0
        %1524 = vmatpush1.bf16.msra.mxu0 0
        %1525 = vmatprep.subr.bf16.mxu0 0
        %1526 = vmatpush1.bf16.msra.mxu0 0
        %1527 = vmatprep.mubr.bf16.mxu0 0
        %1528 = vmatmul.mubr.bf16.gmra.mrb[0].mxu0 %v1490
        %v1529 = vpop.f32.mrb[0].mxu0
        %v1530 = vadd.f32 0.0, %v1529
        %v1531 = vpop.f32.mrb[0].mxu0
        %v1532 = vpop.f32.mrb[0].mxu0
        %v1533 = vpop.f32.mrb[0].mxu0
        %1534 = vdwg.mxu0
        %1536 = vrot.lane.b32.xlu0 %v1311, 120
        %v1537 = vpop.permute.xlu0 %1536
        %1538 = vrot.lane.b32.xlu0 %v1313, 88
        %v1539 = vpop.permute.xlu0 %1538
        %v1541 = vsel %vm1318, %v1537, 0
        %v1544 = vsel %vm1318, %v1539, 0
        %1546 = vmatprep.subr.bf16.mxu0 0
        %1547 = vmatpush1.bf16.xpose.msra.mxu0 %v1544
        %1548 = vmatprep.subr.bf16.mxu0 0
        %1549 = vmatpush1.bf16.xpose.msra.mxu0 0
        %1550 = vmatprep.subr.bf16.mxu0 0
        %1551 = vmatpush1.bf16.xpose.msra.mxu0 0
        %1552 = vmatprep.subr.bf16.mxu0 0
        %1553 = vmatpush1.bf16.xpose.msra.mxu0 0
        %1554 = vmatprep.subr.bf16.mxu0 0
        %1555 = vmatpush1.bf16.xpose.msra.mxu0 0
        %1556 = vmatprep.subr.bf16.mxu0 0
        %1557 = vmatpush1.bf16.xpose.msra.mxu0 0
        %1558 = vmatprep.subr.bf16.mxu0 0
        %1559 = vmatpush1.bf16.xpose.msra.mxu0 0
        %1560 = vmatprep.subr.bf16.mxu0 0
        %1561 = vmatpush1.bf16.xpose.msra.mxu0 0
        %1562 = vmatprep.subr.bf16.mxu0 0
        %1563 = vmatpush1.bf16.xpose.msra.mxu0 0
        %1564 = vmatprep.subr.bf16.mxu0 0
        %1565 = vmatpush1.bf16.xpose.msra.mxu0 0
        %1566 = vmatprep.subr.bf16.mxu0 0
        %1567 = vmatpush1.bf16.xpose.msra.mxu0 0
        %1568 = vmatprep.subr.bf16.mxu0 0
        %1569 = vmatpush1.bf16.xpose.msra.mxu0 0
        %1570 = vmatprep.subr.bf16.mxu0 0
        %1571 = vmatpush1.bf16.xpose.msra.mxu0 0
        %1572 = vmatprep.subr.bf16.mxu0 0
        %1573 = vmatpush1.bf16.xpose.msra.mxu0 0
        %1574 = vmatprep.subr.bf16.mxu0 0
        %1575 = vmatpush1.bf16.xpose.msra.mxu0 0
        %1576 = vmatprep.subr.bf16.mxu0 0
        %1577 = vmatpush1.bf16.xpose.msra.mxu0 0
        %1578 = vmatprep.mubr.bf16.mxu0 0
        %1579 = vmatmul.mubr.bf16.gmra.mrb[0].mxu0 %v1541
        %v1580 = vpop.f32.mrb[0].mxu0
        %v1581 = vadd.f32 %v1152, %v1580
        %v1582 = vpop.f32.mrb[0].mxu0
        %v1583 = vpop.f32.mrb[0].mxu0
        %v1584 = vpop.f32.mrb[0].mxu0
        %1585 = vdwg.mxu0
        %1587 = vrot.lane.b32.xlu0 %v1312, 120
        %v1588 = vpop.permute.xlu0 %1587
        %1589 = vrot.lane.b32.xlu0 %v1314, 88
        %v1590 = vpop.permute.xlu0 %1589
        %v1592 = vsel %vm1318, %v1588, 0
        %v1595 = vsel %vm1318, %v1590, 0
        %1597 = vmatprep.subr.bf16.mxu0 0
        %1598 = vmatpush1.bf16.xpose.msra.mxu0 %v1595
        %1599 = vmatprep.subr.bf16.mxu0 0
        %1600 = vmatpush1.bf16.xpose.msra.mxu0 0
        %1601 = vmatprep.subr.bf16.mxu0 0
        %1602 = vmatpush1.bf16.xpose.msra.mxu0 0
        %1603 = vmatprep.subr.bf16.mxu0 0
        %1604 = vmatpush1.bf16.xpose.msra.mxu0 0
        %1605 = vmatprep.subr.bf16.mxu0 0
        %1606 = vmatpush1.bf16.xpose.msra.mxu0 0
        %1607 = vmatprep.subr.bf16.mxu0 0
        %1608 = vmatpush1.bf16.xpose.msra.mxu0 0
        %1609 = vmatprep.subr.bf16.mxu0 0
        %1610 = vmatpush1.bf16.xpose.msra.mxu0 0
        %1611 = vmatprep.subr.bf16.mxu0 0
        %1612 = vmatpush1.bf16.xpose.msra.mxu0 0
        %1613 = vmatprep.subr.bf16.mxu0 0
        %1614 = vmatpush1.bf16.xpose.msra.mxu0 0
        %1615 = vmatprep.subr.bf16.mxu0 0
        %1616 = vmatpush1.bf16.xpose.msra.mxu0 0
        %1617 = vmatprep.subr.bf16.mxu0 0
        %1618 = vmatpush1.bf16.xpose.msra.mxu0 0
        %1619 = vmatprep.subr.bf16.mxu0 0
        %1620 = vmatpush1.bf16.xpose.msra.mxu0 0
        %1621 = vmatprep.subr.bf16.mxu0 0
        %1622 = vmatpush1.bf16.xpose.msra.mxu0 0
        %1623 = vmatprep.subr.bf16.mxu0 0
        %1624 = vmatpush1.bf16.xpose.msra.mxu0 0
        %1625 = vmatprep.subr.bf16.mxu0 0
        %1626 = vmatpush1.bf16.xpose.msra.mxu0 0
        %1627 = vmatprep.subr.bf16.mxu0 0
        %1628 = vmatpush1.bf16.xpose.msra.mxu0 0
        %1629 = vmatprep.mubr.bf16.mxu0 0
        %1630 = vmatmul.mubr.bf16.gmra.mrb[0].mxu0 %v1592
        %v1631 = vpop.f32.mrb[0].mxu0
        %v1632 = vadd.f32 %v1153, %v1631
        %v1633 = vpop.f32.mrb[0].mxu0
        %v1634 = vpop.f32.mrb[0].mxu0
        %v1635 = vpop.f32.mrb[0].mxu0
        %1636 = vdwg.mxu0
        %v1637 = vsel %vm1318, %v1581, -inf
        %1638 = vmax.xlane.f32.xlu0 %v1637
        %v1639 = vpop.xlane.xlu0 %1638
        %v1640 = vsel %vm1318, %v1632, -inf
        %1641 = vmax.xlane.f32.xlu0 %v1640
        %v1642 = vpop.xlane.xlu0 %1641
        %v1643 = vsub.f32 %v1581, %v1639
        %v1644 = vsub.f32 %v1632, %v1642
        %v1645 = vmul.f32 %v1643, 1.442695
        %v1646 = vpow.pop %v1645
        %v1647 = vmul.f32 %v1644, 1.442695
        %v1648 = vpow.pop %v1647
        %v1649 = vsel %vm1318, %v1646, 0.0
        %1650 = vadd.xlane.f32.xlu0 %v1649
        %v1651 = vpop.xlane.xlu0 %1650
        %v1652 = vsel %vm1318, %v1648, 0.0
        %1653 = vadd.xlane.f32.xlu0 %v1652
        %v1654 = vpop.xlane.xlu0 %1653
        %v1655 = vrcp.pop %v1651
        %v1656 = vrcp.pop %v1654
        %v1657 = vmul.f32 %v1646, %v1655
        %v1658 = vmul.f32 %v1648, %v1656
        %v1659 = vpack.c.bf16 %v1657, %v1657
        %v1660 = vpack.c.bf16 %v1658, %v1658
        %1661 = vrot.lane.b32.xlu0 %v1313, 56
        %v1662 = vpop.permute.xlu0 %1661
        %v1664 = vsel %vm1318, %v1659, 0
        %v1667 = vsel %vm1443, %v1662, 0
        %1669 = vmatprep.subr.bf16.mxu0 0
        %1670 = vmatpush1.bf16.msra.mxu0 %v1667
        %1671 = vmatprep.subr.bf16.mxu0 0
        %1672 = vmatpush1.bf16.msra.mxu0 0
        %1673 = vmatprep.subr.bf16.mxu0 0
        %1674 = vmatpush1.bf16.msra.mxu0 0
        %1675 = vmatprep.subr.bf16.mxu0 0
        %1676 = vmatpush1.bf16.msra.mxu0 0
        %1677 = vmatprep.subr.bf16.mxu0 0
        %1678 = vmatpush1.bf16.msra.mxu0 0
        %1679 = vmatprep.subr.bf16.mxu0 0
        %1680 = vmatpush1.bf16.msra.mxu0 0
        %1681 = vmatprep.subr.bf16.mxu0 0
        %1682 = vmatpush1.bf16.msra.mxu0 0
        %1683 = vmatprep.subr.bf16.mxu0 0
        %1684 = vmatpush1.bf16.msra.mxu0 0
        %1685 = vmatprep.subr.bf16.mxu0 0
        %1686 = vmatpush1.bf16.msra.mxu0 0
        %1687 = vmatprep.subr.bf16.mxu0 0
        %1688 = vmatpush1.bf16.msra.mxu0 0
        %1689 = vmatprep.subr.bf16.mxu0 0
        %1690 = vmatpush1.bf16.msra.mxu0 0
        %1691 = vmatprep.subr.bf16.mxu0 0
        %1692 = vmatpush1.bf16.msra.mxu0 0
        %1693 = vmatprep.subr.bf16.mxu0 0
        %1694 = vmatpush1.bf16.msra.mxu0 0
        %1695 = vmatprep.subr.bf16.mxu0 0
        %1696 = vmatpush1.bf16.msra.mxu0 0
        %1697 = vmatprep.subr.bf16.mxu0 0
        %1698 = vmatpush1.bf16.msra.mxu0 0
        %1699 = vmatprep.subr.bf16.mxu0 0
        %1700 = vmatpush1.bf16.msra.mxu0 0
        %1701 = vmatprep.mubr.bf16.mxu0 0
        %1702 = vmatmul.mubr.bf16.gmra.mrb[0].mxu0 %v1664
        %v1703 = vpop.f32.mrb[0].mxu0
        %v1704 = vadd.f32 0.0, %v1703
        %v1705 = vpop.f32.mrb[0].mxu0
        %v1706 = vpop.f32.mrb[0].mxu0
        %v1707 = vpop.f32.mrb[0].mxu0
        %1708 = vdwg.mxu0
        %1709 = vrot.lane.b32.xlu0 %v1314, 56
        %v1710 = vpop.permute.xlu0 %1709
        %v1712 = vsel %vm1318, %v1660, 0
        %v1715 = vsel %vm1443, %v1710, 0
        %1717 = vmatprep.subr.bf16.mxu0 0
        %1718 = vmatpush1.bf16.msra.mxu0 %v1715
        %1719 = vmatprep.subr.bf16.mxu0 0
        %1720 = vmatpush1.bf16.msra.mxu0 0
        %1721 = vmatprep.subr.bf16.mxu0 0
        %1722 = vmatpush1.bf16.msra.mxu0 0
        %1723 = vmatprep.subr.bf16.mxu0 0
        %1724 = vmatpush1.bf16.msra.mxu0 0
        %1725 = vmatprep.subr.bf16.mxu0 0
        %1726 = vmatpush1.bf16.msra.mxu0 0
        %1727 = vmatprep.subr.bf16.mxu0 0
        %1728 = vmatpush1.bf16.msra.mxu0 0
        %1729 = vmatprep.subr.bf16.mxu0 0
        %1730 = vmatpush1.bf16.msra.mxu0 0
        %1731 = vmatprep.subr.bf16.mxu0 0
        %1732 = vmatpush1.bf16.msra.mxu0 0
        %1733 = vmatprep.subr.bf16.mxu0 0
        %1734 = vmatpush1.bf16.msra.mxu0 0
        %1735 = vmatprep.subr.bf16.mxu0 0
        %1736 = vmatpush1.bf16.msra.mxu0 0
        %1737 = vmatprep.subr.bf16.mxu0 0
        %1738 = vmatpush1.bf16.msra.mxu0 0
        %1739 = vmatprep.subr.bf16.mxu0 0
        %1740 = vmatpush1.bf16.msra.mxu0 0
        %1741 = vmatprep.subr.bf16.mxu0 0
        %1742 = vmatpush1.bf16.msra.mxu0 0
        %1743 = vmatprep.subr.bf16.mxu0 0
        %1744 = vmatpush1.bf16.msra.mxu0 0
        %1745 = vmatprep.subr.bf16.mxu0 0
        %1746 = vmatpush1.bf16.msra.mxu0 0
        %1747 = vmatprep.subr.bf16.mxu0 0
        %1748 = vmatpush1.bf16.msra.mxu0 0
        %1749 = vmatprep.mubr.bf16.mxu0 0
        %1750 = vmatmul.mubr.bf16.gmra.mrb[0].mxu0 %v1712
        %v1751 = vpop.f32.mrb[0].mxu0
        %v1752 = vadd.f32 0.0, %v1751
        %v1753 = vpop.f32.mrb[0].mxu0
        %v1754 = vpop.f32.mrb[0].mxu0
        %v1755 = vpop.f32.mrb[0].mxu0
        %1756 = vdwg.mxu0
        %1757 = vrot.lane.b32.xlu0 %v1311, 112
        %v1758 = vpop.permute.xlu0 %1757
        %1759 = vrot.lane.b32.xlu0 %v1313, 80
        %v1760 = vpop.permute.xlu0 %1759
        %v1762 = vsel %vm1318, %v1758, 0
        %v1765 = vsel %vm1318, %v1760, 0
        %1767 = vmatprep.subr.bf16.mxu0 0
        %1768 = vmatpush1.bf16.xpose.msra.mxu0 %v1765
        %1769 = vmatprep.subr.bf16.mxu0 0
        %1770 = vmatpush1.bf16.xpose.msra.mxu0 0
        %1771 = vmatprep.subr.bf16.mxu0 0
        %1772 = vmatpush1.bf16.xpose.msra.mxu0 0
        %1773 = vmatprep.subr.bf16.mxu0 0
        %1774 = vmatpush1.bf16.xpose.msra.mxu0 0
        %1775 = vmatprep.subr.bf16.mxu0 0
        %1776 = vmatpush1.bf16.xpose.msra.mxu0 0
        %1777 = vmatprep.subr.bf16.mxu0 0
        %1778 = vmatpush1.bf16.xpose.msra.mxu0 0
        %1779 = vmatprep.subr.bf16.mxu0 0
        %1780 = vmatpush1.bf16.xpose.msra.mxu0 0
        %1781 = vmatprep.subr.bf16.mxu0 0
        %1782 = vmatpush1.bf16.xpose.msra.mxu0 0
        %1783 = vmatprep.subr.bf16.mxu0 0
        %1784 = vmatpush1.bf16.xpose.msra.mxu0 0
        %1785 = vmatprep.subr.bf16.mxu0 0
        %1786 = vmatpush1.bf16.xpose.msra.mxu0 0
        %1787 = vmatprep.subr.bf16.mxu0 0
        %1788 = vmatpush1.bf16.xpose.msra.mxu0 0
        %1789 = vmatprep.subr.bf16.mxu0 0
        %1790 = vmatpush1.bf16.xpose.msra.mxu0 0
        %1791 = vmatprep.subr.bf16.mxu0 0
        %1792 = vmatpush1.bf16.xpose.msra.mxu0 0
        %1793 = vmatprep.subr.bf16.mxu0 0
        %1794 = vmatpush1.bf16.xpose.msra.mxu0 0
        %1795 = vmatprep.subr.bf16.mxu0 0
        %1796 = vmatpush1.bf16.xpose.msra.mxu0 0
        %1797 = vmatprep.subr.bf16.mxu0 0
        %1798 = vmatpush1.bf16.xpose.msra.mxu0 0
        %1799 = vmatprep.mubr.bf16.mxu0 0
        %1800 = vmatmul.mubr.bf16.gmra.mrb[0].mxu0 %v1762
        %v1801 = vpop.f32.mrb[0].mxu0
        %v1802 = vadd.f32 %v1152, %v1801
        %v1803 = vpop.f32.mrb[0].mxu0
        %v1804 = vpop.f32.mrb[0].mxu0
        %v1805 = vpop.f32.mrb[0].mxu0
        %1806 = vdwg.mxu0
        %1807 = vrot.lane.b32.xlu0 %v1312, 112
        %v1808 = vpop.permute.xlu0 %1807
        %1809 = vrot.lane.b32.xlu0 %v1314, 80
        %v1810 = vpop.permute.xlu0 %1809
        %v1812 = vsel %vm1318, %v1808, 0
        %v1815 = vsel %vm1318, %v1810, 0
        %1817 = vmatprep.subr.bf16.mxu0 0
        %1818 = vmatpush1.bf16.xpose.msra.mxu0 %v1815
        %1819 = vmatprep.subr.bf16.mxu0 0
        %1820 = vmatpush1.bf16.xpose.msra.mxu0 0
        %1821 = vmatprep.subr.bf16.mxu0 0
        %1822 = vmatpush1.bf16.xpose.msra.mxu0 0
        %1823 = vmatprep.subr.bf16.mxu0 0
        %1824 = vmatpush1.bf16.xpose.msra.mxu0 0
        %1825 = vmatprep.subr.bf16.mxu0 0
        %1826 = vmatpush1.bf16.xpose.msra.mxu0 0
        %1827 = vmatprep.subr.bf16.mxu0 0
        %1828 = vmatpush1.bf16.xpose.msra.mxu0 0
        %1829 = vmatprep.subr.bf16.mxu0 0
        %1830 = vmatpush1.bf16.xpose.msra.mxu0 0
        %1831 = vmatprep.subr.bf16.mxu0 0
        %1832 = vmatpush1.bf16.xpose.msra.mxu0 0
        %1833 = vmatprep.subr.bf16.mxu0 0
        %1834 = vmatpush1.bf16.xpose.msra.mxu0 0
        %1835 = vmatprep.subr.bf16.mxu0 0
        %1836 = vmatpush1.bf16.xpose.msra.mxu0 0
        %1837 = vmatprep.subr.bf16.mxu0 0
        %1838 = vmatpush1.bf16.xpose.msra.mxu0 0
        %1839 = vmatprep.subr.bf16.mxu0 0
        %1840 = vmatpush1.bf16.xpose.msra.mxu0 0
        %1841 = vmatprep.subr.bf16.mxu0 0
        %1842 = vmatpush1.bf16.xpose.msra.mxu0 0
        %1843 = vmatprep.subr.bf16.mxu0 0
        %1844 = vmatpush1.bf16.xpose.msra.mxu0 0
        %1845 = vmatprep.subr.bf16.mxu0 0
        %1846 = vmatpush1.bf16.xpose.msra.mxu0 0
        %1847 = vmatprep.subr.bf16.mxu0 0
        %1848 = vmatpush1.bf16.xpose.msra.mxu0 0
        %1849 = vmatprep.mubr.bf16.mxu0 0
        %1850 = vmatmul.mubr.bf16.gmra.mrb[0].mxu0 %v1812
        %v1851 = vpop.f32.mrb[0].mxu0
        %v1852 = vadd.f32 %v1153, %v1851
        %v1853 = vpop.f32.mrb[0].mxu0
        %v1854 = vpop.f32.mrb[0].mxu0
        %v1855 = vpop.f32.mrb[0].mxu0
        %1856 = vdwg.mxu0
        %v1857 = vsel %vm1318, %v1802, -inf
        %1858 = vmax.xlane.f32.xlu0 %v1857
        %v1859 = vpop.xlane.xlu0 %1858
        %v1860 = vsel %vm1318, %v1852, -inf
        %1861 = vmax.xlane.f32.xlu0 %v1860
        %v1862 = vpop.xlane.xlu0 %1861
        %v1863 = vsub.f32 %v1802, %v1859
        %v1864 = vsub.f32 %v1852, %v1862
        %v1865 = vmul.f32 %v1863, 1.442695
        %v1866 = vpow.pop %v1865
        %v1867 = vmul.f32 %v1864, 1.442695
        %v1868 = vpow.pop %v1867
        %v1869 = vsel %vm1318, %v1866, 0.0
        %1870 = vadd.xlane.f32.xlu0 %v1869
        %v1871 = vpop.xlane.xlu0 %1870
        %v1872 = vsel %vm1318, %v1868, 0.0
        %1873 = vadd.xlane.f32.xlu0 %v1872
        %v1874 = vpop.xlane.xlu0 %1873
        %v1875 = vrcp.pop %v1871
        %v1876 = vrcp.pop %v1874
        %v1877 = vmul.f32 %v1866, %v1875
        %v1878 = vmul.f32 %v1868, %v1876
        %v1879 = vpack.c.bf16 %v1877, %v1877
        %v1880 = vpack.c.bf16 %v1878, %v1878
        %1881 = vrot.lane.b32.xlu0 %v1313, 48
        %v1882 = vpop.permute.xlu0 %1881
        %v1884 = vsel %vm1318, %v1879, 0
        %v1887 = vsel %vm1443, %v1882, 0
        %1889 = vmatprep.subr.bf16.mxu0 0
        %1890 = vmatpush1.bf16.msra.mxu0 %v1887
        %1891 = vmatprep.subr.bf16.mxu0 0
        %1892 = vmatpush1.bf16.msra.mxu0 0
        %1893 = vmatprep.subr.bf16.mxu0 0
        %1894 = vmatpush1.bf16.msra.mxu0 0
        %1895 = vmatprep.subr.bf16.mxu0 0
        %1896 = vmatpush1.bf16.msra.mxu0 0
        %1897 = vmatprep.subr.bf16.mxu0 0
        %1898 = vmatpush1.bf16.msra.mxu0 0
        %1899 = vmatprep.subr.bf16.mxu0 0
        %1900 = vmatpush1.bf16.msra.mxu0 0
        %1901 = vmatprep.subr.bf16.mxu0 0
        %1902 = vmatpush1.bf16.msra.mxu0 0
        %1903 = vmatprep.subr.bf16.mxu0 0
        %1904 = vmatpush1.bf16.msra.mxu0 0
        %1905 = vmatprep.subr.bf16.mxu0 0
        %1906 = vmatpush1.bf16.msra.mxu0 0
        %1907 = vmatprep.subr.bf16.mxu0 0
        %1908 = vmatpush1.bf16.msra.mxu0 0
        %1909 = vmatprep.subr.bf16.mxu0 0
        %1910 = vmatpush1.bf16.msra.mxu0 0
        %1911 = vmatprep.subr.bf16.mxu0 0
        %1912 = vmatpush1.bf16.msra.mxu0 0
        %1913 = vmatprep.subr.bf16.mxu0 0
        %1914 = vmatpush1.bf16.msra.mxu0 0
        %1915 = vmatprep.subr.bf16.mxu0 0
        %1916 = vmatpush1.bf16.msra.mxu0 0
        %1917 = vmatprep.subr.bf16.mxu0 0
        %1918 = vmatpush1.bf16.msra.mxu0 0
        %1919 = vmatprep.subr.bf16.mxu0 0
        %1920 = vmatpush1.bf16.msra.mxu0 0
        %1921 = vmatprep.mubr.bf16.mxu0 0
        %1922 = vmatmul.mubr.bf16.gmra.mrb[0].mxu0 %v1884
        %v1923 = vpop.f32.mrb[0].mxu0
        %v1924 = vadd.f32 0.0, %v1923
        %v1925 = vpop.f32.mrb[0].mxu0
        %v1926 = vpop.f32.mrb[0].mxu0
        %v1927 = vpop.f32.mrb[0].mxu0
        %1928 = vdwg.mxu0
        %1929 = vrot.lane.b32.xlu0 %v1314, 48
        %v1930 = vpop.permute.xlu0 %1929
        %v1932 = vsel %vm1318, %v1880, 0
        %v1935 = vsel %vm1443, %v1930, 0
        %1937 = vmatprep.subr.bf16.mxu0 0
        %1938 = vmatpush1.bf16.msra.mxu0 %v1935
        %1939 = vmatprep.subr.bf16.mxu0 0
        %1940 = vmatpush1.bf16.msra.mxu0 0
        %1941 = vmatprep.subr.bf16.mxu0 0
        %1942 = vmatpush1.bf16.msra.mxu0 0
        %1943 = vmatprep.subr.bf16.mxu0 0
        %1944 = vmatpush1.bf16.msra.mxu0 0
        %1945 = vmatprep.subr.bf16.mxu0 0
        %1946 = vmatpush1.bf16.msra.mxu0 0
        %1947 = vmatprep.subr.bf16.mxu0 0
        %1948 = vmatpush1.bf16.msra.mxu0 0
        %1949 = vmatprep.subr.bf16.mxu0 0
        %1950 = vmatpush1.bf16.msra.mxu0 0
        %1951 = vmatprep.subr.bf16.mxu0 0
        %1952 = vmatpush1.bf16.msra.mxu0 0
        %1953 = vmatprep.subr.bf16.mxu0 0
        %1954 = vmatpush1.bf16.msra.mxu0 0
        %1955 = vmatprep.subr.bf16.mxu0 0
        %1956 = vmatpush1.bf16.msra.mxu0 0
        %1957 = vmatprep.subr.bf16.mxu0 0
        %1958 = vmatpush1.bf16.msra.mxu0 0
        %1959 = vmatprep.subr.bf16.mxu0 0
        %1960 = vmatpush1.bf16.msra.mxu0 0
        %1961 = vmatprep.subr.bf16.mxu0 0
        %1962 = vmatpush1.bf16.msra.mxu0 0
        %1963 = vmatprep.subr.bf16.mxu0 0
        %1964 = vmatpush1.bf16.msra.mxu0 0
        %1965 = vmatprep.subr.bf16.mxu0 0
        %1966 = vmatpush1.bf16.msra.mxu0 0
        %1967 = vmatprep.subr.bf16.mxu0 0
        %1968 = vmatpush1.bf16.msra.mxu0 0
        %1969 = vmatprep.mubr.bf16.mxu0 0
        %1970 = vmatmul.mubr.bf16.gmra.mrb[0].mxu0 %v1932
        %v1971 = vpop.f32.mrb[0].mxu0
        %v1972 = vadd.f32 0.0, %v1971
        %v1973 = vpop.f32.mrb[0].mxu0
        %v1974 = vpop.f32.mrb[0].mxu0
        %v1975 = vpop.f32.mrb[0].mxu0
        %1976 = vdwg.mxu0
        %1977 = vrot.lane.b32.xlu0 %v1311, 104
        %v1978 = vpop.permute.xlu0 %1977
        %1979 = vrot.lane.b32.xlu0 %v1313, 72
        %v1980 = vpop.permute.xlu0 %1979
        %v1982 = vsel %vm1318, %v1978, 0
        %v1985 = vsel %vm1318, %v1980, 0
        %1987 = vmatprep.subr.bf16.mxu0 0
        %1988 = vmatpush1.bf16.xpose.msra.mxu0 %v1985
        %1989 = vmatprep.subr.bf16.mxu0 0
        %1990 = vmatpush1.bf16.xpose.msra.mxu0 0
        %1991 = vmatprep.subr.bf16.mxu0 0
        %1992 = vmatpush1.bf16.xpose.msra.mxu0 0
        %1993 = vmatprep.subr.bf16.mxu0 0
        %1994 = vmatpush1.bf16.xpose.msra.mxu0 0
        %1995 = vmatprep.subr.bf16.mxu0 0
        %1996 = vmatpush1.bf16.xpose.msra.mxu0 0
        %1997 = vmatprep.subr.bf16.mxu0 0
        %1998 = vmatpush1.bf16.xpose.msra.mxu0 0
        %1999 = vmatprep.subr.bf16.mxu0 0
        %2000 = vmatpush1.bf16.xpose.msra.mxu0 0
        %2001 = vmatprep.subr.bf16.mxu0 0
        %2002 = vmatpush1.bf16.xpose.msra.mxu0 0
        %2003 = vmatprep.subr.bf16.mxu0 0
        %2004 = vmatpush1.bf16.xpose.msra.mxu0 0
        %2005 = vmatprep.subr.bf16.mxu0 0
        %2006 = vmatpush1.bf16.xpose.msra.mxu0 0
        %2007 = vmatprep.subr.bf16.mxu0 0
        %2008 = vmatpush1.bf16.xpose.msra.mxu0 0
        %2009 = vmatprep.subr.bf16.mxu0 0
        %2010 = vmatpush1.bf16.xpose.msra.mxu0 0
        %2011 = vmatprep.subr.bf16.mxu0 0
        %2012 = vmatpush1.bf16.xpose.msra.mxu0 0
        %2013 = vmatprep.subr.bf16.mxu0 0
        %2014 = vmatpush1.bf16.xpose.msra.mxu0 0
        %2015 = vmatprep.subr.bf16.mxu0 0
        %2016 = vmatpush1.bf16.xpose.msra.mxu0 0
        %2017 = vmatprep.subr.bf16.mxu0 0
        %2018 = vmatpush1.bf16.xpose.msra.mxu0 0
        %2019 = vmatprep.mubr.bf16.mxu0 0
        %2020 = vmatmul.mubr.bf16.gmra.mrb[0].mxu0 %v1982
        %v2021 = vpop.f32.mrb[0].mxu0
        %v2022 = vadd.f32 %v1152, %v2021
        %v2023 = vpop.f32.mrb[0].mxu0
        %v2024 = vpop.f32.mrb[0].mxu0
        %v2025 = vpop.f32.mrb[0].mxu0
        %2026 = vdwg.mxu0
        %2027 = vrot.lane.b32.xlu0 %v1312, 104
        %v2028 = vpop.permute.xlu0 %2027
        %2029 = vrot.lane.b32.xlu0 %v1314, 72
        %v2030 = vpop.permute.xlu0 %2029
        %v2032 = vsel %vm1318, %v2028, 0
        %v2035 = vsel %vm1318, %v2030, 0
        %2037 = vmatprep.subr.bf16.mxu0 0
        %2038 = vmatpush1.bf16.xpose.msra.mxu0 %v2035
        %2039 = vmatprep.subr.bf16.mxu0 0
        %2040 = vmatpush1.bf16.xpose.msra.mxu0 0
        %2041 = vmatprep.subr.bf16.mxu0 0
        %2042 = vmatpush1.bf16.xpose.msra.mxu0 0
        %2043 = vmatprep.subr.bf16.mxu0 0
        %2044 = vmatpush1.bf16.xpose.msra.mxu0 0
        %2045 = vmatprep.subr.bf16.mxu0 0
        %2046 = vmatpush1.bf16.xpose.msra.mxu0 0
        %2047 = vmatprep.subr.bf16.mxu0 0
        %2048 = vmatpush1.bf16.xpose.msra.mxu0 0
        %2049 = vmatprep.subr.bf16.mxu0 0
        %2050 = vmatpush1.bf16.xpose.msra.mxu0 0
        %2051 = vmatprep.subr.bf16.mxu0 0
        %2052 = vmatpush1.bf16.xpose.msra.mxu0 0
        %2053 = vmatprep.subr.bf16.mxu0 0
        %2054 = vmatpush1.bf16.xpose.msra.mxu0 0
        %2055 = vmatprep.subr.bf16.mxu0 0
        %2056 = vmatpush1.bf16.xpose.msra.mxu0 0
        %2057 = vmatprep.subr.bf16.mxu0 0
        %2058 = vmatpush1.bf16.xpose.msra.mxu0 0
        %2059 = vmatprep.subr.bf16.mxu0 0
        %2060 = vmatpush1.bf16.xpose.msra.mxu0 0
        %2061 = vmatprep.subr.bf16.mxu0 0
        %2062 = vmatpush1.bf16.xpose.msra.mxu0 0
        %2063 = vmatprep.subr.bf16.mxu0 0
        %2064 = vmatpush1.bf16.xpose.msra.mxu0 0
        %2065 = vmatprep.subr.bf16.mxu0 0
        %2066 = vmatpush1.bf16.xpose.msra.mxu0 0
        %2067 = vmatprep.subr.bf16.mxu0 0
        %2068 = vmatpush1.bf16.xpose.msra.mxu0 0
        %2069 = vmatprep.mubr.bf16.mxu0 0
        %2070 = vmatmul.mubr.bf16.gmra.mrb[0].mxu0 %v2032
        %v2071 = vpop.f32.mrb[0].mxu0
        %v2072 = vadd.f32 %v1153, %v2071
        %v2073 = vpop.f32.mrb[0].mxu0
        %v2074 = vpop.f32.mrb[0].mxu0
        %v2075 = vpop.f32.mrb[0].mxu0
        %2076 = vdwg.mxu0
        %v2077 = vsel %vm1318, %v2022, -inf
        %2078 = vmax.xlane.f32.xlu0 %v2077
        %v2079 = vpop.xlane.xlu0 %2078
        %v2080 = vsel %vm1318, %v2072, -inf
        %2081 = vmax.xlane.f32.xlu0 %v2080
        %v2082 = vpop.xlane.xlu0 %2081
        %v2083 = vsub.f32 %v2022, %v2079
        %v2084 = vsub.f32 %v2072, %v2082
        %v2085 = vmul.f32 %v2083, 1.442695
        %v2086 = vpow.pop %v2085
        %v2087 = vmul.f32 %v2084, 1.442695
        %v2088 = vpow.pop %v2087
        %v2089 = vsel %vm1318, %v2086, 0.0
        %2090 = vadd.xlane.f32.xlu0 %v2089
        %v2091 = vpop.xlane.xlu0 %2090
        %v2092 = vsel %vm1318, %v2088, 0.0
        %2093 = vadd.xlane.f32.xlu0 %v2092
        %v2094 = vpop.xlane.xlu0 %2093
        %v2095 = vrcp.pop %v2091
        %v2096 = vrcp.pop %v2094
        %v2097 = vmul.f32 %v2086, %v2095
        %v2098 = vmul.f32 %v2088, %v2096
        %v2099 = vpack.c.bf16 %v2097, %v2097
        %v2100 = vpack.c.bf16 %v2098, %v2098
        %2101 = vrot.lane.b32.xlu0 %v1313, 40
        %v2102 = vpop.permute.xlu0 %2101
        %v2104 = vsel %vm1318, %v2099, 0
        %v2107 = vsel %vm1443, %v2102, 0
        %2109 = vmatprep.subr.bf16.mxu0 0
        %2110 = vmatpush1.bf16.msra.mxu0 %v2107
        %2111 = vmatprep.subr.bf16.mxu0 0
        %2112 = vmatpush1.bf16.msra.mxu0 0
        %2113 = vmatprep.subr.bf16.mxu0 0
        %2114 = vmatpush1.bf16.msra.mxu0 0
        %2115 = vmatprep.subr.bf16.mxu0 0
        %2116 = vmatpush1.bf16.msra.mxu0 0
        %2117 = vmatprep.subr.bf16.mxu0 0
        %2118 = vmatpush1.bf16.msra.mxu0 0
        %2119 = vmatprep.subr.bf16.mxu0 0
        %2120 = vmatpush1.bf16.msra.mxu0 0
        %2121 = vmatprep.subr.bf16.mxu0 0
        %2122 = vmatpush1.bf16.msra.mxu0 0
        %2123 = vmatprep.subr.bf16.mxu0 0
        %2124 = vmatpush1.bf16.msra.mxu0 0
        %2125 = vmatprep.subr.bf16.mxu0 0
        %2126 = vmatpush1.bf16.msra.mxu0 0
        %2127 = vmatprep.subr.bf16.mxu0 0
        %2128 = vmatpush1.bf16.msra.mxu0 0
        %2129 = vmatprep.subr.bf16.mxu0 0
        %2130 = vmatpush1.bf16.msra.mxu0 0
        %2131 = vmatprep.subr.bf16.mxu0 0
        %2132 = vmatpush1.bf16.msra.mxu0 0
        %2133 = vmatprep.subr.bf16.mxu0 0
        %2134 = vmatpush1.bf16.msra.mxu0 0
        %2135 = vmatprep.subr.bf16.mxu0 0
        %2136 = vmatpush1.bf16.msra.mxu0 0
        %2137 = vmatprep.subr.bf16.mxu0 0
        %2138 = vmatpush1.bf16.msra.mxu0 0
        %2139 = vmatprep.subr.bf16.mxu0 0
        %2140 = vmatpush1.bf16.msra.mxu0 0
        %2141 = vmatprep.mubr.bf16.mxu0 0
        %2142 = vmatmul.mubr.bf16.gmra.mrb[0].mxu0 %v2104
        %v2143 = vpop.f32.mrb[0].mxu0
        %v2144 = vadd.f32 0.0, %v2143
        %v2145 = vpop.f32.mrb[0].mxu0
        %v2146 = vpop.f32.mrb[0].mxu0
        %v2147 = vpop.f32.mrb[0].mxu0
        %2148 = vdwg.mxu0
        %2149 = vrot.lane.b32.xlu0 %v1314, 40
        %v2150 = vpop.permute.xlu0 %2149
        %v2152 = vsel %vm1318, %v2100, 0
        %v2155 = vsel %vm1443, %v2150, 0
        %2157 = vmatprep.subr.bf16.mxu0 0
        %2158 = vmatpush1.bf16.msra.mxu0 %v2155
        %2159 = vmatprep.subr.bf16.mxu0 0
        %2160 = vmatpush1.bf16.msra.mxu0 0
        %2161 = vmatprep.subr.bf16.mxu0 0
        %2162 = vmatpush1.bf16.msra.mxu0 0
        %2163 = vmatprep.subr.bf16.mxu0 0
        %2164 = vmatpush1.bf16.msra.mxu0 0
        %2165 = vmatprep.subr.bf16.mxu0 0
        %2166 = vmatpush1.bf16.msra.mxu0 0
        %2167 = vmatprep.subr.bf16.mxu0 0
        %2168 = vmatpush1.bf16.msra.mxu0 0
        %2169 = vmatprep.subr.bf16.mxu0 0
        %2170 = vmatpush1.bf16.msra.mxu0 0
        %2171 = vmatprep.subr.bf16.mxu0 0
        %2172 = vmatpush1.bf16.msra.mxu0 0
        %2173 = vmatprep.subr.bf16.mxu0 0
        %2174 = vmatpush1.bf16.msra.mxu0 0
        %2175 = vmatprep.subr.bf16.mxu0 0
        %2176 = vmatpush1.bf16.msra.mxu0 0
        %2177 = vmatprep.subr.bf16.mxu0 0
        %2178 = vmatpush1.bf16.msra.mxu0 0
        %2179 = vmatprep.subr.bf16.mxu0 0
        %2180 = vmatpush1.bf16.msra.mxu0 0
        %2181 = vmatprep.subr.bf16.mxu0 0
        %2182 = vmatpush1.bf16.msra.mxu0 0
        %2183 = vmatprep.subr.bf16.mxu0 0
        %2184 = vmatpush1.bf16.msra.mxu0 0
        %2185 = vmatprep.subr.bf16.mxu0 0
        %2186 = vmatpush1.bf16.msra.mxu0 0
        %2187 = vmatprep.subr.bf16.mxu0 0
        %2188 = vmatpush1.bf16.msra.mxu0 0
        %2189 = vmatprep.mubr.bf16.mxu0 0
        %2190 = vmatmul.mubr.bf16.gmra.mrb[0].mxu0 %v2152
        %v2191 = vpop.f32.mrb[0].mxu0
        %v2192 = vadd.f32 0.0, %v2191
        %v2193 = vpop.f32.mrb[0].mxu0
        %v2194 = vpop.f32.mrb[0].mxu0
        %v2195 = vpop.f32.mrb[0].mxu0
        %2196 = vdwg.mxu0
        %2199 = vrot.lane.b32.xlu0 %v1704, 8
        %v2200 = vpop.permute.xlu0 %2199
        %2201 = vrot.lane.b32.xlu0 %v1752, 8
        %v2202 = vpop.permute.xlu0 %2201
        %2207 = vrot.lane.b32.xlu0 %v1924, 16
        %v2208 = vpop.permute.xlu0 %2207
        %2209 = vrot.lane.b32.xlu0 %v1972, 16
        %v2210 = vpop.permute.xlu0 %2209
        %2215 = vrot.lane.b32.xlu0 %v2144, 24
        %v2216 = vpop.permute.xlu0 %2215
        %2217 = vrot.lane.b32.xlu0 %v2192, 24
        %v2218 = vpop.permute.xlu0 %2217
        %v2221 = vsel %vm1318, %v1482, %v2200
        %v2222 = vsel %vm1318, %v1530, %v2202
        %vm2223 = vcmask 130048
        %v2224 = vsel %vm2223, %v2221, %v2208
        %v2225 = vsel %vm2223, %v2222, %v2210
        %vm2226 = vcmask 195584
        %v2227 = vsel %vm2226, %v2224, %v2216
        %v2228 = vsel %vm2226, %v2225, %v2218
        %v2229 = vpack.c.bf16 %v2228, %v2227
        %v2231 = vlaneseq
        %v2232 = vshrl.u32 %v2231, 7
        %v2233 = vsub.s32 0, %v2232
        %v2234 = vrot.slane %v1308, %v2233
        %v2240 = vunpack.c.l.b16 %v1304
        %v2241 = vunpack.c.l.b16 %v1305
        %v2242 = vunpack.c.l.b16 %v1306
        %v2243 = vunpack.c.l.b16 %v1307
        %v2244 = vpack.c.b16 %v2241, %v2240
        %v2245 = vpack.c.b16 %v2243, %v2242
        %v2249 = vsel %vm1192, %v2229, 0
        %2251 = vmatprep.subr.bf16.mxu0 0
        %2252 = vmatpush1.bf16.msra.mxu0 %v2244
        %2253 = vmatprep.subr.bf16.mxu0 0
        %2254 = vmatpush1.bf16.msra.mxu0 %v2245
        %2255 = vmatprep.subr.bf16.mxu0 0
        %2256 = vmatpush1.bf16.msra.mxu0 0
        %2257 = vmatprep.subr.bf16.mxu0 0
        %2258 = vmatpush1.bf16.msra.mxu0 0
        %2259 = vmatprep.subr.bf16.mxu0 0
        %2260 = vmatpush1.bf16.msra.mxu0 0
        %2261 = vmatprep.subr.bf16.mxu0 0
        %2262 = vmatpush1.bf16.msra.mxu0 0
        %2263 = vmatprep.subr.bf16.mxu0 0
        %2264 = vmatpush1.bf16.msra.mxu0 0
        %2265 = vmatprep.subr.bf16.mxu0 0
        %2266 = vmatpush1.bf16.msra.mxu0 0
        %2267 = vmatprep.subr.bf16.mxu0 0
        %2268 = vmatpush1.bf16.msra.mxu0 0
        %2269 = vmatprep.subr.bf16.mxu0 0
        %2270 = vmatpush1.bf16.msra.mxu0 0
        %2271 = vmatprep.subr.bf16.mxu0 0
        %2272 = vmatpush1.bf16.msra.mxu0 0
        %2273 = vmatprep.subr.bf16.mxu0 0
        %2274 = vmatpush1.bf16.msra.mxu0 0
        %2275 = vmatprep.subr.bf16.mxu0 0
        %2276 = vmatpush1.bf16.msra.mxu0 0
        %2277 = vmatprep.subr.bf16.mxu0 0
        %2278 = vmatpush1.bf16.msra.mxu0 0
        %2279 = vmatprep.subr.bf16.mxu0 0
        %2280 = vmatpush1.bf16.msra.mxu0 0
        %2281 = vmatprep.subr.bf16.mxu0 0
        %2282 = vmatpush1.bf16.msra.mxu0 0
        %2283 = vmatprep.mubr.bf16.mxu0 0
        %2284 = vmatmul.mubr.bf16.gmra.mrb[0].mxu0 %v2249
        %v2285 = vpop.f32.mrb[0].mxu0
        %v2286 = vadd.f32 %v2234, %v2285
        %v2287 = vpop.f32.mrb[0].mxu0
        %v2288 = vpop.f32.mrb[0].mxu0
        %v2289 = vadd.f32 %v2234, %v2288
        %v2290 = vpop.f32.mrb[0].mxu0
        %2291 = vdwg.mxu0
        %v2292 = vadd.f32 %v1144, %v2286
        %v2293 = vadd.f32 %v1145, %v2289
        %v2294 = vld [vmem:[%s1084] sm:$0x1]
        %v2295 = vld [vmem:[%s1087] sm:$0x1]
        %v2296 = vsel %vm1192, %v2292, 0.0
        %2297 = vadd.xlane.f32.xlu0 %v2296
        %v2298 = vpop.xlane.xlu0 %2297
        %v2299 = vsel %vm1192, %v2293, 0.0
        %2300 = vadd.xlane.f32.xlu0 %v2299
        %v2301 = vpop.xlane.xlu0 %2300
        %v2302 = vmul.f32 %v2298, %v1199
        %v2303 = vmul.f32 %v2301, %v1199
        %v2304 = vsub.f32 %v2292, %v2302
        %v2305 = vsub.f32 %v2293, %v2303
        %v2306 = vmul.f32 %v2304, %v2304
        %v2307 = vmul.f32 %v2305, %v2305
        %v2308 = vsel %vm1192, %v2306, 0.0
        %2309 = vadd.xlane.f32.xlu0 %v2308
        %v2310 = vpop.xlane.xlu0 %2309
        %v2311 = vsel %vm1192, %v2307, 0.0
        %2312 = vadd.xlane.f32.xlu0 %v2311
        %v2313 = vpop.xlane.xlu0 %2312
        %v2314 = vmul.f32 %v2310, %v1199
        %v2315 = vmul.f32 %v2313, %v1199
        %v2316 = vadd.f32 %v2314, 1e-06
        %v2317 = vadd.f32 %v2315, 1e-06
        %v2318 = vrsqrt.pop %v2316
        %v2319 = vrsqrt.pop %v2317
        %v2320 = vmul.f32 %v2304, %v2318
        %v2321 = vmul.f32 %v2305, %v2319
        %v2323 = vlaneseq
        %v2324 = vshrl.u32 %v2323, 7
        %v2325 = vsub.s32 0, %v2324
        %v2326 = vrot.slane %v2294, %v2325
        %v2328 = vmul.f32 %v2320, %v2326
        %v2329 = vmul.f32 %v2321, %v2326
        %v2331 = vlaneseq
        %v2332 = vshrl.u32 %v2331, 7
        %v2333 = vsub.s32 0, %v2332
        %v2334 = vrot.slane %v2295, %v2333
        %v2336 = vadd.f32 %v2328, %v2334
        %v2337 = vadd.f32 %v2329, %v2334
        %v2338 = vld [vmem:[%s1092] sm:$0xf]
        %v2339 = vld [vmem:[%s1092 + $0x4] sm:$0xf]
        %v2340 = vld [vmem:[%s1092 + $0x8] sm:$0xf]
        %v2341 = vld [vmem:[%s1092 + $0xc] sm:$0xf]
        %v2342 = vpack.c.bf16 %v2337, %v2336
        %v2343 = vld [vmem:[%s1095] sm:$0x1]
        %v2345 = vlaneseq
        %v2346 = vshrl.u32 %v2345, 7
        %v2347 = vsub.s32 0, %v2346
        %v2348 = vrot.slane %v2343, %v2347
        %v2354 = vunpack.c.l.b16 %v2338
        %v2355 = vunpack.c.l.b16 %v2339
        %v2356 = vunpack.c.l.b16 %v2340
        %v2357 = vunpack.c.l.b16 %v2341
        %v2358 = vpack.c.b16 %v2355, %v2354
        %v2359 = vpack.c.b16 %v2357, %v2356
        %v2363 = vsel %vm1192, %v2342, 0
        %2365 = vmatprep.subr.bf16.mxu0 0
        %2366 = vmatpush1.bf16.msra.mxu0 %v2358
        %2367 = vmatprep.subr.bf16.mxu0 0
        %2368 = vmatpush1.bf16.msra.mxu0 %v2359
        %2369 = vmatprep.subr.bf16.mxu0 0
        %2370 = vmatpush1.bf16.msra.mxu0 0
        %2371 = vmatprep.subr.bf16.mxu0 0
        %2372 = vmatpush1.bf16.msra.mxu0 0
        %2373 = vmatprep.subr.bf16.mxu0 0
        %2374 = vmatpush1.bf16.msra.mxu0 0
        %2375 = vmatprep.subr.bf16.mxu0 0
        %2376 = vmatpush1.bf16.msra.mxu0 0
        %2377 = vmatprep.subr.bf16.mxu0 0
        %2378 = vmatpush1.bf16.msra.mxu0 0
        %2379 = vmatprep.subr.bf16.mxu0 0
        %2380 = vmatpush1.bf16.msra.mxu0 0
        %2381 = vmatprep.subr.bf16.mxu0 0
        %2382 = vmatpush1.bf16.msra.mxu0 0
        %2383 = vmatprep.subr.bf16.mxu0 0
        %2384 = vmatpush1.bf16.msra.mxu0 0
        %2385 = vmatprep.subr.bf16.mxu0 0
        %2386 = vmatpush1.bf16.msra.mxu0 0
        %2387 = vmatprep.subr.bf16.mxu0 0
        %2388 = vmatpush1.bf16.msra.mxu0 0
        %2389 = vmatprep.subr.bf16.mxu0 0
        %2390 = vmatpush1.bf16.msra.mxu0 0
        %2391 = vmatprep.subr.bf16.mxu0 0
        %2392 = vmatpush1.bf16.msra.mxu0 0
        %2393 = vmatprep.subr.bf16.mxu0 0
        %2394 = vmatpush1.bf16.msra.mxu0 0
        %2395 = vmatprep.subr.bf16.mxu0 0
        %2396 = vmatpush1.bf16.msra.mxu0 0
        %2397 = vmatprep.mubr.bf16.mxu0 0
        %2398 = vmatmul.mubr.bf16.gmra.mrb[0].mxu0 %v2363
        %v2399 = vpop.f32.mrb[0].mxu0
        %v2400 = vadd.f32 %v2348, %v2399
        %v2401 = vpop.f32.mrb[0].mxu0
        %v2402 = vpop.f32.mrb[0].mxu0
        %v2403 = vadd.f32 %v2348, %v2402
        %v2404 = vpop.f32.mrb[0].mxu0
        %2405 = vdwg.mxu0
        %v2406 = vld [vmem:[%s1100] sm:$0xf]
        %v2407 = vld [vmem:[%s1100 + $0x4] sm:$0xf]
        %v2408 = vld [vmem:[%s1100 + $0x8] sm:$0xf]
        %v2409 = vld [vmem:[%s1100 + $0xc] sm:$0xf]
        %v2410 = vpack.c.bf16 %v1147, %v1146
        %v2411 = vld [vmem:[%s1103] sm:$0x1]
        %v2413 = vlaneseq
        %v2414 = vshrl.u32 %v2413, 7
        %v2415 = vsub.s32 0, %v2414
        %v2416 = vrot.slane %v2411, %v2415
        %v2422 = vunpack.c.l.b16 %v2406
        %v2423 = vunpack.c.l.b16 %v2407
        %v2424 = vunpack.c.l.b16 %v2408
        %v2425 = vunpack.c.l.b16 %v2409
        %v2426 = vpack.c.b16 %v2423, %v2422
        %v2427 = vpack.c.b16 %v2425, %v2424
        %v2431 = vsel %vm1192, %v2410, 0
        %2433 = vmatprep.subr.bf16.mxu0 0
        %2434 = vmatpush1.bf16.msra.mxu0 %v2426
        %2435 = vmatprep.subr.bf16.mxu0 0
        %2436 = vmatpush1.bf16.msra.mxu0 %v2427
        %2437 = vmatprep.subr.bf16.mxu0 0
        %2438 = vmatpush1.bf16.msra.mxu0 0
        %2439 = vmatprep.subr.bf16.mxu0 0
        %2440 = vmatpush1.bf16.msra.mxu0 0
        %2441 = vmatprep.subr.bf16.mxu0 0
        %2442 = vmatpush1.bf16.msra.mxu0 0
        %2443 = vmatprep.subr.bf16.mxu0 0
        %2444 = vmatpush1.bf16.msra.mxu0 0
        %2445 = vmatprep.subr.bf16.mxu0 0
        %2446 = vmatpush1.bf16.msra.mxu0 0
        %2447 = vmatprep.subr.bf16.mxu0 0
        %2448 = vmatpush1.bf16.msra.mxu0 0
        %2449 = vmatprep.subr.bf16.mxu0 0
        %2450 = vmatpush1.bf16.msra.mxu0 0
        %2451 = vmatprep.subr.bf16.mxu0 0
        %2452 = vmatpush1.bf16.msra.mxu0 0
        %2453 = vmatprep.subr.bf16.mxu0 0
        %2454 = vmatpush1.bf16.msra.mxu0 0
        %2455 = vmatprep.subr.bf16.mxu0 0
        %2456 = vmatpush1.bf16.msra.mxu0 0
        %2457 = vmatprep.subr.bf16.mxu0 0
        %2458 = vmatpush1.bf16.msra.mxu0 0
        %2459 = vmatprep.subr.bf16.mxu0 0
        %2460 = vmatpush1.bf16.msra.mxu0 0
        %2461 = vmatprep.subr.bf16.mxu0 0
        %2462 = vmatpush1.bf16.msra.mxu0 0
        %2463 = vmatprep.subr.bf16.mxu0 0
        %2464 = vmatpush1.bf16.msra.mxu0 0
        %2465 = vmatprep.mubr.bf16.mxu0 0
        %2466 = vmatmul.mubr.bf16.gmra.mrb[0].mxu0 %v2431
        %v2467 = vpop.f32.mrb[0].mxu0
        %v2468 = vadd.f32 %v2416, %v2467
        %v2469 = vpop.f32.mrb[0].mxu0
        %v2470 = vpop.f32.mrb[0].mxu0
        %v2471 = vadd.f32 %v2416, %v2470
        %v2472 = vpop.f32.mrb[0].mxu0
        %2473 = vdwg.mxu0
        %v2474 = vld [vmem:[%s1108] sm:$0xf]
        %v2475 = vld [vmem:[%s1108 + $0x4] sm:$0xf]
        %v2476 = vld [vmem:[%s1108 + $0x8] sm:$0xf]
        %v2477 = vld [vmem:[%s1108 + $0xc] sm:$0xf]
        %v2478 = vld [vmem:[%s1111] sm:$0x1]
        %v2479 = vmul.f32 %v2400, 0.35355338
        %v2480 = vmul.f32 %v2403, 0.35355338
        %v2481 = vpack.c.bf16 %v2479, %v2479
        %v2482 = vpack.c.bf16 %v2480, %v2480
        %v2483 = vpack.c.bf16 %v2468, %v2468
        %v2484 = vpack.c.bf16 %v2471, %v2471
        %v2486 = vsel %vm1318, %v2481, 0
        %v2489 = vsel %vm1318, %v2483, 0
        %2491 = vmatprep.subr.bf16.mxu0 0
        %2492 = vmatpush1.bf16.xpose.msra.mxu0 %v2489
        %2493 = vmatprep.subr.bf16.mxu0 0
        %2494 = vmatpush1.bf16.xpose.msra.mxu0 0
        %2495 = vmatprep.subr.bf16.mxu0 0
        %2496 = vmatpush1.bf16.xpose.msra.mxu0 0
        %2497 = vmatprep.subr.bf16.mxu0 0
        %2498 = vmatpush1.bf16.xpose.msra.mxu0 0
        %2499 = vmatprep.subr.bf16.mxu0 0
        %2500 = vmatpush1.bf16.xpose.msra.mxu0 0
        %2501 = vmatprep.subr.bf16.mxu0 0
        %2502 = vmatpush1.bf16.xpose.msra.mxu0 0
        %2503 = vmatprep.subr.bf16.mxu0 0
        %2504 = vmatpush1.bf16.xpose.msra.mxu0 0
        %2505 = vmatprep.subr.bf16.mxu0 0
        %2506 = vmatpush1.bf16.xpose.msra.mxu0 0
        %2507 = vmatprep.subr.bf16.mxu0 0
        %2508 = vmatpush1.bf16.xpose.msra.mxu0 0
        %2509 = vmatprep.subr.bf16.mxu0 0
        %2510 = vmatpush1.bf16.xpose.msra.mxu0 0
        %2511 = vmatprep.subr.bf16.mxu0 0
        %2512 = vmatpush1.bf16.xpose.msra.mxu0 0
        %2513 = vmatprep.subr.bf16.mxu0 0
        %2514 = vmatpush1.bf16.xpose.msra.mxu0 0
        %2515 = vmatprep.subr.bf16.mxu0 0
        %2516 = vmatpush1.bf16.xpose.msra.mxu0 0
        %2517 = vmatprep.subr.bf16.mxu0 0
        %2518 = vmatpush1.bf16.xpose.msra.mxu0 0
        %2519 = vmatprep.subr.bf16.mxu0 0
        %2520 = vmatpush1.bf16.xpose.msra.mxu0 0
        %2521 = vmatprep.subr.bf16.mxu0 0
        %2522 = vmatpush1.bf16.xpose.msra.mxu0 0
        %2523 = vmatprep.mubr.bf16.mxu0 0
        %2524 = vmatmul.mubr.bf16.gmra.mrb[0].mxu0 %v2486
        %v2525 = vpop.f32.mrb[0].mxu0
        %v2526 = vadd.f32 %v1183, %v2525
        %v2527 = vpop.f32.mrb[0].mxu0
        %v2528 = vpop.f32.mrb[0].mxu0
        %v2529 = vpop.f32.mrb[0].mxu0
        %2530 = vdwg.mxu0
        %v2532 = vsel %vm1318, %v2482, 0
        %v2535 = vsel %vm1318, %v2484, 0
        %2537 = vmatprep.subr.bf16.mxu0 0
        %2538 = vmatpush1.bf16.xpose.msra.mxu0 %v2535
        %2539 = vmatprep.subr.bf16.mxu0 0
        %2540 = vmatpush1.bf16.xpose.msra.mxu0 0
        %2541 = vmatprep.subr.bf16.mxu0 0
        %2542 = vmatpush1.bf16.xpose.msra.mxu0 0
        %2543 = vmatprep.subr.bf16.mxu0 0
        %2544 = vmatpush1.bf16.xpose.msra.mxu0 0
        %2545 = vmatprep.subr.bf16.mxu0 0
        %2546 = vmatpush1.bf16.xpose.msra.mxu0 0
        %2547 = vmatprep.subr.bf16.mxu0 0
        %2548 = vmatpush1.bf16.xpose.msra.mxu0 0
        %2549 = vmatprep.subr.bf16.mxu0 0
        %2550 = vmatpush1.bf16.xpose.msra.mxu0 0
        %2551 = vmatprep.subr.bf16.mxu0 0
        %2552 = vmatpush1.bf16.xpose.msra.mxu0 0
        %2553 = vmatprep.subr.bf16.mxu0 0
        %2554 = vmatpush1.bf16.xpose.msra.mxu0 0
        %2555 = vmatprep.subr.bf16.mxu0 0
        %2556 = vmatpush1.bf16.xpose.msra.mxu0 0
        %2557 = vmatprep.subr.bf16.mxu0 0
        %2558 = vmatpush1.bf16.xpose.msra.mxu0 0
        %2559 = vmatprep.subr.bf16.mxu0 0
        %2560 = vmatpush1.bf16.xpose.msra.mxu0 0
        %2561 = vmatprep.subr.bf16.mxu0 0
        %2562 = vmatpush1.bf16.xpose.msra.mxu0 0
        %2563 = vmatprep.subr.bf16.mxu0 0
        %2564 = vmatpush1.bf16.xpose.msra.mxu0 0
        %2565 = vmatprep.subr.bf16.mxu0 0
        %2566 = vmatpush1.bf16.xpose.msra.mxu0 0
        %2567 = vmatprep.subr.bf16.mxu0 0
        %2568 = vmatpush1.bf16.xpose.msra.mxu0 0
        %2569 = vmatprep.mubr.bf16.mxu0 0
        %2570 = vmatmul.mubr.bf16.gmra.mrb[0].mxu0 %v2532
        %v2571 = vpop.f32.mrb[0].mxu0
        %v2572 = vadd.f32 %v1187, %v2571
        %v2573 = vpop.f32.mrb[0].mxu0
        %v2574 = vpop.f32.mrb[0].mxu0
        %v2575 = vpop.f32.mrb[0].mxu0
        %2576 = vdwg.mxu0
        %v2577 = vsel %vm1318, %v2526, -inf
        %2578 = vmax.xlane.f32.xlu0 %v2577
        %v2579 = vpop.xlane.xlu0 %2578
        %v2580 = vsel %vm1318, %v2572, -inf
        %2581 = vmax.xlane.f32.xlu0 %v2580
        %v2582 = vpop.xlane.xlu0 %2581
        %v2583 = vsub.f32 %v2526, %v2579
        %v2584 = vsub.f32 %v2572, %v2582
        %v2585 = vmul.f32 %v2583, 1.442695
        %v2586 = vpow.pop %v2585
        %v2587 = vmul.f32 %v2584, 1.442695
        %v2588 = vpow.pop %v2587
        %v2589 = vsel %vm1318, %v2586, 0.0
        %2590 = vadd.xlane.f32.xlu0 %v2589
        %v2591 = vpop.xlane.xlu0 %2590
        %v2592 = vsel %vm1318, %v2588, 0.0
        %2593 = vadd.xlane.f32.xlu0 %v2592
        %v2594 = vpop.xlane.xlu0 %2593
        %v2595 = vrcp.pop %v2591
        %v2596 = vrcp.pop %v2594
        %v2597 = vmul.f32 %v2586, %v2595
        %v2598 = vmul.f32 %v2588, %v2596
        %v2599 = vpack.c.bf16 %v2597, %v2597
        %v2600 = vpack.c.bf16 %v2598, %v2598
        %2602 = vrot.lane.b32.xlu0 %v2483, 96
        %v2603 = vpop.permute.xlu0 %2602
        %v2605 = vsel %vm1318, %v2599, 0
        %v2608 = vsel %vm1443, %v2603, 0
        %2610 = vmatprep.subr.bf16.mxu0 0
        %2611 = vmatpush1.bf16.msra.mxu0 %v2608
        %2612 = vmatprep.subr.bf16.mxu0 0
        %2613 = vmatpush1.bf16.msra.mxu0 0
        %2614 = vmatprep.subr.bf16.mxu0 0
        %2615 = vmatpush1.bf16.msra.mxu0 0
        %2616 = vmatprep.subr.bf16.mxu0 0
        %2617 = vmatpush1.bf16.msra.mxu0 0
        %2618 = vmatprep.subr.bf16.mxu0 0
        %2619 = vmatpush1.bf16.msra.mxu0 0
        %2620 = vmatprep.subr.bf16.mxu0 0
        %2621 = vmatpush1.bf16.msra.mxu0 0
        %2622 = vmatprep.subr.bf16.mxu0 0
        %2623 = vmatpush1.bf16.msra.mxu0 0
        %2624 = vmatprep.subr.bf16.mxu0 0
        %2625 = vmatpush1.bf16.msra.mxu0 0
        %2626 = vmatprep.subr.bf16.mxu0 0
        %2627 = vmatpush1.bf16.msra.mxu0 0
        %2628 = vmatprep.subr.bf16.mxu0 0
        %2629 = vmatpush1.bf16.msra.mxu0 0
        %2630 = vmatprep.subr.bf16.mxu0 0
        %2631 = vmatpush1.bf16.msra.mxu0 0
        %2632 = vmatprep.subr.bf16.mxu0 0
        %2633 = vmatpush1.bf16.msra.mxu0 0
        %2634 = vmatprep.subr.bf16.mxu0 0
        %2635 = vmatpush1.bf16.msra.mxu0 0
        %2636 = vmatprep.subr.bf16.mxu0 0
        %2637 = vmatpush1.bf16.msra.mxu0 0
        %2638 = vmatprep.subr.bf16.mxu0 0
        %2639 = vmatpush1.bf16.msra.mxu0 0
        %2640 = vmatprep.subr.bf16.mxu0 0
        %2641 = vmatpush1.bf16.msra.mxu0 0
        %2642 = vmatprep.mubr.bf16.mxu0 0
        %2643 = vmatmul.mubr.bf16.gmra.mrb[0].mxu0 %v2605
        %v2644 = vpop.f32.mrb[0].mxu0
        %v2645 = vadd.f32 0.0, %v2644
        %v2646 = vpop.f32.mrb[0].mxu0
        %v2647 = vpop.f32.mrb[0].mxu0
        %v2648 = vpop.f32.mrb[0].mxu0
        %2649 = vdwg.mxu0
        %2651 = vrot.lane.b32.xlu0 %v2484, 96
        %v2652 = vpop.permute.xlu0 %2651
        %v2654 = vsel %vm1318, %v2600, 0
        %v2657 = vsel %vm1443, %v2652, 0
        %2659 = vmatprep.subr.bf16.mxu0 0
        %2660 = vmatpush1.bf16.msra.mxu0 %v2657
        %2661 = vmatprep.subr.bf16.mxu0 0
        %2662 = vmatpush1.bf16.msra.mxu0 0
        %2663 = vmatprep.subr.bf16.mxu0 0
        %2664 = vmatpush1.bf16.msra.mxu0 0
        %2665 = vmatprep.subr.bf16.mxu0 0
        %2666 = vmatpush1.bf16.msra.mxu0 0
        %2667 = vmatprep.subr.bf16.mxu0 0
        %2668 = vmatpush1.bf16.msra.mxu0 0
        %2669 = vmatprep.subr.bf16.mxu0 0
        %2670 = vmatpush1.bf16.msra.mxu0 0
        %2671 = vmatprep.subr.bf16.mxu0 0
        %2672 = vmatpush1.bf16.msra.mxu0 0
        %2673 = vmatprep.subr.bf16.mxu0 0
        %2674 = vmatpush1.bf16.msra.mxu0 0
        %2675 = vmatprep.subr.bf16.mxu0 0
        %2676 = vmatpush1.bf16.msra.mxu0 0
        %2677 = vmatprep.subr.bf16.mxu0 0
        %2678 = vmatpush1.bf16.msra.mxu0 0
        %2679 = vmatprep.subr.bf16.mxu0 0
        %2680 = vmatpush1.bf16.msra.mxu0 0
        %2681 = vmatprep.subr.bf16.mxu0 0
        %2682 = vmatpush1.bf16.msra.mxu0 0
        %2683 = vmatprep.subr.bf16.mxu0 0
        %2684 = vmatpush1.bf16.msra.mxu0 0
        %2685 = vmatprep.subr.bf16.mxu0 0
        %2686 = vmatpush1.bf16.msra.mxu0 0
        %2687 = vmatprep.subr.bf16.mxu0 0
        %2688 = vmatpush1.bf16.msra.mxu0 0
        %2689 = vmatprep.subr.bf16.mxu0 0
        %2690 = vmatpush1.bf16.msra.mxu0 0
        %2691 = vmatprep.mubr.bf16.mxu0 0
        %2692 = vmatmul.mubr.bf16.gmra.mrb[0].mxu0 %v2654
        %v2693 = vpop.f32.mrb[0].mxu0
        %v2694 = vadd.f32 0.0, %v2693
        %v2695 = vpop.f32.mrb[0].mxu0
        %v2696 = vpop.f32.mrb[0].mxu0
        %v2697 = vpop.f32.mrb[0].mxu0
        %2698 = vdwg.mxu0
        %2700 = vrot.lane.b32.xlu0 %v2481, 120
        %v2701 = vpop.permute.xlu0 %2700
        %2702 = vrot.lane.b32.xlu0 %v2483, 120
        %v2703 = vpop.permute.xlu0 %2702
        %v2705 = vsel %vm1318, %v2701, 0
        %v2708 = vsel %vm1318, %v2703, 0
        %2710 = vmatprep.subr.bf16.mxu0 0
        %2711 = vmatpush1.bf16.xpose.msra.mxu0 %v2708
        %2712 = vmatprep.subr.bf16.mxu0 0
        %2713 = vmatpush1.bf16.xpose.msra.mxu0 0
        %2714 = vmatprep.subr.bf16.mxu0 0
        %2715 = vmatpush1.bf16.xpose.msra.mxu0 0
        %2716 = vmatprep.subr.bf16.mxu0 0
        %2717 = vmatpush1.bf16.xpose.msra.mxu0 0
        %2718 = vmatprep.subr.bf16.mxu0 0
        %2719 = vmatpush1.bf16.xpose.msra.mxu0 0
        %2720 = vmatprep.subr.bf16.mxu0 0
        %2721 = vmatpush1.bf16.xpose.msra.mxu0 0
        %2722 = vmatprep.subr.bf16.mxu0 0
        %2723 = vmatpush1.bf16.xpose.msra.mxu0 0
        %2724 = vmatprep.subr.bf16.mxu0 0
        %2725 = vmatpush1.bf16.xpose.msra.mxu0 0
        %2726 = vmatprep.subr.bf16.mxu0 0
        %2727 = vmatpush1.bf16.xpose.msra.mxu0 0
        %2728 = vmatprep.subr.bf16.mxu0 0
        %2729 = vmatpush1.bf16.xpose.msra.mxu0 0
        %2730 = vmatprep.subr.bf16.mxu0 0
        %2731 = vmatpush1.bf16.xpose.msra.mxu0 0
        %2732 = vmatprep.subr.bf16.mxu0 0
        %2733 = vmatpush1.bf16.xpose.msra.mxu0 0
        %2734 = vmatprep.subr.bf16.mxu0 0
        %2735 = vmatpush1.bf16.xpose.msra.mxu0 0
        %2736 = vmatprep.subr.bf16.mxu0 0
        %2737 = vmatpush1.bf16.xpose.msra.mxu0 0
        %2738 = vmatprep.subr.bf16.mxu0 0
        %2739 = vmatpush1.bf16.xpose.msra.mxu0 0
        %2740 = vmatprep.subr.bf16.mxu0 0
        %2741 = vmatpush1.bf16.xpose.msra.mxu0 0
        %2742 = vmatprep.mubr.bf16.mxu0 0
        %2743 = vmatmul.mubr.bf16.gmra.mrb[0].mxu0 %v2705
        %v2744 = vpop.f32.mrb[0].mxu0
        %v2745 = vadd.f32 %v1183, %v2744
        %v2746 = vpop.f32.mrb[0].mxu0
        %v2747 = vpop.f32.mrb[0].mxu0
        %v2748 = vpop.f32.mrb[0].mxu0
        %2749 = vdwg.mxu0
        %2751 = vrot.lane.b32.xlu0 %v2482, 120
        %v2752 = vpop.permute.xlu0 %2751
        %2753 = vrot.lane.b32.xlu0 %v2484, 120
        %v2754 = vpop.permute.xlu0 %2753
        %v2756 = vsel %vm1318, %v2752, 0
        %v2759 = vsel %vm1318, %v2754, 0
        %2761 = vmatprep.subr.bf16.mxu0 0
        %2762 = vmatpush1.bf16.xpose.msra.mxu0 %v2759
        %2763 = vmatprep.subr.bf16.mxu0 0
        %2764 = vmatpush1.bf16.xpose.msra.mxu0 0
        %2765 = vmatprep.subr.bf16.mxu0 0
        %2766 = vmatpush1.bf16.xpose.msra.mxu0 0
        %2767 = vmatprep.subr.bf16.mxu0 0
        %2768 = vmatpush1.bf16.xpose.msra.mxu0 0
        %2769 = vmatprep.subr.bf16.mxu0 0
        %2770 = vmatpush1.bf16.xpose.msra.mxu0 0
        %2771 = vmatprep.subr.bf16.mxu0 0
        %2772 = vmatpush1.bf16.xpose.msra.mxu0 0
        %2773 = vmatprep.subr.bf16.mxu0 0
        %2774 = vmatpush1.bf16.xpose.msra.mxu0 0
        %2775 = vmatprep.subr.bf16.mxu0 0
        %2776 = vmatpush1.bf16.xpose.msra.mxu0 0
        %2777 = vmatprep.subr.bf16.mxu0 0
        %2778 = vmatpush1.bf16.xpose.msra.mxu0 0
        %2779 = vmatprep.subr.bf16.mxu0 0
        %2780 = vmatpush1.bf16.xpose.msra.mxu0 0
        %2781 = vmatprep.subr.bf16.mxu0 0
        %2782 = vmatpush1.bf16.xpose.msra.mxu0 0
        %2783 = vmatprep.subr.bf16.mxu0 0
        %2784 = vmatpush1.bf16.xpose.msra.mxu0 0
        %2785 = vmatprep.subr.bf16.mxu0 0
        %2786 = vmatpush1.bf16.xpose.msra.mxu0 0
        %2787 = vmatprep.subr.bf16.mxu0 0
        %2788 = vmatpush1.bf16.xpose.msra.mxu0 0
        %2789 = vmatprep.subr.bf16.mxu0 0
        %2790 = vmatpush1.bf16.xpose.msra.mxu0 0
        %2791 = vmatprep.subr.bf16.mxu0 0
        %2792 = vmatpush1.bf16.xpose.msra.mxu0 0
        %2793 = vmatprep.mubr.bf16.mxu0 0
        %2794 = vmatmul.mubr.bf16.gmra.mrb[0].mxu0 %v2756
        %v2795 = vpop.f32.mrb[0].mxu0
        %v2796 = vadd.f32 %v1187, %v2795
        %v2797 = vpop.f32.mrb[0].mxu0
        %v2798 = vpop.f32.mrb[0].mxu0
        %v2799 = vpop.f32.mrb[0].mxu0
        %2800 = vdwg.mxu0
        %v2801 = vsel %vm1318, %v2745, -inf
        %2802 = vmax.xlane.f32.xlu0 %v2801
        %v2803 = vpop.xlane.xlu0 %2802
        %v2804 = vsel %vm1318, %v2796, -inf
        %2805 = vmax.xlane.f32.xlu0 %v2804
        %v2806 = vpop.xlane.xlu0 %2805
        %v2807 = vsub.f32 %v2745, %v2803
        %v2808 = vsub.f32 %v2796, %v2806
        %v2809 = vmul.f32 %v2807, 1.442695
        %v2810 = vpow.pop %v2809
        %v2811 = vmul.f32 %v2808, 1.442695
        %v2812 = vpow.pop %v2811
        %v2813 = vsel %vm1318, %v2810, 0.0
        %2814 = vadd.xlane.f32.xlu0 %v2813
        %v2815 = vpop.xlane.xlu0 %2814
        %v2816 = vsel %vm1318, %v2812, 0.0
        %2817 = vadd.xlane.f32.xlu0 %v2816
        %v2818 = vpop.xlane.xlu0 %2817
        %v2819 = vrcp.pop %v2815
        %v2820 = vrcp.pop %v2818
        %v2821 = vmul.f32 %v2810, %v2819
        %v2822 = vmul.f32 %v2812, %v2820
        %v2823 = vpack.c.bf16 %v2821, %v2821
        %v2824 = vpack.c.bf16 %v2822, %v2822
        %2825 = vrot.lane.b32.xlu0 %v2483, 88
        %v2826 = vpop.permute.xlu0 %2825
        %v2828 = vsel %vm1318, %v2823, 0
        %v2831 = vsel %vm1443, %v2826, 0
        %2833 = vmatprep.subr.bf16.mxu0 0
        %2834 = vmatpush1.bf16.msra.mxu0 %v2831
        %2835 = vmatprep.subr.bf16.mxu0 0
        %2836 = vmatpush1.bf16.msra.mxu0 0
        %2837 = vmatprep.subr.bf16.mxu0 0
        %2838 = vmatpush1.bf16.msra.mxu0 0
        %2839 = vmatprep.subr.bf16.mxu0 0
        %2840 = vmatpush1.bf16.msra.mxu0 0
        %2841 = vmatprep.subr.bf16.mxu0 0
        %2842 = vmatpush1.bf16.msra.mxu0 0
        %2843 = vmatprep.subr.bf16.mxu0 0
        %2844 = vmatpush1.bf16.msra.mxu0 0
        %2845 = vmatprep.subr.bf16.mxu0 0
        %2846 = vmatpush1.bf16.msra.mxu0 0
        %2847 = vmatprep.subr.bf16.mxu0 0
        %2848 = vmatpush1.bf16.msra.mxu0 0
        %2849 = vmatprep.subr.bf16.mxu0 0
        %2850 = vmatpush1.bf16.msra.mxu0 0
        %2851 = vmatprep.subr.bf16.mxu0 0
        %2852 = vmatpush1.bf16.msra.mxu0 0
        %2853 = vmatprep.subr.bf16.mxu0 0
        %2854 = vmatpush1.bf16.msra.mxu0 0
        %2855 = vmatprep.subr.bf16.mxu0 0
        %2856 = vmatpush1.bf16.msra.mxu0 0
        %2857 = vmatprep.subr.bf16.mxu0 0
        %2858 = vmatpush1.bf16.msra.mxu0 0
        %2859 = vmatprep.subr.bf16.mxu0 0
        %2860 = vmatpush1.bf16.msra.mxu0 0
        %2861 = vmatprep.subr.bf16.mxu0 0
        %2862 = vmatpush1.bf16.msra.mxu0 0
        %2863 = vmatprep.subr.bf16.mxu0 0
        %2864 = vmatpush1.bf16.msra.mxu0 0
        %2865 = vmatprep.mubr.bf16.mxu0 0
        %2866 = vmatmul.mubr.bf16.gmra.mrb[0].mxu0 %v2828
        %v2867 = vpop.f32.mrb[0].mxu0
        %v2868 = vadd.f32 0.0, %v2867
        %v2869 = vpop.f32.mrb[0].mxu0
        %v2870 = vpop.f32.mrb[0].mxu0
        %v2871 = vpop.f32.mrb[0].mxu0
        %2872 = vdwg.mxu0
        %2873 = vrot.lane.b32.xlu0 %v2484, 88
        %v2874 = vpop.permute.xlu0 %2873
        %v2876 = vsel %vm1318, %v2824, 0
        %v2879 = vsel %vm1443, %v2874, 0
        %2881 = vmatprep.subr.bf16.mxu0 0
        %2882 = vmatpush1.bf16.msra.mxu0 %v2879
        %2883 = vmatprep.subr.bf16.mxu0 0
        %2884 = vmatpush1.bf16.msra.mxu0 0
        %2885 = vmatprep.subr.bf16.mxu0 0
        %2886 = vmatpush1.bf16.msra.mxu0 0
        %2887 = vmatprep.subr.bf16.mxu0 0
        %2888 = vmatpush1.bf16.msra.mxu0 0
        %2889 = vmatprep.subr.bf16.mxu0 0
        %2890 = vmatpush1.bf16.msra.mxu0 0
        %2891 = vmatprep.subr.bf16.mxu0 0
        %2892 = vmatpush1.bf16.msra.mxu0 0
        %2893 = vmatprep.subr.bf16.mxu0 0
        %2894 = vmatpush1.bf16.msra.mxu0 0
        %2895 = vmatprep.subr.bf16.mxu0 0
        %2896 = vmatpush1.bf16.msra.mxu0 0
        %2897 = vmatprep.subr.bf16.mxu0 0
        %2898 = vmatpush1.bf16.msra.mxu0 0
        %2899 = vmatprep.subr.bf16.mxu0 0
        %2900 = vmatpush1.bf16.msra.mxu0 0
        %2901 = vmatprep.subr.bf16.mxu0 0
        %2902 = vmatpush1.bf16.msra.mxu0 0
        %2903 = vmatprep.subr.bf16.mxu0 0
        %2904 = vmatpush1.bf16.msra.mxu0 0
        %2905 = vmatprep.subr.bf16.mxu0 0
        %2906 = vmatpush1.bf16.msra.mxu0 0
        %2907 = vmatprep.subr.bf16.mxu0 0
        %2908 = vmatpush1.bf16.msra.mxu0 0
        %2909 = vmatprep.subr.bf16.mxu0 0
        %2910 = vmatpush1.bf16.msra.mxu0 0
        %2911 = vmatprep.subr.bf16.mxu0 0
        %2912 = vmatpush1.bf16.msra.mxu0 0
        %2913 = vmatprep.mubr.bf16.mxu0 0
        %2914 = vmatmul.mubr.bf16.gmra.mrb[0].mxu0 %v2876
        %v2915 = vpop.f32.mrb[0].mxu0
        %v2916 = vadd.f32 0.0, %v2915
        %v2917 = vpop.f32.mrb[0].mxu0
        %v2918 = vpop.f32.mrb[0].mxu0
        %v2919 = vpop.f32.mrb[0].mxu0
        %2920 = vdwg.mxu0
        %2921 = vrot.lane.b32.xlu0 %v2481, 112
        %v2922 = vpop.permute.xlu0 %2921
        %2923 = vrot.lane.b32.xlu0 %v2483, 112
        %v2924 = vpop.permute.xlu0 %2923
        %v2926 = vsel %vm1318, %v2922, 0
        %v2929 = vsel %vm1318, %v2924, 0
        %2931 = vmatprep.subr.bf16.mxu0 0
        %2932 = vmatpush1.bf16.xpose.msra.mxu0 %v2929
        %2933 = vmatprep.subr.bf16.mxu0 0
        %2934 = vmatpush1.bf16.xpose.msra.mxu0 0
        %2935 = vmatprep.subr.bf16.mxu0 0
        %2936 = vmatpush1.bf16.xpose.msra.mxu0 0
        %2937 = vmatprep.subr.bf16.mxu0 0
        %2938 = vmatpush1.bf16.xpose.msra.mxu0 0
        %2939 = vmatprep.subr.bf16.mxu0 0
        %2940 = vmatpush1.bf16.xpose.msra.mxu0 0
        %2941 = vmatprep.subr.bf16.mxu0 0
        %2942 = vmatpush1.bf16.xpose.msra.mxu0 0
        %2943 = vmatprep.subr.bf16.mxu0 0
        %2944 = vmatpush1.bf16.xpose.msra.mxu0 0
        %2945 = vmatprep.subr.bf16.mxu0 0
        %2946 = vmatpush1.bf16.xpose.msra.mxu0 0
        %2947 = vmatprep.subr.bf16.mxu0 0
        %2948 = vmatpush1.bf16.xpose.msra.mxu0 0
        %2949 = vmatprep.subr.bf16.mxu0 0
        %2950 = vmatpush1.bf16.xpose.msra.mxu0 0
        %2951 = vmatprep.subr.bf16.mxu0 0
        %2952 = vmatpush1.bf16.xpose.msra.mxu0 0
        %2953 = vmatprep.subr.bf16.mxu0 0
        %2954 = vmatpush1.bf16.xpose.msra.mxu0 0
        %2955 = vmatprep.subr.bf16.mxu0 0
        %2956 = vmatpush1.bf16.xpose.msra.mxu0 0
        %2957 = vmatprep.subr.bf16.mxu0 0
        %2958 = vmatpush1.bf16.xpose.msra.mxu0 0
        %2959 = vmatprep.subr.bf16.mxu0 0
        %2960 = vmatpush1.bf16.xpose.msra.mxu0 0
        %2961 = vmatprep.subr.bf16.mxu0 0
        %2962 = vmatpush1.bf16.xpose.msra.mxu0 0
        %2963 = vmatprep.mubr.bf16.mxu0 0
        %2964 = vmatmul.mubr.bf16.gmra.mrb[0].mxu0 %v2926
        %v2965 = vpop.f32.mrb[0].mxu0
        %v2966 = vadd.f32 %v1183, %v2965
        %v2967 = vpop.f32.mrb[0].mxu0
        %v2968 = vpop.f32.mrb[0].mxu0
        %v2969 = vpop.f32.mrb[0].mxu0
        %2970 = vdwg.mxu0
        %2971 = vrot.lane.b32.xlu0 %v2482, 112
        %v2972 = vpop.permute.xlu0 %2971
        %2973 = vrot.lane.b32.xlu0 %v2484, 112
        %v2974 = vpop.permute.xlu0 %2973
        %v2976 = vsel %vm1318, %v2972, 0
        %v2979 = vsel %vm1318, %v2974, 0
        %2981 = vmatprep.subr.bf16.mxu0 0
        %2982 = vmatpush1.bf16.xpose.msra.mxu0 %v2979
        %2983 = vmatprep.subr.bf16.mxu0 0
        %2984 = vmatpush1.bf16.xpose.msra.mxu0 0
        %2985 = vmatprep.subr.bf16.mxu0 0
        %2986 = vmatpush1.bf16.xpose.msra.mxu0 0
        %2987 = vmatprep.subr.bf16.mxu0 0
        %2988 = vmatpush1.bf16.xpose.msra.mxu0 0
        %2989 = vmatprep.subr.bf16.mxu0 0
        %2990 = vmatpush1.bf16.xpose.msra.mxu0 0
        %2991 = vmatprep.subr.bf16.mxu0 0
        %2992 = vmatpush1.bf16.xpose.msra.mxu0 0
        %2993 = vmatprep.subr.bf16.mxu0 0
        %2994 = vmatpush1.bf16.xpose.msra.mxu0 0
        %2995 = vmatprep.subr.bf16.mxu0 0
        %2996 = vmatpush1.bf16.xpose.msra.mxu0 0
        %2997 = vmatprep.subr.bf16.mxu0 0
        %2998 = vmatpush1.bf16.xpose.msra.mxu0 0
        %2999 = vmatprep.subr.bf16.mxu0 0
        %3000 = vmatpush1.bf16.xpose.msra.mxu0 0
        %3001 = vmatprep.subr.bf16.mxu0 0
        %3002 = vmatpush1.bf16.xpose.msra.mxu0 0
        %3003 = vmatprep.subr.bf16.mxu0 0
        %3004 = vmatpush1.bf16.xpose.msra.mxu0 0
        %3005 = vmatprep.subr.bf16.mxu0 0
        %3006 = vmatpush1.bf16.xpose.msra.mxu0 0
        %3007 = vmatprep.subr.bf16.mxu0 0
        %3008 = vmatpush1.bf16.xpose.msra.mxu0 0
        %3009 = vmatprep.subr.bf16.mxu0 0
        %3010 = vmatpush1.bf16.xpose.msra.mxu0 0
        %3011 = vmatprep.subr.bf16.mxu0 0
        %3012 = vmatpush1.bf16.xpose.msra.mxu0 0
        %3013 = vmatprep.mubr.bf16.mxu0 0
        %3014 = vmatmul.mubr.bf16.gmra.mrb[0].mxu0 %v2976
        %v3015 = vpop.f32.mrb[0].mxu0
        %v3016 = vadd.f32 %v1187, %v3015
        %v3017 = vpop.f32.mrb[0].mxu0
        %v3018 = vpop.f32.mrb[0].mxu0
        %v3019 = vpop.f32.mrb[0].mxu0
        %3020 = vdwg.mxu0
        %v3021 = vsel %vm1318, %v2966, -inf
        %3022 = vmax.xlane.f32.xlu0 %v3021
        %v3023 = vpop.xlane.xlu0 %3022
        %v3024 = vsel %vm1318, %v3016, -inf
        %3025 = vmax.xlane.f32.xlu0 %v3024
        %v3026 = vpop.xlane.xlu0 %3025
        %v3027 = vsub.f32 %v2966, %v3023
        %v3028 = vsub.f32 %v3016, %v3026
        %v3029 = vmul.f32 %v3027, 1.442695
        %v3030 = vpow.pop %v3029
        %v3031 = vmul.f32 %v3028, 1.442695
        %v3032 = vpow.pop %v3031
        %v3033 = vsel %vm1318, %v3030, 0.0
        %3034 = vadd.xlane.f32.xlu0 %v3033
        %v3035 = vpop.xlane.xlu0 %3034
        %v3036 = vsel %vm1318, %v3032, 0.0
        %3037 = vadd.xlane.f32.xlu0 %v3036
        %v3038 = vpop.xlane.xlu0 %3037
        %v3039 = vrcp.pop %v3035
        %v3040 = vrcp.pop %v3038
        %v3041 = vmul.f32 %v3030, %v3039
        %v3042 = vmul.f32 %v3032, %v3040
        %v3043 = vpack.c.bf16 %v3041, %v3041
        %v3044 = vpack.c.bf16 %v3042, %v3042
        %3045 = vrot.lane.b32.xlu0 %v2483, 80
        %v3046 = vpop.permute.xlu0 %3045
        %v3048 = vsel %vm1318, %v3043, 0
        %v3051 = vsel %vm1443, %v3046, 0
        %3053 = vmatprep.subr.bf16.mxu0 0
        %3054 = vmatpush1.bf16.msra.mxu0 %v3051
        %3055 = vmatprep.subr.bf16.mxu0 0
        %3056 = vmatpush1.bf16.msra.mxu0 0
        %3057 = vmatprep.subr.bf16.mxu0 0
        %3058 = vmatpush1.bf16.msra.mxu0 0
        %3059 = vmatprep.subr.bf16.mxu0 0
        %3060 = vmatpush1.bf16.msra.mxu0 0
        %3061 = vmatprep.subr.bf16.mxu0 0
        %3062 = vmatpush1.bf16.msra.mxu0 0
        %3063 = vmatprep.subr.bf16.mxu0 0
        %3064 = vmatpush1.bf16.msra.mxu0 0
        %3065 = vmatprep.subr.bf16.mxu0 0
        %3066 = vmatpush1.bf16.msra.mxu0 0
        %3067 = vmatprep.subr.bf16.mxu0 0
        %3068 = vmatpush1.bf16.msra.mxu0 0
        %3069 = vmatprep.subr.bf16.mxu0 0
        %3070 = vmatpush1.bf16.msra.mxu0 0
        %3071 = vmatprep.subr.bf16.mxu0 0
        %3072 = vmatpush1.bf16.msra.mxu0 0
        %3073 = vmatprep.subr.bf16.mxu0 0
        %3074 = vmatpush1.bf16.msra.mxu0 0
        %3075 = vmatprep.subr.bf16.mxu0 0
        %3076 = vmatpush1.bf16.msra.mxu0 0
        %3077 = vmatprep.subr.bf16.mxu0 0
        %3078 = vmatpush1.bf16.msra.mxu0 0
        %3079 = vmatprep.subr.bf16.mxu0 0
        %3080 = vmatpush1.bf16.msra.mxu0 0
        %3081 = vmatprep.subr.bf16.mxu0 0
        %3082 = vmatpush1.bf16.msra.mxu0 0
        %3083 = vmatprep.subr.bf16.mxu0 0
        %3084 = vmatpush1.bf16.msra.mxu0 0
        %3085 = vmatprep.mubr.bf16.mxu0 0
        %3086 = vmatmul.mubr.bf16.gmra.mrb[0].mxu0 %v3048
        %v3087 = vpop.f32.mrb[0].mxu0
        %v3088 = vadd.f32 0.0, %v3087
        %v3089 = vpop.f32.mrb[0].mxu0
        %v3090 = vpop.f32.mrb[0].mxu0
        %v3091 = vpop.f32.mrb[0].mxu0
        %3092 = vdwg.mxu0
        %3093 = vrot.lane.b32.xlu0 %v2484, 80
        %v3094 = vpop.permute.xlu0 %3093
        %v3096 = vsel %vm1318, %v3044, 0
        %v3099 = vsel %vm1443, %v3094, 0
        %3101 = vmatprep.subr.bf16.mxu0 0
        %3102 = vmatpush1.bf16.msra.mxu0 %v3099
        %3103 = vmatprep.subr.bf16.mxu0 0
        %3104 = vmatpush1.bf16.msra.mxu0 0
        %3105 = vmatprep.subr.bf16.mxu0 0
        %3106 = vmatpush1.bf16.msra.mxu0 0
        %3107 = vmatprep.subr.bf16.mxu0 0
        %3108 = vmatpush1.bf16.msra.mxu0 0
        %3109 = vmatprep.subr.bf16.mxu0 0
        %3110 = vmatpush1.bf16.msra.mxu0 0
        %3111 = vmatprep.subr.bf16.mxu0 0
        %3112 = vmatpush1.bf16.msra.mxu0 0
        %3113 = vmatprep.subr.bf16.mxu0 0
        %3114 = vmatpush1.bf16.msra.mxu0 0
        %3115 = vmatprep.subr.bf16.mxu0 0
        %3116 = vmatpush1.bf16.msra.mxu0 0
        %3117 = vmatprep.subr.bf16.mxu0 0
        %3118 = vmatpush1.bf16.msra.mxu0 0
        %3119 = vmatprep.subr.bf16.mxu0 0
        %3120 = vmatpush1.bf16.msra.mxu0 0
        %3121 = vmatprep.subr.bf16.mxu0 0
        %3122 = vmatpush1.bf16.msra.mxu0 0
        %3123 = vmatprep.subr.bf16.mxu0 0
        %3124 = vmatpush1.bf16.msra.mxu0 0
        %3125 = vmatprep.subr.bf16.mxu0 0
        %3126 = vmatpush1.bf16.msra.mxu0 0
        %3127 = vmatprep.subr.bf16.mxu0 0
        %3128 = vmatpush1.bf16.msra.mxu0 0
        %3129 = vmatprep.subr.bf16.mxu0 0
        %3130 = vmatpush1.bf16.msra.mxu0 0
        %3131 = vmatprep.subr.bf16.mxu0 0
        %3132 = vmatpush1.bf16.msra.mxu0 0
        %3133 = vmatprep.mubr.bf16.mxu0 0
        %3134 = vmatmul.mubr.bf16.gmra.mrb[0].mxu0 %v3096
        %v3135 = vpop.f32.mrb[0].mxu0
        %v3136 = vadd.f32 0.0, %v3135
        %v3137 = vpop.f32.mrb[0].mxu0
        %v3138 = vpop.f32.mrb[0].mxu0
        %v3139 = vpop.f32.mrb[0].mxu0
        %3140 = vdwg.mxu0
        %3141 = vrot.lane.b32.xlu0 %v2481, 104
        %v3142 = vpop.permute.xlu0 %3141
        %3143 = vrot.lane.b32.xlu0 %v2483, 104
        %v3144 = vpop.permute.xlu0 %3143
        %v3146 = vsel %vm1318, %v3142, 0
        %v3149 = vsel %vm1318, %v3144, 0
        %3151 = vmatprep.subr.bf16.mxu0 0
        %3152 = vmatpush1.bf16.xpose.msra.mxu0 %v3149
        %3153 = vmatprep.subr.bf16.mxu0 0
        %3154 = vmatpush1.bf16.xpose.msra.mxu0 0
        %3155 = vmatprep.subr.bf16.mxu0 0
        %3156 = vmatpush1.bf16.xpose.msra.mxu0 0
        %3157 = vmatprep.subr.bf16.mxu0 0
        %3158 = vmatpush1.bf16.xpose.msra.mxu0 0
        %3159 = vmatprep.subr.bf16.mxu0 0
        %3160 = vmatpush1.bf16.xpose.msra.mxu0 0
        %3161 = vmatprep.subr.bf16.mxu0 0
        %3162 = vmatpush1.bf16.xpose.msra.mxu0 0
        %3163 = vmatprep.subr.bf16.mxu0 0
        %3164 = vmatpush1.bf16.xpose.msra.mxu0 0
        %3165 = vmatprep.subr.bf16.mxu0 0
        %3166 = vmatpush1.bf16.xpose.msra.mxu0 0
        %3167 = vmatprep.subr.bf16.mxu0 0
        %3168 = vmatpush1.bf16.xpose.msra.mxu0 0
        %3169 = vmatprep.subr.bf16.mxu0 0
        %3170 = vmatpush1.bf16.xpose.msra.mxu0 0
        %3171 = vmatprep.subr.bf16.mxu0 0
        %3172 = vmatpush1.bf16.xpose.msra.mxu0 0
        %3173 = vmatprep.subr.bf16.mxu0 0
        %3174 = vmatpush1.bf16.xpose.msra.mxu0 0
        %3175 = vmatprep.subr.bf16.mxu0 0
        %3176 = vmatpush1.bf16.xpose.msra.mxu0 0
        %3177 = vmatprep.subr.bf16.mxu0 0
        %3178 = vmatpush1.bf16.xpose.msra.mxu0 0
        %3179 = vmatprep.subr.bf16.mxu0 0
        %3180 = vmatpush1.bf16.xpose.msra.mxu0 0
        %3181 = vmatprep.subr.bf16.mxu0 0
        %3182 = vmatpush1.bf16.xpose.msra.mxu0 0
        %3183 = vmatprep.mubr.bf16.mxu0 0
        %3184 = vmatmul.mubr.bf16.gmra.mrb[0].mxu0 %v3146
        %v3185 = vpop.f32.mrb[0].mxu0
        %v3186 = vadd.f32 %v1183, %v3185
        %v3187 = vpop.f32.mrb[0].mxu0
        %v3188 = vpop.f32.mrb[0].mxu0
        %v3189 = vpop.f32.mrb[0].mxu0
        %3190 = vdwg.mxu0
        %3191 = vrot.lane.b32.xlu0 %v2482, 104
        %v3192 = vpop.permute.xlu0 %3191
        %3193 = vrot.lane.b32.xlu0 %v2484, 104
        %v3194 = vpop.permute.xlu0 %3193
        %v3196 = vsel %vm1318, %v3192, 0
        %v3199 = vsel %vm1318, %v3194, 0
        %3201 = vmatprep.subr.bf16.mxu0 0
        %3202 = vmatpush1.bf16.xpose.msra.mxu0 %v3199
        %3203 = vmatprep.subr.bf16.mxu0 0
        %3204 = vmatpush1.bf16.xpose.msra.mxu0 0
        %3205 = vmatprep.subr.bf16.mxu0 0
        %3206 = vmatpush1.bf16.xpose.msra.mxu0 0
        %3207 = vmatprep.subr.bf16.mxu0 0
        %3208 = vmatpush1.bf16.xpose.msra.mxu0 0
        %3209 = vmatprep.subr.bf16.mxu0 0
        %3210 = vmatpush1.bf16.xpose.msra.mxu0 0
        %3211 = vmatprep.subr.bf16.mxu0 0
        %3212 = vmatpush1.bf16.xpose.msra.mxu0 0
        %3213 = vmatprep.subr.bf16.mxu0 0
        %3214 = vmatpush1.bf16.xpose.msra.mxu0 0
        %3215 = vmatprep.subr.bf16.mxu0 0
        %3216 = vmatpush1.bf16.xpose.msra.mxu0 0
        %3217 = vmatprep.subr.bf16.mxu0 0
        %3218 = vmatpush1.bf16.xpose.msra.mxu0 0
        %3219 = vmatprep.subr.bf16.mxu0 0
        %3220 = vmatpush1.bf16.xpose.msra.mxu0 0
        %3221 = vmatprep.subr.bf16.mxu0 0
        %3222 = vmatpush1.bf16.xpose.msra.mxu0 0
        %3223 = vmatprep.subr.bf16.mxu0 0
        %3224 = vmatpush1.bf16.xpose.msra.mxu0 0
        %3225 = vmatprep.subr.bf16.mxu0 0
        %3226 = vmatpush1.bf16.xpose.msra.mxu0 0
        %3227 = vmatprep.subr.bf16.mxu0 0
        %3228 = vmatpush1.bf16.xpose.msra.mxu0 0
        %3229 = vmatprep.subr.bf16.mxu0 0
        %3230 = vmatpush1.bf16.xpose.msra.mxu0 0
        %3231 = vmatprep.subr.bf16.mxu0 0
        %3232 = vmatpush1.bf16.xpose.msra.mxu0 0
        %3233 = vmatprep.mubr.bf16.mxu0 0
        %3234 = vmatmul.mubr.bf16.gmra.mrb[0].mxu0 %v3196
        %v3235 = vpop.f32.mrb[0].mxu0
        %v3236 = vadd.f32 %v1187, %v3235
        %v3237 = vpop.f32.mrb[0].mxu0
        %v3238 = vpop.f32.mrb[0].mxu0
        %v3239 = vpop.f32.mrb[0].mxu0
        %3240 = vdwg.mxu0
        %v3241 = vsel %vm1318, %v3186, -inf
        %3242 = vmax.xlane.f32.xlu0 %v3241
        %v3243 = vpop.xlane.xlu0 %3242
        %v3244 = vsel %vm1318, %v3236, -inf
        %3245 = vmax.xlane.f32.xlu0 %v3244
        %v3246 = vpop.xlane.xlu0 %3245
        %v3247 = vsub.f32 %v3186, %v3243
        %v3248 = vsub.f32 %v3236, %v3246
        %v3249 = vmul.f32 %v3247, 1.442695
        %v3250 = vpow.pop %v3249
        %v3251 = vmul.f32 %v3248, 1.442695
        %v3252 = vpow.pop %v3251
        %v3253 = vsel %vm1318, %v3250, 0.0
        %3254 = vadd.xlane.f32.xlu0 %v3253
        %v3255 = vpop.xlane.xlu0 %3254
        %v3256 = vsel %vm1318, %v3252, 0.0
        %3257 = vadd.xlane.f32.xlu0 %v3256
        %v3258 = vpop.xlane.xlu0 %3257
        %v3259 = vrcp.pop %v3255
        %v3260 = vrcp.pop %v3258
        %v3261 = vmul.f32 %v3250, %v3259
        %v3262 = vmul.f32 %v3252, %v3260
        %v3263 = vpack.c.bf16 %v3261, %v3261
        %v3264 = vpack.c.bf16 %v3262, %v3262
        %3265 = vrot.lane.b32.xlu0 %v2483, 72
        %v3266 = vpop.permute.xlu0 %3265
        %v3268 = vsel %vm1318, %v3263, 0
        %v3271 = vsel %vm1443, %v3266, 0
        %3273 = vmatprep.subr.bf16.mxu0 0
        %3274 = vmatpush1.bf16.msra.mxu0 %v3271
        %3275 = vmatprep.subr.bf16.mxu0 0
        %3276 = vmatpush1.bf16.msra.mxu0 0
        %3277 = vmatprep.subr.bf16.mxu0 0
        %3278 = vmatpush1.bf16.msra.mxu0 0
        %3279 = vmatprep.subr.bf16.mxu0 0
        %3280 = vmatpush1.bf16.msra.mxu0 0
        %3281 = vmatprep.subr.bf16.mxu0 0
        %3282 = vmatpush1.bf16.msra.mxu0 0
        %3283 = vmatprep.subr.bf16.mxu0 0
        %3284 = vmatpush1.bf16.msra.mxu0 0
        %3285 = vmatprep.subr.bf16.mxu0 0
        %3286 = vmatpush1.bf16.msra.mxu0 0
        %3287 = vmatprep.subr.bf16.mxu0 0
        %3288 = vmatpush1.bf16.msra.mxu0 0
        %3289 = vmatprep.subr.bf16.mxu0 0
        %3290 = vmatpush1.bf16.msra.mxu0 0
        %3291 = vmatprep.subr.bf16.mxu0 0
        %3292 = vmatpush1.bf16.msra.mxu0 0
        %3293 = vmatprep.subr.bf16.mxu0 0
        %3294 = vmatpush1.bf16.msra.mxu0 0
        %3295 = vmatprep.subr.bf16.mxu0 0
        %3296 = vmatpush1.bf16.msra.mxu0 0
        %3297 = vmatprep.subr.bf16.mxu0 0
        %3298 = vmatpush1.bf16.msra.mxu0 0
        %3299 = vmatprep.subr.bf16.mxu0 0
        %3300 = vmatpush1.bf16.msra.mxu0 0
        %3301 = vmatprep.subr.bf16.mxu0 0
        %3302 = vmatpush1.bf16.msra.mxu0 0
        %3303 = vmatprep.subr.bf16.mxu0 0
        %3304 = vmatpush1.bf16.msra.mxu0 0
        %3305 = vmatprep.mubr.bf16.mxu0 0
        %3306 = vmatmul.mubr.bf16.gmra.mrb[0].mxu0 %v3268
        %v3307 = vpop.f32.mrb[0].mxu0
        %v3308 = vadd.f32 0.0, %v3307
        %v3309 = vpop.f32.mrb[0].mxu0
        %v3310 = vpop.f32.mrb[0].mxu0
        %v3311 = vpop.f32.mrb[0].mxu0
        %3312 = vdwg.mxu0
        %3313 = vrot.lane.b32.xlu0 %v2484, 72
        %v3314 = vpop.permute.xlu0 %3313
        %v3316 = vsel %vm1318, %v3264, 0
        %v3319 = vsel %vm1443, %v3314, 0
        %3321 = vmatprep.subr.bf16.mxu0 0
        %3322 = vmatpush1.bf16.msra.mxu0 %v3319
        %3323 = vmatprep.subr.bf16.mxu0 0
        %3324 = vmatpush1.bf16.msra.mxu0 0
        %3325 = vmatprep.subr.bf16.mxu0 0
        %3326 = vmatpush1.bf16.msra.mxu0 0
        %3327 = vmatprep.subr.bf16.mxu0 0
        %3328 = vmatpush1.bf16.msra.mxu0 0
        %3329 = vmatprep.subr.bf16.mxu0 0
        %3330 = vmatpush1.bf16.msra.mxu0 0
        %3331 = vmatprep.subr.bf16.mxu0 0
        %3332 = vmatpush1.bf16.msra.mxu0 0
        %3333 = vmatprep.subr.bf16.mxu0 0
        %3334 = vmatpush1.bf16.msra.mxu0 0
        %3335 = vmatprep.subr.bf16.mxu0 0
        %3336 = vmatpush1.bf16.msra.mxu0 0
        %3337 = vmatprep.subr.bf16.mxu0 0
        %3338 = vmatpush1.bf16.msra.mxu0 0
        %3339 = vmatprep.subr.bf16.mxu0 0
        %3340 = vmatpush1.bf16.msra.mxu0 0
        %3341 = vmatprep.subr.bf16.mxu0 0
        %3342 = vmatpush1.bf16.msra.mxu0 0
        %3343 = vmatprep.subr.bf16.mxu0 0
        %3344 = vmatpush1.bf16.msra.mxu0 0
        %3345 = vmatprep.subr.bf16.mxu0 0
        %3346 = vmatpush1.bf16.msra.mxu0 0
        %3347 = vmatprep.subr.bf16.mxu0 0
        %3348 = vmatpush1.bf16.msra.mxu0 0
        %3349 = vmatprep.subr.bf16.mxu0 0
        %3350 = vmatpush1.bf16.msra.mxu0 0
        %3351 = vmatprep.subr.bf16.mxu0 0
        %3352 = vmatpush1.bf16.msra.mxu0 0
        %3353 = vmatprep.mubr.bf16.mxu0 0
        %3354 = vmatmul.mubr.bf16.gmra.mrb[0].mxu0 %v3316
        %v3355 = vpop.f32.mrb[0].mxu0
        %v3356 = vadd.f32 0.0, %v3355
        %v3357 = vpop.f32.mrb[0].mxu0
        %v3358 = vpop.f32.mrb[0].mxu0
        %v3359 = vpop.f32.mrb[0].mxu0
        %3360 = vdwg.mxu0
        %3363 = vrot.lane.b32.xlu0 %v2868, 8
        %v3364 = vpop.permute.xlu0 %3363
        %3365 = vrot.lane.b32.xlu0 %v2916, 8
        %v3366 = vpop.permute.xlu0 %3365
        %3371 = vrot.lane.b32.xlu0 %v3088, 16
        %v3372 = vpop.permute.xlu0 %3371
        %3373 = vrot.lane.b32.xlu0 %v3136, 16
        %v3374 = vpop.permute.xlu0 %3373
        %3379 = vrot.lane.b32.xlu0 %v3308, 24
        %v3380 = vpop.permute.xlu0 %3379
        %3381 = vrot.lane.b32.xlu0 %v3356, 24
        %v3382 = vpop.permute.xlu0 %3381
        %v3385 = vsel %vm1318, %v2645, %v3364
        %v3386 = vsel %vm1318, %v2694, %v3366
        %v3387 = vsel %vm2223, %v3385, %v3372
        %v3388 = vsel %vm2223, %v3386, %v3374
        %v3389 = vsel %vm2226, %v3387, %v3380
        %v3390 = vsel %vm2226, %v3388, %v3382
        %v3391 = vpack.c.bf16 %v3390, %v3389
        %v3393 = vlaneseq
        %v3394 = vshrl.u32 %v3393, 7
        %v3395 = vsub.s32 0, %v3394
        %v3396 = vrot.slane %v2478, %v3395
        %v3402 = vunpack.c.l.b16 %v2474
        %v3403 = vunpack.c.l.b16 %v2475
        %v3404 = vunpack.c.l.b16 %v2476
        %v3405 = vunpack.c.l.b16 %v2477
        %v3406 = vpack.c.b16 %v3403, %v3402
        %v3407 = vpack.c.b16 %v3405, %v3404
        %v3411 = vsel %vm1192, %v3391, 0
        %3413 = vmatprep.subr.bf16.mxu0 0
        %3414 = vmatpush1.bf16.msra.mxu0 %v3406
        %3415 = vmatprep.subr.bf16.mxu0 0
        %3416 = vmatpush1.bf16.msra.mxu0 %v3407
        %3417 = vmatprep.subr.bf16.mxu0 0
        %3418 = vmatpush1.bf16.msra.mxu0 0
        %3419 = vmatprep.subr.bf16.mxu0 0
        %3420 = vmatpush1.bf16.msra.mxu0 0
        %3421 = vmatprep.subr.bf16.mxu0 0
        %3422 = vmatpush1.bf16.msra.mxu0 0
        %3423 = vmatprep.subr.bf16.mxu0 0
        %3424 = vmatpush1.bf16.msra.mxu0 0
        %3425 = vmatprep.subr.bf16.mxu0 0
        %3426 = vmatpush1.bf16.msra.mxu0 0
        %3427 = vmatprep.subr.bf16.mxu0 0
        %3428 = vmatpush1.bf16.msra.mxu0 0
        %3429 = vmatprep.subr.bf16.mxu0 0
        %3430 = vmatpush1.bf16.msra.mxu0 0
        %3431 = vmatprep.subr.bf16.mxu0 0
        %3432 = vmatpush1.bf16.msra.mxu0 0
        %3433 = vmatprep.subr.bf16.mxu0 0
        %3434 = vmatpush1.bf16.msra.mxu0 0
        %3435 = vmatprep.subr.bf16.mxu0 0
        %3436 = vmatpush1.bf16.msra.mxu0 0
        %3437 = vmatprep.subr.bf16.mxu0 0
        %3438 = vmatpush1.bf16.msra.mxu0 0
        %3439 = vmatprep.subr.bf16.mxu0 0
        %3440 = vmatpush1.bf16.msra.mxu0 0
        %3441 = vmatprep.subr.bf16.mxu0 0
        %3442 = vmatpush1.bf16.msra.mxu0 0
        %3443 = vmatprep.subr.bf16.mxu0 0
        %3444 = vmatpush1.bf16.msra.mxu0 0
        %3445 = vmatprep.mubr.bf16.mxu0 0
        %3446 = vmatmul.mubr.bf16.gmra.mrb[0].mxu0 %v3411
        %v3447 = vpop.f32.mrb[0].mxu0
        %v3448 = vadd.f32 %v3396, %v3447
        %v3449 = vpop.f32.mrb[0].mxu0
        %v3450 = vpop.f32.mrb[0].mxu0
        %v3451 = vadd.f32 %v3396, %v3450
        %v3452 = vpop.f32.mrb[0].mxu0
        %3453 = vdwg.mxu0
        %v3454 = vadd.f32 %v2292, %v3448
        %v3455 = vadd.f32 %v2293, %v3451
        %v3456 = vld [vmem:[%s1114] sm:$0x1]
        %v3457 = vld [vmem:[%s1117] sm:$0x1]
        %v3458 = vsel %vm1192, %v3454, 0.0
        %3459 = vadd.xlane.f32.xlu0 %v3458
        %v3460 = vpop.xlane.xlu0 %3459
        %v3461 = vsel %vm1192, %v3455, 0.0
        %3462 = vadd.xlane.f32.xlu0 %v3461
        %v3463 = vpop.xlane.xlu0 %3462
        %v3464 = vmul.f32 %v3460, %v1199
        %v3465 = vmul.f32 %v3463, %v1199
        %v3466 = vsub.f32 %v3454, %v3464
        %v3467 = vsub.f32 %v3455, %v3465
        %v3468 = vmul.f32 %v3466, %v3466
        %v3469 = vmul.f32 %v3467, %v3467
        %v3470 = vsel %vm1192, %v3468, 0.0
        %3471 = vadd.xlane.f32.xlu0 %v3470
        %v3472 = vpop.xlane.xlu0 %3471
        %v3473 = vsel %vm1192, %v3469, 0.0
        %3474 = vadd.xlane.f32.xlu0 %v3473
        %v3475 = vpop.xlane.xlu0 %3474
        %v3476 = vmul.f32 %v3472, %v1199
        %v3477 = vmul.f32 %v3475, %v1199
        %v3478 = vadd.f32 %v3476, 1e-06
        %v3479 = vadd.f32 %v3477, 1e-06
        %v3480 = vrsqrt.pop %v3478
        %v3481 = vrsqrt.pop %v3479
        %v3482 = vmul.f32 %v3466, %v3480
        %v3483 = vmul.f32 %v3467, %v3481
        %v3485 = vlaneseq
        %v3486 = vshrl.u32 %v3485, 7
        %v3487 = vsub.s32 0, %v3486
        %v3488 = vrot.slane %v3456, %v3487
        %v3490 = vmul.f32 %v3482, %v3488
        %v3491 = vmul.f32 %v3483, %v3488
        %v3493 = vlaneseq
        %v3494 = vshrl.u32 %v3493, 7
        %v3495 = vsub.s32 0, %v3494
        %v3496 = vrot.slane %v3457, %v3495
        %v3498 = vadd.f32 %v3490, %v3496
        %v3499 = vadd.f32 %v3491, %v3496
        %v3500 = vld [vmem:[%s1122] sm:$0xf]
        %v3501 = vld [vmem:[%s1122 + $0x4] sm:$0xf]
        %v3502 = vld [vmem:[%s1122 + $0x8] sm:$0xf]
        %v3503 = vld [vmem:[%s1122 + $0xc] sm:$0xf]
        %v3504 = vpack.c.bf16 %v3499, %v3498
        %v3505 = vld [vmem:[%s1125] sm:$0x1]
        %v3507 = vlaneseq
        %v3508 = vshrl.u32 %v3507, 7
        %v3509 = vsub.s32 0, %v3508
        %v3510 = vrot.slane %v3505, %v3509
        %v3516 = vunpack.c.l.b16 %v3500
        %v3517 = vunpack.c.l.b16 %v3501
        %v3518 = vunpack.c.l.b16 %v3502
        %v3519 = vunpack.c.l.b16 %v3503
        %v3520 = vpack.c.b16 %v3517, %v3516
        %v3521 = vpack.c.b16 %v3519, %v3518
        %v3525 = vsel %vm1192, %v3504, 0
        %3527 = vmatprep.subr.bf16.mxu0 0
        %3528 = vmatpush1.bf16.msra.mxu0 %v3520
        %3529 = vmatprep.subr.bf16.mxu0 0
        %3530 = vmatpush1.bf16.msra.mxu0 %v3521
        %3531 = vmatprep.subr.bf16.mxu0 0
        %3532 = vmatpush1.bf16.msra.mxu0 0
        %3533 = vmatprep.subr.bf16.mxu0 0
        %3534 = vmatpush1.bf16.msra.mxu0 0
        %3535 = vmatprep.subr.bf16.mxu0 0
        %3536 = vmatpush1.bf16.msra.mxu0 0
        %3537 = vmatprep.subr.bf16.mxu0 0
        %3538 = vmatpush1.bf16.msra.mxu0 0
        %3539 = vmatprep.subr.bf16.mxu0 0
        %3540 = vmatpush1.bf16.msra.mxu0 0
        %3541 = vmatprep.subr.bf16.mxu0 0
        %3542 = vmatpush1.bf16.msra.mxu0 0
        %3543 = vmatprep.subr.bf16.mxu0 0
        %3544 = vmatpush1.bf16.msra.mxu0 0
        %3545 = vmatprep.subr.bf16.mxu0 0
        %3546 = vmatpush1.bf16.msra.mxu0 0
        %3547 = vmatprep.subr.bf16.mxu0 0
        %3548 = vmatpush1.bf16.msra.mxu0 0
        %3549 = vmatprep.subr.bf16.mxu0 0
        %3550 = vmatpush1.bf16.msra.mxu0 0
        %3551 = vmatprep.subr.bf16.mxu0 0
        %3552 = vmatpush1.bf16.msra.mxu0 0
        %3553 = vmatprep.subr.bf16.mxu0 0
        %3554 = vmatpush1.bf16.msra.mxu0 0
        %3555 = vmatprep.subr.bf16.mxu0 0
        %3556 = vmatpush1.bf16.msra.mxu0 0
        %3557 = vmatprep.subr.bf16.mxu0 0
        %3558 = vmatpush1.bf16.msra.mxu0 0
        %3559 = vmatprep.mubr.bf16.mxu0 0
        %3560 = vmatmul.mubr.bf16.gmra.mrb[0].mxu0 %v3525
        %v3561 = vpop.f32.mrb[0].mxu0
        %v3562 = vadd.f32 %v3510, %v3561
        %v3563 = vpop.f32.mrb[0].mxu0
        %v3564 = vpop.f32.mrb[0].mxu0
        %v3565 = vadd.f32 %v3510, %v3564
        %v3566 = vpop.f32.mrb[0].mxu0
        %3567 = vdwg.mxu0
        %v3568 = vmax.f32 %v3562, 0.0
        %v3569 = vmax.f32 %v3565, 0.0
        %v3570 = vld [vmem:[%s1130] sm:$0xf]
        %v3571 = vld [vmem:[%s1130 + $0x4] sm:$0xf]
        %v3572 = vld [vmem:[%s1130 + $0x8] sm:$0xf]
        %v3573 = vld [vmem:[%s1130 + $0xc] sm:$0xf]
        %v3574 = vld [vmem:[%s1130 + $0x10] sm:$0xf]
        %v3575 = vld [vmem:[%s1130 + $0x14] sm:$0xf]
        %v3576 = vld [vmem:[%s1130 + $0x18] sm:$0xf]
        %v3577 = vld [vmem:[%s1130 + $0x1c] sm:$0xf]
        %v3578 = vpack.c.bf16 %v3569, %v3568
        %v3579 = vld [vmem:[%s1133] sm:$0x1]
        %v3581 = vlaneseq
        %v3582 = vshrl.u32 %v3581, 7
        %v3583 = vsub.s32 0, %v3582
        %v3584 = vrot.slane %v3579, %v3583
        %v3594 = vunpack.c.l.b16 %v3570
        %v3595 = vunpack.c.l.b16 %v3571
        %v3596 = vunpack.c.l.b16 %v3572
        %v3597 = vunpack.c.l.b16 %v3573
        %v3598 = vunpack.c.l.b16 %v3574
        %v3599 = vunpack.c.l.b16 %v3575
        %v3600 = vunpack.c.l.b16 %v3576
        %v3601 = vunpack.c.l.b16 %v3577
        %v3602 = vpack.c.b16 %v3595, %v3594
        %v3603 = vpack.c.b16 %v3597, %v3596
        %v3604 = vpack.c.b16 %v3599, %v3598
        %v3605 = vpack.c.b16 %v3601, %v3600
        %vm3610 = vcmask 523264
        %v3612 = vsel %vm3610, %v3578, 0
        %3614 = vmatprep.subr.bf16.mxu0 0
        %3615 = vmatpush1.bf16.msra.mxu0 %v3602
        %3616 = vmatprep.subr.bf16.mxu0 0
        %3617 = vmatpush1.bf16.msra.mxu0 %v3603
        %3618 = vmatprep.subr.bf16.mxu0 0
        %3619 = vmatpush1.bf16.msra.mxu0 %v3604
        %3620 = vmatprep.subr.bf16.mxu0 0
        %3621 = vmatpush1.bf16.msra.mxu0 %v3605
        %3622 = vmatprep.subr.bf16.mxu0 0
        %3623 = vmatpush1.bf16.msra.mxu0 0
        %3624 = vmatprep.subr.bf16.mxu0 0
        %3625 = vmatpush1.bf16.msra.mxu0 0
        %3626 = vmatprep.subr.bf16.mxu0 0
        %3627 = vmatpush1.bf16.msra.mxu0 0
        %3628 = vmatprep.subr.bf16.mxu0 0
        %3629 = vmatpush1.bf16.msra.mxu0 0
        %3630 = vmatprep.subr.bf16.mxu0 0
        %3631 = vmatpush1.bf16.msra.mxu0 0
        %3632 = vmatprep.subr.bf16.mxu0 0
        %3633 = vmatpush1.bf16.msra.mxu0 0
        %3634 = vmatprep.subr.bf16.mxu0 0
        %3635 = vmatpush1.bf16.msra.mxu0 0
        %3636 = vmatprep.subr.bf16.mxu0 0
        %3637 = vmatpush1.bf16.msra.mxu0 0
        %3638 = vmatprep.subr.bf16.mxu0 0
        %3639 = vmatpush1.bf16.msra.mxu0 0
        %3640 = vmatprep.subr.bf16.mxu0 0
        %3641 = vmatpush1.bf16.msra.mxu0 0
        %3642 = vmatprep.subr.bf16.mxu0 0
        %3643 = vmatpush1.bf16.msra.mxu0 0
        %3644 = vmatprep.subr.bf16.mxu0 0
        %3645 = vmatpush1.bf16.msra.mxu0 0
        %3646 = vmatprep.mubr.bf16.mxu0 0
        %3647 = vmatmul.mubr.bf16.gmra.mrb[0].mxu0 %v3612
        %v3648 = vpop.f32.mrb[0].mxu0
        %v3649 = vadd.f32 %v3584, %v3648
        %v3650 = vpop.f32.mrb[0].mxu0
        %v3651 = vpop.f32.mrb[0].mxu0
        %v3652 = vadd.f32 %v3584, %v3651
        %v3653 = vpop.f32.mrb[0].mxu0
        %3654 = vdwg.mxu0
        %v3655 = vadd.f32 %v3454, %v3649
        %v3656 = vadd.f32 %v3455, %v3652
        %3657 = vst.msk [vmem:[#allocation2] sm:$0xff] %vm1192, %v3655
        %3658 = vst.msk [vmem:[#allocation2 + $0x8] sm:$0xff] %vm1192, %v3656
        %p3659 = scmp.eq.s32.totalorder %s40, 1
        // Predicated region
        $region137: #{encoder_decoder_forward.3} parent=131 // pred_check
          %p3660 = pneg %p3659
        $region138: #{encoder_decoder_forward.3} parent=131 // pred_check_branch
          %3662 = sbr.rel (%p3660) target = $region140
        $region139: #{encoder_decoder_forward.3} parent=131 // pred_region
          %v3663 = vld [vmem:[%s24] sm:$0x1]
          %v3664 = vld [vmem:[%s25] sm:$0x1]
          %v3665 = vsel %vm1192, %v3655, 0.0
          %3666 = vadd.xlane.f32.xlu0 %v3665
          %v3667 = vpop.xlane.xlu0 %3666
          %v3668 = vsel %vm1192, %v3656, 0.0
          %3669 = vadd.xlane.f32.xlu0 %v3668
          %v3670 = vpop.xlane.xlu0 %3669
          %v3671 = vmul.f32 %v3667, %v1199
          %v3672 = vmul.f32 %v3670, %v1199
          %v3673 = vsub.f32 %v3655, %v3671
          %v3674 = vsub.f32 %v3656, %v3672
          %v3675 = vmul.f32 %v3673, %v3673
          %v3676 = vmul.f32 %v3674, %v3674
          %v3677 = vsel %vm1192, %v3675, 0.0
          %3678 = vadd.xlane.f32.xlu0 %v3677
          %v3679 = vpop.xlane.xlu0 %3678
          %v3680 = vsel %vm1192, %v3676, 0.0
          %3681 = vadd.xlane.f32.xlu0 %v3680
          %v3682 = vpop.xlane.xlu0 %3681
          %v3683 = vmul.f32 %v3679, %v1199
          %v3684 = vmul.f32 %v3682, %v1199
          %v3685 = vadd.f32 %v3683, 1e-06
          %v3686 = vadd.f32 %v3684, 1e-06
          %v3687 = vrsqrt.pop %v3685
          %v3688 = vrsqrt.pop %v3686
          %v3689 = vmul.f32 %v3673, %v3687
          %v3690 = vmul.f32 %v3674, %v3688
          %v3692 = vlaneseq
          %v3693 = vshrl.u32 %v3692, 7
          %v3694 = vsub.s32 0, %v3693
          %v3695 = vrot.slane %v3663, %v3694
          %v3697 = vmul.f32 %v3689, %v3695
          %v3698 = vmul.f32 %v3690, %v3695
          %v3700 = vlaneseq
          %v3701 = vshrl.u32 %v3700, 7
          %v3702 = vsub.s32 0, %v3701
          %v3703 = vrot.slane %v3664, %v3702
          %v3705 = vadd.f32 %v3697, %v3703
          %v3706 = vadd.f32 %v3698, %v3703
          %v3707 = vld [vmem:[%s26] sm:$0xf]
          %v3708 = vld [vmem:[%s26 + $0x4] sm:$0xf]
          %v3709 = vld [vmem:[%s26 + $0x8] sm:$0xf]
          %v3710 = vld [vmem:[%s26 + $0xc] sm:$0xf]
          %v3711 = vpack.c.bf16 %v3706, %v3705
          %v3712 = vld [vmem:[%s27] sm:$0x1]
          %v3714 = vlaneseq
          %v3715 = vshrl.u32 %v3714, 7
          %v3716 = vsub.s32 0, %v3715
          %v3717 = vrot.slane %v3712, %v3716
          %v3723 = vunpack.c.l.b16 %v3707
          %v3724 = vunpack.c.l.b16 %v3708
          %v3725 = vunpack.c.l.b16 %v3709
          %v3726 = vunpack.c.l.b16 %v3710
          %v3727 = vpack.c.b16 %v3724, %v3723
          %v3728 = vpack.c.b16 %v3726, %v3725
          %v3732 = vsel %vm1192, %v3711, 0
          %3734 = vmatprep.subr.bf16.mxu0 0
          %3735 = vmatpush1.bf16.msra.mxu0 %v3727
          %3736 = vmatprep.subr.bf16.mxu0 0
          %3737 = vmatpush1.bf16.msra.mxu0 %v3728
          %3738 = vmatprep.subr.bf16.mxu0 0
          %3739 = vmatpush1.bf16.msra.mxu0 0
          %3740 = vmatprep.subr.bf16.mxu0 0
          %3741 = vmatpush1.bf16.msra.mxu0 0
          %3742 = vmatprep.subr.bf16.mxu0 0
          %3743 = vmatpush1.bf16.msra.mxu0 0
          %3744 = vmatprep.subr.bf16.mxu0 0
          %3745 = vmatpush1.bf16.msra.mxu0 0
          %3746 = vmatprep.subr.bf16.mxu0 0
          %3747 = vmatpush1.bf16.msra.mxu0 0
          %3748 = vmatprep.subr.bf16.mxu0 0
          %3749 = vmatpush1.bf16.msra.mxu0 0
          %3750 = vmatprep.subr.bf16.mxu0 0
          %3751 = vmatpush1.bf16.msra.mxu0 0
          %3752 = vmatprep.subr.bf16.mxu0 0
          %3753 = vmatpush1.bf16.msra.mxu0 0
          %3754 = vmatprep.subr.bf16.mxu0 0
          %3755 = vmatpush1.bf16.msra.mxu0 0
          %3756 = vmatprep.subr.bf16.mxu0 0
          %3757 = vmatpush1.bf16.msra.mxu0 0
          %3758 = vmatprep.subr.bf16.mxu0 0
          %3759 = vmatpush1.bf16.msra.mxu0 0
          %3760 = vmatprep.subr.bf16.mxu0 0
          %3761 = vmatpush1.bf16.msra.mxu0 0
          %3762 = vmatprep.subr.bf16.mxu0 0
          %3763 = vmatpush1.bf16.msra.mxu0 0
          %3764 = vmatprep.subr.bf16.mxu0 0
          %3765 = vmatpush1.bf16.msra.mxu0 0
          %3766 = vmatprep.mubr.bf16.mxu0 0
          %3767 = vmatmul.mubr.bf16.gmra.mrb[0].mxu0 %v3732
          %v3768 = vpop.f32.mrb[0].mxu0
          %v3769 = vadd.f32 %v3717, %v3768
          %v3770 = vpop.f32.mrb[0].mxu0
          %v3771 = vpop.f32.mrb[0].mxu0
          %v3772 = vadd.f32 %v3717, %v3771
          %v3773 = vpop.f32.mrb[0].mxu0
          %3774 = vdwg.mxu0
          %3775 = vmax.xlane.f32.xlu0 %v3769
          %v3776 = vpop.xlane.xlu0 %3775
          %3777 = vmax.xlane.f32.xlu0 %v3772
          %v3778 = vpop.xlane.xlu0 %3777
          %v3779 = vsub.f32 %v3769, %v3776
          %v3780 = vsub.f32 %v3772, %v3778
          %v3781 = vmul.f32 %v3779, 1.442695
          %v3782 = vpow.pop %v3781
          %v3783 = vmul.f32 %v3780, 1.442695
          %v3784 = vpow.pop %v3783
          %3785 = vadd.xlane.f32.xlu0 %v3782
          %v3786 = vpop.xlane.xlu0 %3785
          %3787 = vadd.xlane.f32.xlu0 %v3784
          %v3788 = vpop.xlane.xlu0 %3787
          %v3789 = vlog2.pop %v3786
          %v3790 = vmul.f32 %v3789, 0.6931472
          %v3791 = vlog2.pop %v3788
          %v3792 = vmul.f32 %v3791, 0.6931472
          %v3793 = vsub.f32 %v3779, %v3790
          %v3794 = vsub.f32 %v3780, %v3792
          %3795 = vst [vmem:[#allocation3] sm:$0xff] %v3793
          %3796 = vst [vmem:[#allocation3 + $0x8] sm:$0xff] %v3794
        $region140: #{encoder_decoder_forward.3} parent=131 // pred_fallthru
          _
        // Predicated region
        $region141: #{encoder_decoder_forward.3} parent=131 // pred_check
          %p3797 = pneg %p741
        $region142: #{encoder_decoder_forward.3} parent=131 // pred_check_branch
          %3799 = sbr.rel (%p3797) target = $region144
        $region143: #{encoder_decoder_forward.3} parent=131 // pred_region
          %s3801 = ssub.s32 256, 256
          %3802 = vsyncadd [#allocation4], %s3801
          %s3803 = sshll.u32 [#allocation3], 4
          %s3804 = int_to_ptr.vmem [resolvable:$true] %s3803
          %3809 = dma.vmem_to_hbm [thread:$0]  %s3804, 256, %s28, [#allocation4], 128, 128, 8
        $region144: #{encoder_decoder_forward.3} parent=131 // pred_fallthru
          _
        // Predicated region
        $region145: #{encoder_decoder_forward.3} parent=131 // pred_check
          %p3810 = pneg %p741
        $region146: #{encoder_decoder_forward.3} parent=131 // pred_check_branch
          %3812 = sbr.rel (%p3810) target = $region148
        $region147: #{encoder_decoder_forward.3} parent=131 // pred_region
          %3813 = dma.done [#allocation4], 256
        $region148: #{encoder_decoder_forward.3} parent=131 // pred_fallthru
          _
      $region132: #{encoder_decoder_forward.3} parent=5 // pred_fallthru
        _
      %p3814 = scmp.le.s32.totalorder 2, %s35
      // Predicated region
      $region149: #{encoder_decoder_forward.3} parent=5 // pred_check
        %p3815 = pneg %p3814
      $region150: #{encoder_decoder_forward.3} parent=5 // pred_check_branch
        %3817 = sbr.rel (%p3815) target = $region152
      $region151: #{encoder_decoder_forward.3} parent=5 // pred_region
        %s3818 = ssub.s32 %s35, 2
      $region152: #{encoder_decoder_forward.3} parent=5 // pred_fallthru
        _
    $region6: #{encoder_decoder_forward.3} parent=1 // loop_footer
      %s39 = sadd.s32 1, %s35
    $region7: #{encoder_decoder_forward.3} parent=1 // loop_footer_branch
      %34 = sbr.rel target = $region3
    $region8: #{encoder_decoder_forward.3} parent=1 // loop_exit
      _
    %3819 = vsyncpa [#allocation4], 1
    %s3820 = scalar_lea.sflag [#allocation4], 1
    %3821 = vsyncpa %s3820, 1

</llo_original>
